<compile_context>
chip_gen: v7x
topology: tpu7x:2x2x1
jax: 0.10.0
libtpu: 0.0.40
codegen_flags: <defaults>
</compile_context>

<pallas_src>
import jax
import jax.numpy as jnp
import numpy as np
from jax.experimental import pallas as pl
from jax.experimental.pallas import tpu as pltpu

VOCAB    = 128
EMB_DIM  = 128
CONV_OUT = 256
KSIZE    = 4
PAD      = 2
POOL     = 4
HIDDEN   = 512
FC1_OUT  = 256


# ----------------------------------------------------------------------------
# Fused kernel: embed + conv1d + ReLU + maxpool + LSTM + fused fc head + sigmoid
# ----------------------------------------------------------------------------
def fused_kernel(tok_ref, emb_ref, wconv_ref, bconv_ref, wih_ref, whh_ref,
                 blstm_ref, whead_ref, bhead_ref, out_ref):
    # tok_ref  : (Bb, L, 1)                 int32
    # emb_ref  : (VOCAB, EMB_DIM)           bf16
    # wconv_ref: (KSIZE*EMB_DIM, CONV_OUT)  bf16   (k-major rows)
    # bconv_ref: (1, CONV_OUT)              f32
    # wih_ref  : (CONV_OUT, 4*HIDDEN)       bf16
    # whh_ref  : (HIDDEN, 4*HIDDEN)         bf16
    # blstm_ref: (1, 4*HIDDEN)              f32    (b_ih + b_hh)
    # whead_ref: (1, HIDDEN)                f32    (w_fc2 @ w_fc1)
    # bhead_ref: (1, 1)                     f32    (w_fc2 @ b_fc1 + b_fc2)
    # out_ref  : (Bb, 1)                    f32
    Bb, L, _ = tok_ref.shape
    T = (L + 2 * PAD - KSIZE + 1 - POOL) // POOL + 1   # LSTM timesteps (4 for L=16)
    l_use = T * POOL                                   # conv rows the pool reads (16)

    # ---- embedding gather as one one-hot MXU matmul --------------------------
    tok = tok_ref[...]                                                  # (Bb, L, 1)
    vocab_iota = jax.lax.broadcasted_iota(jnp.int32, (Bb, L, VOCAB), 2)
    onehot = jnp.where(vocab_iota == tok, 1.0, 0.0)                     # (Bb, L, 128) f32
    emb = jnp.dot(onehot.reshape(Bb * L, VOCAB).astype(jnp.bfloat16),
                  emb_ref[...], preferred_element_type=jnp.float32)     # (Bb*L, 128)
    emb = emb.reshape(Bb, L, EMB_DIM)

    # ---- Conv1d(k=4, pad=2) as ONE matmul: batched im2col --------------------
    zpad = jnp.zeros((Bb, PAD, EMB_DIM), jnp.float32)
    embp = jnp.concatenate([zpad, emb, zpad], axis=1)                   # (Bb, L+2P, 128)
    xcat = jnp.concatenate([embp[:, k:k + l_use, :] for k in range(KSIZE)],
                           axis=-1)                                     # (Bb, 16, 512)
    xcat = xcat.reshape(Bb * l_use, KSIZE * EMB_DIM)                    # aligned merge
    conv = jnp.dot(xcat.astype(jnp.bfloat16), wconv_ref[...],
                   preferred_element_type=jnp.float32)                  # (Bb*16, 256)
    conv = jnp.maximum(conv + bconv_ref[...], 0.0)                      # bias + ReLU

    # ---- MaxPool1d(4, 4), emitted directly in TIME-major order ---------------
    conv3 = conv.reshape(Bb, l_use, CONV_OUT)                           # (Bb, 16, 256)
    pooled_tm = jnp.concatenate(
        [jnp.max(conv3[:, t * POOL:(t + 1) * POOL, :], axis=1) for t in range(T)],
        axis=0)                                                         # (T*Bb, 256)

    # ---- LSTM: input projection for ALL timesteps hoisted into one matmul ----
    xg = jnp.dot(pooled_tm.astype(jnp.bfloat16), wih_ref[...],
                 preferred_element_type=jnp.float32) + blstm_ref[...]   # (T*Bb, 4H)
    xg = xg.reshape(T, Bb, 4 * HIDDEN)                                  # index by time

    whh = whh_ref[...]                                                  # (H, 4H) bf16
    h = jnp.zeros((Bb, HIDDEN), jnp.float32)
    c = jnp.zeros((Bb, HIDDEN), jnp.float32)
    for t in range(T):                                   # T=4 static -> unrolled
        gates = xg[t] + jnp.dot(h.astype(jnp.bfloat16), whh,
                                preferred_element_type=jnp.float32)     # (Bb, 4H)
        i = jax.nn.sigmoid(gates[:, 0 * HIDDEN:1 * HIDDEN])
        f = jax.nn.sigmoid(gates[:, 1 * HIDDEN:2 * HIDDEN])
        g = jnp.tanh(gates[:, 2 * HIDDEN:3 * HIDDEN])
        o = jax.nn.sigmoid(gates[:, 3 * HIDDEN:4 * HIDDEN])
        c = f * c + i * g                                # gate math stays f32 (v5e-safe)
        h = o * jnp.tanh(c)

    # ---- head: fc1 -> dropout(identity) -> fc2 fused into one reduction ------
    # TODO(synk): nn.Dropout(0.1) is identity here (inference / eval semantics).
    y = jnp.sum(h * whead_ref[...], axis=-1, keepdims=True) + bhead_ref[...]
    out_ref[...] = jax.nn.sigmoid(y)                                    # (Bb, 1)


# ----------------------------------------------------------------------------
# One-time weight prep (transposes / fusions / bf16 casts happen ONCE).
# ----------------------------------------------------------------------------
def prepare_params(p):
    w_conv = jnp.transpose(p["w_conv"], (2, 1, 0)).reshape(KSIZE * EMB_DIM, CONV_OUT)
    # fc2(dropout(fc1(h))) == h @ (W2 W1)^T + (W2 b1 + b2)   (dropout is identity)
    w_head = (p["w_fc2"] @ p["w_fc1"]).reshape(1, HIDDEN)
    b_head = (p["w_fc2"] @ p["b_fc1"] + p["b_fc2"]).reshape(1, 1)
    return {
        "emb":    p["emb"].astype(jnp.bfloat16),          # (128, 128) gather table
        "w_conv": w_conv.astype(jnp.bfloat16),             # (512, 256), k-major rows
        "b_conv": p["b_conv"].reshape(1, CONV_OUT),
        "w_ih":   p["w_ih"].T.astype(jnp.bfloat16),        # (256, 2048)
        "w_hh":   p["w_hh"].T.astype(jnp.bfloat16),        # (512, 2048)
        "b_lstm": (p["b_ih"] + p["b_hh"]).reshape(1, 4 * HIDDEN),
        "w_head": w_head,                                  # (1, 512) f32
        "b_head": b_head,                                  # (1, 1)   f32
    }


def _pick_b_blk(B):
    """Batch block: fill MXU rows (up to 128), keep >=2 grid steps when the
    batch allows (v7x has 2 TensorCores), stay a divisor of B and a multiple of 8."""
    if B <= 8:
        return B
    assert B % 8 == 0, "pad batch to a multiple of 8 for B > 8"
    blk = min(128, max(8, (B // 2) // 8 * 8))
    while B % blk:
        blk -= 8
    return blk


def fused_forward(tokens, prep):
    B, L = tokens.shape
    b_blk = _pick_b_blk(B)
    nb = B // b_blk
    # Live set at b_blk=128: emb/xcat/conv/xg intermediates ~12 MiB + weights
    # ~3.3 MiB bf16 (x2 buffering). Fits 48 MiB on v7x (64 MiB physical VMEM).
    vmem_limit = (48 if b_blk > 32 else 32) * 1024 * 1024
    tok3 = tokens[:, :, None]                              # (B, L, 1) int32
    return pl.pallas_call(
        fused_kernel,
        out_shape=jax.ShapeDtypeStruct((B, 1), jnp.float32),
        grid=(nb,),
        in_specs=[
            pl.BlockSpec((b_blk, L, 1), lambda i: (i, 0, 0)),              # tokens
            pl.BlockSpec((VOCAB, EMB_DIM), lambda i: (0, 0)),              # emb table
            pl.BlockSpec((KSIZE * EMB_DIM, CONV_OUT), lambda i: (0, 0)),   # w_conv
            pl.BlockSpec((1, CONV_OUT), lambda i: (0, 0)),                 # b_conv
            pl.BlockSpec((CONV_OUT, 4 * HIDDEN), lambda i: (0, 0)),        # w_ih
            pl.BlockSpec((HIDDEN, 4 * HIDDEN), lambda i: (0, 0)),          # w_hh
            pl.BlockSpec((1, 4 * HIDDEN), lambda i: (0, 0)),               # b_lstm
            pl.BlockSpec((1, HIDDEN), lambda i: (0, 0)),                   # w_head
            pl.BlockSpec((1, 1), lambda i: (0, 0)),                        # b_head
        ],
        out_specs=pl.BlockSpec((b_blk, 1), lambda i: (i, 0)),
        compiler_params=pltpu.CompilerParams(
            dimension_semantics=("parallel",),   # batch blocks shard over TCs (v7x)
            vmem_limit_bytes=vmem_limit,
        ),
    )(tok3, prep["emb"], prep["w_conv"], prep["b_conv"], prep["w_ih"],
      prep["w_hh"], prep["b_lstm"], prep["w_head"], prep["b_head"])


@jax.jit
def forward(tokens, prep):
    return fused_forward(tokens, prep)[:, 0]               # squeeze -> (B,)


# ----------------------------------------------------------------------------
# Pure-JAX f32 reference (mirrors PyTorch semantics, unfused head).
# ----------------------------------------------------------------------------
def reference_forward(tokens, p):
    x = p["emb"][tokens]
    x = jnp.pad(x, ((0, 0), (PAD, PAD), (0, 0)))
    B, Lp, _ = x.shape
    l_conv = Lp - KSIZE + 1
    conv = jnp.zeros((B, l_conv, CONV_OUT), jnp.float32)
    for k in range(KSIZE):
        conv = conv + jnp.einsum("blc,co->blo", x[:, k:k + l_conv, :],
                                 p["w_conv"][:, :, k].T)
    conv = jax.nn.relu(conv + p["b_conv"])
    l_pool = (l_conv - POOL) // POOL + 1
    pooled = jnp.max(conv[:, :l_pool * POOL, :].reshape(B, l_pool, POOL, CONV_OUT), axis=2)
    h = jnp.zeros((B, HIDDEN), jnp.float32)
    c = jnp.zeros((B, HIDDEN), jnp.float32)
    for t in range(l_pool):
        gates = (pooled[:, t, :] @ p["w_ih"].T + h @ p["w_hh"].T
                 + p["b_ih"] + p["b_hh"])
        i, f, g, o = jnp.split(gates, 4, axis=1)
        c = jax.nn.sigmoid(f) * c + jax.nn.sigmoid(i) * jnp.tanh(g)
        h = jax.nn.sigmoid(o) * jnp.tanh(c)
    y = h @ p["w_fc1"].T + p["b_fc1"]
    y = jax.nn.sigmoid(y @ p["w_fc2"].T + p["b_fc2"])
    return y[:, 0]


if __name__ == "__main__":
    B, L = 2, 16                       # small: batch=2, token sequence length=16

    key = jax.random.PRNGKey(0)
    ks = jax.random.split(key, 12)
    s = 0.05
    params = {
        "emb":    jax.random.normal(ks[0], (VOCAB, EMB_DIM), jnp.float32) * s,
        "w_conv": jax.random.normal(ks[1], (CONV_OUT, EMB_DIM, KSIZE), jnp.float32) * s,
        "b_conv": jax.random.normal(ks[2], (CONV_OUT,), jnp.float32) * s,
        "w_ih":   jax.random.normal(ks[3], (4 * HIDDEN, CONV_OUT), jnp.float32) * s,
        "w_hh":   jax.random.normal(ks[4], (4 * HIDDEN, HIDDEN), jnp.float32) * s,
        "b_ih":   jax.random.normal(ks[5], (4 * HIDDEN,), jnp.float32) * s,
        "b_hh":   jax.random.normal(ks[6], (4 * HIDDEN,), jnp.float32) * s,
        "w_fc1":  jax.random.normal(ks[7], (FC1_OUT, HIDDEN), jnp.float32) * s,
        "b_fc1":  jax.random.normal(ks[8], (FC1_OUT,), jnp.float32) * s,
        "w_fc2":  jax.random.normal(ks[9], (1, FC1_OUT), jnp.float32) * s,
        "b_fc2":  jax.random.normal(ks[10], (1,), jnp.float32) * s,
    }
    tokens = jax.random.randint(ks[11], (B, L), 0, VOCAB, dtype=jnp.int32)

    prep = prepare_params(params)               # one-time layout/bf16/fusion prep
    out = jax.block_until_ready(forward(tokens, prep))
    ref = jax.block_until_ready(reference_forward(tokens, params))

    assert out.shape == (B,), out.shape
    # bf16 emb table + bf16 matmul operands (f32 accumulation) vs f32 reference
    # -> loose-ish tolerance is intentional.
    np.testing.assert_allclose(np.asarray(out), np.asarray(ref), rtol=1e-2, atol=1e-2)
    print("KERNEL_OK")
</pallas_src>

<mosaic_0001>
module attributes {stable_mosaic.version = 11 : i64} {
  func.func @fused_kernel(%arg0: i32, %arg1: memref<2x16x1xi32, #tpu.memory_space<vmem>>, %arg2: memref<128x128xbf16, #tpu.memory_space<vmem>>, %arg3: memref<512x256xbf16, #tpu.memory_space<vmem>>, %arg4: memref<1x256xf32, #tpu.memory_space<vmem>>, %arg5: memref<256x2048xbf16, #tpu.memory_space<vmem>>, %arg6: memref<512x2048xbf16, #tpu.memory_space<vmem>>, %arg7: memref<1x2048xf32, #tpu.memory_space<vmem>>, %arg8: memref<1x512xf32, #tpu.memory_space<vmem>>, %arg9: memref<1x1xf32, #tpu.memory_space<vmem>>, %arg10: memref<2x1xf32, #tpu.memory_space<vmem>>) attributes {dimension_semantics = [#tpu.dimension_semantics<parallel>], iteration_bounds = array<i64: 1>, scalar_prefetch = 0 : i64, scratch_operands = 0 : i64, tpu.core_type = #tpu.core_type<tc>, window_params = [{transform_indices = @transform_0, window_bounds = array<i64: 2, 16, 1>}, {pipeline_mode = #tpu.pipeline_mode<synchronous>, transform_indices = @transform_1, window_bounds = array<i64: 128, 128>}, {pipeline_mode = #tpu.pipeline_mode<synchronous>, transform_indices = @transform_2, window_bounds = array<i64: 512, 256>}, {pipeline_mode = #tpu.pipeline_mode<synchronous>, transform_indices = @transform_3, window_bounds = array<i64: 1, 256>}, {pipeline_mode = #tpu.pipeline_mode<synchronous>, transform_indices = @transform_4, window_bounds = array<i64: 256, 2048>}, {pipeline_mode = #tpu.pipeline_mode<synchronous>, transform_indices = @transform_5, window_bounds = array<i64: 512, 2048>}, {pipeline_mode = #tpu.pipeline_mode<synchronous>, transform_indices = @transform_6, window_bounds = array<i64: 1, 2048>}, {pipeline_mode = #tpu.pipeline_mode<synchronous>, transform_indices = @transform_7, window_bounds = array<i64: 1, 512>}, {pipeline_mode = #tpu.pipeline_mode<synchronous>, transform_indices = @transform_8, window_bounds = array<i64: 1, 1>}, {transform_indices = @transform_9, window_bounds = array<i64: 2, 1>}]} {
    %c0 = arith.constant 0 : index
    %c0_0 = arith.constant 0 : index
    %c0_1 = arith.constant 0 : index
    %0 = vector.load %arg1[%c0, %c0_0, %c0_1] : memref<2x16x1xi32, #tpu.memory_space<vmem>>, vector<2x16x1xi32>
    %1 = tpu.iota {dimensions = array<i32: 2>} : vector<2x16x128xi32>
    %2 = vector.broadcast %0 : vector<2x16x1xi32> to vector<2x16x128xi32>
    %3 = arith.cmpi eq, %1, %2 : vector<2x16x128xi32>
    %cst = arith.constant 1.000000e+00 : f32
    %cst_2 = arith.constant 0.000000e+00 : f32
    %4 = vector.broadcast %cst : f32 to vector<2x16x128xf32>
    %5 = vector.broadcast %cst_2 : f32 to vector<2x16x128xf32>
    %6 = arith.select %3, %4, %5 : vector<2x16x128xi1>, vector<2x16x128xf32>
    %7 = vector.shape_cast %6 : vector<2x16x128xf32> to vector<32x128xf32>
    %8 = arith.truncf %7 : vector<32x128xf32> to vector<32x128xbf16>
    %c0_3 = arith.constant 0 : index
    %c0_4 = arith.constant 0 : index
    %9 = vector.load %arg2[%c0_3, %c0_4] : memref<128x128xbf16, #tpu.memory_space<vmem>>, vector<128x128xbf16>
    %cst_5 = arith.constant dense<0.000000e+00> : vector<32x128xf32>
    %10 = tpu.matmul %8, %9, %cst_5 {dimension_numbers = #tpu.dot_dimension_numbers<[1], [0], [0], [1], [0, 0, 1, 1], [], []>} : vector<32x128xbf16>, vector<128x128xbf16>, vector<32x128xf32> -> vector<32x128xf32>
    %11 = vector.shape_cast %10 : vector<32x128xf32> to vector<2x16x128xf32>
    %cst_6 = arith.constant 0.000000e+00 : f32
    %12 = vector.broadcast %cst_6 : f32 to vector<2x2x128xf32>
    %13 = tpu.concatenate %12, %11, %12 in 1 : vector<2x2x128xf32>, vector<2x16x128xf32>, vector<2x2x128xf32> -> vector<2x20x128xf32>
    %14 = vector.extract_strided_slice %13 {offsets = [0, 0, 0], sizes = [2, 16, 128], strides = [1, 1, 1]} : vector<2x20x128xf32> to vector<2x16x128xf32>
    %15 = vector.extract_strided_slice %13 {offsets = [0, 1, 0], sizes = [2, 16, 128], strides = [1, 1, 1]} : vector<2x20x128xf32> to vector<2x16x128xf32>
    %16 = vector.extract_strided_slice %13 {offsets = [0, 2, 0], sizes = [2, 16, 128], strides = [1, 1, 1]} : vector<2x20x128xf32> to vector<2x16x128xf32>
    %17 = vector.extract_strided_slice %13 {offsets = [0, 3, 0], sizes = [2, 16, 128], strides = [1, 1, 1]} : vector<2x20x128xf32> to vector<2x16x128xf32>
    %18 = tpu.concatenate %14, %15, %16, %17 in 2 : vector<2x16x128xf32>, vector<2x16x128xf32>, vector<2x16x128xf32>, vector<2x16x128xf32> -> vector<2x16x512xf32>
    %19 = vector.shape_cast %18 : vector<2x16x512xf32> to vector<32x512xf32>
    %20 = arith.truncf %19 : vector<32x512xf32> to vector<32x512xbf16>
    %c0_7 = arith.constant 0 : index
    %c0_8 = arith.constant 0 : index
    %21 = vector.load %arg3[%c0_7, %c0_8] : memref<512x256xbf16, #tpu.memory_space<vmem>>, vector<512x256xbf16>
    %cst_9 = arith.constant dense<0.000000e+00> : vector<32x256xf32>
    %22 = tpu.matmul %20, %21, %cst_9 {dimension_numbers = #tpu.dot_dimension_numbers<[1], [0], [0], [1], [0, 0, 1, 1], [], []>} : vector<32x512xbf16>, vector<512x256xbf16>, vector<32x256xf32> -> vector<32x256xf32>
    %c0_10 = arith.constant 0 : index
    %c0_11 = arith.constant 0 : index
    %23 = vector.load %arg4[%c0_10, %c0_11] : memref<1x256xf32, #tpu.memory_space<vmem>>, vector<1x256xf32>
    %24 = vector.broadcast %23 : vector<1x256xf32> to vector<32x256xf32>
    %25 = arith.addf %22, %24 : vector<32x256xf32>
    %cst_12 = arith.constant 0.000000e+00 : f32
    %26 = vector.broadcast %cst_12 : f32 to vector<32x256xf32>
    %27 = arith.maximumf %25, %26 : vector<32x256xf32>
    %28 = vector.shape_cast %27 : vector<32x256xf32> to vector<2x16x256xf32>
    %29 = vector.extract_strided_slice %28 {offsets = [0, 0, 0], sizes = [2, 4, 256], strides = [1, 1, 1]} : vector<2x16x256xf32> to vector<2x4x256xf32>
    %cst_13 = arith.constant dense<0xFF800000> : vector<2x256xf32>
    %30 = vector.multi_reduction <maximumf>, %29, %cst_13 [1] : vector<2x4x256xf32> to vector<2x256xf32>
    %31 = vector.extract_strided_slice %28 {offsets = [0, 4, 0], sizes = [2, 4, 256], strides = [1, 1, 1]} : vector<2x16x256xf32> to vector<2x4x256xf32>
    %cst_14 = arith.constant dense<0xFF800000> : vector<2x256xf32>
    %32 = vector.multi_reduction <maximumf>, %31, %cst_14 [1] : vector<2x4x256xf32> to vector<2x256xf32>
    %33 = vector.extract_strided_slice %28 {offsets = [0, 8, 0], sizes = [2, 4, 256], strides = [1, 1, 1]} : vector<2x16x256xf32> to vector<2x4x256xf32>
    %cst_15 = arith.constant dense<0xFF800000> : vector<2x256xf32>
    %34 = vector.multi_reduction <maximumf>, %33, %cst_15 [1] : vector<2x4x256xf32> to vector<2x256xf32>
    %35 = vector.extract_strided_slice %28 {offsets = [0, 12, 0], sizes = [2, 4, 256], strides = [1, 1, 1]} : vector<2x16x256xf32> to vector<2x4x256xf32>
    %cst_16 = arith.constant dense<0xFF800000> : vector<2x256xf32>
    %36 = vector.multi_reduction <maximumf>, %35, %cst_16 [1] : vector<2x4x256xf32> to vector<2x256xf32>
    %37 = tpu.concatenate %30, %32, %34, %36 in 0 : vector<2x256xf32>, vector<2x256xf32>, vector<2x256xf32>, vector<2x256xf32> -> vector<8x256xf32>
    %38 = arith.truncf %37 : vector<8x256xf32> to vector<8x256xbf16>
    %c0_17 = arith.constant 0 : index
    %c0_18 = arith.constant 0 : index
    %39 = vector.load %arg5[%c0_17, %c0_18] : memref<256x2048xbf16, #tpu.memory_space<vmem>>, vector<256x2048xbf16>
    %cst_19 = arith.constant dense<0.000000e+00> : vector<8x2048xf32>
    %40 = tpu.matmul %38, %39, %cst_19 {dimension_numbers = #tpu.dot_dimension_numbers<[1], [0], [0], [1], [0, 0, 1, 1], [], []>} : vector<8x256xbf16>, vector<256x2048xbf16>, vector<8x2048xf32> -> vector<8x2048xf32>
    %c0_20 = arith.constant 0 : index
    %c0_21 = arith.constant 0 : index
    %41 = vector.load %arg7[%c0_20, %c0_21] : memref<1x2048xf32, #tpu.memory_space<vmem>>, vector<1x2048xf32>
    %42 = vector.broadcast %41 : vector<1x2048xf32> to vector<8x2048xf32>
    %43 = arith.addf %40, %42 : vector<8x2048xf32>
    %44 = vector.shape_cast %43 : vector<8x2048xf32> to vector<4x2x2048xf32>
    %c0_22 = arith.constant 0 : index
    %c0_23 = arith.constant 0 : index
    %45 = vector.load %arg6[%c0_22, %c0_23] : memref<512x2048xbf16, #tpu.memory_space<vmem>>, vector<512x2048xbf16>
    %cst_24 = arith.constant 0.000000e+00 : f32
    %46 = vector.broadcast %cst_24 : f32 to vector<2x512xf32>
    %cst_25 = arith.constant 0.000000e+00 : f32
    %47 = vector.broadcast %cst_25 : f32 to vector<2x512xf32>
    %48 = vector.extract_strided_slice %44 {offsets = [0, 0, 0], sizes = [1, 2, 2048], strides = [1, 1, 1]} : vector<4x2x2048xf32> to vector<1x2x2048xf32>
    %49 = vector.shape_cast %48 : vector<1x2x2048xf32> to vector<2x2048xf32>
    %50 = arith.truncf %46 : vector<2x512xf32> to vector<2x512xbf16>
    %cst_26 = arith.constant dense<0.000000e+00> : vector<2x2048xf32>
    %51 = tpu.matmul %50, %45, %cst_26 {dimension_numbers = #tpu.dot_dimension_numbers<[1], [0], [0], [1], [0, 0, 1, 1], [], []>} : vector<2x512xbf16>, vector<512x2048xbf16>, vector<2x2048xf32> -> vector<2x2048xf32>
    %52 = arith.addf %49, %51 : vector<2x2048xf32>
    %53 = vector.extract_strided_slice %52 {offsets = [0, 0], sizes = [2, 512], strides = [1, 1]} : vector<2x2048xf32> to vector<2x512xf32>
    %54 = arith.negf %53 : vector<2x512xf32>
    %55 = math.exp %54 : vector<2x512xf32>
    %cst_27 = arith.constant 1.000000e+00 : f32
    %56 = vector.broadcast %cst_27 : f32 to vector<2x512xf32>
    %57 = arith.addf %56, %55 : vector<2x512xf32>
    %58 = arith.divf %56, %57 : vector<2x512xf32>
    %59 = vector.extract_strided_slice %52 {offsets = [0, 512], sizes = [2, 512], strides = [1, 1]} : vector<2x2048xf32> to vector<2x512xf32>
    %60 = arith.negf %59 : vector<2x512xf32>
    %61 = math.exp %60 : vector<2x512xf32>
    %cst_28 = arith.constant 1.000000e+00 : f32
    %62 = vector.broadcast %cst_28 : f32 to vector<2x512xf32>
    %63 = arith.addf %62, %61 : vector<2x512xf32>
    %64 = arith.divf %62, %63 : vector<2x512xf32>
    %65 = vector.extract_strided_slice %52 {offsets = [0, 1024], sizes = [2, 512], strides = [1, 1]} : vector<2x2048xf32> to vector<2x512xf32>
    %66 = math.tanh %65 : vector<2x512xf32>
    %67 = vector.extract_strided_slice %52 {offsets = [0, 1536], sizes = [2, 512], strides = [1, 1]} : vector<2x2048xf32> to vector<2x512xf32>
    %68 = arith.negf %67 : vector<2x512xf32>
    %69 = math.exp %68 : vector<2x512xf32>
    %cst_29 = arith.constant 1.000000e+00 : f32
    %70 = vector.broadcast %cst_29 : f32 to vector<2x512xf32>
    %71 = arith.addf %70, %69 : vector<2x512xf32>
    %72 = arith.divf %70, %71 : vector<2x512xf32>
    %73 = arith.mulf %64, %47 : vector<2x512xf32>
    %74 = arith.mulf %58, %66 : vector<2x512xf32>
    %75 = arith.addf %73, %74 : vector<2x512xf32>
    %76 = math.tanh %75 : vector<2x512xf32>
    %77 = arith.mulf %72, %76 : vector<2x512xf32>
    %78 = vector.extract_strided_slice %44 {offsets = [1, 0, 0], sizes = [1, 2, 2048], strides = [1, 1, 1]} : vector<4x2x2048xf32> to vector<1x2x2048xf32>
    %79 = vector.shape_cast %78 : vector<1x2x2048xf32> to vector<2x2048xf32>
    %80 = arith.truncf %77 : vector<2x512xf32> to vector<2x512xbf16>
    %cst_30 = arith.constant dense<0.000000e+00> : vector<2x2048xf32>
    %81 = tpu.matmul %80, %45, %cst_30 {dimension_numbers = #tpu.dot_dimension_numbers<[1], [0], [0], [1], [0, 0, 1, 1], [], []>} : vector<2x512xbf16>, vector<512x2048xbf16>, vector<2x2048xf32> -> vector<2x2048xf32>
    %82 = arith.addf %79, %81 : vector<2x2048xf32>
    %83 = vector.extract_strided_slice %82 {offsets = [0, 0], sizes = [2, 512], strides = [1, 1]} : vector<2x2048xf32> to vector<2x512xf32>
    %84 = arith.negf %83 : vector<2x512xf32>
    %85 = math.exp %84 : vector<2x512xf32>
    %cst_31 = arith.constant 1.000000e+00 : f32
    %86 = vector.broadcast %cst_31 : f32 to vector<2x512xf32>
    %87 = arith.addf %86, %85 : vector<2x512xf32>
    %88 = arith.divf %86, %87 : vector<2x512xf32>
    %89 = vector.extract_strided_slice %82 {offsets = [0, 512], sizes = [2, 512], strides = [1, 1]} : vector<2x2048xf32> to vector<2x512xf32>
    %90 = arith.negf %89 : vector<2x512xf32>
    %91 = math.exp %90 : vector<2x512xf32>
    %cst_32 = arith.constant 1.000000e+00 : f32
    %92 = vector.broadcast %cst_32 : f32 to vector<2x512xf32>
    %93 = arith.addf %92, %91 : vector<2x512xf32>
    %94 = arith.divf %92, %93 : vector<2x512xf32>
    %95 = vector.extract_strided_slice %82 {offsets = [0, 1024], sizes = [2, 512], strides = [1, 1]} : vector<2x2048xf32> to vector<2x512xf32>
    %96 = math.tanh %95 : vector<2x512xf32>
    %97 = vector.extract_strided_slice %82 {offsets = [0, 1536], sizes = [2, 512], strides = [1, 1]} : vector<2x2048xf32> to vector<2x512xf32>
    %98 = arith.negf %97 : vector<2x512xf32>
    %99 = math.exp %98 : vector<2x512xf32>
    %cst_33 = arith.constant 1.000000e+00 : f32
    %100 = vector.broadcast %cst_33 : f32 to vector<2x512xf32>
    %101 = arith.addf %100, %99 : vector<2x512xf32>
    %102 = arith.divf %100, %101 : vector<2x512xf32>
    %103 = arith.mulf %94, %75 : vector<2x512xf32>
    %104 = arith.mulf %88, %96 : vector<2x512xf32>
    %105 = arith.addf %103, %104 : vector<2x512xf32>
    %106 = math.tanh %105 : vector<2x512xf32>
    %107 = arith.mulf %102, %106 : vector<2x512xf32>
    %108 = vector.extract_strided_slice %44 {offsets = [2, 0, 0], sizes = [1, 2, 2048], strides = [1, 1, 1]} : vector<4x2x2048xf32> to vector<1x2x2048xf32>
    %109 = vector.shape_cast %108 : vector<1x2x2048xf32> to vector<2x2048xf32>
    %110 = arith.truncf %107 : vector<2x512xf32> to vector<2x512xbf16>
    %cst_34 = arith.constant dense<0.000000e+00> : vector<2x2048xf32>
    %111 = tpu.matmul %110, %45, %cst_34 {dimension_numbers = #tpu.dot_dimension_numbers<[1], [0], [0], [1], [0, 0, 1, 1], [], []>} : vector<2x512xbf16>, vector<512x2048xbf16>, vector<2x2048xf32> -> vector<2x2048xf32>
    %112 = arith.addf %109, %111 : vector<2x2048xf32>
    %113 = vector.extract_strided_slice %112 {offsets = [0, 0], sizes = [2, 512], strides = [1, 1]} : vector<2x2048xf32> to vector<2x512xf32>
    %114 = arith.negf %113 : vector<2x512xf32>
    %115 = math.exp %114 : vector<2x512xf32>
    %cst_35 = arith.constant 1.000000e+00 : f32
    %116 = vector.broadcast %cst_35 : f32 to vector<2x512xf32>
    %117 = arith.addf %116, %115 : vector<2x512xf32>
    %118 = arith.divf %116, %117 : vector<2x512xf32>
    %119 = vector.extract_strided_slice %112 {offsets = [0, 512], sizes = [2, 512], strides = [1, 1]} : vector<2x2048xf32> to vector<2x512xf32>
    %120 = arith.negf %119 : vector<2x512xf32>
    %121 = math.exp %120 : vector<2x512xf32>
    %cst_36 = arith.constant 1.000000e+00 : f32
    %122 = vector.broadcast %cst_36 : f32 to vector<2x512xf32>
    %123 = arith.addf %122, %121 : vector<2x512xf32>
    %124 = arith.divf %122, %123 : vector<2x512xf32>
    %125 = vector.extract_strided_slice %112 {offsets = [0, 1024], sizes = [2, 512], strides = [1, 1]} : vector<2x2048xf32> to vector<2x512xf32>
    %126 = math.tanh %125 : vector<2x512xf32>
    %127 = vector.extract_strided_slice %112 {offsets = [0, 1536], sizes = [2, 512], strides = [1, 1]} : vector<2x2048xf32> to vector<2x512xf32>
    %128 = arith.negf %127 : vector<2x512xf32>
    %129 = math.exp %128 : vector<2x512xf32>
    %cst_37 = arith.constant 1.000000e+00 : f32
    %130 = vector.broadcast %cst_37 : f32 to vector<2x512xf32>
    %131 = arith.addf %130, %129 : vector<2x512xf32>
    %132 = arith.divf %130, %131 : vector<2x512xf32>
    %133 = arith.mulf %124, %105 : vector<2x512xf32>
    %134 = arith.mulf %118, %126 : vector<2x512xf32>
    %135 = arith.addf %133, %134 : vector<2x512xf32>
    %136 = math.tanh %135 : vector<2x512xf32>
    %137 = arith.mulf %132, %136 : vector<2x512xf32>
    %138 = vector.extract_strided_slice %44 {offsets = [3, 0, 0], sizes = [1, 2, 2048], strides = [1, 1, 1]} : vector<4x2x2048xf32> to vector<1x2x2048xf32>
    %139 = vector.shape_cast %138 : vector<1x2x2048xf32> to vector<2x2048xf32>
    %140 = arith.truncf %137 : vector<2x512xf32> to vector<2x512xbf16>
    %cst_38 = arith.constant dense<0.000000e+00> : vector<2x2048xf32>
    %141 = tpu.matmul %140, %45, %cst_38 {dimension_numbers = #tpu.dot_dimension_numbers<[1], [0], [0], [1], [0, 0, 1, 1], [], []>} : vector<2x512xbf16>, vector<512x2048xbf16>, vector<2x2048xf32> -> vector<2x2048xf32>
    %142 = arith.addf %139, %141 : vector<2x2048xf32>
    %143 = vector.extract_strided_slice %142 {offsets = [0, 0], sizes = [2, 512], strides = [1, 1]} : vector<2x2048xf32> to vector<2x512xf32>
    %144 = arith.negf %143 : vector<2x512xf32>
    %145 = math.exp %144 : vector<2x512xf32>
    %cst_39 = arith.constant 1.000000e+00 : f32
    %146 = vector.broadcast %cst_39 : f32 to vector<2x512xf32>
    %147 = arith.addf %146, %145 : vector<2x512xf32>
    %148 = arith.divf %146, %147 : vector<2x512xf32>
    %149 = vector.extract_strided_slice %142 {offsets = [0, 512], sizes = [2, 512], strides = [1, 1]} : vector<2x2048xf32> to vector<2x512xf32>
    %150 = arith.negf %149 : vector<2x512xf32>
    %151 = math.exp %150 : vector<2x512xf32>
    %cst_40 = arith.constant 1.000000e+00 : f32
    %152 = vector.broadcast %cst_40 : f32 to vector<2x512xf32>
    %153 = arith.addf %152, %151 : vector<2x512xf32>
    %154 = arith.divf %152, %153 : vector<2x512xf32>
    %155 = vector.extract_strided_slice %142 {offsets = [0, 1024], sizes = [2, 512], strides = [1, 1]} : vector<2x2048xf32> to vector<2x512xf32>
    %156 = math.tanh %155 : vector<2x512xf32>
    %157 = vector.extract_strided_slice %142 {offsets = [0, 1536], sizes = [2, 512], strides = [1, 1]} : vector<2x2048xf32> to vector<2x512xf32>
    %158 = arith.negf %157 : vector<2x512xf32>
    %159 = math.exp %158 : vector<2x512xf32>
    %cst_41 = arith.constant 1.000000e+00 : f32
    %160 = vector.broadcast %cst_41 : f32 to vector<2x512xf32>
    %161 = arith.addf %160, %159 : vector<2x512xf32>
    %162 = arith.divf %160, %161 : vector<2x512xf32>
    %163 = arith.mulf %154, %135 : vector<2x512xf32>
    %164 = arith.mulf %148, %156 : vector<2x512xf32>
    %165 = arith.addf %163, %164 : vector<2x512xf32>
    %166 = math.tanh %165 : vector<2x512xf32>
    %167 = arith.mulf %162, %166 : vector<2x512xf32>
    %c0_42 = arith.constant 0 : index
    %c0_43 = arith.constant 0 : index
    %168 = vector.load %arg8[%c0_42, %c0_43] : memref<1x512xf32, #tpu.memory_space<vmem>>, vector<1x512xf32>
    %169 = vector.broadcast %168 : vector<1x512xf32> to vector<2x512xf32>
    %170 = arith.mulf %167, %169 : vector<2x512xf32>
    %cst_44 = arith.constant dense<0.000000e+00> : vector<2xf32>
    %171 = vector.multi_reduction <add>, %170, %cst_44 [1] : vector<2x512xf32> to vector<2xf32>
    %172 = vector.shape_cast %171 : vector<2xf32> to vector<2x1xf32>
    %c0_45 = arith.constant 0 : index
    %c0_46 = arith.constant 0 : index
    %173 = vector.load %arg9[%c0_45, %c0_46] : memref<1x1xf32, #tpu.memory_space<vmem>>, vector<1x1xf32>
    %174 = vector.broadcast %173 : vector<1x1xf32> to vector<2x1xf32>
    %175 = arith.addf %172, %174 : vector<2x1xf32>
    %176 = arith.negf %175 : vector<2x1xf32>
    %177 = math.exp %176 : vector<2x1xf32>
    %cst_47 = arith.constant 1.000000e+00 : f32
    %178 = vector.broadcast %cst_47 : f32 to vector<2x1xf32>
    %179 = arith.addf %178, %177 : vector<2x1xf32>
    %180 = arith.divf %178, %179 : vector<2x1xf32>
    %c0_48 = arith.constant 0 : index
    %c0_49 = arith.constant 0 : index
    %181 = vector.load %arg10[%c0_48, %c0_49] : memref<2x1xf32, #tpu.memory_space<vmem>>, vector<2x1xf32>
    tpu.vector_store %arg10[%c0_48, %c0_49], %180 {strides = array<i32>} : memref<2x1xf32, #tpu.memory_space<vmem>>, vector<2x1xf32>,
    return
  }
  func.func @transform_0(%arg0: i32) -> (i32, i32, i32) {
    %c0_i32 = arith.constant 0 : i32
    %c0_i32_0 = arith.constant 0 : i32
    %c0_i32_1 = arith.constant 0 : i32
    return %arg0, %c0_i32, %c0_i32_0 : i32, i32, i32
  }
  func.func @transform_1(%arg0: i32) -> (i32, i32) {
    %c0_i32 = arith.constant 0 : i32
    %c0_i32_0 = arith.constant 0 : i32
    %c0_i32_1 = arith.constant 0 : i32
    return %c0_i32, %c0_i32_0 : i32, i32
  }
  func.func @transform_2(%arg0: i32) -> (i32, i32) {
    %c0_i32 = arith.constant 0 : i32
    %c0_i32_0 = arith.constant 0 : i32
    %c0_i32_1 = arith.constant 0 : i32
    return %c0_i32, %c0_i32_0 : i32, i32
  }
  func.func @transform_3(%arg0: i32) -> (i32, i32) {
    %c0_i32 = arith.constant 0 : i32
    %c0_i32_0 = arith.constant 0 : i32
    %c0_i32_1 = arith.constant 0 : i32
    return %c0_i32, %c0_i32_0 : i32, i32
  }
  func.func @transform_4(%arg0: i32) -> (i32, i32) {
    %c0_i32 = arith.constant 0 : i32
    %c0_i32_0 = arith.constant 0 : i32
    %c0_i32_1 = arith.constant 0 : i32
    return %c0_i32, %c0_i32_0 : i32, i32
  }
  func.func @transform_5(%arg0: i32) -> (i32, i32) {
    %c0_i32 = arith.constant 0 : i32
    %c0_i32_0 = arith.constant 0 : i32
    %c0_i32_1 = arith.constant 0 : i32
    return %c0_i32, %c0_i32_0 : i32, i32
  }
  func.func @transform_6(%arg0: i32) -> (i32, i32) {
    %c0_i32 = arith.constant 0 : i32
    %c0_i32_0 = arith.constant 0 : i32
    %c0_i32_1 = arith.constant 0 : i32
    return %c0_i32, %c0_i32_0 : i32, i32
  }
  func.func @transform_7(%arg0: i32) -> (i32, i32) {
    %c0_i32 = arith.constant 0 : i32
    %c0_i32_0 = arith.constant 0 : i32
    %c0_i32_1 = arith.constant 0 : i32
    return %c0_i32, %c0_i32_0 : i32, i32
  }
  func.func @transform_8(%arg0: i32) -> (i32, i32) {
    %c0_i32 = arith.constant 0 : i32
    %c0_i32_0 = arith.constant 0 : i32
    %c0_i32_1 = arith.constant 0 : i32
    return %c0_i32, %c0_i32_0 : i32, i32
  }
  func.func @transform_9(%arg0: i32) -> (i32, i32) {
    %c0_i32 = arith.constant 0 : i32
    %c0_i32_0 = arith.constant 0 : i32
    return %arg0, %c0_i32 : i32, i32
  }
}

</mosaic_0001>

<llo_original>
// kernel: forward.1
$region0: #{forward.1}
  #allocation0 [shape = 'u32[]', space=smem, size = 0x4, offset = 0x4, fixed_abs, tag = 'smem constant byte address 0x4 - core index']
  #allocation1 [shape = 'u32[144,128]{1,0:T(1,128)}', space=vmem, size = 0x12000, scoped, tag = 'internal scratch']
  #allocation2 [shape = 'f32[1,1]{1,0:T(1,128)S(1)}', space=vmem, size = 0x200, scoped, tag = 'scoped memory for forward.1']
  %s0 = inlined_call_operand.vmem [shape: s32[2,16,1], index: 0, kind: input, shape index: {}]
  %s1 = inlined_call_operand.hbm [shape: bf16[128,128], index: 1, kind: input, shape index: {}]
  %s2 = inlined_call_operand.hbm [shape: bf16[512,256], index: 2, kind: input, shape index: {}]
  %s3 = inlined_call_operand.hbm [shape: f32[1,256], index: 3, kind: input, shape index: {}]
  %s4 = inlined_call_operand.hbm [shape: bf16[256,2048], index: 4, kind: input, shape index: {}]
  %s5 = inlined_call_operand.hbm [shape: bf16[512,2048], index: 5, kind: input, shape index: {}]
  %s6 = inlined_call_operand.hbm [shape: f32[1,2048], index: 6, kind: input, shape index: {}]
  %s7 = inlined_call_operand.hbm [shape: f32[1,512], index: 7, kind: input, shape index: {}]
  %s8 = inlined_call_operand.<no memory space> [shape: f32[1,1], index: 8, kind: input, shape index: {}]
  %s9 = inlined_call_operand.vmem [shape: f32[2,1], index: 9, kind: output, shape index: {}]
  %s10 = sld [smem:[#allocation0]]
  $region74: #{forward.1} parent=0
    _
  %s12 = ssub.s32 1, %s10
  %s13 = scalar_select 0, %s12, %s10
  %v14 = vstv %s8
  %15 = vst [vmem:[#allocation2] sm:$0x1] %v14
  $region1: #{forward.1} parent=0
    #allocation3 [shape = 'u8[32768]{0}', space=vmem, size = 0x8000, scoped, tag = 'input window, operand 1, single buffered']
    #allocation4 [shape = 's32[1]{0}', space=sflag, size = 0x4, scoped, tag = 'scoped memory for forward.1']
    #allocation5 [shape = 'u8[262144]{0}', space=vmem, size = 0x40000, scoped, tag = 'input window, operand 2, single buffered']
    #allocation6 [shape = 's32[1]{0}', space=sflag, size = 0x4, scoped, tag = 'scoped memory for forward.1']
    #allocation7 [shape = 'u8[1024]{0}', space=vmem, size = 0x400, scoped, tag = 'input window, operand 3, single buffered']
    #allocation8 [shape = 'u8[1048576]{0}', space=vmem, size = 0x100000, scoped, tag = 'input window, operand 4, single buffered']
    #allocation9 [shape = 's32[1]{0}', space=sflag, size = 0x4, scoped, tag = 'scoped memory for forward.1']
    #allocation10 [shape = 'u8[2097152]{0}', space=vmem, size = 0x200000, scoped, tag = 'input window, operand 5, single buffered']
    #allocation11 [shape = 'u8[8192]{0}', space=vmem, size = 0x2000, scoped, tag = 'input window, operand 6, single buffered']
    #allocation12 [shape = 's32[1]{0}', space=sflag, size = 0x4, scoped, tag = 'scoped memory for forward.1']
    #allocation13 [shape = 'u8[2048]{0}', space=vmem, size = 0x800, scoped, tag = 'input window, operand 7, single buffered']
    %16 = vsyncpa [#allocation4], 0
    %17 = vsyncpa [#allocation6], 0
    %18 = vsyncpa [#allocation9], 0
    %19 = vsyncpa [#allocation12], 0
    // Predicated region
    $region2: #{forward.1} parent=1 // pred_check
      _
    $region3: #{forward.1} parent=1 // pred_check_branch
      %21 = sbr.rel (0) target = $region5
    $region4: #{forward.1} parent=1 // pred_region
      _
    $region5: #{forward.1} parent=1 // pred_fallthru
      _
    // Predicated region
    $region6: #{forward.1} parent=1 // pred_check
      _
    $region7: #{forward.1} parent=1 // pred_check_branch
      %23 = sbr.rel (0) target = $region9
    $region8: #{forward.1} parent=1 // pred_region
      %s25 = ssub.s32 1024, 1024
      %26 = vsyncadd [#allocation4], %s25
      %s27 = sshll.u32 [#allocation3], 4
      %s28 = int_to_ptr.vmem [resolvable:$true] %s27
      %33 = dma.hbm_to_vmem [thread:$0]  %s1, 1024, %s28, [#allocation4], 64, 64, 4
    $region9: #{forward.1} parent=1 // pred_fallthru
      _
    // Predicated region
    $region10: #{forward.1} parent=1 // pred_check
      _
    $region11: #{forward.1} parent=1 // pred_check_branch
      %35 = sbr.rel (0) target = $region13
    $region12: #{forward.1} parent=1 // pred_region
      %s37 = ssub.s32 8192, 8192
      %38 = vsyncadd [#allocation6], %s37
      %s39 = sshll.u32 [#allocation5], 4
      %s40 = int_to_ptr.vmem [resolvable:$true] %s39
      %45 = dma.hbm_to_vmem [thread:$0]  %s2, 8192, %s40, [#allocation6], 128, 128, 8
    $region13: #{forward.1} parent=1 // pred_fallthru
      _
    // Predicated region
    $region14: #{forward.1} parent=1 // pred_check
      _
    $region15: #{forward.1} parent=1 // pred_check_branch
      %47 = sbr.rel (0) target = $region17
    $region16: #{forward.1} parent=1 // pred_region
      %s49 = ssub.s32 32, 32
      %50 = vsyncadd [#allocation6], %s49
      %s52 = sshll.u32 [#allocation7], 4
      %s53 = int_to_ptr.vmem [resolvable:$true] %s52
      %55 = dma.hbm_to_vmem [thread:$0]  %s3, 32, %s53, [#allocation6]
    $region17: #{forward.1} parent=1 // pred_fallthru
      _
    // Predicated region
    $region18: #{forward.1} parent=1 // pred_check
      _
    $region19: #{forward.1} parent=1 // pred_check_branch
      %57 = sbr.rel (0) target = $region21
    $region20: #{forward.1} parent=1 // pred_region
      %s59 = ssub.s32 32768, 32768
      %60 = vsyncadd [#allocation9], %s59
      %s61 = sshll.u32 [#allocation8], 4
      %s62 = int_to_ptr.vmem [resolvable:$true] %s61
      %67 = dma.hbm_to_vmem [thread:$0]  %s4, 32768, %s62, [#allocation9], 1024, 1024, 64
    $region21: #{forward.1} parent=1 // pred_fallthru
      _
    // Predicated region
    $region22: #{forward.1} parent=1 // pred_check
      _
    $region23: #{forward.1} parent=1 // pred_check_branch
      %69 = sbr.rel (0) target = $region25
    $region24: #{forward.1} parent=1 // pred_region
      %s71 = ssub.s32 65536, 65536
      %72 = vsyncadd [#allocation9], %s71
      %s73 = sshll.u32 [#allocation10], 4
      %s74 = int_to_ptr.vmem [resolvable:$true] %s73
      %79 = dma.hbm_to_vmem [thread:$0]  %s5, 65536, %s74, [#allocation9], 1024, 1024, 64
    $region25: #{forward.1} parent=1 // pred_fallthru
      _
    // Predicated region
    $region26: #{forward.1} parent=1 // pred_check
      _
    $region27: #{forward.1} parent=1 // pred_check_branch
      %81 = sbr.rel (0) target = $region29
    $region28: #{forward.1} parent=1 // pred_region
      %s83 = ssub.s32 256, 256
      %84 = vsyncadd [#allocation12], %s83
      %s86 = sshll.u32 [#allocation11], 4
      %s87 = int_to_ptr.vmem [resolvable:$true] %s86
      %89 = dma.hbm_to_vmem [thread:$0]  %s6, 256, %s87, [#allocation12]
    $region29: #{forward.1} parent=1 // pred_fallthru
      _
    // Predicated region
    $region30: #{forward.1} parent=1 // pred_check
      _
    $region31: #{forward.1} parent=1 // pred_check_branch
      %91 = sbr.rel (0) target = $region33
    $region32: #{forward.1} parent=1 // pred_region
      %s93 = ssub.s32 64, 64
      %94 = vsyncadd [#allocation12], %s93
      %s96 = sshll.u32 [#allocation13], 4
      %s97 = int_to_ptr.vmem [resolvable:$true] %s96
      %99 = dma.hbm_to_vmem [thread:$0]  %s7, 64, %s97, [#allocation12]
    $region33: #{forward.1} parent=1 // pred_fallthru
      _
    // Predicated region
    $region34: #{forward.1} parent=1 // pred_check
      _
    $region35: #{forward.1} parent=1 // pred_check_branch
      %101 = sbr.rel (0) target = $region37
    $region36: #{forward.1} parent=1 // pred_region
      _
    $region37: #{forward.1} parent=1 // pred_fallthru
      _
    // Predicated region
    $region38: #{forward.1} parent=1 // pred_check
      _
    $region39: #{forward.1} parent=1 // pred_check_branch
      %103 = sbr.rel (0) target = $region41
    $region40: #{forward.1} parent=1 // pred_region
      %104 = dma.done [#allocation4], 1024
    $region41: #{forward.1} parent=1 // pred_fallthru
      _
    // Predicated region
    $region42: #{forward.1} parent=1 // pred_check
      _
    $region43: #{forward.1} parent=1 // pred_check_branch
      %106 = sbr.rel (0) target = $region45
    $region44: #{forward.1} parent=1 // pred_region
      %107 = dma.done [#allocation6], 8192
    $region45: #{forward.1} parent=1 // pred_fallthru
      _
    // Predicated region
    $region46: #{forward.1} parent=1 // pred_check
      _
    $region47: #{forward.1} parent=1 // pred_check_branch
      %109 = sbr.rel (0) target = $region49
    $region48: #{forward.1} parent=1 // pred_region
      %110 = dma.done [#allocation6], 32
    $region49: #{forward.1} parent=1 // pred_fallthru
      _
    // Predicated region
    $region50: #{forward.1} parent=1 // pred_check
      _
    $region51: #{forward.1} parent=1 // pred_check_branch
      %112 = sbr.rel (0) target = $region53
    $region52: #{forward.1} parent=1 // pred_region
      %113 = dma.done [#allocation9], 32768
    $region53: #{forward.1} parent=1 // pred_fallthru
      _
    // Predicated region
    $region54: #{forward.1} parent=1 // pred_check
      _
    $region55: #{forward.1} parent=1 // pred_check_branch
      %115 = sbr.rel (0) target = $region57
    $region56: #{forward.1} parent=1 // pred_region
      %116 = dma.done [#allocation9], 65536
    $region57: #{forward.1} parent=1 // pred_fallthru
      _
    // Predicated region
    $region58: #{forward.1} parent=1 // pred_check
      _
    $region59: #{forward.1} parent=1 // pred_check_branch
      %118 = sbr.rel (0) target = $region61
    $region60: #{forward.1} parent=1 // pred_region
      %119 = dma.done [#allocation12], 256
    $region61: #{forward.1} parent=1 // pred_fallthru
      _
    // Predicated region
    $region62: #{forward.1} parent=1 // pred_check
      _
    $region63: #{forward.1} parent=1 // pred_check_branch
      %121 = sbr.rel (0) target = $region65
    $region64: #{forward.1} parent=1 // pred_region
      %122 = dma.done [#allocation12], 64
    $region65: #{forward.1} parent=1 // pred_fallthru
      _
    %v124 = vld [vmem:[%s0] sm:$0xff]
    %v125 = vld [vmem:[%s0 + $0x8] sm:$0xff]
    %v126 = vld [vmem:[%s0 + $0x10] sm:$0xff]
    %v127 = vld [vmem:[%s0 + $0x18] sm:$0xff]
    %v128 = vlaneseq
    %v129 = vand.u32 %v128, 127
    %130 = vset.pattern.permute.xlu0 0
    %131 = vperm.xlu0 %130, %v124
    %v132 = vpop.permute.xlu0 %131
    %133 = vset.pattern.permute.xlu0 0
    %134 = vperm.xlu0 %133, %v125
    %v135 = vpop.permute.xlu0 %134
    %136 = vset.pattern.permute.xlu0 0
    %137 = vperm.xlu0 %136, %v126
    %v138 = vpop.permute.xlu0 %137
    %139 = vset.pattern.permute.xlu0 0
    %140 = vperm.xlu0 %139, %v127
    %v141 = vpop.permute.xlu0 %140
    %vm142 = vcmp.eq.s32.totalorder %v129, %v132
    %vm143 = vcmp.eq.s32.totalorder %v129, %v135
    %vm144 = vcmp.eq.s32.totalorder %v129, %v138
    %vm145 = vcmp.eq.s32.totalorder %v129, %v141
    %v146 = vsel %vm142, 1.0, 0.0
    %v147 = vsel %vm143, 1.0, 0.0
    %v148 = vsel %vm144, 1.0, 0.0
    %v149 = vsel %vm145, 1.0, 0.0
    %v150 = vpack.c.bf16 %v147, %v146
    %v151 = vpack.c.bf16 %v149, %v148
    %v152 = vld [vmem:[#allocation3] sm:$0xf]
    %v153 = vld [vmem:[#allocation3 + $0x4] sm:$0xf]
    %v154 = vld [vmem:[#allocation3 + $0x8] sm:$0xf]
    %v155 = vld [vmem:[#allocation3 + $0xc] sm:$0xf]
    %v156 = vld [vmem:[#allocation3 + $0x10] sm:$0xf]
    %v157 = vld [vmem:[#allocation3 + $0x14] sm:$0xf]
    %v158 = vld [vmem:[#allocation3 + $0x18] sm:$0xf]
    %v159 = vld [vmem:[#allocation3 + $0x1c] sm:$0xf]
    %v160 = vld [vmem:[#allocation3 + $0x20] sm:$0xf]
    %v161 = vld [vmem:[#allocation3 + $0x24] sm:$0xf]
    %v162 = vld [vmem:[#allocation3 + $0x28] sm:$0xf]
    %v163 = vld [vmem:[#allocation3 + $0x2c] sm:$0xf]
    %v164 = vld [vmem:[#allocation3 + $0x30] sm:$0xf]
    %v165 = vld [vmem:[#allocation3 + $0x34] sm:$0xf]
    %v166 = vld [vmem:[#allocation3 + $0x38] sm:$0xf]
    %v167 = vld [vmem:[#allocation3 + $0x3c] sm:$0xf]
    %v184 = vunpack.c.l.b16 %v152
    %v185 = vunpack.c.l.b16 %v153
    %v186 = vunpack.c.l.b16 %v154
    %v187 = vunpack.c.l.b16 %v155
    %v188 = vunpack.c.l.b16 %v156
    %v189 = vunpack.c.l.b16 %v157
    %v190 = vunpack.c.l.b16 %v158
    %v191 = vunpack.c.l.b16 %v159
    %v192 = vunpack.c.l.b16 %v160
    %v193 = vunpack.c.l.b16 %v161
    %v194 = vunpack.c.l.b16 %v162
    %v195 = vunpack.c.l.b16 %v163
    %v196 = vunpack.c.l.b16 %v164
    %v197 = vunpack.c.l.b16 %v165
    %v198 = vunpack.c.l.b16 %v166
    %v199 = vunpack.c.l.b16 %v167
    %v200 = vpack.c.b16 %v185, %v184
    %v201 = vpack.c.b16 %v187, %v186
    %v202 = vpack.c.b16 %v189, %v188
    %v203 = vpack.c.b16 %v191, %v190
    %v204 = vpack.c.b16 %v193, %v192
    %v205 = vpack.c.b16 %v195, %v194
    %v206 = vpack.c.b16 %v197, %v196
    %v207 = vpack.c.b16 %v199, %v198
    %216 = vmatprep.subr.bf16.mxu0 0
    %217 = vmatpush1.bf16.msra.mxu0 %v200
    %218 = vmatprep.subr.bf16.mxu0 0
    %219 = vmatpush1.bf16.msra.mxu0 %v201
    %220 = vmatprep.subr.bf16.mxu0 0
    %221 = vmatpush1.bf16.msra.mxu0 %v202
    %222 = vmatprep.subr.bf16.mxu0 0
    %223 = vmatpush1.bf16.msra.mxu0 %v203
    %224 = vmatprep.subr.bf16.mxu0 0
    %225 = vmatpush1.bf16.msra.mxu0 %v204
    %226 = vmatprep.subr.bf16.mxu0 0
    %227 = vmatpush1.bf16.msra.mxu0 %v205
    %228 = vmatprep.subr.bf16.mxu0 0
    %229 = vmatpush1.bf16.msra.mxu0 %v206
    %230 = vmatprep.subr.bf16.mxu0 0
    %231 = vmatpush1.bf16.msra.mxu0 %v207
    %232 = vmatprep.subr.bf16.mxu0 0
    %233 = vmatpush1.bf16.msra.mxu0 0
    %234 = vmatprep.subr.bf16.mxu0 0
    %235 = vmatpush1.bf16.msra.mxu0 0
    %236 = vmatprep.subr.bf16.mxu0 0
    %237 = vmatpush1.bf16.msra.mxu0 0
    %238 = vmatprep.subr.bf16.mxu0 0
    %239 = vmatpush1.bf16.msra.mxu0 0
    %240 = vmatprep.subr.bf16.mxu0 0
    %241 = vmatpush1.bf16.msra.mxu0 0
    %242 = vmatprep.subr.bf16.mxu0 0
    %243 = vmatpush1.bf16.msra.mxu0 0
    %244 = vmatprep.subr.bf16.mxu0 0
    %245 = vmatpush1.bf16.msra.mxu0 0
    %246 = vmatprep.subr.bf16.mxu0 0
    %247 = vmatpush1.bf16.msra.mxu0 0
    %248 = vmatprep.mubr.bf16.mxu0 0
    %249 = vmatmul.mubr.bf16.gmra.mrb[0].mxu0 %v150
    %v250 = vpop.f32.mrb[0].mxu0
    %v251 = vadd.f32 0.0, %v250
    %v252 = vpop.f32.mrb[0].mxu0
    %v253 = vpop.f32.mrb[0].mxu0
    %v254 = vadd.f32 0.0, %v253
    %v255 = vpop.f32.mrb[0].mxu0
    %256 = vmatprep.mubr.bf16.mxu0 0
    %257 = vmatmul.mubr.bf16.gmra.mrb[0].mxu0 %v151
    %v258 = vpop.f32.mrb[0].mxu0
    %v259 = vadd.f32 0.0, %v258
    %v260 = vpop.f32.mrb[0].mxu0
    %v261 = vpop.f32.mrb[0].mxu0
    %v262 = vadd.f32 0.0, %v261
    %v263 = vpop.f32.mrb[0].mxu0
    %264 = vdwg.mxu0
    %vm269 = vcmask 1041408
    %v270 = vrot.slane %v251, 6
    %v271 = vrot.slane %v254, 6
    %v272 = vsel %vm269, %v270, %v271
    %v273 = vrot.slane %v259, 6
    %v274 = vrot.slane %v262, 6
    %v275 = vsel %vm269, %v273, %v274
    %v282 = vsel %vm269, 0.0, %v270
    %v283 = vsel %vm269, 0.0, %v273
    %v284 = vsel %vm269, %v271, 0.0
    %v285 = vsel %vm269, %v274, 0.0
    %vm290 = vcmask 1046528
    %v291 = vrot.slane %v282, 1
    %v292 = vrot.slane %v272, 1
    %v293 = vsel %vm290, %v291, %v292
    %v294 = vrot.slane %v284, 1
    %v295 = vsel %vm290, %v292, %v294
    %v296 = vrot.slane %v283, 1
    %v297 = vrot.slane %v275, 1
    %v298 = vsel %vm290, %v296, %v297
    %v299 = vrot.slane %v285, 1
    %v300 = vsel %vm290, %v297, %v299
    %vm305 = vcmask 1045504
    %v306 = vrot.slane %v282, 2
    %v307 = vrot.slane %v272, 2
    %v308 = vsel %vm305, %v306, %v307
    %v309 = vrot.slane %v284, 2
    %v310 = vsel %vm305, %v307, %v309
    %v311 = vrot.slane %v283, 2
    %v312 = vrot.slane %v275, 2
    %v313 = vsel %vm305, %v311, %v312
    %v314 = vrot.slane %v285, 2
    %v315 = vsel %vm305, %v312, %v314
    %vm320 = vcmask 1044480
    %v321 = vrot.slane %v282, 3
    %v322 = vrot.slane %v272, 3
    %v323 = vsel %vm320, %v321, %v322
    %v324 = vrot.slane %v284, 3
    %v325 = vsel %vm320, %v322, %v324
    %v326 = vrot.slane %v283, 3
    %v327 = vrot.slane %v275, 3
    %v328 = vsel %vm320, %v326, %v327
    %v329 = vrot.slane %v285, 3
    %v330 = vsel %vm320, %v327, %v329
    %v335 = vpack.c.bf16 %v272, %v282
    %v336 = vpack.c.bf16 %v295, %v293
    %v337 = vpack.c.bf16 %v310, %v308
    %v338 = vpack.c.bf16 %v325, %v323
    %v339 = vpack.c.bf16 %v275, %v283
    %v340 = vpack.c.bf16 %v300, %v298
    %v341 = vpack.c.bf16 %v315, %v313
    %v342 = vpack.c.bf16 %v330, %v328
    %v343 = vld [vmem:[#allocation5] sm:$0xff]
    %v344 = vld [vmem:[#allocation5 + $0x8] sm:$0xff]
    %v345 = vld [vmem:[#allocation5 + $0x10] sm:$0xff]
    %v346 = vld [vmem:[#allocation5 + $0x18] sm:$0xff]
    %v347 = vld [vmem:[#allocation5 + $0x20] sm:$0xff]
    %v348 = vld [vmem:[#allocation5 + $0x28] sm:$0xff]
    %v349 = vld [vmem:[#allocation5 + $0x30] sm:$0xff]
    %v350 = vld [vmem:[#allocation5 + $0x38] sm:$0xff]
    %v351 = vld [vmem:[#allocation5 + $0x40] sm:$0xff]
    %v352 = vld [vmem:[#allocation5 + $0x48] sm:$0xff]
    %v353 = vld [vmem:[#allocation5 + $0x50] sm:$0xff]
    %v354 = vld [vmem:[#allocation5 + $0x58] sm:$0xff]
    %v355 = vld [vmem:[#allocation5 + $0x60] sm:$0xff]
    %v356 = vld [vmem:[#allocation5 + $0x68] sm:$0xff]
    %v357 = vld [vmem:[#allocation5 + $0x70] sm:$0xff]
    %v358 = vld [vmem:[#allocation5 + $0x78] sm:$0xff]
    %v359 = vld [vmem:[#allocation5 + $0x80] sm:$0xff]
    %v360 = vld [vmem:[#allocation5 + $0x88] sm:$0xff]
    %v361 = vld [vmem:[#allocation5 + $0x90] sm:$0xff]
    %v362 = vld [vmem:[#allocation5 + $0x98] sm:$0xff]
    %v363 = vld [vmem:[#allocation5 + $0xa0] sm:$0xff]
    %v364 = vld [vmem:[#allocation5 + $0xa8] sm:$0xff]
    %v365 = vld [vmem:[#allocation5 + $0xb0] sm:$0xff]
    %v366 = vld [vmem:[#allocation5 + $0xb8] sm:$0xff]
    %v367 = vld [vmem:[#allocation5 + $0xc0] sm:$0xff]
    %v368 = vld [vmem:[#allocation5 + $0xc8] sm:$0xff]
    %v369 = vld [vmem:[#allocation5 + $0xd0] sm:$0xff]
    %v370 = vld [vmem:[#allocation5 + $0xd8] sm:$0xff]
    %v371 = vld [vmem:[#allocation5 + $0xe0] sm:$0xff]
    %v372 = vld [vmem:[#allocation5 + $0xe8] sm:$0xff]
    %v373 = vld [vmem:[#allocation5 + $0xf0] sm:$0xff]
    %v374 = vld [vmem:[#allocation5 + $0xf8] sm:$0xff]
    %v375 = vld [vmem:[#allocation5 + $0x100] sm:$0xff]
    %v376 = vld [vmem:[#allocation5 + $0x108] sm:$0xff]
    %v377 = vld [vmem:[#allocation5 + $0x110] sm:$0xff]
    %v378 = vld [vmem:[#allocation5 + $0x118] sm:$0xff]
    %v379 = vld [vmem:[#allocation5 + $0x120] sm:$0xff]
    %v380 = vld [vmem:[#allocation5 + $0x128] sm:$0xff]
    %v381 = vld [vmem:[#allocation5 + $0x130] sm:$0xff]
    %v382 = vld [vmem:[#allocation5 + $0x138] sm:$0xff]
    %v383 = vld [vmem:[#allocation5 + $0x140] sm:$0xff]
    %v384 = vld [vmem:[#allocation5 + $0x148] sm:$0xff]
    %v385 = vld [vmem:[#allocation5 + $0x150] sm:$0xff]
    %v386 = vld [vmem:[#allocation5 + $0x158] sm:$0xff]
    %v387 = vld [vmem:[#allocation5 + $0x160] sm:$0xff]
    %v388 = vld [vmem:[#allocation5 + $0x168] sm:$0xff]
    %v389 = vld [vmem:[#allocation5 + $0x170] sm:$0xff]
    %v390 = vld [vmem:[#allocation5 + $0x178] sm:$0xff]
    %v391 = vld [vmem:[#allocation5 + $0x180] sm:$0xff]
    %v392 = vld [vmem:[#allocation5 + $0x188] sm:$0xff]
    %v393 = vld [vmem:[#allocation5 + $0x190] sm:$0xff]
    %v394 = vld [vmem:[#allocation5 + $0x198] sm:$0xff]
    %v395 = vld [vmem:[#allocation5 + $0x1a0] sm:$0xff]
    %v396 = vld [vmem:[#allocation5 + $0x1a8] sm:$0xff]
    %v397 = vld [vmem:[#allocation5 + $0x1b0] sm:$0xff]
    %v398 = vld [vmem:[#allocation5 + $0x1b8] sm:$0xff]
    %v399 = vld [vmem:[#allocation5 + $0x1c0] sm:$0xff]
    %v400 = vld [vmem:[#allocation5 + $0x1c8] sm:$0xff]
    %v401 = vld [vmem:[#allocation5 + $0x1d0] sm:$0xff]
    %v402 = vld [vmem:[#allocation5 + $0x1d8] sm:$0xff]
    %v403 = vld [vmem:[#allocation5 + $0x1e0] sm:$0xff]
    %v404 = vld [vmem:[#allocation5 + $0x1e8] sm:$0xff]
    %v405 = vld [vmem:[#allocation5 + $0x1f0] sm:$0xff]
    %v406 = vld [vmem:[#allocation5 + $0x1f8] sm:$0xff]
    %v407 = vld [vmem:[#allocation7] sm:$0x3]
    %v409 = vlaneseq
    %v410 = vshrl.u32 %v409, 7
    %v411 = vsub.s32 0, %v410
    %v412 = vrot.slane %v407, %v411
    %v413 = vlaneseq
    %v414 = vshrl.u32 %v413, 7
    %v415 = vsub.s32 1, %v414
    %v416 = vrot.slane %v407, %v415
    %v483 = vunpack.c.l.b16 %v343
    %v484 = vunpack.c.h.b16 %v343
    %v485 = vunpack.c.l.b16 %v344
    %v486 = vunpack.c.h.b16 %v344
    %v487 = vunpack.c.l.b16 %v345
    %v488 = vunpack.c.h.b16 %v345
    %v489 = vunpack.c.l.b16 %v346
    %v490 = vunpack.c.h.b16 %v346
    %v491 = vunpack.c.l.b16 %v347
    %v492 = vunpack.c.h.b16 %v347
    %v493 = vunpack.c.l.b16 %v348
    %v494 = vunpack.c.h.b16 %v348
    %v495 = vunpack.c.l.b16 %v349
    %v496 = vunpack.c.h.b16 %v349
    %v497 = vunpack.c.l.b16 %v350
    %v498 = vunpack.c.h.b16 %v350
    %v499 = vunpack.c.l.b16 %v351
    %v500 = vunpack.c.h.b16 %v351
    %v501 = vunpack.c.l.b16 %v352
    %v502 = vunpack.c.h.b16 %v352
    %v503 = vunpack.c.l.b16 %v353
    %v504 = vunpack.c.h.b16 %v353
    %v505 = vunpack.c.l.b16 %v354
    %v506 = vunpack.c.h.b16 %v354
    %v507 = vunpack.c.l.b16 %v355
    %v508 = vunpack.c.h.b16 %v355
    %v509 = vunpack.c.l.b16 %v356
    %v510 = vunpack.c.h.b16 %v356
    %v511 = vunpack.c.l.b16 %v357
    %v512 = vunpack.c.h.b16 %v357
    %v513 = vunpack.c.l.b16 %v358
    %v514 = vunpack.c.h.b16 %v358
    %v515 = vunpack.c.l.b16 %v359
    %v516 = vunpack.c.h.b16 %v359
    %v517 = vunpack.c.l.b16 %v360
    %v518 = vunpack.c.h.b16 %v360
    %v519 = vunpack.c.l.b16 %v361
    %v520 = vunpack.c.h.b16 %v361
    %v521 = vunpack.c.l.b16 %v362
    %v522 = vunpack.c.h.b16 %v362
    %v523 = vunpack.c.l.b16 %v363
    %v524 = vunpack.c.h.b16 %v363
    %v525 = vunpack.c.l.b16 %v364
    %v526 = vunpack.c.h.b16 %v364
    %v527 = vunpack.c.l.b16 %v365
    %v528 = vunpack.c.h.b16 %v365
    %v529 = vunpack.c.l.b16 %v366
    %v530 = vunpack.c.h.b16 %v366
    %v531 = vunpack.c.l.b16 %v367
    %v532 = vunpack.c.h.b16 %v367
    %v533 = vunpack.c.l.b16 %v368
    %v534 = vunpack.c.h.b16 %v368
    %v535 = vunpack.c.l.b16 %v369
    %v536 = vunpack.c.h.b16 %v369
    %v537 = vunpack.c.l.b16 %v370
    %v538 = vunpack.c.h.b16 %v370
    %v539 = vunpack.c.l.b16 %v371
    %v540 = vunpack.c.h.b16 %v371
    %v541 = vunpack.c.l.b16 %v372
    %v542 = vunpack.c.h.b16 %v372
    %v543 = vunpack.c.l.b16 %v373
    %v544 = vunpack.c.h.b16 %v373
    %v545 = vunpack.c.l.b16 %v374
    %v546 = vunpack.c.h.b16 %v374
    %v547 = vunpack.c.l.b16 %v375
    %v548 = vunpack.c.h.b16 %v375
    %v549 = vunpack.c.l.b16 %v376
    %v550 = vunpack.c.h.b16 %v376
    %v551 = vunpack.c.l.b16 %v377
    %v552 = vunpack.c.h.b16 %v377
    %v553 = vunpack.c.l.b16 %v378
    %v554 = vunpack.c.h.b16 %v378
    %v555 = vunpack.c.l.b16 %v379
    %v556 = vunpack.c.h.b16 %v379
    %v557 = vunpack.c.l.b16 %v380
    %v558 = vunpack.c.h.b16 %v380
    %v559 = vunpack.c.l.b16 %v381
    %v560 = vunpack.c.h.b16 %v381
    %v561 = vunpack.c.l.b16 %v382
    %v562 = vunpack.c.h.b16 %v382
    %v563 = vunpack.c.l.b16 %v383
    %v564 = vunpack.c.h.b16 %v383
    %v565 = vunpack.c.l.b16 %v384
    %v566 = vunpack.c.h.b16 %v384
    %v567 = vunpack.c.l.b16 %v385
    %v568 = vunpack.c.h.b16 %v385
    %v569 = vunpack.c.l.b16 %v386
    %v570 = vunpack.c.h.b16 %v386
    %v571 = vunpack.c.l.b16 %v387
    %v572 = vunpack.c.h.b16 %v387
    %v573 = vunpack.c.l.b16 %v388
    %v574 = vunpack.c.h.b16 %v388
    %v575 = vunpack.c.l.b16 %v389
    %v576 = vunpack.c.h.b16 %v389
    %v577 = vunpack.c.l.b16 %v390
    %v578 = vunpack.c.h.b16 %v390
    %v579 = vunpack.c.l.b16 %v391
    %v580 = vunpack.c.h.b16 %v391
    %v581 = vunpack.c.l.b16 %v392
    %v582 = vunpack.c.h.b16 %v392
    %v583 = vunpack.c.l.b16 %v393
    %v584 = vunpack.c.h.b16 %v393
    %v585 = vunpack.c.l.b16 %v394
    %v586 = vunpack.c.h.b16 %v394
    %v587 = vunpack.c.l.b16 %v395
    %v588 = vunpack.c.h.b16 %v395
    %v589 = vunpack.c.l.b16 %v396
    %v590 = vunpack.c.h.b16 %v396
    %v591 = vunpack.c.l.b16 %v397
    %v592 = vunpack.c.h.b16 %v397
    %v593 = vunpack.c.l.b16 %v398
    %v594 = vunpack.c.h.b16 %v398
    %v595 = vunpack.c.l.b16 %v399
    %v596 = vunpack.c.h.b16 %v399
    %v597 = vunpack.c.l.b16 %v400
    %v598 = vunpack.c.h.b16 %v400
    %v599 = vunpack.c.l.b16 %v401
    %v600 = vunpack.c.h.b16 %v401
    %v601 = vunpack.c.l.b16 %v402
    %v602 = vunpack.c.h.b16 %v402
    %v603 = vunpack.c.l.b16 %v403
    %v604 = vunpack.c.h.b16 %v403
    %v605 = vunpack.c.l.b16 %v404
    %v606 = vunpack.c.h.b16 %v404
    %v607 = vunpack.c.l.b16 %v405
    %v608 = vunpack.c.h.b16 %v405
    %v609 = vunpack.c.l.b16 %v406
    %v610 = vunpack.c.h.b16 %v406
    %v611 = vpack.c.b16 %v485, %v483
    %v612 = vpack.c.b16 %v486, %v484
    %v613 = vpack.c.b16 %v489, %v487
    %v614 = vpack.c.b16 %v490, %v488
    %v615 = vpack.c.b16 %v493, %v491
    %v616 = vpack.c.b16 %v494, %v492
    %v617 = vpack.c.b16 %v497, %v495
    %v618 = vpack.c.b16 %v498, %v496
    %v619 = vpack.c.b16 %v501, %v499
    %v620 = vpack.c.b16 %v502, %v500
    %v621 = vpack.c.b16 %v505, %v503
    %v622 = vpack.c.b16 %v506, %v504
    %v623 = vpack.c.b16 %v509, %v507
    %v624 = vpack.c.b16 %v510, %v508
    %v625 = vpack.c.b16 %v513, %v511
    %v626 = vpack.c.b16 %v514, %v512
    %v627 = vpack.c.b16 %v517, %v515
    %v628 = vpack.c.b16 %v518, %v516
    %v629 = vpack.c.b16 %v521, %v519
    %v630 = vpack.c.b16 %v522, %v520
    %v631 = vpack.c.b16 %v525, %v523
    %v632 = vpack.c.b16 %v526, %v524
    %v633 = vpack.c.b16 %v529, %v527
    %v634 = vpack.c.b16 %v530, %v528
    %v635 = vpack.c.b16 %v533, %v531
    %v636 = vpack.c.b16 %v534, %v532
    %v637 = vpack.c.b16 %v537, %v535
    %v638 = vpack.c.b16 %v538, %v536
    %v639 = vpack.c.b16 %v541, %v539
    %v640 = vpack.c.b16 %v542, %v540
    %v641 = vpack.c.b16 %v545, %v543
    %v642 = vpack.c.b16 %v546, %v544
    %v643 = vpack.c.b16 %v549, %v547
    %v644 = vpack.c.b16 %v550, %v548
    %v645 = vpack.c.b16 %v553, %v551
    %v646 = vpack.c.b16 %v554, %v552
    %v647 = vpack.c.b16 %v557, %v555
    %v648 = vpack.c.b16 %v558, %v556
    %v649 = vpack.c.b16 %v561, %v559
    %v650 = vpack.c.b16 %v562, %v560
    %v651 = vpack.c.b16 %v565, %v563
    %v652 = vpack.c.b16 %v566, %v564
    %v653 = vpack.c.b16 %v569, %v567
    %v654 = vpack.c.b16 %v570, %v568
    %v655 = vpack.c.b16 %v573, %v571
    %v656 = vpack.c.b16 %v574, %v572
    %v657 = vpack.c.b16 %v577, %v575
    %v658 = vpack.c.b16 %v578, %v576
    %v659 = vpack.c.b16 %v581, %v579
    %v660 = vpack.c.b16 %v582, %v580
    %v661 = vpack.c.b16 %v585, %v583
    %v662 = vpack.c.b16 %v586, %v584
    %v663 = vpack.c.b16 %v589, %v587
    %v664 = vpack.c.b16 %v590, %v588
    %v665 = vpack.c.b16 %v593, %v591
    %v666 = vpack.c.b16 %v594, %v592
    %v667 = vpack.c.b16 %v597, %v595
    %v668 = vpack.c.b16 %v598, %v596
    %v669 = vpack.c.b16 %v601, %v599
    %v670 = vpack.c.b16 %v602, %v600
    %v671 = vpack.c.b16 %v605, %v603
    %v672 = vpack.c.b16 %v606, %v604
    %v673 = vpack.c.b16 %v609, %v607
    %v674 = vpack.c.b16 %v610, %v608
    %739 = vmatprep.subr.bf16.mxu0 %v612
    %740 = vmatpush1.bf16.msra.mxu0 %v611
    %741 = vmatprep.subr.bf16.mxu0 %v614
    %742 = vmatpush1.bf16.msra.mxu0 %v613
    %743 = vmatprep.subr.bf16.mxu0 %v616
    %744 = vmatpush1.bf16.msra.mxu0 %v615
    %745 = vmatprep.subr.bf16.mxu0 %v618
    %746 = vmatpush1.bf16.msra.mxu0 %v617
    %747 = vmatprep.subr.bf16.mxu0 %v620
    %748 = vmatpush1.bf16.msra.mxu0 %v619
    %749 = vmatprep.subr.bf16.mxu0 %v622
    %750 = vmatpush1.bf16.msra.mxu0 %v621
    %751 = vmatprep.subr.bf16.mxu0 %v624
    %752 = vmatpush1.bf16.msra.mxu0 %v623
    %753 = vmatprep.subr.bf16.mxu0 %v626
    %754 = vmatpush1.bf16.msra.mxu0 %v625
    %755 = vmatprep.subr.bf16.mxu0 %v628
    %756 = vmatpush1.bf16.msra.mxu0 %v627
    %757 = vmatprep.subr.bf16.mxu0 %v630
    %758 = vmatpush1.bf16.msra.mxu0 %v629
    %759 = vmatprep.subr.bf16.mxu0 %v632
    %760 = vmatpush1.bf16.msra.mxu0 %v631
    %761 = vmatprep.subr.bf16.mxu0 %v634
    %762 = vmatpush1.bf16.msra.mxu0 %v633
    %763 = vmatprep.subr.bf16.mxu0 %v636
    %764 = vmatpush1.bf16.msra.mxu0 %v635
    %765 = vmatprep.subr.bf16.mxu0 %v638
    %766 = vmatpush1.bf16.msra.mxu0 %v637
    %767 = vmatprep.subr.bf16.mxu0 %v640
    %768 = vmatpush1.bf16.msra.mxu0 %v639
    %769 = vmatprep.subr.bf16.mxu0 %v642
    %770 = vmatpush1.bf16.msra.mxu0 %v641
    %771 = vmatprep.mubr.bf16.mxu0 %v336
    %772 = vmatmul.mubr.bf16.gmra.mrb[0].mxu0 %v335
    %v773 = vpop.f32.mrb[0].mxu0
    %v774 = vadd.f32 %v412, %v773
    %v775 = vpop.f32.mrb[0].mxu0
    %v776 = vadd.f32 %v416, %v775
    %v777 = vpop.f32.mrb[0].mxu0
    %v778 = vadd.f32 %v412, %v777
    %v779 = vpop.f32.mrb[0].mxu0
    %v780 = vadd.f32 %v416, %v779
    %781 = vmatprep.mubr.bf16.mxu0 %v340
    %782 = vmatmul.mubr.bf16.gmra.mrb[0].mxu0 %v339
    %v783 = vpop.f32.mrb[0].mxu0
    %v784 = vadd.f32 %v412, %v783
    %v785 = vpop.f32.mrb[0].mxu0
    %v786 = vadd.f32 %v416, %v785
    %v787 = vpop.f32.mrb[0].mxu0
    %v788 = vadd.f32 %v412, %v787
    %v789 = vpop.f32.mrb[0].mxu0
    %v790 = vadd.f32 %v416, %v789
    %791 = vdwg.mxu0
    %792 = vmatprep.subr.bf16.mxu0 %v644
    %793 = vmatpush1.bf16.msra.mxu0 %v643
    %794 = vmatprep.subr.bf16.mxu0 %v646
    %795 = vmatpush1.bf16.msra.mxu0 %v645
    %796 = vmatprep.subr.bf16.mxu0 %v648
    %797 = vmatpush1.bf16.msra.mxu0 %v647
    %798 = vmatprep.subr.bf16.mxu0 %v650
    %799 = vmatpush1.bf16.msra.mxu0 %v649
    %800 = vmatprep.subr.bf16.mxu0 %v652
    %801 = vmatpush1.bf16.msra.mxu0 %v651
    %802 = vmatprep.subr.bf16.mxu0 %v654
    %803 = vmatpush1.bf16.msra.mxu0 %v653
    %804 = vmatprep.subr.bf16.mxu0 %v656
    %805 = vmatpush1.bf16.msra.mxu0 %v655
    %806 = vmatprep.subr.bf16.mxu0 %v658
    %807 = vmatpush1.bf16.msra.mxu0 %v657
    %808 = vmatprep.subr.bf16.mxu0 %v660
    %809 = vmatpush1.bf16.msra.mxu0 %v659
    %810 = vmatprep.subr.bf16.mxu0 %v662
    %811 = vmatpush1.bf16.msra.mxu0 %v661
    %812 = vmatprep.subr.bf16.mxu0 %v664
    %813 = vmatpush1.bf16.msra.mxu0 %v663
    %814 = vmatprep.subr.bf16.mxu0 %v666
    %815 = vmatpush1.bf16.msra.mxu0 %v665
    %816 = vmatprep.subr.bf16.mxu0 %v668
    %817 = vmatpush1.bf16.msra.mxu0 %v667
    %818 = vmatprep.subr.bf16.mxu0 %v670
    %819 = vmatpush1.bf16.msra.mxu0 %v669
    %820 = vmatprep.subr.bf16.mxu0 %v672
    %821 = vmatpush1.bf16.msra.mxu0 %v671
    %822 = vmatprep.subr.bf16.mxu0 %v674
    %823 = vmatpush1.bf16.msra.mxu0 %v673
    %824 = vmatprep.mubr.bf16.mxu0 %v338
    %825 = vmatmul.mubr.bf16.gmra.mrb[0].mxu0 %v337
    %v826 = vpop.f32.mrb[0].mxu0
    %v827 = vadd.f32 %v774, %v826
    %v828 = vpop.f32.mrb[0].mxu0
    %v829 = vadd.f32 %v776, %v828
    %v830 = vpop.f32.mrb[0].mxu0
    %v831 = vadd.f32 %v778, %v830
    %v832 = vpop.f32.mrb[0].mxu0
    %v833 = vadd.f32 %v780, %v832
    %834 = vmatprep.mubr.bf16.mxu0 %v342
    %835 = vmatmul.mubr.bf16.gmra.mrb[0].mxu0 %v341
    %v836 = vpop.f32.mrb[0].mxu0
    %v837 = vadd.f32 %v784, %v836
    %v838 = vpop.f32.mrb[0].mxu0
    %v839 = vadd.f32 %v786, %v838
    %v840 = vpop.f32.mrb[0].mxu0
    %v841 = vadd.f32 %v788, %v840
    %v842 = vpop.f32.mrb[0].mxu0
    %v843 = vadd.f32 %v790, %v842
    %844 = vdwg.mxu0
    %v845 = vmax.f32 %v827, 0.0
    %v846 = vmax.f32 %v829, 0.0
    %v847 = vmax.f32 %v831, 0.0
    %v848 = vmax.f32 %v833, 0.0
    %v849 = vmax.f32 %v837, 0.0
    %v850 = vmax.f32 %v839, 0.0
    %v851 = vmax.f32 %v841, 0.0
    %v852 = vmax.f32 %v843, 0.0
    %vm853 = vcmask 1043456
    %v854 = vsel %vm853, %v845, -inf
    %v855 = vrot.slane %v854, 4
    %v856 = vmax.f32 %v854, %v855
    %v857 = vrot.slane %v856, 2
    %v858 = vmax.f32 %v856, %v857
    %v859 = vrot.slane %v858, 1
    %v860 = vmax.f32 %v858, %v859
    %v861 = vsel %vm853, %v846, -inf
    %v862 = vrot.slane %v861, 4
    %v863 = vmax.f32 %v861, %v862
    %v864 = vrot.slane %v863, 2
    %v865 = vmax.f32 %v863, %v864
    %v866 = vrot.slane %v865, 1
    %v867 = vmax.f32 %v865, %v866
    %v868 = vsel %vm853, %v849, -inf
    %v869 = vrot.slane %v868, 4
    %v870 = vmax.f32 %v868, %v869
    %v871 = vrot.slane %v870, 2
    %v872 = vmax.f32 %v870, %v871
    %v873 = vrot.slane %v872, 1
    %v874 = vmax.f32 %v872, %v873
    %v875 = vsel %vm853, %v850, -inf
    %v876 = vrot.slane %v875, 4
    %v877 = vmax.f32 %v875, %v876
    %v878 = vrot.slane %v877, 2
    %v879 = vmax.f32 %v877, %v878
    %v880 = vrot.slane %v879, 1
    %v881 = vmax.f32 %v879, %v880
    %vm882 = vcmask 1047556
    %v883 = vsel %vm882, %v845, -inf
    %v884 = vrot.slane %v883, 4
    %v885 = vmax.f32 %v883, %v884
    %v886 = vrot.slane %v885, 2
    %v887 = vmax.f32 %v885, %v886
    %v888 = vrot.slane %v887, 1
    %v889 = vmax.f32 %v887, %v888
    %v890 = vsel %vm882, %v846, -inf
    %v891 = vrot.slane %v890, 4
    %v892 = vmax.f32 %v890, %v891
    %v893 = vrot.slane %v892, 2
    %v894 = vmax.f32 %v892, %v893
    %v895 = vrot.slane %v894, 1
    %v896 = vmax.f32 %v894, %v895
    %v897 = vsel %vm882, %v849, -inf
    %v898 = vrot.slane %v897, 4
    %v899 = vmax.f32 %v897, %v898
    %v900 = vrot.slane %v899, 2
    %v901 = vmax.f32 %v899, %v900
    %v902 = vrot.slane %v901, 1
    %v903 = vmax.f32 %v901, %v902
    %v904 = vsel %vm882, %v850, -inf
    %v905 = vrot.slane %v904, 4
    %v906 = vmax.f32 %v904, %v905
    %v907 = vrot.slane %v906, 2
    %v908 = vmax.f32 %v906, %v907
    %v909 = vrot.slane %v908, 1
    %v910 = vmax.f32 %v908, %v909
    %v911 = vsel %vm853, %v847, -inf
    %v912 = vrot.slane %v911, 4
    %v913 = vmax.f32 %v911, %v912
    %v914 = vrot.slane %v913, 2
    %v915 = vmax.f32 %v913, %v914
    %v916 = vrot.slane %v915, 1
    %v917 = vmax.f32 %v915, %v916
    %v918 = vsel %vm853, %v848, -inf
    %v919 = vrot.slane %v918, 4
    %v920 = vmax.f32 %v918, %v919
    %v921 = vrot.slane %v920, 2
    %v922 = vmax.f32 %v920, %v921
    %v923 = vrot.slane %v922, 1
    %v924 = vmax.f32 %v922, %v923
    %v925 = vsel %vm853, %v851, -inf
    %v926 = vrot.slane %v925, 4
    %v927 = vmax.f32 %v925, %v926
    %v928 = vrot.slane %v927, 2
    %v929 = vmax.f32 %v927, %v928
    %v930 = vrot.slane %v929, 1
    %v931 = vmax.f32 %v929, %v930
    %v932 = vsel %vm853, %v852, -inf
    %v933 = vrot.slane %v932, 4
    %v934 = vmax.f32 %v932, %v933
    %v935 = vrot.slane %v934, 2
    %v936 = vmax.f32 %v934, %v935
    %v937 = vrot.slane %v936, 1
    %v938 = vmax.f32 %v936, %v937
    %v939 = vsel %vm882, %v847, -inf
    %v940 = vrot.slane %v939, 4
    %v941 = vmax.f32 %v939, %v940
    %v942 = vrot.slane %v941, 2
    %v943 = vmax.f32 %v941, %v942
    %v944 = vrot.slane %v943, 1
    %v945 = vmax.f32 %v943, %v944
    %v946 = vsel %vm882, %v848, -inf
    %v947 = vrot.slane %v946, 4
    %v948 = vmax.f32 %v946, %v947
    %v949 = vrot.slane %v948, 2
    %v950 = vmax.f32 %v948, %v949
    %v951 = vrot.slane %v950, 1
    %v952 = vmax.f32 %v950, %v951
    %v953 = vsel %vm882, %v851, -inf
    %v954 = vrot.slane %v953, 4
    %v955 = vmax.f32 %v953, %v954
    %v956 = vrot.slane %v955, 2
    %v957 = vmax.f32 %v955, %v956
    %v958 = vrot.slane %v957, 1
    %v959 = vmax.f32 %v957, %v958
    %v960 = vsel %vm882, %v852, -inf
    %v961 = vrot.slane %v960, 4
    %v962 = vmax.f32 %v960, %v961
    %v963 = vrot.slane %v962, 2
    %v964 = vmax.f32 %v962, %v963
    %v965 = vrot.slane %v964, 1
    %v966 = vmax.f32 %v964, %v965
    %vm971 = vcmask 1041409
    %v972 = vsel %vm971, %v874, %v860
    %v973 = vsel %vm971, %v881, %v867
    %vm980 = vcmask 1043459
    %v981 = vsel %vm980, %v903, %v889
    %v982 = vsel %vm980, %v910, %v896
    %vm989 = vcmask 1045509
    %v990 = vsel %vm989, %v931, %v917
    %v991 = vsel %vm989, %v938, %v924
    %vm998 = vcmask 1047559
    %v999 = vsel %vm998, %v959, %v945
    %v1000 = vsel %vm998, %v966, %v952
    %v1003 = vsel %vm269, %v972, %v981
    %v1004 = vsel %vm269, %v973, %v982
    %v1005 = vsel %vm853, %v1003, %v990
    %v1006 = vsel %vm853, %v1004, %v991
    %v1007 = vsel %vm305, %v1005, %v999
    %v1008 = vsel %vm305, %v1006, %v1000
    %v1009 = vpack.c.bf16 %v1007, %v1007
    %v1010 = vpack.c.bf16 %v1008, %v1008
    %v1011 = vld [vmem:[#allocation8] sm:$0xff]
    %v1012 = vld [vmem:[#allocation8 + $0x8] sm:$0xff]
    %v1013 = vld [vmem:[#allocation8 + $0x10] sm:$0xff]
    %v1014 = vld [vmem:[#allocation8 + $0x18] sm:$0xff]
    %v1015 = vld [vmem:[#allocation8 + $0x20] sm:$0xff]
    %v1016 = vld [vmem:[#allocation8 + $0x28] sm:$0xff]
    %v1017 = vld [vmem:[#allocation8 + $0x30] sm:$0xff]
    %v1018 = vld [vmem:[#allocation8 + $0x38] sm:$0xff]
    %v1019 = vld [vmem:[#allocation8 + $0x40] sm:$0xff]
    %v1020 = vld [vmem:[#allocation8 + $0x48] sm:$0xff]
    %v1021 = vld [vmem:[#allocation8 + $0x50] sm:$0xff]
    %v1022 = vld [vmem:[#allocation8 + $0x58] sm:$0xff]
    %v1023 = vld [vmem:[#allocation8 + $0x60] sm:$0xff]
    %v1024 = vld [vmem:[#allocation8 + $0x68] sm:$0xff]
    %v1025 = vld [vmem:[#allocation8 + $0x70] sm:$0xff]
    %v1026 = vld [vmem:[#allocation8 + $0x78] sm:$0xff]
    %v1027 = vld [vmem:[#allocation8 + $0x80] sm:$0xff]
    %v1028 = vld [vmem:[#allocation8 + $0x88] sm:$0xff]
    %v1029 = vld [vmem:[#allocation8 + $0x90] sm:$0xff]
    %v1030 = vld [vmem:[#allocation8 + $0x98] sm:$0xff]
    %v1031 = vld [vmem:[#allocation8 + $0xa0] sm:$0xff]
    %v1032 = vld [vmem:[#allocation8 + $0xa8] sm:$0xff]
    %v1033 = vld [vmem:[#allocation8 + $0xb0] sm:$0xff]
    %v1034 = vld [vmem:[#allocation8 + $0xb8] sm:$0xff]
    %v1035 = vld [vmem:[#allocation8 + $0xc0] sm:$0xff]
    %v1036 = vld [vmem:[#allocation8 + $0xc8] sm:$0xff]
    %v1037 = vld [vmem:[#allocation8 + $0xd0] sm:$0xff]
    %v1038 = vld [vmem:[#allocation8 + $0xd8] sm:$0xff]
    %v1039 = vld [vmem:[#allocation8 + $0xe0] sm:$0xff]
    %v1040 = vld [vmem:[#allocation8 + $0xe8] sm:$0xff]
    %v1041 = vld [vmem:[#allocation8 + $0xf0] sm:$0xff]
    %v1042 = vld [vmem:[#allocation8 + $0xf8] sm:$0xff]
    %v1043 = vld [vmem:[#allocation8 + $0x100] sm:$0xff]
    %v1044 = vld [vmem:[#allocation8 + $0x108] sm:$0xff]
    %v1045 = vld [vmem:[#allocation8 + $0x110] sm:$0xff]
    %v1046 = vld [vmem:[#allocation8 + $0x118] sm:$0xff]
    %v1047 = vld [vmem:[#allocation8 + $0x120] sm:$0xff]
    %v1048 = vld [vmem:[#allocation8 + $0x128] sm:$0xff]
    %v1049 = vld [vmem:[#allocation8 + $0x130] sm:$0xff]
    %v1050 = vld [vmem:[#allocation8 + $0x138] sm:$0xff]
    %v1051 = vld [vmem:[#allocation8 + $0x140] sm:$0xff]
    %v1052 = vld [vmem:[#allocation8 + $0x148] sm:$0xff]
    %v1053 = vld [vmem:[#allocation8 + $0x150] sm:$0xff]
    %v1054 = vld [vmem:[#allocation8 + $0x158] sm:$0xff]
    %v1055 = vld [vmem:[#allocation8 + $0x160] sm:$0xff]
    %v1056 = vld [vmem:[#allocation8 + $0x168] sm:$0xff]
    %v1057 = vld [vmem:[#allocation8 + $0x170] sm:$0xff]
    %v1058 = vld [vmem:[#allocation8 + $0x178] sm:$0xff]
    %v1059 = vld [vmem:[#allocation8 + $0x180] sm:$0xff]
    %v1060 = vld [vmem:[#allocation8 + $0x188] sm:$0xff]
    %v1061 = vld [vmem:[#allocation8 + $0x190] sm:$0xff]
    %v1062 = vld [vmem:[#allocation8 + $0x198] sm:$0xff]
    %v1063 = vld [vmem:[#allocation8 + $0x1a0] sm:$0xff]
    %v1064 = vld [vmem:[#allocation8 + $0x1a8] sm:$0xff]
    %v1065 = vld [vmem:[#allocation8 + $0x1b0] sm:$0xff]
    %v1066 = vld [vmem:[#allocation8 + $0x1b8] sm:$0xff]
    %v1067 = vld [vmem:[#allocation8 + $0x1c0] sm:$0xff]
    %v1068 = vld [vmem:[#allocation8 + $0x1c8] sm:$0xff]
    %v1069 = vld [vmem:[#allocation8 + $0x1d0] sm:$0xff]
    %v1070 = vld [vmem:[#allocation8 + $0x1d8] sm:$0xff]
    %v1071 = vld [vmem:[#allocation8 + $0x1e0] sm:$0xff]
    %v1072 = vld [vmem:[#allocation8 + $0x1e8] sm:$0xff]
    %v1073 = vld [vmem:[#allocation8 + $0x1f0] sm:$0xff]
    %v1074 = vld [vmem:[#allocation8 + $0x1f8] sm:$0xff]
    %v1075 = vld [vmem:[#allocation8 + $0x200] sm:$0xff]
    %v1076 = vld [vmem:[#allocation8 + $0x208] sm:$0xff]
    %v1077 = vld [vmem:[#allocation8 + $0x210] sm:$0xff]
    %v1078 = vld [vmem:[#allocation8 + $0x218] sm:$0xff]
    %v1079 = vld [vmem:[#allocation8 + $0x220] sm:$0xff]
    %v1080 = vld [vmem:[#allocation8 + $0x228] sm:$0xff]
    %v1081 = vld [vmem:[#allocation8 + $0x230] sm:$0xff]
    %v1082 = vld [vmem:[#allocation8 + $0x238] sm:$0xff]
    %v1083 = vld [vmem:[#allocation8 + $0x240] sm:$0xff]
    %v1084 = vld [vmem:[#allocation8 + $0x248] sm:$0xff]
    %v1085 = vld [vmem:[#allocation8 + $0x250] sm:$0xff]
    %v1086 = vld [vmem:[#allocation8 + $0x258] sm:$0xff]
    %v1087 = vld [vmem:[#allocation8 + $0x260] sm:$0xff]
    %v1088 = vld [vmem:[#allocation8 + $0x268] sm:$0xff]
    %v1089 = vld [vmem:[#allocation8 + $0x270] sm:$0xff]
    %v1090 = vld [vmem:[#allocation8 + $0x278] sm:$0xff]
    %v1091 = vld [vmem:[#allocation8 + $0x280] sm:$0xff]
    %v1092 = vld [vmem:[#allocation8 + $0x288] sm:$0xff]
    %v1093 = vld [vmem:[#allocation8 + $0x290] sm:$0xff]
    %v1094 = vld [vmem:[#allocation8 + $0x298] sm:$0xff]
    %v1095 = vld [vmem:[#allocation8 + $0x2a0] sm:$0xff]
    %v1096 = vld [vmem:[#allocation8 + $0x2a8] sm:$0xff]
    %v1097 = vld [vmem:[#allocation8 + $0x2b0] sm:$0xff]
    %v1098 = vld [vmem:[#allocation8 + $0x2b8] sm:$0xff]
    %v1099 = vld [vmem:[#allocation8 + $0x2c0] sm:$0xff]
    %v1100 = vld [vmem:[#allocation8 + $0x2c8] sm:$0xff]
    %v1101 = vld [vmem:[#allocation8 + $0x2d0] sm:$0xff]
    %v1102 = vld [vmem:[#allocation8 + $0x2d8] sm:$0xff]
    %v1103 = vld [vmem:[#allocation8 + $0x2e0] sm:$0xff]
    %v1104 = vld [vmem:[#allocation8 + $0x2e8] sm:$0xff]
    %v1105 = vld [vmem:[#allocation8 + $0x2f0] sm:$0xff]
    %v1106 = vld [vmem:[#allocation8 + $0x2f8] sm:$0xff]
    %v1107 = vld [vmem:[#allocation8 + $0x300] sm:$0xff]
    %v1108 = vld [vmem:[#allocation8 + $0x308] sm:$0xff]
    %v1109 = vld [vmem:[#allocation8 + $0x310] sm:$0xff]
    %v1110 = vld [vmem:[#allocation8 + $0x318] sm:$0xff]
    %v1111 = vld [vmem:[#allocation8 + $0x320] sm:$0xff]
    %v1112 = vld [vmem:[#allocation8 + $0x328] sm:$0xff]
    %v1113 = vld [vmem:[#allocation8 + $0x330] sm:$0xff]
    %v1114 = vld [vmem:[#allocation8 + $0x338] sm:$0xff]
    %v1115 = vld [vmem:[#allocation8 + $0x340] sm:$0xff]
    %v1116 = vld [vmem:[#allocation8 + $0x348] sm:$0xff]
    %v1117 = vld [vmem:[#allocation8 + $0x350] sm:$0xff]
    %v1118 = vld [vmem:[#allocation8 + $0x358] sm:$0xff]
    %v1119 = vld [vmem:[#allocation8 + $0x360] sm:$0xff]
    %v1120 = vld [vmem:[#allocation8 + $0x368] sm:$0xff]
    %v1121 = vld [vmem:[#allocation8 + $0x370] sm:$0xff]
    %v1122 = vld [vmem:[#allocation8 + $0x378] sm:$0xff]
    %v1123 = vld [vmem:[#allocation8 + $0x380] sm:$0xff]
    %v1124 = vld [vmem:[#allocation8 + $0x388] sm:$0xff]
    %v1125 = vld [vmem:[#allocation8 + $0x390] sm:$0xff]
    %v1126 = vld [vmem:[#allocation8 + $0x398] sm:$0xff]
    %v1127 = vld [vmem:[#allocation8 + $0x3a0] sm:$0xff]
    %v1128 = vld [vmem:[#allocation8 + $0x3a8] sm:$0xff]
    %v1129 = vld [vmem:[#allocation8 + $0x3b0] sm:$0xff]
    %v1130 = vld [vmem:[#allocation8 + $0x3b8] sm:$0xff]
    %v1131 = vld [vmem:[#allocation8 + $0x3c0] sm:$0xff]
    %v1132 = vld [vmem:[#allocation8 + $0x3c8] sm:$0xff]
    %v1133 = vld [vmem:[#allocation8 + $0x3d0] sm:$0xff]
    %v1134 = vld [vmem:[#allocation8 + $0x3d8] sm:$0xff]
    %v1135 = vld [vmem:[#allocation8 + $0x3e0] sm:$0xff]
    %v1136 = vld [vmem:[#allocation8 + $0x3e8] sm:$0xff]
    %v1137 = vld [vmem:[#allocation8 + $0x3f0] sm:$0xff]
    %v1138 = vld [vmem:[#allocation8 + $0x3f8] sm:$0xff]
    %v1139 = vld [vmem:[#allocation8 + $0x400] sm:$0xff]
    %v1140 = vld [vmem:[#allocation8 + $0x408] sm:$0xff]
    %v1141 = vld [vmem:[#allocation8 + $0x410] sm:$0xff]
    %v1142 = vld [vmem:[#allocation8 + $0x418] sm:$0xff]
    %v1143 = vld [vmem:[#allocation8 + $0x420] sm:$0xff]
    %v1144 = vld [vmem:[#allocation8 + $0x428] sm:$0xff]
    %v1145 = vld [vmem:[#allocation8 + $0x430] sm:$0xff]
    %v1146 = vld [vmem:[#allocation8 + $0x438] sm:$0xff]
    %v1147 = vld [vmem:[#allocation8 + $0x440] sm:$0xff]
    %v1148 = vld [vmem:[#allocation8 + $0x448] sm:$0xff]
    %v1149 = vld [vmem:[#allocation8 + $0x450] sm:$0xff]
    %v1150 = vld [vmem:[#allocation8 + $0x458] sm:$0xff]
    %v1151 = vld [vmem:[#allocation8 + $0x460] sm:$0xff]
    %v1152 = vld [vmem:[#allocation8 + $0x468] sm:$0xff]
    %v1153 = vld [vmem:[#allocation8 + $0x470] sm:$0xff]
    %v1154 = vld [vmem:[#allocation8 + $0x478] sm:$0xff]
    %v1155 = vld [vmem:[#allocation8 + $0x480] sm:$0xff]
    %v1156 = vld [vmem:[#allocation8 + $0x488] sm:$0xff]
    %v1157 = vld [vmem:[#allocation8 + $0x490] sm:$0xff]
    %v1158 = vld [vmem:[#allocation8 + $0x498] sm:$0xff]
    %v1159 = vld [vmem:[#allocation8 + $0x4a0] sm:$0xff]
    %v1160 = vld [vmem:[#allocation8 + $0x4a8] sm:$0xff]
    %v1161 = vld [vmem:[#allocation8 + $0x4b0] sm:$0xff]
    %v1162 = vld [vmem:[#allocation8 + $0x4b8] sm:$0xff]
    %v1163 = vld [vmem:[#allocation8 + $0x4c0] sm:$0xff]
    %v1164 = vld [vmem:[#allocation8 + $0x4c8] sm:$0xff]
    %v1165 = vld [vmem:[#allocation8 + $0x4d0] sm:$0xff]
    %v1166 = vld [vmem:[#allocation8 + $0x4d8] sm:$0xff]
    %v1167 = vld [vmem:[#allocation8 + $0x4e0] sm:$0xff]
    %v1168 = vld [vmem:[#allocation8 + $0x4e8] sm:$0xff]
    %v1169 = vld [vmem:[#allocation8 + $0x4f0] sm:$0xff]
    %v1170 = vld [vmem:[#allocation8 + $0x4f8] sm:$0xff]
    %v1171 = vld [vmem:[#allocation8 + $0x500] sm:$0xff]
    %v1172 = vld [vmem:[#allocation8 + $0x508] sm:$0xff]
    %v1173 = vld [vmem:[#allocation8 + $0x510] sm:$0xff]
    %v1174 = vld [vmem:[#allocation8 + $0x518] sm:$0xff]
    %v1175 = vld [vmem:[#allocation8 + $0x520] sm:$0xff]
    %v1176 = vld [vmem:[#allocation8 + $0x528] sm:$0xff]
    %v1177 = vld [vmem:[#allocation8 + $0x530] sm:$0xff]
    %v1178 = vld [vmem:[#allocation8 + $0x538] sm:$0xff]
    %v1179 = vld [vmem:[#allocation8 + $0x540] sm:$0xff]
    %v1180 = vld [vmem:[#allocation8 + $0x548] sm:$0xff]
    %v1181 = vld [vmem:[#allocation8 + $0x550] sm:$0xff]
    %v1182 = vld [vmem:[#allocation8 + $0x558] sm:$0xff]
    %v1183 = vld [vmem:[#allocation8 + $0x560] sm:$0xff]
    %v1184 = vld [vmem:[#allocation8 + $0x568] sm:$0xff]
    %v1185 = vld [vmem:[#allocation8 + $0x570] sm:$0xff]
    %v1186 = vld [vmem:[#allocation8 + $0x578] sm:$0xff]
    %v1187 = vld [vmem:[#allocation8 + $0x580] sm:$0xff]
    %v1188 = vld [vmem:[#allocation8 + $0x588] sm:$0xff]
    %v1189 = vld [vmem:[#allocation8 + $0x590] sm:$0xff]
    %v1190 = vld [vmem:[#allocation8 + $0x598] sm:$0xff]
    %v1191 = vld [vmem:[#allocation8 + $0x5a0] sm:$0xff]
    %v1192 = vld [vmem:[#allocation8 + $0x5a8] sm:$0xff]
    %v1193 = vld [vmem:[#allocation8 + $0x5b0] sm:$0xff]
    %v1194 = vld [vmem:[#allocation8 + $0x5b8] sm:$0xff]
    %v1195 = vld [vmem:[#allocation8 + $0x5c0] sm:$0xff]
    %v1196 = vld [vmem:[#allocation8 + $0x5c8] sm:$0xff]
    %v1197 = vld [vmem:[#allocation8 + $0x5d0] sm:$0xff]
    %v1198 = vld [vmem:[#allocation8 + $0x5d8] sm:$0xff]
    %v1199 = vld [vmem:[#allocation8 + $0x5e0] sm:$0xff]
    %v1200 = vld [vmem:[#allocation8 + $0x5e8] sm:$0xff]
    %v1201 = vld [vmem:[#allocation8 + $0x5f0] sm:$0xff]
    %v1202 = vld [vmem:[#allocation8 + $0x5f8] sm:$0xff]
    %v1203 = vld [vmem:[#allocation8 + $0x600] sm:$0xff]
    %v1204 = vld [vmem:[#allocation8 + $0x608] sm:$0xff]
    %v1205 = vld [vmem:[#allocation8 + $0x610] sm:$0xff]
    %v1206 = vld [vmem:[#allocation8 + $0x618] sm:$0xff]
    %v1207 = vld [vmem:[#allocation8 + $0x620] sm:$0xff]
    %v1208 = vld [vmem:[#allocation8 + $0x628] sm:$0xff]
    %v1209 = vld [vmem:[#allocation8 + $0x630] sm:$0xff]
    %v1210 = vld [vmem:[#allocation8 + $0x638] sm:$0xff]
    %v1211 = vld [vmem:[#allocation8 + $0x640] sm:$0xff]
    %v1212 = vld [vmem:[#allocation8 + $0x648] sm:$0xff]
    %v1213 = vld [vmem:[#allocation8 + $0x650] sm:$0xff]
    %v1214 = vld [vmem:[#allocation8 + $0x658] sm:$0xff]
    %v1215 = vld [vmem:[#allocation8 + $0x660] sm:$0xff]
    %v1216 = vld [vmem:[#allocation8 + $0x668] sm:$0xff]
    %v1217 = vld [vmem:[#allocation8 + $0x670] sm:$0xff]
    %v1218 = vld [vmem:[#allocation8 + $0x678] sm:$0xff]
    %v1219 = vld [vmem:[#allocation8 + $0x680] sm:$0xff]
    %v1220 = vld [vmem:[#allocation8 + $0x688] sm:$0xff]
    %v1221 = vld [vmem:[#allocation8 + $0x690] sm:$0xff]
    %v1222 = vld [vmem:[#allocation8 + $0x698] sm:$0xff]
    %v1223 = vld [vmem:[#allocation8 + $0x6a0] sm:$0xff]
    %v1224 = vld [vmem:[#allocation8 + $0x6a8] sm:$0xff]
    %v1225 = vld [vmem:[#allocation8 + $0x6b0] sm:$0xff]
    %v1226 = vld [vmem:[#allocation8 + $0x6b8] sm:$0xff]
    %v1227 = vld [vmem:[#allocation8 + $0x6c0] sm:$0xff]
    %v1228 = vld [vmem:[#allocation8 + $0x6c8] sm:$0xff]
    %v1229 = vld [vmem:[#allocation8 + $0x6d0] sm:$0xff]
    %v1230 = vld [vmem:[#allocation8 + $0x6d8] sm:$0xff]
    %v1231 = vld [vmem:[#allocation8 + $0x6e0] sm:$0xff]
    %v1232 = vld [vmem:[#allocation8 + $0x6e8] sm:$0xff]
    %v1233 = vld [vmem:[#allocation8 + $0x6f0] sm:$0xff]
    %v1234 = vld [vmem:[#allocation8 + $0x6f8] sm:$0xff]
    %v1235 = vld [vmem:[#allocation8 + $0x700] sm:$0xff]
    %v1236 = vld [vmem:[#allocation8 + $0x708] sm:$0xff]
    %v1237 = vld [vmem:[#allocation8 + $0x710] sm:$0xff]
    %v1238 = vld [vmem:[#allocation8 + $0x718] sm:$0xff]
    %v1239 = vld [vmem:[#allocation8 + $0x720] sm:$0xff]
    %v1240 = vld [vmem:[#allocation8 + $0x728] sm:$0xff]
    %v1241 = vld [vmem:[#allocation8 + $0x730] sm:$0xff]
    %v1242 = vld [vmem:[#allocation8 + $0x738] sm:$0xff]
    %v1243 = vld [vmem:[#allocation8 + $0x740] sm:$0xff]
    %v1244 = vld [vmem:[#allocation8 + $0x748] sm:$0xff]
    %v1245 = vld [vmem:[#allocation8 + $0x750] sm:$0xff]
    %v1246 = vld [vmem:[#allocation8 + $0x758] sm:$0xff]
    %v1247 = vld [vmem:[#allocation8 + $0x760] sm:$0xff]
    %v1248 = vld [vmem:[#allocation8 + $0x768] sm:$0xff]
    %v1249 = vld [vmem:[#allocation8 + $0x770] sm:$0xff]
    %v1250 = vld [vmem:[#allocation8 + $0x778] sm:$0xff]
    %v1251 = vld [vmem:[#allocation8 + $0x780] sm:$0xff]
    %v1252 = vld [vmem:[#allocation8 + $0x788] sm:$0xff]
    %v1253 = vld [vmem:[#allocation8 + $0x790] sm:$0xff]
    %v1254 = vld [vmem:[#allocation8 + $0x798] sm:$0xff]
    %v1255 = vld [vmem:[#allocation8 + $0x7a0] sm:$0xff]
    %v1256 = vld [vmem:[#allocation8 + $0x7a8] sm:$0xff]
    %v1257 = vld [vmem:[#allocation8 + $0x7b0] sm:$0xff]
    %v1258 = vld [vmem:[#allocation8 + $0x7b8] sm:$0xff]
    %v1259 = vld [vmem:[#allocation8 + $0x7c0] sm:$0xff]
    %v1260 = vld [vmem:[#allocation8 + $0x7c8] sm:$0xff]
    %v1261 = vld [vmem:[#allocation8 + $0x7d0] sm:$0xff]
    %v1262 = vld [vmem:[#allocation8 + $0x7d8] sm:$0xff]
    %v1263 = vld [vmem:[#allocation8 + $0x7e0] sm:$0xff]
    %v1264 = vld [vmem:[#allocation8 + $0x7e8] sm:$0xff]
    %v1265 = vld [vmem:[#allocation8 + $0x7f0] sm:$0xff]
    %v1266 = vld [vmem:[#allocation8 + $0x7f8] sm:$0xff]
    %v1267 = vld [vmem:[#allocation11] sm:$0xff]
    %v1268 = vld [vmem:[#allocation11 + $0x8] sm:$0xff]
    %v1271 = vlaneseq
    %v1272 = vshrl.u32 %v1271, 7
    %v1273 = vsub.s32 0, %v1272
    %v1274 = vrot.slane %v1267, %v1273
    %v1275 = vlaneseq
    %v1276 = vshrl.u32 %v1275, 7
    %v1277 = vsub.s32 1, %v1276
    %v1278 = vrot.slane %v1267, %v1277
    %v1279 = vlaneseq
    %v1280 = vshrl.u32 %v1279, 7
    %v1281 = vsub.s32 2, %v1280
    %v1282 = vrot.slane %v1267, %v1281
    %v1283 = vlaneseq
    %v1284 = vshrl.u32 %v1283, 7
    %v1285 = vsub.s32 3, %v1284
    %v1286 = vrot.slane %v1267, %v1285
    %v1287 = vlaneseq
    %v1288 = vshrl.u32 %v1287, 7
    %v1289 = vsub.s32 4, %v1288
    %v1290 = vrot.slane %v1267, %v1289
    %v1291 = vlaneseq
    %v1292 = vshrl.u32 %v1291, 7
    %v1293 = vsub.s32 5, %v1292
    %v1294 = vrot.slane %v1267, %v1293
    %v1295 = vlaneseq
    %v1296 = vshrl.u32 %v1295, 7
    %v1297 = vsub.s32 6, %v1296
    %v1298 = vrot.slane %v1267, %v1297
    %v1299 = vlaneseq
    %v1300 = vshrl.u32 %v1299, 7
    %v1301 = vsub.s32 7, %v1300
    %v1302 = vrot.slane %v1267, %v1301
    %v1303 = vlaneseq
    %v1304 = vshrl.u32 %v1303, 7
    %v1305 = vsub.s32 0, %v1304
    %v1306 = vrot.slane %v1268, %v1305
    %v1307 = vlaneseq
    %v1308 = vshrl.u32 %v1307, 7
    %v1309 = vsub.s32 1, %v1308
    %v1310 = vrot.slane %v1268, %v1309
    %v1311 = vlaneseq
    %v1312 = vshrl.u32 %v1311, 7
    %v1313 = vsub.s32 2, %v1312
    %v1314 = vrot.slane %v1268, %v1313
    %v1315 = vlaneseq
    %v1316 = vshrl.u32 %v1315, 7
    %v1317 = vsub.s32 3, %v1316
    %v1318 = vrot.slane %v1268, %v1317
    %v1319 = vlaneseq
    %v1320 = vshrl.u32 %v1319, 7
    %v1321 = vsub.s32 4, %v1320
    %v1322 = vrot.slane %v1268, %v1321
    %v1323 = vlaneseq
    %v1324 = vshrl.u32 %v1323, 7
    %v1325 = vsub.s32 5, %v1324
    %v1326 = vrot.slane %v1268, %v1325
    %v1327 = vlaneseq
    %v1328 = vshrl.u32 %v1327, 7
    %v1329 = vsub.s32 6, %v1328
    %v1330 = vrot.slane %v1268, %v1329
    %v1331 = vlaneseq
    %v1332 = vshrl.u32 %v1331, 7
    %v1333 = vsub.s32 7, %v1332
    %v1334 = vrot.slane %v1268, %v1333
    %v1607 = vunpack.c.l.b16 %v1011
    %v1608 = vunpack.c.h.b16 %v1011
    %v1609 = vunpack.c.l.b16 %v1012
    %v1610 = vunpack.c.h.b16 %v1012
    %v1611 = vunpack.c.l.b16 %v1013
    %v1612 = vunpack.c.h.b16 %v1013
    %v1613 = vunpack.c.l.b16 %v1014
    %v1614 = vunpack.c.h.b16 %v1014
    %v1615 = vunpack.c.l.b16 %v1015
    %v1616 = vunpack.c.h.b16 %v1015
    %v1617 = vunpack.c.l.b16 %v1016
    %v1618 = vunpack.c.h.b16 %v1016
    %v1619 = vunpack.c.l.b16 %v1017
    %v1620 = vunpack.c.h.b16 %v1017
    %v1621 = vunpack.c.l.b16 %v1018
    %v1622 = vunpack.c.h.b16 %v1018
    %v1623 = vunpack.c.l.b16 %v1019
    %v1624 = vunpack.c.h.b16 %v1019
    %v1625 = vunpack.c.l.b16 %v1020
    %v1626 = vunpack.c.h.b16 %v1020
    %v1627 = vunpack.c.l.b16 %v1021
    %v1628 = vunpack.c.h.b16 %v1021
    %v1629 = vunpack.c.l.b16 %v1022
    %v1630 = vunpack.c.h.b16 %v1022
    %v1631 = vunpack.c.l.b16 %v1023
    %v1632 = vunpack.c.h.b16 %v1023
    %v1633 = vunpack.c.l.b16 %v1024
    %v1634 = vunpack.c.h.b16 %v1024
    %v1635 = vunpack.c.l.b16 %v1025
    %v1636 = vunpack.c.h.b16 %v1025
    %v1637 = vunpack.c.l.b16 %v1026
    %v1638 = vunpack.c.h.b16 %v1026
    %v1639 = vunpack.c.l.b16 %v1027
    %v1640 = vunpack.c.h.b16 %v1027
    %v1641 = vunpack.c.l.b16 %v1028
    %v1642 = vunpack.c.h.b16 %v1028
    %v1643 = vunpack.c.l.b16 %v1029
    %v1644 = vunpack.c.h.b16 %v1029
    %v1645 = vunpack.c.l.b16 %v1030
    %v1646 = vunpack.c.h.b16 %v1030
    %v1647 = vunpack.c.l.b16 %v1031
    %v1648 = vunpack.c.h.b16 %v1031
    %v1649 = vunpack.c.l.b16 %v1032
    %v1650 = vunpack.c.h.b16 %v1032
    %v1651 = vunpack.c.l.b16 %v1033
    %v1652 = vunpack.c.h.b16 %v1033
    %v1653 = vunpack.c.l.b16 %v1034
    %v1654 = vunpack.c.h.b16 %v1034
    %v1655 = vunpack.c.l.b16 %v1035
    %v1656 = vunpack.c.h.b16 %v1035
    %v1657 = vunpack.c.l.b16 %v1036
    %v1658 = vunpack.c.h.b16 %v1036
    %v1659 = vunpack.c.l.b16 %v1037
    %v1660 = vunpack.c.h.b16 %v1037
    %v1661 = vunpack.c.l.b16 %v1038
    %v1662 = vunpack.c.h.b16 %v1038
    %v1663 = vunpack.c.l.b16 %v1039
    %v1664 = vunpack.c.h.b16 %v1039
    %v1665 = vunpack.c.l.b16 %v1040
    %v1666 = vunpack.c.h.b16 %v1040
    %v1667 = vunpack.c.l.b16 %v1041
    %v1668 = vunpack.c.h.b16 %v1041
    %v1669 = vunpack.c.l.b16 %v1042
    %v1670 = vunpack.c.h.b16 %v1042
    %v1671 = vunpack.c.l.b16 %v1043
    %v1672 = vunpack.c.h.b16 %v1043
    %v1673 = vunpack.c.l.b16 %v1044
    %v1674 = vunpack.c.h.b16 %v1044
    %v1675 = vunpack.c.l.b16 %v1045
    %v1676 = vunpack.c.h.b16 %v1045
    %v1677 = vunpack.c.l.b16 %v1046
    %v1678 = vunpack.c.h.b16 %v1046
    %v1679 = vunpack.c.l.b16 %v1047
    %v1680 = vunpack.c.h.b16 %v1047
    %v1681 = vunpack.c.l.b16 %v1048
    %v1682 = vunpack.c.h.b16 %v1048
    %v1683 = vunpack.c.l.b16 %v1049
    %v1684 = vunpack.c.h.b16 %v1049
    %v1685 = vunpack.c.l.b16 %v1050
    %v1686 = vunpack.c.h.b16 %v1050
    %v1687 = vunpack.c.l.b16 %v1051
    %v1688 = vunpack.c.h.b16 %v1051
    %v1689 = vunpack.c.l.b16 %v1052
    %v1690 = vunpack.c.h.b16 %v1052
    %v1691 = vunpack.c.l.b16 %v1053
    %v1692 = vunpack.c.h.b16 %v1053
    %v1693 = vunpack.c.l.b16 %v1054
    %v1694 = vunpack.c.h.b16 %v1054
    %v1695 = vunpack.c.l.b16 %v1055
    %v1696 = vunpack.c.h.b16 %v1055
    %v1697 = vunpack.c.l.b16 %v1056
    %v1698 = vunpack.c.h.b16 %v1056
    %v1699 = vunpack.c.l.b16 %v1057
    %v1700 = vunpack.c.h.b16 %v1057
    %v1701 = vunpack.c.l.b16 %v1058
    %v1702 = vunpack.c.h.b16 %v1058
    %v1703 = vunpack.c.l.b16 %v1059
    %v1704 = vunpack.c.h.b16 %v1059
    %v1705 = vunpack.c.l.b16 %v1060
    %v1706 = vunpack.c.h.b16 %v1060
    %v1707 = vunpack.c.l.b16 %v1061
    %v1708 = vunpack.c.h.b16 %v1061
    %v1709 = vunpack.c.l.b16 %v1062
    %v1710 = vunpack.c.h.b16 %v1062
    %v1711 = vunpack.c.l.b16 %v1063
    %v1712 = vunpack.c.h.b16 %v1063
    %v1713 = vunpack.c.l.b16 %v1064
    %v1714 = vunpack.c.h.b16 %v1064
    %v1715 = vunpack.c.l.b16 %v1065
    %v1716 = vunpack.c.h.b16 %v1065
    %v1717 = vunpack.c.l.b16 %v1066
    %v1718 = vunpack.c.h.b16 %v1066
    %v1719 = vunpack.c.l.b16 %v1067
    %v1720 = vunpack.c.h.b16 %v1067
    %v1721 = vunpack.c.l.b16 %v1068
    %v1722 = vunpack.c.h.b16 %v1068
    %v1723 = vunpack.c.l.b16 %v1069
    %v1724 = vunpack.c.h.b16 %v1069
    %v1725 = vunpack.c.l.b16 %v1070
    %v1726 = vunpack.c.h.b16 %v1070
    %v1727 = vunpack.c.l.b16 %v1071
    %v1728 = vunpack.c.h.b16 %v1071
    %v1729 = vunpack.c.l.b16 %v1072
    %v1730 = vunpack.c.h.b16 %v1072
    %v1731 = vunpack.c.l.b16 %v1073
    %v1732 = vunpack.c.h.b16 %v1073
    %v1733 = vunpack.c.l.b16 %v1074
    %v1734 = vunpack.c.h.b16 %v1074
    %v1735 = vunpack.c.l.b16 %v1075
    %v1736 = vunpack.c.h.b16 %v1075
    %v1737 = vunpack.c.l.b16 %v1076
    %v1738 = vunpack.c.h.b16 %v1076
    %v1739 = vunpack.c.l.b16 %v1077
    %v1740 = vunpack.c.h.b16 %v1077
    %v1741 = vunpack.c.l.b16 %v1078
    %v1742 = vunpack.c.h.b16 %v1078
    %v1743 = vunpack.c.l.b16 %v1079
    %v1744 = vunpack.c.h.b16 %v1079
    %v1745 = vunpack.c.l.b16 %v1080
    %v1746 = vunpack.c.h.b16 %v1080
    %v1747 = vunpack.c.l.b16 %v1081
    %v1748 = vunpack.c.h.b16 %v1081
    %v1749 = vunpack.c.l.b16 %v1082
    %v1750 = vunpack.c.h.b16 %v1082
    %v1751 = vunpack.c.l.b16 %v1083
    %v1752 = vunpack.c.h.b16 %v1083
    %v1753 = vunpack.c.l.b16 %v1084
    %v1754 = vunpack.c.h.b16 %v1084
    %v1755 = vunpack.c.l.b16 %v1085
    %v1756 = vunpack.c.h.b16 %v1085
    %v1757 = vunpack.c.l.b16 %v1086
    %v1758 = vunpack.c.h.b16 %v1086
    %v1759 = vunpack.c.l.b16 %v1087
    %v1760 = vunpack.c.h.b16 %v1087
    %v1761 = vunpack.c.l.b16 %v1088
    %v1762 = vunpack.c.h.b16 %v1088
    %v1763 = vunpack.c.l.b16 %v1089
    %v1764 = vunpack.c.h.b16 %v1089
    %v1765 = vunpack.c.l.b16 %v1090
    %v1766 = vunpack.c.h.b16 %v1090
    %v1767 = vunpack.c.l.b16 %v1091
    %v1768 = vunpack.c.h.b16 %v1091
    %v1769 = vunpack.c.l.b16 %v1092
    %v1770 = vunpack.c.h.b16 %v1092
    %v1771 = vunpack.c.l.b16 %v1093
    %v1772 = vunpack.c.h.b16 %v1093
    %v1773 = vunpack.c.l.b16 %v1094
    %v1774 = vunpack.c.h.b16 %v1094
    %v1775 = vunpack.c.l.b16 %v1095
    %v1776 = vunpack.c.h.b16 %v1095
    %v1777 = vunpack.c.l.b16 %v1096
    %v1778 = vunpack.c.h.b16 %v1096
    %v1779 = vunpack.c.l.b16 %v1097
    %v1780 = vunpack.c.h.b16 %v1097
    %v1781 = vunpack.c.l.b16 %v1098
    %v1782 = vunpack.c.h.b16 %v1098
    %v1783 = vunpack.c.l.b16 %v1099
    %v1784 = vunpack.c.h.b16 %v1099
    %v1785 = vunpack.c.l.b16 %v1100
    %v1786 = vunpack.c.h.b16 %v1100
    %v1787 = vunpack.c.l.b16 %v1101
    %v1788 = vunpack.c.h.b16 %v1101
    %v1789 = vunpack.c.l.b16 %v1102
    %v1790 = vunpack.c.h.b16 %v1102
    %v1791 = vunpack.c.l.b16 %v1103
    %v1792 = vunpack.c.h.b16 %v1103
    %v1793 = vunpack.c.l.b16 %v1104
    %v1794 = vunpack.c.h.b16 %v1104
    %v1795 = vunpack.c.l.b16 %v1105
    %v1796 = vunpack.c.h.b16 %v1105
    %v1797 = vunpack.c.l.b16 %v1106
    %v1798 = vunpack.c.h.b16 %v1106
    %v1799 = vunpack.c.l.b16 %v1107
    %v1800 = vunpack.c.h.b16 %v1107
    %v1801 = vunpack.c.l.b16 %v1108
    %v1802 = vunpack.c.h.b16 %v1108
    %v1803 = vunpack.c.l.b16 %v1109
    %v1804 = vunpack.c.h.b16 %v1109
    %v1805 = vunpack.c.l.b16 %v1110
    %v1806 = vunpack.c.h.b16 %v1110
    %v1807 = vunpack.c.l.b16 %v1111
    %v1808 = vunpack.c.h.b16 %v1111
    %v1809 = vunpack.c.l.b16 %v1112
    %v1810 = vunpack.c.h.b16 %v1112
    %v1811 = vunpack.c.l.b16 %v1113
    %v1812 = vunpack.c.h.b16 %v1113
    %v1813 = vunpack.c.l.b16 %v1114
    %v1814 = vunpack.c.h.b16 %v1114
    %v1815 = vunpack.c.l.b16 %v1115
    %v1816 = vunpack.c.h.b16 %v1115
    %v1817 = vunpack.c.l.b16 %v1116
    %v1818 = vunpack.c.h.b16 %v1116
    %v1819 = vunpack.c.l.b16 %v1117
    %v1820 = vunpack.c.h.b16 %v1117
    %v1821 = vunpack.c.l.b16 %v1118
    %v1822 = vunpack.c.h.b16 %v1118
    %v1823 = vunpack.c.l.b16 %v1119
    %v1824 = vunpack.c.h.b16 %v1119
    %v1825 = vunpack.c.l.b16 %v1120
    %v1826 = vunpack.c.h.b16 %v1120
    %v1827 = vunpack.c.l.b16 %v1121
    %v1828 = vunpack.c.h.b16 %v1121
    %v1829 = vunpack.c.l.b16 %v1122
    %v1830 = vunpack.c.h.b16 %v1122
    %v1831 = vunpack.c.l.b16 %v1123
    %v1832 = vunpack.c.h.b16 %v1123
    %v1833 = vunpack.c.l.b16 %v1124
    %v1834 = vunpack.c.h.b16 %v1124
    %v1835 = vunpack.c.l.b16 %v1125
    %v1836 = vunpack.c.h.b16 %v1125
    %v1837 = vunpack.c.l.b16 %v1126
    %v1838 = vunpack.c.h.b16 %v1126
    %v1839 = vunpack.c.l.b16 %v1127
    %v1840 = vunpack.c.h.b16 %v1127
    %v1841 = vunpack.c.l.b16 %v1128
    %v1842 = vunpack.c.h.b16 %v1128
    %v1843 = vunpack.c.l.b16 %v1129
    %v1844 = vunpack.c.h.b16 %v1129
    %v1845 = vunpack.c.l.b16 %v1130
    %v1846 = vunpack.c.h.b16 %v1130
    %v1847 = vunpack.c.l.b16 %v1131
    %v1848 = vunpack.c.h.b16 %v1131
    %v1849 = vunpack.c.l.b16 %v1132
    %v1850 = vunpack.c.h.b16 %v1132
    %v1851 = vunpack.c.l.b16 %v1133
    %v1852 = vunpack.c.h.b16 %v1133
    %v1853 = vunpack.c.l.b16 %v1134
    %v1854 = vunpack.c.h.b16 %v1134
    %v1855 = vunpack.c.l.b16 %v1135
    %v1856 = vunpack.c.h.b16 %v1135
    %v1857 = vunpack.c.l.b16 %v1136
    %v1858 = vunpack.c.h.b16 %v1136
    %v1859 = vunpack.c.l.b16 %v1137
    %v1860 = vunpack.c.h.b16 %v1137
    %v1861 = vunpack.c.l.b16 %v1138
    %v1862 = vunpack.c.h.b16 %v1138
    %v1863 = vunpack.c.l.b16 %v1139
    %v1864 = vunpack.c.h.b16 %v1139
    %v1865 = vunpack.c.l.b16 %v1140
    %v1866 = vunpack.c.h.b16 %v1140
    %v1867 = vunpack.c.l.b16 %v1141
    %v1868 = vunpack.c.h.b16 %v1141
    %v1869 = vunpack.c.l.b16 %v1142
    %v1870 = vunpack.c.h.b16 %v1142
    %v1871 = vunpack.c.l.b16 %v1143
    %v1872 = vunpack.c.h.b16 %v1143
    %v1873 = vunpack.c.l.b16 %v1144
    %v1874 = vunpack.c.h.b16 %v1144
    %v1875 = vunpack.c.l.b16 %v1145
    %v1876 = vunpack.c.h.b16 %v1145
    %v1877 = vunpack.c.l.b16 %v1146
    %v1878 = vunpack.c.h.b16 %v1146
    %v1879 = vunpack.c.l.b16 %v1147
    %v1880 = vunpack.c.h.b16 %v1147
    %v1881 = vunpack.c.l.b16 %v1148
    %v1882 = vunpack.c.h.b16 %v1148
    %v1883 = vunpack.c.l.b16 %v1149
    %v1884 = vunpack.c.h.b16 %v1149
    %v1885 = vunpack.c.l.b16 %v1150
    %v1886 = vunpack.c.h.b16 %v1150
    %v1887 = vunpack.c.l.b16 %v1151
    %v1888 = vunpack.c.h.b16 %v1151
    %v1889 = vunpack.c.l.b16 %v1152
    %v1890 = vunpack.c.h.b16 %v1152
    %v1891 = vunpack.c.l.b16 %v1153
    %v1892 = vunpack.c.h.b16 %v1153
    %v1893 = vunpack.c.l.b16 %v1154
    %v1894 = vunpack.c.h.b16 %v1154
    %v1895 = vunpack.c.l.b16 %v1155
    %v1896 = vunpack.c.h.b16 %v1155
    %v1897 = vunpack.c.l.b16 %v1156
    %v1898 = vunpack.c.h.b16 %v1156
    %v1899 = vunpack.c.l.b16 %v1157
    %v1900 = vunpack.c.h.b16 %v1157
    %v1901 = vunpack.c.l.b16 %v1158
    %v1902 = vunpack.c.h.b16 %v1158
    %v1903 = vunpack.c.l.b16 %v1159
    %v1904 = vunpack.c.h.b16 %v1159
    %v1905 = vunpack.c.l.b16 %v1160
    %v1906 = vunpack.c.h.b16 %v1160
    %v1907 = vunpack.c.l.b16 %v1161
    %v1908 = vunpack.c.h.b16 %v1161
    %v1909 = vunpack.c.l.b16 %v1162
    %v1910 = vunpack.c.h.b16 %v1162
    %v1911 = vunpack.c.l.b16 %v1163
    %v1912 = vunpack.c.h.b16 %v1163
    %v1913 = vunpack.c.l.b16 %v1164
    %v1914 = vunpack.c.h.b16 %v1164
    %v1915 = vunpack.c.l.b16 %v1165
    %v1916 = vunpack.c.h.b16 %v1165
    %v1917 = vunpack.c.l.b16 %v1166
    %v1918 = vunpack.c.h.b16 %v1166
    %v1919 = vunpack.c.l.b16 %v1167
    %v1920 = vunpack.c.h.b16 %v1167
    %v1921 = vunpack.c.l.b16 %v1168
    %v1922 = vunpack.c.h.b16 %v1168
    %v1923 = vunpack.c.l.b16 %v1169
    %v1924 = vunpack.c.h.b16 %v1169
    %v1925 = vunpack.c.l.b16 %v1170
    %v1926 = vunpack.c.h.b16 %v1170
    %v1927 = vunpack.c.l.b16 %v1171
    %v1928 = vunpack.c.h.b16 %v1171
    %v1929 = vunpack.c.l.b16 %v1172
    %v1930 = vunpack.c.h.b16 %v1172
    %v1931 = vunpack.c.l.b16 %v1173
    %v1932 = vunpack.c.h.b16 %v1173
    %v1933 = vunpack.c.l.b16 %v1174
    %v1934 = vunpack.c.h.b16 %v1174
    %v1935 = vunpack.c.l.b16 %v1175
    %v1936 = vunpack.c.h.b16 %v1175
    %v1937 = vunpack.c.l.b16 %v1176
    %v1938 = vunpack.c.h.b16 %v1176
    %v1939 = vunpack.c.l.b16 %v1177
    %v1940 = vunpack.c.h.b16 %v1177
    %v1941 = vunpack.c.l.b16 %v1178
    %v1942 = vunpack.c.h.b16 %v1178
    %v1943 = vunpack.c.l.b16 %v1179
    %v1944 = vunpack.c.h.b16 %v1179
    %v1945 = vunpack.c.l.b16 %v1180
    %v1946 = vunpack.c.h.b16 %v1180
    %v1947 = vunpack.c.l.b16 %v1181
    %v1948 = vunpack.c.h.b16 %v1181
    %v1949 = vunpack.c.l.b16 %v1182
    %v1950 = vunpack.c.h.b16 %v1182
    %v1951 = vunpack.c.l.b16 %v1183
    %v1952 = vunpack.c.h.b16 %v1183
    %v1953 = vunpack.c.l.b16 %v1184
    %v1954 = vunpack.c.h.b16 %v1184
    %v1955 = vunpack.c.l.b16 %v1185
    %v1956 = vunpack.c.h.b16 %v1185
    %v1957 = vunpack.c.l.b16 %v1186
    %v1958 = vunpack.c.h.b16 %v1186
    %v1959 = vunpack.c.l.b16 %v1187
    %v1960 = vunpack.c.h.b16 %v1187
    %v1961 = vunpack.c.l.b16 %v1188
    %v1962 = vunpack.c.h.b16 %v1188
    %v1963 = vunpack.c.l.b16 %v1189
    %v1964 = vunpack.c.h.b16 %v1189
    %v1965 = vunpack.c.l.b16 %v1190
    %v1966 = vunpack.c.h.b16 %v1190
    %v1967 = vunpack.c.l.b16 %v1191
    %v1968 = vunpack.c.h.b16 %v1191
    %v1969 = vunpack.c.l.b16 %v1192
    %v1970 = vunpack.c.h.b16 %v1192
    %v1971 = vunpack.c.l.b16 %v1193
    %v1972 = vunpack.c.h.b16 %v1193
    %v1973 = vunpack.c.l.b16 %v1194
    %v1974 = vunpack.c.h.b16 %v1194
    %v1975 = vunpack.c.l.b16 %v1195
    %v1976 = vunpack.c.h.b16 %v1195
    %v1977 = vunpack.c.l.b16 %v1196
    %v1978 = vunpack.c.h.b16 %v1196
    %v1979 = vunpack.c.l.b16 %v1197
    %v1980 = vunpack.c.h.b16 %v1197
    %v1981 = vunpack.c.l.b16 %v1198
    %v1982 = vunpack.c.h.b16 %v1198
    %v1983 = vunpack.c.l.b16 %v1199
    %v1984 = vunpack.c.h.b16 %v1199
    %v1985 = vunpack.c.l.b16 %v1200
    %v1986 = vunpack.c.h.b16 %v1200
    %v1987 = vunpack.c.l.b16 %v1201
    %v1988 = vunpack.c.h.b16 %v1201
    %v1989 = vunpack.c.l.b16 %v1202
    %v1990 = vunpack.c.h.b16 %v1202
    %v1991 = vunpack.c.l.b16 %v1203
    %v1992 = vunpack.c.h.b16 %v1203
    %v1993 = vunpack.c.l.b16 %v1204
    %v1994 = vunpack.c.h.b16 %v1204
    %v1995 = vunpack.c.l.b16 %v1205
    %v1996 = vunpack.c.h.b16 %v1205
    %v1997 = vunpack.c.l.b16 %v1206
    %v1998 = vunpack.c.h.b16 %v1206
    %v1999 = vunpack.c.l.b16 %v1207
    %v2000 = vunpack.c.h.b16 %v1207
    %v2001 = vunpack.c.l.b16 %v1208
    %v2002 = vunpack.c.h.b16 %v1208
    %v2003 = vunpack.c.l.b16 %v1209
    %v2004 = vunpack.c.h.b16 %v1209
    %v2005 = vunpack.c.l.b16 %v1210
    %v2006 = vunpack.c.h.b16 %v1210
    %v2007 = vunpack.c.l.b16 %v1211
    %v2008 = vunpack.c.h.b16 %v1211
    %v2009 = vunpack.c.l.b16 %v1212
    %v2010 = vunpack.c.h.b16 %v1212
    %v2011 = vunpack.c.l.b16 %v1213
    %v2012 = vunpack.c.h.b16 %v1213
    %v2013 = vunpack.c.l.b16 %v1214
    %v2014 = vunpack.c.h.b16 %v1214
    %v2015 = vunpack.c.l.b16 %v1215
    %v2016 = vunpack.c.h.b16 %v1215
    %v2017 = vunpack.c.l.b16 %v1216
    %v2018 = vunpack.c.h.b16 %v1216
    %v2019 = vunpack.c.l.b16 %v1217
    %v2020 = vunpack.c.h.b16 %v1217
    %v2021 = vunpack.c.l.b16 %v1218
    %v2022 = vunpack.c.h.b16 %v1218
    %v2023 = vunpack.c.l.b16 %v1219
    %v2024 = vunpack.c.h.b16 %v1219
    %v2025 = vunpack.c.l.b16 %v1220
    %v2026 = vunpack.c.h.b16 %v1220
    %v2027 = vunpack.c.l.b16 %v1221
    %v2028 = vunpack.c.h.b16 %v1221
    %v2029 = vunpack.c.l.b16 %v1222
    %v2030 = vunpack.c.h.b16 %v1222
    %v2031 = vunpack.c.l.b16 %v1223
    %v2032 = vunpack.c.h.b16 %v1223
    %v2033 = vunpack.c.l.b16 %v1224
    %v2034 = vunpack.c.h.b16 %v1224
    %v2035 = vunpack.c.l.b16 %v1225
    %v2036 = vunpack.c.h.b16 %v1225
    %v2037 = vunpack.c.l.b16 %v1226
    %v2038 = vunpack.c.h.b16 %v1226
    %v2039 = vunpack.c.l.b16 %v1227
    %v2040 = vunpack.c.h.b16 %v1227
    %v2041 = vunpack.c.l.b16 %v1228
    %v2042 = vunpack.c.h.b16 %v1228
    %v2043 = vunpack.c.l.b16 %v1229
    %v2044 = vunpack.c.h.b16 %v1229
    %v2045 = vunpack.c.l.b16 %v1230
    %v2046 = vunpack.c.h.b16 %v1230
    %v2047 = vunpack.c.l.b16 %v1231
    %v2048 = vunpack.c.h.b16 %v1231
    %v2049 = vunpack.c.l.b16 %v1232
    %v2050 = vunpack.c.h.b16 %v1232
    %v2051 = vunpack.c.l.b16 %v1233
    %v2052 = vunpack.c.h.b16 %v1233
    %v2053 = vunpack.c.l.b16 %v1234
    %v2054 = vunpack.c.h.b16 %v1234
    %v2055 = vunpack.c.l.b16 %v1235
    %v2056 = vunpack.c.h.b16 %v1235
    %v2057 = vunpack.c.l.b16 %v1236
    %v2058 = vunpack.c.h.b16 %v1236
    %v2059 = vunpack.c.l.b16 %v1237
    %v2060 = vunpack.c.h.b16 %v1237
    %v2061 = vunpack.c.l.b16 %v1238
    %v2062 = vunpack.c.h.b16 %v1238
    %v2063 = vunpack.c.l.b16 %v1239
    %v2064 = vunpack.c.h.b16 %v1239
    %v2065 = vunpack.c.l.b16 %v1240
    %v2066 = vunpack.c.h.b16 %v1240
    %v2067 = vunpack.c.l.b16 %v1241
    %v2068 = vunpack.c.h.b16 %v1241
    %v2069 = vunpack.c.l.b16 %v1242
    %v2070 = vunpack.c.h.b16 %v1242
    %v2071 = vunpack.c.l.b16 %v1243
    %v2072 = vunpack.c.h.b16 %v1243
    %v2073 = vunpack.c.l.b16 %v1244
    %v2074 = vunpack.c.h.b16 %v1244
    %v2075 = vunpack.c.l.b16 %v1245
    %v2076 = vunpack.c.h.b16 %v1245
    %v2077 = vunpack.c.l.b16 %v1246
    %v2078 = vunpack.c.h.b16 %v1246
    %v2079 = vunpack.c.l.b16 %v1247
    %v2080 = vunpack.c.h.b16 %v1247
    %v2081 = vunpack.c.l.b16 %v1248
    %v2082 = vunpack.c.h.b16 %v1248
    %v2083 = vunpack.c.l.b16 %v1249
    %v2084 = vunpack.c.h.b16 %v1249
    %v2085 = vunpack.c.l.b16 %v1250
    %v2086 = vunpack.c.h.b16 %v1250
    %v2087 = vunpack.c.l.b16 %v1251
    %v2088 = vunpack.c.h.b16 %v1251
    %v2089 = vunpack.c.l.b16 %v1252
    %v2090 = vunpack.c.h.b16 %v1252
    %v2091 = vunpack.c.l.b16 %v1253
    %v2092 = vunpack.c.h.b16 %v1253
    %v2093 = vunpack.c.l.b16 %v1254
    %v2094 = vunpack.c.h.b16 %v1254
    %v2095 = vunpack.c.l.b16 %v1255
    %v2096 = vunpack.c.h.b16 %v1255
    %v2097 = vunpack.c.l.b16 %v1256
    %v2098 = vunpack.c.h.b16 %v1256
    %v2099 = vunpack.c.l.b16 %v1257
    %v2100 = vunpack.c.h.b16 %v1257
    %v2101 = vunpack.c.l.b16 %v1258
    %v2102 = vunpack.c.h.b16 %v1258
    %v2103 = vunpack.c.l.b16 %v1259
    %v2104 = vunpack.c.h.b16 %v1259
    %v2105 = vunpack.c.l.b16 %v1260
    %v2106 = vunpack.c.h.b16 %v1260
    %v2107 = vunpack.c.l.b16 %v1261
    %v2108 = vunpack.c.h.b16 %v1261
    %v2109 = vunpack.c.l.b16 %v1262
    %v2110 = vunpack.c.h.b16 %v1262
    %v2111 = vunpack.c.l.b16 %v1263
    %v2112 = vunpack.c.h.b16 %v1263
    %v2113 = vunpack.c.l.b16 %v1264
    %v2114 = vunpack.c.h.b16 %v1264
    %v2115 = vunpack.c.l.b16 %v1265
    %v2116 = vunpack.c.h.b16 %v1265
    %v2117 = vunpack.c.l.b16 %v1266
    %v2118 = vunpack.c.h.b16 %v1266
    %v2119 = vpack.c.b16 %v1623, %v1607
    %v2120 = vpack.c.b16 %v1624, %v1608
    %v2121 = vpack.c.b16 %v1625, %v1609
    %v2122 = vpack.c.b16 %v1626, %v1610
    %v2123 = vpack.c.b16 %v1627, %v1611
    %v2124 = vpack.c.b16 %v1628, %v1612
    %v2125 = vpack.c.b16 %v1629, %v1613
    %v2126 = vpack.c.b16 %v1630, %v1614
    %v2127 = vpack.c.b16 %v1631, %v1615
    %v2128 = vpack.c.b16 %v1632, %v1616
    %v2129 = vpack.c.b16 %v1633, %v1617
    %v2130 = vpack.c.b16 %v1634, %v1618
    %v2131 = vpack.c.b16 %v1635, %v1619
    %v2132 = vpack.c.b16 %v1636, %v1620
    %v2133 = vpack.c.b16 %v1637, %v1621
    %v2134 = vpack.c.b16 %v1638, %v1622
    %v2135 = vpack.c.b16 %v1655, %v1639
    %v2136 = vpack.c.b16 %v1656, %v1640
    %v2137 = vpack.c.b16 %v1657, %v1641
    %v2138 = vpack.c.b16 %v1658, %v1642
    %v2139 = vpack.c.b16 %v1659, %v1643
    %v2140 = vpack.c.b16 %v1660, %v1644
    %v2141 = vpack.c.b16 %v1661, %v1645
    %v2142 = vpack.c.b16 %v1662, %v1646
    %v2143 = vpack.c.b16 %v1663, %v1647
    %v2144 = vpack.c.b16 %v1664, %v1648
    %v2145 = vpack.c.b16 %v1665, %v1649
    %v2146 = vpack.c.b16 %v1666, %v1650
    %v2147 = vpack.c.b16 %v1667, %v1651
    %v2148 = vpack.c.b16 %v1668, %v1652
    %v2149 = vpack.c.b16 %v1669, %v1653
    %v2150 = vpack.c.b16 %v1670, %v1654
    %v2151 = vpack.c.b16 %v1687, %v1671
    %v2152 = vpack.c.b16 %v1688, %v1672
    %v2153 = vpack.c.b16 %v1689, %v1673
    %v2154 = vpack.c.b16 %v1690, %v1674
    %v2155 = vpack.c.b16 %v1691, %v1675
    %v2156 = vpack.c.b16 %v1692, %v1676
    %v2157 = vpack.c.b16 %v1693, %v1677
    %v2158 = vpack.c.b16 %v1694, %v1678
    %v2159 = vpack.c.b16 %v1695, %v1679
    %v2160 = vpack.c.b16 %v1696, %v1680
    %v2161 = vpack.c.b16 %v1697, %v1681
    %v2162 = vpack.c.b16 %v1698, %v1682
    %v2163 = vpack.c.b16 %v1699, %v1683
    %v2164 = vpack.c.b16 %v1700, %v1684
    %v2165 = vpack.c.b16 %v1701, %v1685
    %v2166 = vpack.c.b16 %v1702, %v1686
    %v2167 = vpack.c.b16 %v1719, %v1703
    %v2168 = vpack.c.b16 %v1720, %v1704
    %v2169 = vpack.c.b16 %v1721, %v1705
    %v2170 = vpack.c.b16 %v1722, %v1706
    %v2171 = vpack.c.b16 %v1723, %v1707
    %v2172 = vpack.c.b16 %v1724, %v1708
    %v2173 = vpack.c.b16 %v1725, %v1709
    %v2174 = vpack.c.b16 %v1726, %v1710
    %v2175 = vpack.c.b16 %v1727, %v1711
    %v2176 = vpack.c.b16 %v1728, %v1712
    %v2177 = vpack.c.b16 %v1729, %v1713
    %v2178 = vpack.c.b16 %v1730, %v1714
    %v2179 = vpack.c.b16 %v1731, %v1715
    %v2180 = vpack.c.b16 %v1732, %v1716
    %v2181 = vpack.c.b16 %v1733, %v1717
    %v2182 = vpack.c.b16 %v1734, %v1718
    %v2183 = vpack.c.b16 %v1751, %v1735
    %v2184 = vpack.c.b16 %v1752, %v1736
    %v2185 = vpack.c.b16 %v1753, %v1737
    %v2186 = vpack.c.b16 %v1754, %v1738
    %v2187 = vpack.c.b16 %v1755, %v1739
    %v2188 = vpack.c.b16 %v1756, %v1740
    %v2189 = vpack.c.b16 %v1757, %v1741
    %v2190 = vpack.c.b16 %v1758, %v1742
    %v2191 = vpack.c.b16 %v1759, %v1743
    %v2192 = vpack.c.b16 %v1760, %v1744
    %v2193 = vpack.c.b16 %v1761, %v1745
    %v2194 = vpack.c.b16 %v1762, %v1746
    %v2195 = vpack.c.b16 %v1763, %v1747
    %v2196 = vpack.c.b16 %v1764, %v1748
    %v2197 = vpack.c.b16 %v1765, %v1749
    %v2198 = vpack.c.b16 %v1766, %v1750
    %v2199 = vpack.c.b16 %v1783, %v1767
    %v2200 = vpack.c.b16 %v1784, %v1768
    %v2201 = vpack.c.b16 %v1785, %v1769
    %v2202 = vpack.c.b16 %v1786, %v1770
    %v2203 = vpack.c.b16 %v1787, %v1771
    %v2204 = vpack.c.b16 %v1788, %v1772
    %v2205 = vpack.c.b16 %v1789, %v1773
    %v2206 = vpack.c.b16 %v1790, %v1774
    %v2207 = vpack.c.b16 %v1791, %v1775
    %v2208 = vpack.c.b16 %v1792, %v1776
    %v2209 = vpack.c.b16 %v1793, %v1777
    %v2210 = vpack.c.b16 %v1794, %v1778
    %v2211 = vpack.c.b16 %v1795, %v1779
    %v2212 = vpack.c.b16 %v1796, %v1780
    %v2213 = vpack.c.b16 %v1797, %v1781
    %v2214 = vpack.c.b16 %v1798, %v1782
    %v2215 = vpack.c.b16 %v1815, %v1799
    %v2216 = vpack.c.b16 %v1816, %v1800
    %v2217 = vpack.c.b16 %v1817, %v1801
    %v2218 = vpack.c.b16 %v1818, %v1802
    %v2219 = vpack.c.b16 %v1819, %v1803
    %v2220 = vpack.c.b16 %v1820, %v1804
    %v2221 = vpack.c.b16 %v1821, %v1805
    %v2222 = vpack.c.b16 %v1822, %v1806
    %v2223 = vpack.c.b16 %v1823, %v1807
    %v2224 = vpack.c.b16 %v1824, %v1808
    %v2225 = vpack.c.b16 %v1825, %v1809
    %v2226 = vpack.c.b16 %v1826, %v1810
    %v2227 = vpack.c.b16 %v1827, %v1811
    %v2228 = vpack.c.b16 %v1828, %v1812
    %v2229 = vpack.c.b16 %v1829, %v1813
    %v2230 = vpack.c.b16 %v1830, %v1814
    %v2231 = vpack.c.b16 %v1847, %v1831
    %v2232 = vpack.c.b16 %v1848, %v1832
    %v2233 = vpack.c.b16 %v1849, %v1833
    %v2234 = vpack.c.b16 %v1850, %v1834
    %v2235 = vpack.c.b16 %v1851, %v1835
    %v2236 = vpack.c.b16 %v1852, %v1836
    %v2237 = vpack.c.b16 %v1853, %v1837
    %v2238 = vpack.c.b16 %v1854, %v1838
    %v2239 = vpack.c.b16 %v1855, %v1839
    %v2240 = vpack.c.b16 %v1856, %v1840
    %v2241 = vpack.c.b16 %v1857, %v1841
    %v2242 = vpack.c.b16 %v1858, %v1842
    %v2243 = vpack.c.b16 %v1859, %v1843
    %v2244 = vpack.c.b16 %v1860, %v1844
    %v2245 = vpack.c.b16 %v1861, %v1845
    %v2246 = vpack.c.b16 %v1862, %v1846
    %v2247 = vpack.c.b16 %v1879, %v1863
    %v2248 = vpack.c.b16 %v1880, %v1864
    %v2249 = vpack.c.b16 %v1881, %v1865
    %v2250 = vpack.c.b16 %v1882, %v1866
    %v2251 = vpack.c.b16 %v1883, %v1867
    %v2252 = vpack.c.b16 %v1884, %v1868
    %v2253 = vpack.c.b16 %v1885, %v1869
    %v2254 = vpack.c.b16 %v1886, %v1870
    %v2255 = vpack.c.b16 %v1887, %v1871
    %v2256 = vpack.c.b16 %v1888, %v1872
    %v2257 = vpack.c.b16 %v1889, %v1873
    %v2258 = vpack.c.b16 %v1890, %v1874
    %v2259 = vpack.c.b16 %v1891, %v1875
    %v2260 = vpack.c.b16 %v1892, %v1876
    %v2261 = vpack.c.b16 %v1893, %v1877
    %v2262 = vpack.c.b16 %v1894, %v1878
    %v2263 = vpack.c.b16 %v1911, %v1895
    %v2264 = vpack.c.b16 %v1912, %v1896
    %v2265 = vpack.c.b16 %v1913, %v1897
    %v2266 = vpack.c.b16 %v1914, %v1898
    %v2267 = vpack.c.b16 %v1915, %v1899
    %v2268 = vpack.c.b16 %v1916, %v1900
    %v2269 = vpack.c.b16 %v1917, %v1901
    %v2270 = vpack.c.b16 %v1918, %v1902
    %v2271 = vpack.c.b16 %v1919, %v1903
    %v2272 = vpack.c.b16 %v1920, %v1904
    %v2273 = vpack.c.b16 %v1921, %v1905
    %v2274 = vpack.c.b16 %v1922, %v1906
    %v2275 = vpack.c.b16 %v1923, %v1907
    %v2276 = vpack.c.b16 %v1924, %v1908
    %v2277 = vpack.c.b16 %v1925, %v1909
    %v2278 = vpack.c.b16 %v1926, %v1910
    %v2279 = vpack.c.b16 %v1943, %v1927
    %v2280 = vpack.c.b16 %v1944, %v1928
    %v2281 = vpack.c.b16 %v1945, %v1929
    %v2282 = vpack.c.b16 %v1946, %v1930
    %v2283 = vpack.c.b16 %v1947, %v1931
    %v2284 = vpack.c.b16 %v1948, %v1932
    %v2285 = vpack.c.b16 %v1949, %v1933
    %v2286 = vpack.c.b16 %v1950, %v1934
    %v2287 = vpack.c.b16 %v1951, %v1935
    %v2288 = vpack.c.b16 %v1952, %v1936
    %v2289 = vpack.c.b16 %v1953, %v1937
    %v2290 = vpack.c.b16 %v1954, %v1938
    %v2291 = vpack.c.b16 %v1955, %v1939
    %v2292 = vpack.c.b16 %v1956, %v1940
    %v2293 = vpack.c.b16 %v1957, %v1941
    %v2294 = vpack.c.b16 %v1958, %v1942
    %v2295 = vpack.c.b16 %v1975, %v1959
    %v2296 = vpack.c.b16 %v1976, %v1960
    %v2297 = vpack.c.b16 %v1977, %v1961
    %v2298 = vpack.c.b16 %v1978, %v1962
    %v2299 = vpack.c.b16 %v1979, %v1963
    %v2300 = vpack.c.b16 %v1980, %v1964
    %v2301 = vpack.c.b16 %v1981, %v1965
    %v2302 = vpack.c.b16 %v1982, %v1966
    %v2303 = vpack.c.b16 %v1983, %v1967
    %v2304 = vpack.c.b16 %v1984, %v1968
    %v2305 = vpack.c.b16 %v1985, %v1969
    %v2306 = vpack.c.b16 %v1986, %v1970
    %v2307 = vpack.c.b16 %v1987, %v1971
    %v2308 = vpack.c.b16 %v1988, %v1972
    %v2309 = vpack.c.b16 %v1989, %v1973
    %v2310 = vpack.c.b16 %v1990, %v1974
    %v2311 = vpack.c.b16 %v2007, %v1991
    %v2312 = vpack.c.b16 %v2008, %v1992
    %v2313 = vpack.c.b16 %v2009, %v1993
    %v2314 = vpack.c.b16 %v2010, %v1994
    %v2315 = vpack.c.b16 %v2011, %v1995
    %v2316 = vpack.c.b16 %v2012, %v1996
    %v2317 = vpack.c.b16 %v2013, %v1997
    %v2318 = vpack.c.b16 %v2014, %v1998
    %v2319 = vpack.c.b16 %v2015, %v1999
    %v2320 = vpack.c.b16 %v2016, %v2000
    %v2321 = vpack.c.b16 %v2017, %v2001
    %v2322 = vpack.c.b16 %v2018, %v2002
    %v2323 = vpack.c.b16 %v2019, %v2003
    %v2324 = vpack.c.b16 %v2020, %v2004
    %v2325 = vpack.c.b16 %v2021, %v2005
    %v2326 = vpack.c.b16 %v2022, %v2006
    %v2327 = vpack.c.b16 %v2039, %v2023
    %v2328 = vpack.c.b16 %v2040, %v2024
    %v2329 = vpack.c.b16 %v2041, %v2025
    %v2330 = vpack.c.b16 %v2042, %v2026
    %v2331 = vpack.c.b16 %v2043, %v2027
    %v2332 = vpack.c.b16 %v2044, %v2028
    %v2333 = vpack.c.b16 %v2045, %v2029
    %v2334 = vpack.c.b16 %v2046, %v2030
    %v2335 = vpack.c.b16 %v2047, %v2031
    %v2336 = vpack.c.b16 %v2048, %v2032
    %v2337 = vpack.c.b16 %v2049, %v2033
    %v2338 = vpack.c.b16 %v2050, %v2034
    %v2339 = vpack.c.b16 %v2051, %v2035
    %v2340 = vpack.c.b16 %v2052, %v2036
    %v2341 = vpack.c.b16 %v2053, %v2037
    %v2342 = vpack.c.b16 %v2054, %v2038
    %v2343 = vpack.c.b16 %v2071, %v2055
    %v2344 = vpack.c.b16 %v2072, %v2056
    %v2345 = vpack.c.b16 %v2073, %v2057
    %v2346 = vpack.c.b16 %v2074, %v2058
    %v2347 = vpack.c.b16 %v2075, %v2059
    %v2348 = vpack.c.b16 %v2076, %v2060
    %v2349 = vpack.c.b16 %v2077, %v2061
    %v2350 = vpack.c.b16 %v2078, %v2062
    %v2351 = vpack.c.b16 %v2079, %v2063
    %v2352 = vpack.c.b16 %v2080, %v2064
    %v2353 = vpack.c.b16 %v2081, %v2065
    %v2354 = vpack.c.b16 %v2082, %v2066
    %v2355 = vpack.c.b16 %v2083, %v2067
    %v2356 = vpack.c.b16 %v2084, %v2068
    %v2357 = vpack.c.b16 %v2085, %v2069
    %v2358 = vpack.c.b16 %v2086, %v2070
    %v2359 = vpack.c.b16 %v2103, %v2087
    %v2360 = vpack.c.b16 %v2104, %v2088
    %v2361 = vpack.c.b16 %v2105, %v2089
    %v2362 = vpack.c.b16 %v2106, %v2090
    %v2363 = vpack.c.b16 %v2107, %v2091
    %v2364 = vpack.c.b16 %v2108, %v2092
    %v2365 = vpack.c.b16 %v2109, %v2093
    %v2366 = vpack.c.b16 %v2110, %v2094
    %v2367 = vpack.c.b16 %v2111, %v2095
    %v2368 = vpack.c.b16 %v2112, %v2096
    %v2369 = vpack.c.b16 %v2113, %v2097
    %v2370 = vpack.c.b16 %v2114, %v2098
    %v2371 = vpack.c.b16 %v2115, %v2099
    %v2372 = vpack.c.b16 %v2116, %v2100
    %v2373 = vpack.c.b16 %v2117, %v2101
    %v2374 = vpack.c.b16 %v2118, %v2102
    %2631 = vmatprep.subr.bf16.mxu0 %v2120
    %2632 = vmatpush1.bf16.msra.mxu0 %v2119
    %2633 = vmatprep.subr.bf16.mxu0 %v2136
    %2634 = vmatpush1.bf16.msra.mxu0 %v2135
    %2635 = vmatprep.subr.bf16.mxu0 %v2152
    %2636 = vmatpush1.bf16.msra.mxu0 %v2151
    %2637 = vmatprep.subr.bf16.mxu0 %v2168
    %2638 = vmatpush1.bf16.msra.mxu0 %v2167
    %2639 = vmatprep.subr.bf16.mxu0 %v2184
    %2640 = vmatpush1.bf16.msra.mxu0 %v2183
    %2641 = vmatprep.subr.bf16.mxu0 %v2200
    %2642 = vmatpush1.bf16.msra.mxu0 %v2199
    %2643 = vmatprep.subr.bf16.mxu0 %v2216
    %2644 = vmatpush1.bf16.msra.mxu0 %v2215
    %2645 = vmatprep.subr.bf16.mxu0 %v2232
    %2646 = vmatpush1.bf16.msra.mxu0 %v2231
    %2647 = vmatprep.subr.bf16.mxu0 %v2248
    %2648 = vmatpush1.bf16.msra.mxu0 %v2247
    %2649 = vmatprep.subr.bf16.mxu0 %v2264
    %2650 = vmatpush1.bf16.msra.mxu0 %v2263
    %2651 = vmatprep.subr.bf16.mxu0 %v2280
    %2652 = vmatpush1.bf16.msra.mxu0 %v2279
    %2653 = vmatprep.subr.bf16.mxu0 %v2296
    %2654 = vmatpush1.bf16.msra.mxu0 %v2295
    %2655 = vmatprep.subr.bf16.mxu0 %v2312
    %2656 = vmatpush1.bf16.msra.mxu0 %v2311
    %2657 = vmatprep.subr.bf16.mxu0 %v2328
    %2658 = vmatpush1.bf16.msra.mxu0 %v2327
    %2659 = vmatprep.subr.bf16.mxu0 %v2344
    %2660 = vmatpush1.bf16.msra.mxu0 %v2343
    %2661 = vmatprep.subr.bf16.mxu0 %v2360
    %2662 = vmatpush1.bf16.msra.mxu0 %v2359
    %2663 = vmatprep.mubr.bf16.mxu0 %v1010
    %2664 = vmatmul.mubr.bf16.gmra.mrb[0].mxu0 %v1009
    %v2665 = vpop.f32.mrb[0].mxu0
    %v2666 = vadd.f32 %v1274, %v2665
    %v2667 = vpop.f32.mrb[0].mxu0
    %v2668 = vadd.f32 %v1278, %v2667
    %v2669 = vpop.f32.mrb[0].mxu0
    %v2670 = vpop.f32.mrb[0].mxu0
    %2671 = vdwg.mxu0
    %2672 = vmatprep.subr.bf16.mxu0 %v2122
    %2673 = vmatpush1.bf16.msra.mxu0 %v2121
    %2674 = vmatprep.subr.bf16.mxu0 %v2138
    %2675 = vmatpush1.bf16.msra.mxu0 %v2137
    %2676 = vmatprep.subr.bf16.mxu0 %v2154
    %2677 = vmatpush1.bf16.msra.mxu0 %v2153
    %2678 = vmatprep.subr.bf16.mxu0 %v2170
    %2679 = vmatpush1.bf16.msra.mxu0 %v2169
    %2680 = vmatprep.subr.bf16.mxu0 %v2186
    %2681 = vmatpush1.bf16.msra.mxu0 %v2185
    %2682 = vmatprep.subr.bf16.mxu0 %v2202
    %2683 = vmatpush1.bf16.msra.mxu0 %v2201
    %2684 = vmatprep.subr.bf16.mxu0 %v2218
    %2685 = vmatpush1.bf16.msra.mxu0 %v2217
    %2686 = vmatprep.subr.bf16.mxu0 %v2234
    %2687 = vmatpush1.bf16.msra.mxu0 %v2233
    %2688 = vmatprep.subr.bf16.mxu0 %v2250
    %2689 = vmatpush1.bf16.msra.mxu0 %v2249
    %2690 = vmatprep.subr.bf16.mxu0 %v2266
    %2691 = vmatpush1.bf16.msra.mxu0 %v2265
    %2692 = vmatprep.subr.bf16.mxu0 %v2282
    %2693 = vmatpush1.bf16.msra.mxu0 %v2281
    %2694 = vmatprep.subr.bf16.mxu0 %v2298
    %2695 = vmatpush1.bf16.msra.mxu0 %v2297
    %2696 = vmatprep.subr.bf16.mxu0 %v2314
    %2697 = vmatpush1.bf16.msra.mxu0 %v2313
    %2698 = vmatprep.subr.bf16.mxu0 %v2330
    %2699 = vmatpush1.bf16.msra.mxu0 %v2329
    %2700 = vmatprep.subr.bf16.mxu0 %v2346
    %2701 = vmatpush1.bf16.msra.mxu0 %v2345
    %2702 = vmatprep.subr.bf16.mxu0 %v2362
    %2703 = vmatpush1.bf16.msra.mxu0 %v2361
    %2704 = vmatprep.mubr.bf16.mxu0 %v1010
    %2705 = vmatmul.mubr.bf16.gmra.mrb[0].mxu0 %v1009
    %v2706 = vpop.f32.mrb[0].mxu0
    %v2707 = vadd.f32 %v1282, %v2706
    %v2708 = vpop.f32.mrb[0].mxu0
    %v2709 = vadd.f32 %v1286, %v2708
    %v2710 = vpop.f32.mrb[0].mxu0
    %v2711 = vpop.f32.mrb[0].mxu0
    %2712 = vdwg.mxu0
    %2713 = vmatprep.subr.bf16.mxu0 %v2124
    %2714 = vmatpush1.bf16.msra.mxu0 %v2123
    %2715 = vmatprep.subr.bf16.mxu0 %v2140
    %2716 = vmatpush1.bf16.msra.mxu0 %v2139
    %2717 = vmatprep.subr.bf16.mxu0 %v2156
    %2718 = vmatpush1.bf16.msra.mxu0 %v2155
    %2719 = vmatprep.subr.bf16.mxu0 %v2172
    %2720 = vmatpush1.bf16.msra.mxu0 %v2171
    %2721 = vmatprep.subr.bf16.mxu0 %v2188
    %2722 = vmatpush1.bf16.msra.mxu0 %v2187
    %2723 = vmatprep.subr.bf16.mxu0 %v2204
    %2724 = vmatpush1.bf16.msra.mxu0 %v2203
    %2725 = vmatprep.subr.bf16.mxu0 %v2220
    %2726 = vmatpush1.bf16.msra.mxu0 %v2219
    %2727 = vmatprep.subr.bf16.mxu0 %v2236
    %2728 = vmatpush1.bf16.msra.mxu0 %v2235
    %2729 = vmatprep.subr.bf16.mxu0 %v2252
    %2730 = vmatpush1.bf16.msra.mxu0 %v2251
    %2731 = vmatprep.subr.bf16.mxu0 %v2268
    %2732 = vmatpush1.bf16.msra.mxu0 %v2267
    %2733 = vmatprep.subr.bf16.mxu0 %v2284
    %2734 = vmatpush1.bf16.msra.mxu0 %v2283
    %2735 = vmatprep.subr.bf16.mxu0 %v2300
    %2736 = vmatpush1.bf16.msra.mxu0 %v2299
    %2737 = vmatprep.subr.bf16.mxu0 %v2316
    %2738 = vmatpush1.bf16.msra.mxu0 %v2315
    %2739 = vmatprep.subr.bf16.mxu0 %v2332
    %2740 = vmatpush1.bf16.msra.mxu0 %v2331
    %2741 = vmatprep.subr.bf16.mxu0 %v2348
    %2742 = vmatpush1.bf16.msra.mxu0 %v2347
    %2743 = vmatprep.subr.bf16.mxu0 %v2364
    %2744 = vmatpush1.bf16.msra.mxu0 %v2363
    %2745 = vmatprep.mubr.bf16.mxu0 %v1010
    %2746 = vmatmul.mubr.bf16.gmra.mrb[0].mxu0 %v1009
    %v2747 = vpop.f32.mrb[0].mxu0
    %v2748 = vadd.f32 %v1290, %v2747
    %v2749 = vpop.f32.mrb[0].mxu0
    %v2750 = vadd.f32 %v1294, %v2749
    %v2751 = vpop.f32.mrb[0].mxu0
    %v2752 = vpop.f32.mrb[0].mxu0
    %2753 = vdwg.mxu0
    %2754 = vmatprep.subr.bf16.mxu0 %v2126
    %2755 = vmatpush1.bf16.msra.mxu0 %v2125
    %2756 = vmatprep.subr.bf16.mxu0 %v2142
    %2757 = vmatpush1.bf16.msra.mxu0 %v2141
    %2758 = vmatprep.subr.bf16.mxu0 %v2158
    %2759 = vmatpush1.bf16.msra.mxu0 %v2157
    %2760 = vmatprep.subr.bf16.mxu0 %v2174
    %2761 = vmatpush1.bf16.msra.mxu0 %v2173
    %2762 = vmatprep.subr.bf16.mxu0 %v2190
    %2763 = vmatpush1.bf16.msra.mxu0 %v2189
    %2764 = vmatprep.subr.bf16.mxu0 %v2206
    %2765 = vmatpush1.bf16.msra.mxu0 %v2205
    %2766 = vmatprep.subr.bf16.mxu0 %v2222
    %2767 = vmatpush1.bf16.msra.mxu0 %v2221
    %2768 = vmatprep.subr.bf16.mxu0 %v2238
    %2769 = vmatpush1.bf16.msra.mxu0 %v2237
    %2770 = vmatprep.subr.bf16.mxu0 %v2254
    %2771 = vmatpush1.bf16.msra.mxu0 %v2253
    %2772 = vmatprep.subr.bf16.mxu0 %v2270
    %2773 = vmatpush1.bf16.msra.mxu0 %v2269
    %2774 = vmatprep.subr.bf16.mxu0 %v2286
    %2775 = vmatpush1.bf16.msra.mxu0 %v2285
    %2776 = vmatprep.subr.bf16.mxu0 %v2302
    %2777 = vmatpush1.bf16.msra.mxu0 %v2301
    %2778 = vmatprep.subr.bf16.mxu0 %v2318
    %2779 = vmatpush1.bf16.msra.mxu0 %v2317
    %2780 = vmatprep.subr.bf16.mxu0 %v2334
    %2781 = vmatpush1.bf16.msra.mxu0 %v2333
    %2782 = vmatprep.subr.bf16.mxu0 %v2350
    %2783 = vmatpush1.bf16.msra.mxu0 %v2349
    %2784 = vmatprep.subr.bf16.mxu0 %v2366
    %2785 = vmatpush1.bf16.msra.mxu0 %v2365
    %2786 = vmatprep.mubr.bf16.mxu0 %v1010
    %2787 = vmatmul.mubr.bf16.gmra.mrb[0].mxu0 %v1009
    %v2788 = vpop.f32.mrb[0].mxu0
    %v2789 = vadd.f32 %v1298, %v2788
    %v2790 = vpop.f32.mrb[0].mxu0
    %v2791 = vadd.f32 %v1302, %v2790
    %v2792 = vpop.f32.mrb[0].mxu0
    %v2793 = vpop.f32.mrb[0].mxu0
    %2794 = vdwg.mxu0
    %2795 = vmatprep.subr.bf16.mxu0 %v2128
    %2796 = vmatpush1.bf16.msra.mxu0 %v2127
    %2797 = vmatprep.subr.bf16.mxu0 %v2144
    %2798 = vmatpush1.bf16.msra.mxu0 %v2143
    %2799 = vmatprep.subr.bf16.mxu0 %v2160
    %2800 = vmatpush1.bf16.msra.mxu0 %v2159
    %2801 = vmatprep.subr.bf16.mxu0 %v2176
    %2802 = vmatpush1.bf16.msra.mxu0 %v2175
    %2803 = vmatprep.subr.bf16.mxu0 %v2192
    %2804 = vmatpush1.bf16.msra.mxu0 %v2191
    %2805 = vmatprep.subr.bf16.mxu0 %v2208
    %2806 = vmatpush1.bf16.msra.mxu0 %v2207
    %2807 = vmatprep.subr.bf16.mxu0 %v2224
    %2808 = vmatpush1.bf16.msra.mxu0 %v2223
    %2809 = vmatprep.subr.bf16.mxu0 %v2240
    %2810 = vmatpush1.bf16.msra.mxu0 %v2239
    %2811 = vmatprep.subr.bf16.mxu0 %v2256
    %2812 = vmatpush1.bf16.msra.mxu0 %v2255
    %2813 = vmatprep.subr.bf16.mxu0 %v2272
    %2814 = vmatpush1.bf16.msra.mxu0 %v2271
    %2815 = vmatprep.subr.bf16.mxu0 %v2288
    %2816 = vmatpush1.bf16.msra.mxu0 %v2287
    %2817 = vmatprep.subr.bf16.mxu0 %v2304
    %2818 = vmatpush1.bf16.msra.mxu0 %v2303
    %2819 = vmatprep.subr.bf16.mxu0 %v2320
    %2820 = vmatpush1.bf16.msra.mxu0 %v2319
    %2821 = vmatprep.subr.bf16.mxu0 %v2336
    %2822 = vmatpush1.bf16.msra.mxu0 %v2335
    %2823 = vmatprep.subr.bf16.mxu0 %v2352
    %2824 = vmatpush1.bf16.msra.mxu0 %v2351
    %2825 = vmatprep.subr.bf16.mxu0 %v2368
    %2826 = vmatpush1.bf16.msra.mxu0 %v2367
    %2827 = vmatprep.mubr.bf16.mxu0 %v1010
    %2828 = vmatmul.mubr.bf16.gmra.mrb[0].mxu0 %v1009
    %v2829 = vpop.f32.mrb[0].mxu0
    %v2830 = vadd.f32 %v1306, %v2829
    %v2831 = vpop.f32.mrb[0].mxu0
    %v2832 = vadd.f32 %v1310, %v2831
    %v2833 = vpop.f32.mrb[0].mxu0
    %v2834 = vpop.f32.mrb[0].mxu0
    %2835 = vdwg.mxu0
    %2836 = vmatprep.subr.bf16.mxu0 %v2130
    %2837 = vmatpush1.bf16.msra.mxu0 %v2129
    %2838 = vmatprep.subr.bf16.mxu0 %v2146
    %2839 = vmatpush1.bf16.msra.mxu0 %v2145
    %2840 = vmatprep.subr.bf16.mxu0 %v2162
    %2841 = vmatpush1.bf16.msra.mxu0 %v2161
    %2842 = vmatprep.subr.bf16.mxu0 %v2178
    %2843 = vmatpush1.bf16.msra.mxu0 %v2177
    %2844 = vmatprep.subr.bf16.mxu0 %v2194
    %2845 = vmatpush1.bf16.msra.mxu0 %v2193
    %2846 = vmatprep.subr.bf16.mxu0 %v2210
    %2847 = vmatpush1.bf16.msra.mxu0 %v2209
    %2848 = vmatprep.subr.bf16.mxu0 %v2226
    %2849 = vmatpush1.bf16.msra.mxu0 %v2225
    %2850 = vmatprep.subr.bf16.mxu0 %v2242
    %2851 = vmatpush1.bf16.msra.mxu0 %v2241
    %2852 = vmatprep.subr.bf16.mxu0 %v2258
    %2853 = vmatpush1.bf16.msra.mxu0 %v2257
    %2854 = vmatprep.subr.bf16.mxu0 %v2274
    %2855 = vmatpush1.bf16.msra.mxu0 %v2273
    %2856 = vmatprep.subr.bf16.mxu0 %v2290
    %2857 = vmatpush1.bf16.msra.mxu0 %v2289
    %2858 = vmatprep.subr.bf16.mxu0 %v2306
    %2859 = vmatpush1.bf16.msra.mxu0 %v2305
    %2860 = vmatprep.subr.bf16.mxu0 %v2322
    %2861 = vmatpush1.bf16.msra.mxu0 %v2321
    %2862 = vmatprep.subr.bf16.mxu0 %v2338
    %2863 = vmatpush1.bf16.msra.mxu0 %v2337
    %2864 = vmatprep.subr.bf16.mxu0 %v2354
    %2865 = vmatpush1.bf16.msra.mxu0 %v2353
    %2866 = vmatprep.subr.bf16.mxu0 %v2370
    %2867 = vmatpush1.bf16.msra.mxu0 %v2369
    %2868 = vmatprep.mubr.bf16.mxu0 %v1010
    %2869 = vmatmul.mubr.bf16.gmra.mrb[0].mxu0 %v1009
    %v2870 = vpop.f32.mrb[0].mxu0
    %v2871 = vadd.f32 %v1314, %v2870
    %v2872 = vpop.f32.mrb[0].mxu0
    %v2873 = vadd.f32 %v1318, %v2872
    %v2874 = vpop.f32.mrb[0].mxu0
    %v2875 = vpop.f32.mrb[0].mxu0
    %2876 = vdwg.mxu0
    %2877 = vmatprep.subr.bf16.mxu0 %v2132
    %2878 = vmatpush1.bf16.msra.mxu0 %v2131
    %2879 = vmatprep.subr.bf16.mxu0 %v2148
    %2880 = vmatpush1.bf16.msra.mxu0 %v2147
    %2881 = vmatprep.subr.bf16.mxu0 %v2164
    %2882 = vmatpush1.bf16.msra.mxu0 %v2163
    %2883 = vmatprep.subr.bf16.mxu0 %v2180
    %2884 = vmatpush1.bf16.msra.mxu0 %v2179
    %2885 = vmatprep.subr.bf16.mxu0 %v2196
    %2886 = vmatpush1.bf16.msra.mxu0 %v2195
    %2887 = vmatprep.subr.bf16.mxu0 %v2212
    %2888 = vmatpush1.bf16.msra.mxu0 %v2211
    %2889 = vmatprep.subr.bf16.mxu0 %v2228
    %2890 = vmatpush1.bf16.msra.mxu0 %v2227
    %2891 = vmatprep.subr.bf16.mxu0 %v2244
    %2892 = vmatpush1.bf16.msra.mxu0 %v2243
    %2893 = vmatprep.subr.bf16.mxu0 %v2260
    %2894 = vmatpush1.bf16.msra.mxu0 %v2259
    %2895 = vmatprep.subr.bf16.mxu0 %v2276
    %2896 = vmatpush1.bf16.msra.mxu0 %v2275
    %2897 = vmatprep.subr.bf16.mxu0 %v2292
    %2898 = vmatpush1.bf16.msra.mxu0 %v2291
    %2899 = vmatprep.subr.bf16.mxu0 %v2308
    %2900 = vmatpush1.bf16.msra.mxu0 %v2307
    %2901 = vmatprep.subr.bf16.mxu0 %v2324
    %2902 = vmatpush1.bf16.msra.mxu0 %v2323
    %2903 = vmatprep.subr.bf16.mxu0 %v2340
    %2904 = vmatpush1.bf16.msra.mxu0 %v2339
    %2905 = vmatprep.subr.bf16.mxu0 %v2356
    %2906 = vmatpush1.bf16.msra.mxu0 %v2355
    %2907 = vmatprep.subr.bf16.mxu0 %v2372
    %2908 = vmatpush1.bf16.msra.mxu0 %v2371
    %2909 = vmatprep.mubr.bf16.mxu0 %v1010
    %2910 = vmatmul.mubr.bf16.gmra.mrb[0].mxu0 %v1009
    %v2911 = vpop.f32.mrb[0].mxu0
    %v2912 = vadd.f32 %v1322, %v2911
    %v2913 = vpop.f32.mrb[0].mxu0
    %v2914 = vadd.f32 %v1326, %v2913
    %v2915 = vpop.f32.mrb[0].mxu0
    %v2916 = vpop.f32.mrb[0].mxu0
    %2917 = vdwg.mxu0
    %2918 = vmatprep.subr.bf16.mxu0 %v2134
    %2919 = vmatpush1.bf16.msra.mxu0 %v2133
    %2920 = vmatprep.subr.bf16.mxu0 %v2150
    %2921 = vmatpush1.bf16.msra.mxu0 %v2149
    %2922 = vmatprep.subr.bf16.mxu0 %v2166
    %2923 = vmatpush1.bf16.msra.mxu0 %v2165
    %2924 = vmatprep.subr.bf16.mxu0 %v2182
    %2925 = vmatpush1.bf16.msra.mxu0 %v2181
    %2926 = vmatprep.subr.bf16.mxu0 %v2198
    %2927 = vmatpush1.bf16.msra.mxu0 %v2197
    %2928 = vmatprep.subr.bf16.mxu0 %v2214
    %2929 = vmatpush1.bf16.msra.mxu0 %v2213
    %2930 = vmatprep.subr.bf16.mxu0 %v2230
    %2931 = vmatpush1.bf16.msra.mxu0 %v2229
    %2932 = vmatprep.subr.bf16.mxu0 %v2246
    %2933 = vmatpush1.bf16.msra.mxu0 %v2245
    %2934 = vmatprep.subr.bf16.mxu0 %v2262
    %2935 = vmatpush1.bf16.msra.mxu0 %v2261
    %2936 = vmatprep.subr.bf16.mxu0 %v2278
    %2937 = vmatpush1.bf16.msra.mxu0 %v2277
    %2938 = vmatprep.subr.bf16.mxu0 %v2294
    %2939 = vmatpush1.bf16.msra.mxu0 %v2293
    %2940 = vmatprep.subr.bf16.mxu0 %v2310
    %2941 = vmatpush1.bf16.msra.mxu0 %v2309
    %2942 = vmatprep.subr.bf16.mxu0 %v2326
    %2943 = vmatpush1.bf16.msra.mxu0 %v2325
    %2944 = vmatprep.subr.bf16.mxu0 %v2342
    %2945 = vmatpush1.bf16.msra.mxu0 %v2341
    %2946 = vmatprep.subr.bf16.mxu0 %v2358
    %2947 = vmatpush1.bf16.msra.mxu0 %v2357
    %2948 = vmatprep.subr.bf16.mxu0 %v2374
    %2949 = vmatpush1.bf16.msra.mxu0 %v2373
    %2950 = vmatprep.mubr.bf16.mxu0 %v1010
    %2951 = vmatmul.mubr.bf16.gmra.mrb[0].mxu0 %v1009
    %v2952 = vpop.f32.mrb[0].mxu0
    %v2953 = vadd.f32 %v1330, %v2952
    %v2954 = vpop.f32.mrb[0].mxu0
    %v2955 = vadd.f32 %v1334, %v2954
    %v2956 = vpop.f32.mrb[0].mxu0
    %v2957 = vpop.f32.mrb[0].mxu0
    %2958 = vdwg.mxu0
    %v2975 = vcombine.low %v2666, %v2668
    %v2976 = vcombine.high %v2666, %v2668
    %v2977 = vcombine.low %v2707, %v2709
    %v2978 = vcombine.high %v2707, %v2709
    %v2980 = vunpack.c.l.s4 1983009808
    %v2981 = vunpack.c.0.s8 %v2980
    %v2982 = vlaneseq
    %v2983 = vshrl.u32 %v2982, 7
    %v2984 = vsub.s32 %v2981, %v2983
    %v2985 = vrot.slane %v2975, %v2984
    %v2987 = vunpack.c.l.s4 1983009808
    %v2988 = vunpack.c.0.s8 %v2987
    %v2989 = vlaneseq
    %v2990 = vshrl.u32 %v2989, 7
    %v2991 = vsub.s32 %v2988, %v2990
    %v2992 = vrot.slane %v2976, %v2991
    %v2994 = vunpack.c.l.s4 1983009808
    %v2995 = vunpack.c.0.s8 %v2994
    %v2996 = vlaneseq
    %v2997 = vshrl.u32 %v2996, 7
    %v2998 = vsub.s32 %v2995, %v2997
    %v2999 = vrot.slane %v2977, %v2998
    %v3001 = vunpack.c.l.s4 1983009808
    %v3002 = vunpack.c.0.s8 %v3001
    %v3003 = vlaneseq
    %v3004 = vshrl.u32 %v3003, 7
    %v3005 = vsub.s32 %v3002, %v3004
    %v3006 = vrot.slane %v2978, %v3005
    %v3007 = vcombine.low %v2985, %v2999
    %v3008 = vcombine.high %v2985, %v2999
    %v3009 = vcombine.low %v2992, %v3006
    %v3010 = vcombine.high %v2992, %v3006
    %v3011 = vcombine.low %v2748, %v2750
    %v3012 = vcombine.high %v2748, %v2750
    %v3013 = vcombine.low %v2789, %v2791
    %v3014 = vcombine.high %v2789, %v2791
    %v3016 = vunpack.c.l.s4 1983009808
    %v3017 = vunpack.c.0.s8 %v3016
    %v3018 = vlaneseq
    %v3019 = vshrl.u32 %v3018, 7
    %v3020 = vsub.s32 %v3017, %v3019
    %v3021 = vrot.slane %v3011, %v3020
    %v3023 = vunpack.c.l.s4 1983009808
    %v3024 = vunpack.c.0.s8 %v3023
    %v3025 = vlaneseq
    %v3026 = vshrl.u32 %v3025, 7
    %v3027 = vsub.s32 %v3024, %v3026
    %v3028 = vrot.slane %v3012, %v3027
    %v3030 = vunpack.c.l.s4 1983009808
    %v3031 = vunpack.c.0.s8 %v3030
    %v3032 = vlaneseq
    %v3033 = vshrl.u32 %v3032, 7
    %v3034 = vsub.s32 %v3031, %v3033
    %v3035 = vrot.slane %v3013, %v3034
    %v3037 = vunpack.c.l.s4 1983009808
    %v3038 = vunpack.c.0.s8 %v3037
    %v3039 = vlaneseq
    %v3040 = vshrl.u32 %v3039, 7
    %v3041 = vsub.s32 %v3038, %v3040
    %v3042 = vrot.slane %v3014, %v3041
    %v3043 = vcombine.low %v3021, %v3035
    %v3044 = vcombine.high %v3021, %v3035
    %v3045 = vcombine.low %v3028, %v3042
    %v3046 = vcombine.high %v3028, %v3042
    %v3047 = vcombine.low %v2830, %v2832
    %v3048 = vcombine.high %v2830, %v2832
    %v3049 = vcombine.low %v2871, %v2873
    %v3050 = vcombine.high %v2871, %v2873
    %v3052 = vunpack.c.l.s4 1983009808
    %v3053 = vunpack.c.0.s8 %v3052
    %v3054 = vlaneseq
    %v3055 = vshrl.u32 %v3054, 7
    %v3056 = vsub.s32 %v3053, %v3055
    %v3057 = vrot.slane %v3047, %v3056
    %v3059 = vunpack.c.l.s4 1983009808
    %v3060 = vunpack.c.0.s8 %v3059
    %v3061 = vlaneseq
    %v3062 = vshrl.u32 %v3061, 7
    %v3063 = vsub.s32 %v3060, %v3062
    %v3064 = vrot.slane %v3048, %v3063
    %v3066 = vunpack.c.l.s4 1983009808
    %v3067 = vunpack.c.0.s8 %v3066
    %v3068 = vlaneseq
    %v3069 = vshrl.u32 %v3068, 7
    %v3070 = vsub.s32 %v3067, %v3069
    %v3071 = vrot.slane %v3049, %v3070
    %v3073 = vunpack.c.l.s4 1983009808
    %v3074 = vunpack.c.0.s8 %v3073
    %v3075 = vlaneseq
    %v3076 = vshrl.u32 %v3075, 7
    %v3077 = vsub.s32 %v3074, %v3076
    %v3078 = vrot.slane %v3050, %v3077
    %v3079 = vcombine.low %v3057, %v3071
    %v3080 = vcombine.high %v3057, %v3071
    %v3081 = vcombine.low %v3064, %v3078
    %v3082 = vcombine.high %v3064, %v3078
    %v3083 = vcombine.low %v2912, %v2914
    %v3084 = vcombine.high %v2912, %v2914
    %v3085 = vcombine.low %v2953, %v2955
    %v3086 = vcombine.high %v2953, %v2955
    %v3088 = vunpack.c.l.s4 1983009808
    %v3089 = vunpack.c.0.s8 %v3088
    %v3090 = vlaneseq
    %v3091 = vshrl.u32 %v3090, 7
    %v3092 = vsub.s32 %v3089, %v3091
    %v3093 = vrot.slane %v3083, %v3092
    %v3095 = vunpack.c.l.s4 1983009808
    %v3096 = vunpack.c.0.s8 %v3095
    %v3097 = vlaneseq
    %v3098 = vshrl.u32 %v3097, 7
    %v3099 = vsub.s32 %v3096, %v3098
    %v3100 = vrot.slane %v3084, %v3099
    %v3102 = vunpack.c.l.s4 1983009808
    %v3103 = vunpack.c.0.s8 %v3102
    %v3104 = vlaneseq
    %v3105 = vshrl.u32 %v3104, 7
    %v3106 = vsub.s32 %v3103, %v3105
    %v3107 = vrot.slane %v3085, %v3106
    %v3109 = vunpack.c.l.s4 1983009808
    %v3110 = vunpack.c.0.s8 %v3109
    %v3111 = vlaneseq
    %v3112 = vshrl.u32 %v3111, 7
    %v3113 = vsub.s32 %v3110, %v3112
    %v3114 = vrot.slane %v3086, %v3113
    %v3115 = vcombine.low %v3093, %v3107
    %v3116 = vcombine.high %v3093, %v3107
    %v3117 = vcombine.low %v3100, %v3114
    %v3118 = vcombine.high %v3100, %v3114
    %v3135 = vld [vmem:[#allocation10] sm:$0xff]
    %v3136 = vld [vmem:[#allocation10 + $0x8] sm:$0xff]
    %v3137 = vld [vmem:[#allocation10 + $0x10] sm:$0xff]
    %v3138 = vld [vmem:[#allocation10 + $0x18] sm:$0xff]
    %v3139 = vld [vmem:[#allocation10 + $0x20] sm:$0xff]
    %v3140 = vld [vmem:[#allocation10 + $0x28] sm:$0xff]
    %v3141 = vld [vmem:[#allocation10 + $0x30] sm:$0xff]
    %v3142 = vld [vmem:[#allocation10 + $0x38] sm:$0xff]
    %v3143 = vld [vmem:[#allocation10 + $0x40] sm:$0xff]
    %v3144 = vld [vmem:[#allocation10 + $0x48] sm:$0xff]
    %v3145 = vld [vmem:[#allocation10 + $0x50] sm:$0xff]
    %v3146 = vld [vmem:[#allocation10 + $0x58] sm:$0xff]
    %v3147 = vld [vmem:[#allocation10 + $0x60] sm:$0xff]
    %v3148 = vld [vmem:[#allocation10 + $0x68] sm:$0xff]
    %v3149 = vld [vmem:[#allocation10 + $0x70] sm:$0xff]
    %v3150 = vld [vmem:[#allocation10 + $0x78] sm:$0xff]
    %v3151 = vld [vmem:[#allocation10 + $0x80] sm:$0xff]
    %v3152 = vld [vmem:[#allocation10 + $0x88] sm:$0xff]
    %v3153 = vld [vmem:[#allocation10 + $0x90] sm:$0xff]
    %v3154 = vld [vmem:[#allocation10 + $0x98] sm:$0xff]
    %v3155 = vld [vmem:[#allocation10 + $0xa0] sm:$0xff]
    %v3156 = vld [vmem:[#allocation10 + $0xa8] sm:$0xff]
    %v3157 = vld [vmem:[#allocation10 + $0xb0] sm:$0xff]
    %v3158 = vld [vmem:[#allocation10 + $0xb8] sm:$0xff]
    %v3159 = vld [vmem:[#allocation10 + $0xc0] sm:$0xff]
    %v3160 = vld [vmem:[#allocation10 + $0xc8] sm:$0xff]
    %v3161 = vld [vmem:[#allocation10 + $0xd0] sm:$0xff]
    %v3162 = vld [vmem:[#allocation10 + $0xd8] sm:$0xff]
    %v3163 = vld [vmem:[#allocation10 + $0xe0] sm:$0xff]
    %v3164 = vld [vmem:[#allocation10 + $0xe8] sm:$0xff]
    %v3165 = vld [vmem:[#allocation10 + $0xf0] sm:$0xff]
    %v3166 = vld [vmem:[#allocation10 + $0xf8] sm:$0xff]
    %v3167 = vld [vmem:[#allocation10 + $0x100] sm:$0xff]
    %v3168 = vld [vmem:[#allocation10 + $0x108] sm:$0xff]
    %v3169 = vld [vmem:[#allocation10 + $0x110] sm:$0xff]
    %v3170 = vld [vmem:[#allocation10 + $0x118] sm:$0xff]
    %v3171 = vld [vmem:[#allocation10 + $0x120] sm:$0xff]
    %v3172 = vld [vmem:[#allocation10 + $0x128] sm:$0xff]
    %v3173 = vld [vmem:[#allocation10 + $0x130] sm:$0xff]
    %v3174 = vld [vmem:[#allocation10 + $0x138] sm:$0xff]
    %v3175 = vld [vmem:[#allocation10 + $0x140] sm:$0xff]
    %v3176 = vld [vmem:[#allocation10 + $0x148] sm:$0xff]
    %v3177 = vld [vmem:[#allocation10 + $0x150] sm:$0xff]
    %v3178 = vld [vmem:[#allocation10 + $0x158] sm:$0xff]
    %v3179 = vld [vmem:[#allocation10 + $0x160] sm:$0xff]
    %v3180 = vld [vmem:[#allocation10 + $0x168] sm:$0xff]
    %v3181 = vld [vmem:[#allocation10 + $0x170] sm:$0xff]
    %v3182 = vld [vmem:[#allocation10 + $0x178] sm:$0xff]
    %v3183 = vld [vmem:[#allocation10 + $0x180] sm:$0xff]
    %v3184 = vld [vmem:[#allocation10 + $0x188] sm:$0xff]
    %v3185 = vld [vmem:[#allocation10 + $0x190] sm:$0xff]
    %v3186 = vld [vmem:[#allocation10 + $0x198] sm:$0xff]
    %v3187 = vld [vmem:[#allocation10 + $0x1a0] sm:$0xff]
    %v3188 = vld [vmem:[#allocation10 + $0x1a8] sm:$0xff]
    %v3189 = vld [vmem:[#allocation10 + $0x1b0] sm:$0xff]
    %v3190 = vld [vmem:[#allocation10 + $0x1b8] sm:$0xff]
    %v3191 = vld [vmem:[#allocation10 + $0x1c0] sm:$0xff]
    %v3192 = vld [vmem:[#allocation10 + $0x1c8] sm:$0xff]
    %v3193 = vld [vmem:[#allocation10 + $0x1d0] sm:$0xff]
    %v3194 = vld [vmem:[#allocation10 + $0x1d8] sm:$0xff]
    %v3195 = vld [vmem:[#allocation10 + $0x1e0] sm:$0xff]
    %v3196 = vld [vmem:[#allocation10 + $0x1e8] sm:$0xff]
    %v3197 = vld [vmem:[#allocation10 + $0x1f0] sm:$0xff]
    %v3198 = vld [vmem:[#allocation10 + $0x1f8] sm:$0xff]
    %v3199 = vld [vmem:[#allocation10 + $0x200] sm:$0xff]
    %v3200 = vld [vmem:[#allocation10 + $0x208] sm:$0xff]
    %v3201 = vld [vmem:[#allocation10 + $0x210] sm:$0xff]
    %v3202 = vld [vmem:[#allocation10 + $0x218] sm:$0xff]
    %v3203 = vld [vmem:[#allocation10 + $0x220] sm:$0xff]
    %v3204 = vld [vmem:[#allocation10 + $0x228] sm:$0xff]
    %v3205 = vld [vmem:[#allocation10 + $0x230] sm:$0xff]
    %v3206 = vld [vmem:[#allocation10 + $0x238] sm:$0xff]
    %v3207 = vld [vmem:[#allocation10 + $0x240] sm:$0xff]
    %v3208 = vld [vmem:[#allocation10 + $0x248] sm:$0xff]
    %v3209 = vld [vmem:[#allocation10 + $0x250] sm:$0xff]
    %v3210 = vld [vmem:[#allocation10 + $0x258] sm:$0xff]
    %v3211 = vld [vmem:[#allocation10 + $0x260] sm:$0xff]
    %v3212 = vld [vmem:[#allocation10 + $0x268] sm:$0xff]
    %v3213 = vld [vmem:[#allocation10 + $0x270] sm:$0xff]
    %v3214 = vld [vmem:[#allocation10 + $0x278] sm:$0xff]
    %v3215 = vld [vmem:[#allocation10 + $0x280] sm:$0xff]
    %v3216 = vld [vmem:[#allocation10 + $0x288] sm:$0xff]
    %v3217 = vld [vmem:[#allocation10 + $0x290] sm:$0xff]
    %v3218 = vld [vmem:[#allocation10 + $0x298] sm:$0xff]
    %v3219 = vld [vmem:[#allocation10 + $0x2a0] sm:$0xff]
    %v3220 = vld [vmem:[#allocation10 + $0x2a8] sm:$0xff]
    %v3221 = vld [vmem:[#allocation10 + $0x2b0] sm:$0xff]
    %v3222 = vld [vmem:[#allocation10 + $0x2b8] sm:$0xff]
    %v3223 = vld [vmem:[#allocation10 + $0x2c0] sm:$0xff]
    %v3224 = vld [vmem:[#allocation10 + $0x2c8] sm:$0xff]
    %v3225 = vld [vmem:[#allocation10 + $0x2d0] sm:$0xff]
    %v3226 = vld [vmem:[#allocation10 + $0x2d8] sm:$0xff]
    %v3227 = vld [vmem:[#allocation10 + $0x2e0] sm:$0xff]
    %v3228 = vld [vmem:[#allocation10 + $0x2e8] sm:$0xff]
    %v3229 = vld [vmem:[#allocation10 + $0x2f0] sm:$0xff]
    %v3230 = vld [vmem:[#allocation10 + $0x2f8] sm:$0xff]
    %v3231 = vld [vmem:[#allocation10 + $0x300] sm:$0xff]
    %v3232 = vld [vmem:[#allocation10 + $0x308] sm:$0xff]
    %v3233 = vld [vmem:[#allocation10 + $0x310] sm:$0xff]
    %v3234 = vld [vmem:[#allocation10 + $0x318] sm:$0xff]
    %v3235 = vld [vmem:[#allocation10 + $0x320] sm:$0xff]
    %v3236 = vld [vmem:[#allocation10 + $0x328] sm:$0xff]
    %v3237 = vld [vmem:[#allocation10 + $0x330] sm:$0xff]
    %v3238 = vld [vmem:[#allocation10 + $0x338] sm:$0xff]
    %v3239 = vld [vmem:[#allocation10 + $0x340] sm:$0xff]
    %v3240 = vld [vmem:[#allocation10 + $0x348] sm:$0xff]
    %v3241 = vld [vmem:[#allocation10 + $0x350] sm:$0xff]
    %v3242 = vld [vmem:[#allocation10 + $0x358] sm:$0xff]
    %v3243 = vld [vmem:[#allocation10 + $0x360] sm:$0xff]
    %v3244 = vld [vmem:[#allocation10 + $0x368] sm:$0xff]
    %v3245 = vld [vmem:[#allocation10 + $0x370] sm:$0xff]
    %v3246 = vld [vmem:[#allocation10 + $0x378] sm:$0xff]
    %v3247 = vld [vmem:[#allocation10 + $0x380] sm:$0xff]
    %v3248 = vld [vmem:[#allocation10 + $0x388] sm:$0xff]
    %v3249 = vld [vmem:[#allocation10 + $0x390] sm:$0xff]
    %v3250 = vld [vmem:[#allocation10 + $0x398] sm:$0xff]
    %v3251 = vld [vmem:[#allocation10 + $0x3a0] sm:$0xff]
    %v3252 = vld [vmem:[#allocation10 + $0x3a8] sm:$0xff]
    %v3253 = vld [vmem:[#allocation10 + $0x3b0] sm:$0xff]
    %v3254 = vld [vmem:[#allocation10 + $0x3b8] sm:$0xff]
    %v3255 = vld [vmem:[#allocation10 + $0x3c0] sm:$0xff]
    %v3256 = vld [vmem:[#allocation10 + $0x3c8] sm:$0xff]
    %v3257 = vld [vmem:[#allocation10 + $0x3d0] sm:$0xff]
    %v3258 = vld [vmem:[#allocation10 + $0x3d8] sm:$0xff]
    %v3259 = vld [vmem:[#allocation10 + $0x3e0] sm:$0xff]
    %v3260 = vld [vmem:[#allocation10 + $0x3e8] sm:$0xff]
    %v3261 = vld [vmem:[#allocation10 + $0x3f0] sm:$0xff]
    %v3262 = vld [vmem:[#allocation10 + $0x3f8] sm:$0xff]
    %v3263 = vld [vmem:[#allocation10 + $0x400] sm:$0xff]
    %v3264 = vld [vmem:[#allocation10 + $0x408] sm:$0xff]
    %v3265 = vld [vmem:[#allocation10 + $0x410] sm:$0xff]
    %v3266 = vld [vmem:[#allocation10 + $0x418] sm:$0xff]
    %v3267 = vld [vmem:[#allocation10 + $0x420] sm:$0xff]
    %v3268 = vld [vmem:[#allocation10 + $0x428] sm:$0xff]
    %v3269 = vld [vmem:[#allocation10 + $0x430] sm:$0xff]
    %v3270 = vld [vmem:[#allocation10 + $0x438] sm:$0xff]
    %v3271 = vld [vmem:[#allocation10 + $0x440] sm:$0xff]
    %v3272 = vld [vmem:[#allocation10 + $0x448] sm:$0xff]
    %v3273 = vld [vmem:[#allocation10 + $0x450] sm:$0xff]
    %v3274 = vld [vmem:[#allocation10 + $0x458] sm:$0xff]
    %v3275 = vld [vmem:[#allocation10 + $0x460] sm:$0xff]
    %v3276 = vld [vmem:[#allocation10 + $0x468] sm:$0xff]
    %v3277 = vld [vmem:[#allocation10 + $0x470] sm:$0xff]
    %v3278 = vld [vmem:[#allocation10 + $0x478] sm:$0xff]
    %v3279 = vld [vmem:[#allocation10 + $0x480] sm:$0xff]
    %v3280 = vld [vmem:[#allocation10 + $0x488] sm:$0xff]
    %v3281 = vld [vmem:[#allocation10 + $0x490] sm:$0xff]
    %v3282 = vld [vmem:[#allocation10 + $0x498] sm:$0xff]
    %v3283 = vld [vmem:[#allocation10 + $0x4a0] sm:$0xff]
    %v3284 = vld [vmem:[#allocation10 + $0x4a8] sm:$0xff]
    %v3285 = vld [vmem:[#allocation10 + $0x4b0] sm:$0xff]
    %v3286 = vld [vmem:[#allocation10 + $0x4b8] sm:$0xff]
    %v3287 = vld [vmem:[#allocation10 + $0x4c0] sm:$0xff]
    %v3288 = vld [vmem:[#allocation10 + $0x4c8] sm:$0xff]
    %v3289 = vld [vmem:[#allocation10 + $0x4d0] sm:$0xff]
    %v3290 = vld [vmem:[#allocation10 + $0x4d8] sm:$0xff]
    %v3291 = vld [vmem:[#allocation10 + $0x4e0] sm:$0xff]
    %v3292 = vld [vmem:[#allocation10 + $0x4e8] sm:$0xff]
    %v3293 = vld [vmem:[#allocation10 + $0x4f0] sm:$0xff]
    %v3294 = vld [vmem:[#allocation10 + $0x4f8] sm:$0xff]
    %v3295 = vld [vmem:[#allocation10 + $0x500] sm:$0xff]
    %v3296 = vld [vmem:[#allocation10 + $0x508] sm:$0xff]
    %v3297 = vld [vmem:[#allocation10 + $0x510] sm:$0xff]
    %v3298 = vld [vmem:[#allocation10 + $0x518] sm:$0xff]
    %v3299 = vld [vmem:[#allocation10 + $0x520] sm:$0xff]
    %v3300 = vld [vmem:[#allocation10 + $0x528] sm:$0xff]
    %v3301 = vld [vmem:[#allocation10 + $0x530] sm:$0xff]
    %v3302 = vld [vmem:[#allocation10 + $0x538] sm:$0xff]
    %v3303 = vld [vmem:[#allocation10 + $0x540] sm:$0xff]
    %v3304 = vld [vmem:[#allocation10 + $0x548] sm:$0xff]
    %v3305 = vld [vmem:[#allocation10 + $0x550] sm:$0xff]
    %v3306 = vld [vmem:[#allocation10 + $0x558] sm:$0xff]
    %v3307 = vld [vmem:[#allocation10 + $0x560] sm:$0xff]
    %v3308 = vld [vmem:[#allocation10 + $0x568] sm:$0xff]
    %v3309 = vld [vmem:[#allocation10 + $0x570] sm:$0xff]
    %v3310 = vld [vmem:[#allocation10 + $0x578] sm:$0xff]
    %v3311 = vld [vmem:[#allocation10 + $0x580] sm:$0xff]
    %v3312 = vld [vmem:[#allocation10 + $0x588] sm:$0xff]
    %v3313 = vld [vmem:[#allocation10 + $0x590] sm:$0xff]
    %v3314 = vld [vmem:[#allocation10 + $0x598] sm:$0xff]
    %v3315 = vld [vmem:[#allocation10 + $0x5a0] sm:$0xff]
    %v3316 = vld [vmem:[#allocation10 + $0x5a8] sm:$0xff]
    %v3317 = vld [vmem:[#allocation10 + $0x5b0] sm:$0xff]
    %v3318 = vld [vmem:[#allocation10 + $0x5b8] sm:$0xff]
    %v3319 = vld [vmem:[#allocation10 + $0x5c0] sm:$0xff]
    %v3320 = vld [vmem:[#allocation10 + $0x5c8] sm:$0xff]
    %v3321 = vld [vmem:[#allocation10 + $0x5d0] sm:$0xff]
    %v3322 = vld [vmem:[#allocation10 + $0x5d8] sm:$0xff]
    %v3323 = vld [vmem:[#allocation10 + $0x5e0] sm:$0xff]
    %v3324 = vld [vmem:[#allocation10 + $0x5e8] sm:$0xff]
    %v3325 = vld [vmem:[#allocation10 + $0x5f0] sm:$0xff]
    %v3326 = vld [vmem:[#allocation10 + $0x5f8] sm:$0xff]
    %v3327 = vld [vmem:[#allocation10 + $0x600] sm:$0xff]
    %v3328 = vld [vmem:[#allocation10 + $0x608] sm:$0xff]
    %v3329 = vld [vmem:[#allocation10 + $0x610] sm:$0xff]
    %v3330 = vld [vmem:[#allocation10 + $0x618] sm:$0xff]
    %v3331 = vld [vmem:[#allocation10 + $0x620] sm:$0xff]
    %v3332 = vld [vmem:[#allocation10 + $0x628] sm:$0xff]
    %v3333 = vld [vmem:[#allocation10 + $0x630] sm:$0xff]
    %v3334 = vld [vmem:[#allocation10 + $0x638] sm:$0xff]
    %v3335 = vld [vmem:[#allocation10 + $0x640] sm:$0xff]
    %v3336 = vld [vmem:[#allocation10 + $0x648] sm:$0xff]
    %v3337 = vld [vmem:[#allocation10 + $0x650] sm:$0xff]
    %v3338 = vld [vmem:[#allocation10 + $0x658] sm:$0xff]
    %v3339 = vld [vmem:[#allocation10 + $0x660] sm:$0xff]
    %v3340 = vld [vmem:[#allocation10 + $0x668] sm:$0xff]
    %v3341 = vld [vmem:[#allocation10 + $0x670] sm:$0xff]
    %v3342 = vld [vmem:[#allocation10 + $0x678] sm:$0xff]
    %v3343 = vld [vmem:[#allocation10 + $0x680] sm:$0xff]
    %v3344 = vld [vmem:[#allocation10 + $0x688] sm:$0xff]
    %v3345 = vld [vmem:[#allocation10 + $0x690] sm:$0xff]
    %v3346 = vld [vmem:[#allocation10 + $0x698] sm:$0xff]
    %v3347 = vld [vmem:[#allocation10 + $0x6a0] sm:$0xff]
    %v3348 = vld [vmem:[#allocation10 + $0x6a8] sm:$0xff]
    %v3349 = vld [vmem:[#allocation10 + $0x6b0] sm:$0xff]
    %v3350 = vld [vmem:[#allocation10 + $0x6b8] sm:$0xff]
    %v3351 = vld [vmem:[#allocation10 + $0x6c0] sm:$0xff]
    %v3352 = vld [vmem:[#allocation10 + $0x6c8] sm:$0xff]
    %v3353 = vld [vmem:[#allocation10 + $0x6d0] sm:$0xff]
    %v3354 = vld [vmem:[#allocation10 + $0x6d8] sm:$0xff]
    %v3355 = vld [vmem:[#allocation10 + $0x6e0] sm:$0xff]
    %v3356 = vld [vmem:[#allocation10 + $0x6e8] sm:$0xff]
    %v3357 = vld [vmem:[#allocation10 + $0x6f0] sm:$0xff]
    %v3358 = vld [vmem:[#allocation10 + $0x6f8] sm:$0xff]
    %v3359 = vld [vmem:[#allocation10 + $0x700] sm:$0xff]
    %v3360 = vld [vmem:[#allocation10 + $0x708] sm:$0xff]
    %v3361 = vld [vmem:[#allocation10 + $0x710] sm:$0xff]
    %v3362 = vld [vmem:[#allocation10 + $0x718] sm:$0xff]
    %v3363 = vld [vmem:[#allocation10 + $0x720] sm:$0xff]
    %v3364 = vld [vmem:[#allocation10 + $0x728] sm:$0xff]
    %v3365 = vld [vmem:[#allocation10 + $0x730] sm:$0xff]
    %v3366 = vld [vmem:[#allocation10 + $0x738] sm:$0xff]
    %v3367 = vld [vmem:[#allocation10 + $0x740] sm:$0xff]
    %v3368 = vld [vmem:[#allocation10 + $0x748] sm:$0xff]
    %v3369 = vld [vmem:[#allocation10 + $0x750] sm:$0xff]
    %v3370 = vld [vmem:[#allocation10 + $0x758] sm:$0xff]
    %v3371 = vld [vmem:[#allocation10 + $0x760] sm:$0xff]
    %v3372 = vld [vmem:[#allocation10 + $0x768] sm:$0xff]
    %v3373 = vld [vmem:[#allocation10 + $0x770] sm:$0xff]
    %v3374 = vld [vmem:[#allocation10 + $0x778] sm:$0xff]
    %v3375 = vld [vmem:[#allocation10 + $0x780] sm:$0xff]
    %v3376 = vld [vmem:[#allocation10 + $0x788] sm:$0xff]
    %v3377 = vld [vmem:[#allocation10 + $0x790] sm:$0xff]
    %v3378 = vld [vmem:[#allocation10 + $0x798] sm:$0xff]
    %v3379 = vld [vmem:[#allocation10 + $0x7a0] sm:$0xff]
    %v3380 = vld [vmem:[#allocation10 + $0x7a8] sm:$0xff]
    %v3381 = vld [vmem:[#allocation10 + $0x7b0] sm:$0xff]
    %v3382 = vld [vmem:[#allocation10 + $0x7b8] sm:$0xff]
    %v3383 = vld [vmem:[#allocation10 + $0x7c0] sm:$0xff]
    %v3384 = vld [vmem:[#allocation10 + $0x7c8] sm:$0xff]
    %v3385 = vld [vmem:[#allocation10 + $0x7d0] sm:$0xff]
    %v3386 = vld [vmem:[#allocation10 + $0x7d8] sm:$0xff]
    %v3387 = vld [vmem:[#allocation10 + $0x7e0] sm:$0xff]
    %v3388 = vld [vmem:[#allocation10 + $0x7e8] sm:$0xff]
    %v3389 = vld [vmem:[#allocation10 + $0x7f0] sm:$0xff]
    %v3390 = vld [vmem:[#allocation10 + $0x7f8] sm:$0xff]
    %v3391 = vld [vmem:[#allocation10 + $0x800] sm:$0xff]
    %v3392 = vld [vmem:[#allocation10 + $0x808] sm:$0xff]
    %v3393 = vld [vmem:[#allocation10 + $0x810] sm:$0xff]
    %v3394 = vld [vmem:[#allocation10 + $0x818] sm:$0xff]
    %v3395 = vld [vmem:[#allocation10 + $0x820] sm:$0xff]
    %v3396 = vld [vmem:[#allocation10 + $0x828] sm:$0xff]
    %v3397 = vld [vmem:[#allocation10 + $0x830] sm:$0xff]
    %v3398 = vld [vmem:[#allocation10 + $0x838] sm:$0xff]
    %v3399 = vld [vmem:[#allocation10 + $0x840] sm:$0xff]
    %v3400 = vld [vmem:[#allocation10 + $0x848] sm:$0xff]
    %v3401 = vld [vmem:[#allocation10 + $0x850] sm:$0xff]
    %v3402 = vld [vmem:[#allocation10 + $0x858] sm:$0xff]
    %v3403 = vld [vmem:[#allocation10 + $0x860] sm:$0xff]
    %v3404 = vld [vmem:[#allocation10 + $0x868] sm:$0xff]
    %v3405 = vld [vmem:[#allocation10 + $0x870] sm:$0xff]
    %v3406 = vld [vmem:[#allocation10 + $0x878] sm:$0xff]
    %v3407 = vld [vmem:[#allocation10 + $0x880] sm:$0xff]
    %v3408 = vld [vmem:[#allocation10 + $0x888] sm:$0xff]
    %v3409 = vld [vmem:[#allocation10 + $0x890] sm:$0xff]
    %v3410 = vld [vmem:[#allocation10 + $0x898] sm:$0xff]
    %v3411 = vld [vmem:[#allocation10 + $0x8a0] sm:$0xff]
    %v3412 = vld [vmem:[#allocation10 + $0x8a8] sm:$0xff]
    %v3413 = vld [vmem:[#allocation10 + $0x8b0] sm:$0xff]
    %v3414 = vld [vmem:[#allocation10 + $0x8b8] sm:$0xff]
    %v3415 = vld [vmem:[#allocation10 + $0x8c0] sm:$0xff]
    %v3416 = vld [vmem:[#allocation10 + $0x8c8] sm:$0xff]
    %v3417 = vld [vmem:[#allocation10 + $0x8d0] sm:$0xff]
    %v3418 = vld [vmem:[#allocation10 + $0x8d8] sm:$0xff]
    %v3419 = vld [vmem:[#allocation10 + $0x8e0] sm:$0xff]
    %v3420 = vld [vmem:[#allocation10 + $0x8e8] sm:$0xff]
    %v3421 = vld [vmem:[#allocation10 + $0x8f0] sm:$0xff]
    %v3422 = vld [vmem:[#allocation10 + $0x8f8] sm:$0xff]
    %v3423 = vld [vmem:[#allocation10 + $0x900] sm:$0xff]
    %v3424 = vld [vmem:[#allocation10 + $0x908] sm:$0xff]
    %v3425 = vld [vmem:[#allocation10 + $0x910] sm:$0xff]
    %v3426 = vld [vmem:[#allocation10 + $0x918] sm:$0xff]
    %v3427 = vld [vmem:[#allocation10 + $0x920] sm:$0xff]
    %v3428 = vld [vmem:[#allocation10 + $0x928] sm:$0xff]
    %v3429 = vld [vmem:[#allocation10 + $0x930] sm:$0xff]
    %v3430 = vld [vmem:[#allocation10 + $0x938] sm:$0xff]
    %v3431 = vld [vmem:[#allocation10 + $0x940] sm:$0xff]
    %v3432 = vld [vmem:[#allocation10 + $0x948] sm:$0xff]
    %v3433 = vld [vmem:[#allocation10 + $0x950] sm:$0xff]
    %v3434 = vld [vmem:[#allocation10 + $0x958] sm:$0xff]
    %v3435 = vld [vmem:[#allocation10 + $0x960] sm:$0xff]
    %v3436 = vld [vmem:[#allocation10 + $0x968] sm:$0xff]
    %v3437 = vld [vmem:[#allocation10 + $0x970] sm:$0xff]
    %v3438 = vld [vmem:[#allocation10 + $0x978] sm:$0xff]
    %v3439 = vld [vmem:[#allocation10 + $0x980] sm:$0xff]
    %v3440 = vld [vmem:[#allocation10 + $0x988] sm:$0xff]
    %v3441 = vld [vmem:[#allocation10 + $0x990] sm:$0xff]
    %v3442 = vld [vmem:[#allocation10 + $0x998] sm:$0xff]
    %v3443 = vld [vmem:[#allocation10 + $0x9a0] sm:$0xff]
    %v3444 = vld [vmem:[#allocation10 + $0x9a8] sm:$0xff]
    %v3445 = vld [vmem:[#allocation10 + $0x9b0] sm:$0xff]
    %v3446 = vld [vmem:[#allocation10 + $0x9b8] sm:$0xff]
    %v3447 = vld [vmem:[#allocation10 + $0x9c0] sm:$0xff]
    %v3448 = vld [vmem:[#allocation10 + $0x9c8] sm:$0xff]
    %v3449 = vld [vmem:[#allocation10 + $0x9d0] sm:$0xff]
    %v3450 = vld [vmem:[#allocation10 + $0x9d8] sm:$0xff]
    %v3451 = vld [vmem:[#allocation10 + $0x9e0] sm:$0xff]
    %v3452 = vld [vmem:[#allocation10 + $0x9e8] sm:$0xff]
    %v3453 = vld [vmem:[#allocation10 + $0x9f0] sm:$0xff]
    %v3454 = vld [vmem:[#allocation10 + $0x9f8] sm:$0xff]
    %v3455 = vld [vmem:[#allocation10 + $0xa00] sm:$0xff]
    %v3456 = vld [vmem:[#allocation10 + $0xa08] sm:$0xff]
    %v3457 = vld [vmem:[#allocation10 + $0xa10] sm:$0xff]
    %v3458 = vld [vmem:[#allocation10 + $0xa18] sm:$0xff]
    %v3459 = vld [vmem:[#allocation10 + $0xa20] sm:$0xff]
    %v3460 = vld [vmem:[#allocation10 + $0xa28] sm:$0xff]
    %v3461 = vld [vmem:[#allocation10 + $0xa30] sm:$0xff]
    %v3462 = vld [vmem:[#allocation10 + $0xa38] sm:$0xff]
    %v3463 = vld [vmem:[#allocation10 + $0xa40] sm:$0xff]
    %v3464 = vld [vmem:[#allocation10 + $0xa48] sm:$0xff]
    %v3465 = vld [vmem:[#allocation10 + $0xa50] sm:$0xff]
    %v3466 = vld [vmem:[#allocation10 + $0xa58] sm:$0xff]
    %v3467 = vld [vmem:[#allocation10 + $0xa60] sm:$0xff]
    %v3468 = vld [vmem:[#allocation10 + $0xa68] sm:$0xff]
    %v3469 = vld [vmem:[#allocation10 + $0xa70] sm:$0xff]
    %v3470 = vld [vmem:[#allocation10 + $0xa78] sm:$0xff]
    %v3471 = vld [vmem:[#allocation10 + $0xa80] sm:$0xff]
    %v3472 = vld [vmem:[#allocation10 + $0xa88] sm:$0xff]
    %v3473 = vld [vmem:[#allocation10 + $0xa90] sm:$0xff]
    %v3474 = vld [vmem:[#allocation10 + $0xa98] sm:$0xff]
    %v3475 = vld [vmem:[#allocation10 + $0xaa0] sm:$0xff]
    %v3476 = vld [vmem:[#allocation10 + $0xaa8] sm:$0xff]
    %v3477 = vld [vmem:[#allocation10 + $0xab0] sm:$0xff]
    %v3478 = vld [vmem:[#allocation10 + $0xab8] sm:$0xff]
    %v3479 = vld [vmem:[#allocation10 + $0xac0] sm:$0xff]
    %v3480 = vld [vmem:[#allocation10 + $0xac8] sm:$0xff]
    %v3481 = vld [vmem:[#allocation10 + $0xad0] sm:$0xff]
    %v3482 = vld [vmem:[#allocation10 + $0xad8] sm:$0xff]
    %v3483 = vld [vmem:[#allocation10 + $0xae0] sm:$0xff]
    %v3484 = vld [vmem:[#allocation10 + $0xae8] sm:$0xff]
    %v3485 = vld [vmem:[#allocation10 + $0xaf0] sm:$0xff]
    %v3486 = vld [vmem:[#allocation10 + $0xaf8] sm:$0xff]
    %v3487 = vld [vmem:[#allocation10 + $0xb00] sm:$0xff]
    %v3488 = vld [vmem:[#allocation10 + $0xb08] sm:$0xff]
    %v3489 = vld [vmem:[#allocation10 + $0xb10] sm:$0xff]
    %v3490 = vld [vmem:[#allocation10 + $0xb18] sm:$0xff]
    %v3491 = vld [vmem:[#allocation10 + $0xb20] sm:$0xff]
    %v3492 = vld [vmem:[#allocation10 + $0xb28] sm:$0xff]
    %v3493 = vld [vmem:[#allocation10 + $0xb30] sm:$0xff]
    %v3494 = vld [vmem:[#allocation10 + $0xb38] sm:$0xff]
    %v3495 = vld [vmem:[#allocation10 + $0xb40] sm:$0xff]
    %v3496 = vld [vmem:[#allocation10 + $0xb48] sm:$0xff]
    %v3497 = vld [vmem:[#allocation10 + $0xb50] sm:$0xff]
    %v3498 = vld [vmem:[#allocation10 + $0xb58] sm:$0xff]
    %v3499 = vld [vmem:[#allocation10 + $0xb60] sm:$0xff]
    %v3500 = vld [vmem:[#allocation10 + $0xb68] sm:$0xff]
    %v3501 = vld [vmem:[#allocation10 + $0xb70] sm:$0xff]
    %v3502 = vld [vmem:[#allocation10 + $0xb78] sm:$0xff]
    %v3503 = vld [vmem:[#allocation10 + $0xb80] sm:$0xff]
    %v3504 = vld [vmem:[#allocation10 + $0xb88] sm:$0xff]
    %v3505 = vld [vmem:[#allocation10 + $0xb90] sm:$0xff]
    %v3506 = vld [vmem:[#allocation10 + $0xb98] sm:$0xff]
    %v3507 = vld [vmem:[#allocation10 + $0xba0] sm:$0xff]
    %v3508 = vld [vmem:[#allocation10 + $0xba8] sm:$0xff]
    %v3509 = vld [vmem:[#allocation10 + $0xbb0] sm:$0xff]
    %v3510 = vld [vmem:[#allocation10 + $0xbb8] sm:$0xff]
    %v3511 = vld [vmem:[#allocation10 + $0xbc0] sm:$0xff]
    %v3512 = vld [vmem:[#allocation10 + $0xbc8] sm:$0xff]
    %v3513 = vld [vmem:[#allocation10 + $0xbd0] sm:$0xff]
    %v3514 = vld [vmem:[#allocation10 + $0xbd8] sm:$0xff]
    %v3515 = vld [vmem:[#allocation10 + $0xbe0] sm:$0xff]
    %v3516 = vld [vmem:[#allocation10 + $0xbe8] sm:$0xff]
    %v3517 = vld [vmem:[#allocation10 + $0xbf0] sm:$0xff]
    %v3518 = vld [vmem:[#allocation10 + $0xbf8] sm:$0xff]
    %v3519 = vld [vmem:[#allocation10 + $0xc00] sm:$0xff]
    %v3520 = vld [vmem:[#allocation10 + $0xc08] sm:$0xff]
    %v3521 = vld [vmem:[#allocation10 + $0xc10] sm:$0xff]
    %v3522 = vld [vmem:[#allocation10 + $0xc18] sm:$0xff]
    %v3523 = vld [vmem:[#allocation10 + $0xc20] sm:$0xff]
    %v3524 = vld [vmem:[#allocation10 + $0xc28] sm:$0xff]
    %v3525 = vld [vmem:[#allocation10 + $0xc30] sm:$0xff]
    %v3526 = vld [vmem:[#allocation10 + $0xc38] sm:$0xff]
    %v3527 = vld [vmem:[#allocation10 + $0xc40] sm:$0xff]
    %v3528 = vld [vmem:[#allocation10 + $0xc48] sm:$0xff]
    %v3529 = vld [vmem:[#allocation10 + $0xc50] sm:$0xff]
    %v3530 = vld [vmem:[#allocation10 + $0xc58] sm:$0xff]
    %v3531 = vld [vmem:[#allocation10 + $0xc60] sm:$0xff]
    %v3532 = vld [vmem:[#allocation10 + $0xc68] sm:$0xff]
    %v3533 = vld [vmem:[#allocation10 + $0xc70] sm:$0xff]
    %v3534 = vld [vmem:[#allocation10 + $0xc78] sm:$0xff]
    %v3535 = vld [vmem:[#allocation10 + $0xc80] sm:$0xff]
    %v3536 = vld [vmem:[#allocation10 + $0xc88] sm:$0xff]
    %v3537 = vld [vmem:[#allocation10 + $0xc90] sm:$0xff]
    %v3538 = vld [vmem:[#allocation10 + $0xc98] sm:$0xff]
    %v3539 = vld [vmem:[#allocation10 + $0xca0] sm:$0xff]
    %v3540 = vld [vmem:[#allocation10 + $0xca8] sm:$0xff]
    %v3541 = vld [vmem:[#allocation10 + $0xcb0] sm:$0xff]
    %v3542 = vld [vmem:[#allocation10 + $0xcb8] sm:$0xff]
    %v3543 = vld [vmem:[#allocation10 + $0xcc0] sm:$0xff]
    %v3544 = vld [vmem:[#allocation10 + $0xcc8] sm:$0xff]
    %v3545 = vld [vmem:[#allocation10 + $0xcd0] sm:$0xff]
    %v3546 = vld [vmem:[#allocation10 + $0xcd8] sm:$0xff]
    %v3547 = vld [vmem:[#allocation10 + $0xce0] sm:$0xff]
    %v3548 = vld [vmem:[#allocation10 + $0xce8] sm:$0xff]
    %v3549 = vld [vmem:[#allocation10 + $0xcf0] sm:$0xff]
    %v3550 = vld [vmem:[#allocation10 + $0xcf8] sm:$0xff]
    %v3551 = vld [vmem:[#allocation10 + $0xd00] sm:$0xff]
    %v3552 = vld [vmem:[#allocation10 + $0xd08] sm:$0xff]
    %v3553 = vld [vmem:[#allocation10 + $0xd10] sm:$0xff]
    %v3554 = vld [vmem:[#allocation10 + $0xd18] sm:$0xff]
    %v3555 = vld [vmem:[#allocation10 + $0xd20] sm:$0xff]
    %v3556 = vld [vmem:[#allocation10 + $0xd28] sm:$0xff]
    %v3557 = vld [vmem:[#allocation10 + $0xd30] sm:$0xff]
    %v3558 = vld [vmem:[#allocation10 + $0xd38] sm:$0xff]
    %v3559 = vld [vmem:[#allocation10 + $0xd40] sm:$0xff]
    %v3560 = vld [vmem:[#allocation10 + $0xd48] sm:$0xff]
    %v3561 = vld [vmem:[#allocation10 + $0xd50] sm:$0xff]
    %v3562 = vld [vmem:[#allocation10 + $0xd58] sm:$0xff]
    %v3563 = vld [vmem:[#allocation10 + $0xd60] sm:$0xff]
    %v3564 = vld [vmem:[#allocation10 + $0xd68] sm:$0xff]
    %v3565 = vld [vmem:[#allocation10 + $0xd70] sm:$0xff]
    %v3566 = vld [vmem:[#allocation10 + $0xd78] sm:$0xff]
    %v3567 = vld [vmem:[#allocation10 + $0xd80] sm:$0xff]
    %v3568 = vld [vmem:[#allocation10 + $0xd88] sm:$0xff]
    %v3569 = vld [vmem:[#allocation10 + $0xd90] sm:$0xff]
    %v3570 = vld [vmem:[#allocation10 + $0xd98] sm:$0xff]
    %v3571 = vld [vmem:[#allocation10 + $0xda0] sm:$0xff]
    %v3572 = vld [vmem:[#allocation10 + $0xda8] sm:$0xff]
    %v3573 = vld [vmem:[#allocation10 + $0xdb0] sm:$0xff]
    %v3574 = vld [vmem:[#allocation10 + $0xdb8] sm:$0xff]
    %v3575 = vld [vmem:[#allocation10 + $0xdc0] sm:$0xff]
    %v3576 = vld [vmem:[#allocation10 + $0xdc8] sm:$0xff]
    %v3577 = vld [vmem:[#allocation10 + $0xdd0] sm:$0xff]
    %v3578 = vld [vmem:[#allocation10 + $0xdd8] sm:$0xff]
    %v3579 = vld [vmem:[#allocation10 + $0xde0] sm:$0xff]
    %v3580 = vld [vmem:[#allocation10 + $0xde8] sm:$0xff]
    %v3581 = vld [vmem:[#allocation10 + $0xdf0] sm:$0xff]
    %v3582 = vld [vmem:[#allocation10 + $0xdf8] sm:$0xff]
    %v3583 = vld [vmem:[#allocation10 + $0xe00] sm:$0xff]
    %v3584 = vld [vmem:[#allocation10 + $0xe08] sm:$0xff]
    %v3585 = vld [vmem:[#allocation10 + $0xe10] sm:$0xff]
    %v3586 = vld [vmem:[#allocation10 + $0xe18] sm:$0xff]
    %v3587 = vld [vmem:[#allocation10 + $0xe20] sm:$0xff]
    %v3588 = vld [vmem:[#allocation10 + $0xe28] sm:$0xff]
    %v3589 = vld [vmem:[#allocation10 + $0xe30] sm:$0xff]
    %v3590 = vld [vmem:[#allocation10 + $0xe38] sm:$0xff]
    %v3591 = vld [vmem:[#allocation10 + $0xe40] sm:$0xff]
    %v3592 = vld [vmem:[#allocation10 + $0xe48] sm:$0xff]
    %v3593 = vld [vmem:[#allocation10 + $0xe50] sm:$0xff]
    %v3594 = vld [vmem:[#allocation10 + $0xe58] sm:$0xff]
    %v3595 = vld [vmem:[#allocation10 + $0xe60] sm:$0xff]
    %v3596 = vld [vmem:[#allocation10 + $0xe68] sm:$0xff]
    %v3597 = vld [vmem:[#allocation10 + $0xe70] sm:$0xff]
    %v3598 = vld [vmem:[#allocation10 + $0xe78] sm:$0xff]
    %v3599 = vld [vmem:[#allocation10 + $0xe80] sm:$0xff]
    %v3600 = vld [vmem:[#allocation10 + $0xe88] sm:$0xff]
    %v3601 = vld [vmem:[#allocation10 + $0xe90] sm:$0xff]
    %v3602 = vld [vmem:[#allocation10 + $0xe98] sm:$0xff]
    %v3603 = vld [vmem:[#allocation10 + $0xea0] sm:$0xff]
    %v3604 = vld [vmem:[#allocation10 + $0xea8] sm:$0xff]
    %v3605 = vld [vmem:[#allocation10 + $0xeb0] sm:$0xff]
    %v3606 = vld [vmem:[#allocation10 + $0xeb8] sm:$0xff]
    %v3607 = vld [vmem:[#allocation10 + $0xec0] sm:$0xff]
    %v3608 = vld [vmem:[#allocation10 + $0xec8] sm:$0xff]
    %v3609 = vld [vmem:[#allocation10 + $0xed0] sm:$0xff]
    %v3610 = vld [vmem:[#allocation10 + $0xed8] sm:$0xff]
    %v3611 = vld [vmem:[#allocation10 + $0xee0] sm:$0xff]
    %v3612 = vld [vmem:[#allocation10 + $0xee8] sm:$0xff]
    %v3613 = vld [vmem:[#allocation10 + $0xef0] sm:$0xff]
    %v3614 = vld [vmem:[#allocation10 + $0xef8] sm:$0xff]
    %v3615 = vld [vmem:[#allocation10 + $0xf00] sm:$0xff]
    %v3616 = vld [vmem:[#allocation10 + $0xf08] sm:$0xff]
    %v3617 = vld [vmem:[#allocation10 + $0xf10] sm:$0xff]
    %v3618 = vld [vmem:[#allocation10 + $0xf18] sm:$0xff]
    %v3619 = vld [vmem:[#allocation10 + $0xf20] sm:$0xff]
    %v3620 = vld [vmem:[#allocation10 + $0xf28] sm:$0xff]
    %v3621 = vld [vmem:[#allocation10 + $0xf30] sm:$0xff]
    %v3622 = vld [vmem:[#allocation10 + $0xf38] sm:$0xff]
    %v3623 = vld [vmem:[#allocation10 + $0xf40] sm:$0xff]
    %v3624 = vld [vmem:[#allocation10 + $0xf48] sm:$0xff]
    %v3625 = vld [vmem:[#allocation10 + $0xf50] sm:$0xff]
    %v3626 = vld [vmem:[#allocation10 + $0xf58] sm:$0xff]
    %v3627 = vld [vmem:[#allocation10 + $0xf60] sm:$0xff]
    %v3628 = vld [vmem:[#allocation10 + $0xf68] sm:$0xff]
    %v3629 = vld [vmem:[#allocation10 + $0xf70] sm:$0xff]
    %v3630 = vld [vmem:[#allocation10 + $0xf78] sm:$0xff]
    %v3631 = vld [vmem:[#allocation10 + $0xf80] sm:$0xff]
    %v3632 = vld [vmem:[#allocation10 + $0xf88] sm:$0xff]
    %v3633 = vld [vmem:[#allocation10 + $0xf90] sm:$0xff]
    %v3634 = vld [vmem:[#allocation10 + $0xf98] sm:$0xff]
    %v3635 = vld [vmem:[#allocation10 + $0xfa0] sm:$0xff]
    %v3636 = vld [vmem:[#allocation10 + $0xfa8] sm:$0xff]
    %v3637 = vld [vmem:[#allocation10 + $0xfb0] sm:$0xff]
    %v3638 = vld [vmem:[#allocation10 + $0xfb8] sm:$0xff]
    %v3639 = vld [vmem:[#allocation10 + $0xfc0] sm:$0xff]
    %v3640 = vld [vmem:[#allocation10 + $0xfc8] sm:$0xff]
    %v3641 = vld [vmem:[#allocation10 + $0xfd0] sm:$0xff]
    %v3642 = vld [vmem:[#allocation10 + $0xfd8] sm:$0xff]
    %v3643 = vld [vmem:[#allocation10 + $0xfe0] sm:$0xff]
    %v3644 = vld [vmem:[#allocation10 + $0xfe8] sm:$0xff]
    %v3645 = vld [vmem:[#allocation10 + $0xff0] sm:$0xff]
    %v3646 = vld [vmem:[#allocation10 + $0xff8] sm:$0xff]
    %v4159 = vunpack.c.l.b16 %v3135
    %v4160 = vunpack.c.h.b16 %v3135
    %v4161 = vunpack.c.l.b16 %v3136
    %v4162 = vunpack.c.h.b16 %v3136
    %v4163 = vunpack.c.l.b16 %v3137
    %v4164 = vunpack.c.h.b16 %v3137
    %v4165 = vunpack.c.l.b16 %v3138
    %v4166 = vunpack.c.h.b16 %v3138
    %v4167 = vunpack.c.l.b16 %v3139
    %v4168 = vunpack.c.h.b16 %v3139
    %v4169 = vunpack.c.l.b16 %v3140
    %v4170 = vunpack.c.h.b16 %v3140
    %v4171 = vunpack.c.l.b16 %v3141
    %v4172 = vunpack.c.h.b16 %v3141
    %v4173 = vunpack.c.l.b16 %v3142
    %v4174 = vunpack.c.h.b16 %v3142
    %v4175 = vunpack.c.l.b16 %v3143
    %v4176 = vunpack.c.h.b16 %v3143
    %v4177 = vunpack.c.l.b16 %v3144
    %v4178 = vunpack.c.h.b16 %v3144
    %v4179 = vunpack.c.l.b16 %v3145
    %v4180 = vunpack.c.h.b16 %v3145
    %v4181 = vunpack.c.l.b16 %v3146
    %v4182 = vunpack.c.h.b16 %v3146
    %v4183 = vunpack.c.l.b16 %v3147
    %v4184 = vunpack.c.h.b16 %v3147
    %v4185 = vunpack.c.l.b16 %v3148
    %v4186 = vunpack.c.h.b16 %v3148
    %v4187 = vunpack.c.l.b16 %v3149
    %v4188 = vunpack.c.h.b16 %v3149
    %v4189 = vunpack.c.l.b16 %v3150
    %v4190 = vunpack.c.h.b16 %v3150
    %v4191 = vunpack.c.l.b16 %v3151
    %v4192 = vunpack.c.h.b16 %v3151
    %v4193 = vunpack.c.l.b16 %v3152
    %v4194 = vunpack.c.h.b16 %v3152
    %v4195 = vunpack.c.l.b16 %v3153
    %v4196 = vunpack.c.h.b16 %v3153
    %v4197 = vunpack.c.l.b16 %v3154
    %v4198 = vunpack.c.h.b16 %v3154
    %v4199 = vunpack.c.l.b16 %v3155
    %v4200 = vunpack.c.h.b16 %v3155
    %v4201 = vunpack.c.l.b16 %v3156
    %v4202 = vunpack.c.h.b16 %v3156
    %v4203 = vunpack.c.l.b16 %v3157
    %v4204 = vunpack.c.h.b16 %v3157
    %v4205 = vunpack.c.l.b16 %v3158
    %v4206 = vunpack.c.h.b16 %v3158
    %v4207 = vunpack.c.l.b16 %v3159
    %v4208 = vunpack.c.h.b16 %v3159
    %v4209 = vunpack.c.l.b16 %v3160
    %v4210 = vunpack.c.h.b16 %v3160
    %v4211 = vunpack.c.l.b16 %v3161
    %v4212 = vunpack.c.h.b16 %v3161
    %v4213 = vunpack.c.l.b16 %v3162
    %v4214 = vunpack.c.h.b16 %v3162
    %v4215 = vunpack.c.l.b16 %v3163
    %v4216 = vunpack.c.h.b16 %v3163
    %v4217 = vunpack.c.l.b16 %v3164
    %v4218 = vunpack.c.h.b16 %v3164
    %v4219 = vunpack.c.l.b16 %v3165
    %v4220 = vunpack.c.h.b16 %v3165
    %v4221 = vunpack.c.l.b16 %v3166
    %v4222 = vunpack.c.h.b16 %v3166
    %v4223 = vunpack.c.l.b16 %v3167
    %v4224 = vunpack.c.h.b16 %v3167
    %v4225 = vunpack.c.l.b16 %v3168
    %v4226 = vunpack.c.h.b16 %v3168
    %v4227 = vunpack.c.l.b16 %v3169
    %v4228 = vunpack.c.h.b16 %v3169
    %v4229 = vunpack.c.l.b16 %v3170
    %v4230 = vunpack.c.h.b16 %v3170
    %v4231 = vunpack.c.l.b16 %v3171
    %v4232 = vunpack.c.h.b16 %v3171
    %v4233 = vunpack.c.l.b16 %v3172
    %v4234 = vunpack.c.h.b16 %v3172
    %v4235 = vunpack.c.l.b16 %v3173
    %v4236 = vunpack.c.h.b16 %v3173
    %v4237 = vunpack.c.l.b16 %v3174
    %v4238 = vunpack.c.h.b16 %v3174
    %v4239 = vunpack.c.l.b16 %v3175
    %v4240 = vunpack.c.h.b16 %v3175
    %v4241 = vunpack.c.l.b16 %v3176
    %v4242 = vunpack.c.h.b16 %v3176
    %v4243 = vunpack.c.l.b16 %v3177
    %v4244 = vunpack.c.h.b16 %v3177
    %v4245 = vunpack.c.l.b16 %v3178
    %v4246 = vunpack.c.h.b16 %v3178
    %v4247 = vunpack.c.l.b16 %v3179
    %v4248 = vunpack.c.h.b16 %v3179
    %v4249 = vunpack.c.l.b16 %v3180
    %v4250 = vunpack.c.h.b16 %v3180
    %v4251 = vunpack.c.l.b16 %v3181
    %v4252 = vunpack.c.h.b16 %v3181
    %v4253 = vunpack.c.l.b16 %v3182
    %v4254 = vunpack.c.h.b16 %v3182
    %v4255 = vunpack.c.l.b16 %v3183
    %v4256 = vunpack.c.h.b16 %v3183
    %v4257 = vunpack.c.l.b16 %v3184
    %v4258 = vunpack.c.h.b16 %v3184
    %v4259 = vunpack.c.l.b16 %v3185
    %v4260 = vunpack.c.h.b16 %v3185
    %v4261 = vunpack.c.l.b16 %v3186
    %v4262 = vunpack.c.h.b16 %v3186
    %v4263 = vunpack.c.l.b16 %v3187
    %v4264 = vunpack.c.h.b16 %v3187
    %v4265 = vunpack.c.l.b16 %v3188
    %v4266 = vunpack.c.h.b16 %v3188
    %v4267 = vunpack.c.l.b16 %v3189
    %v4268 = vunpack.c.h.b16 %v3189
    %v4269 = vunpack.c.l.b16 %v3190
    %v4270 = vunpack.c.h.b16 %v3190
    %v4271 = vunpack.c.l.b16 %v3191
    %v4272 = vunpack.c.h.b16 %v3191
    %v4273 = vunpack.c.l.b16 %v3192
    %v4274 = vunpack.c.h.b16 %v3192
    %v4275 = vunpack.c.l.b16 %v3193
    %v4276 = vunpack.c.h.b16 %v3193
    %v4277 = vunpack.c.l.b16 %v3194
    %v4278 = vunpack.c.h.b16 %v3194
    %v4279 = vunpack.c.l.b16 %v3195
    %v4280 = vunpack.c.h.b16 %v3195
    %v4281 = vunpack.c.l.b16 %v3196
    %v4282 = vunpack.c.h.b16 %v3196
    %v4283 = vunpack.c.l.b16 %v3197
    %v4284 = vunpack.c.h.b16 %v3197
    %v4285 = vunpack.c.l.b16 %v3198
    %v4286 = vunpack.c.h.b16 %v3198
    %v4287 = vunpack.c.l.b16 %v3199
    %v4288 = vunpack.c.h.b16 %v3199
    %v4289 = vunpack.c.l.b16 %v3200
    %v4290 = vunpack.c.h.b16 %v3200
    %v4291 = vunpack.c.l.b16 %v3201
    %v4292 = vunpack.c.h.b16 %v3201
    %v4293 = vunpack.c.l.b16 %v3202
    %v4294 = vunpack.c.h.b16 %v3202
    %v4295 = vunpack.c.l.b16 %v3203
    %v4296 = vunpack.c.h.b16 %v3203
    %v4297 = vunpack.c.l.b16 %v3204
    %v4298 = vunpack.c.h.b16 %v3204
    %v4299 = vunpack.c.l.b16 %v3205
    %v4300 = vunpack.c.h.b16 %v3205
    %v4301 = vunpack.c.l.b16 %v3206
    %v4302 = vunpack.c.h.b16 %v3206
    %v4303 = vunpack.c.l.b16 %v3207
    %v4304 = vunpack.c.h.b16 %v3207
    %v4305 = vunpack.c.l.b16 %v3208
    %v4306 = vunpack.c.h.b16 %v3208
    %v4307 = vunpack.c.l.b16 %v3209
    %v4308 = vunpack.c.h.b16 %v3209
    %v4309 = vunpack.c.l.b16 %v3210
    %v4310 = vunpack.c.h.b16 %v3210
    %v4311 = vunpack.c.l.b16 %v3211
    %v4312 = vunpack.c.h.b16 %v3211
    %v4313 = vunpack.c.l.b16 %v3212
    %v4314 = vunpack.c.h.b16 %v3212
    %v4315 = vunpack.c.l.b16 %v3213
    %v4316 = vunpack.c.h.b16 %v3213
    %v4317 = vunpack.c.l.b16 %v3214
    %v4318 = vunpack.c.h.b16 %v3214
    %v4319 = vunpack.c.l.b16 %v3215
    %v4320 = vunpack.c.h.b16 %v3215
    %v4321 = vunpack.c.l.b16 %v3216
    %v4322 = vunpack.c.h.b16 %v3216
    %v4323 = vunpack.c.l.b16 %v3217
    %v4324 = vunpack.c.h.b16 %v3217
    %v4325 = vunpack.c.l.b16 %v3218
    %v4326 = vunpack.c.h.b16 %v3218
    %v4327 = vunpack.c.l.b16 %v3219
    %v4328 = vunpack.c.h.b16 %v3219
    %v4329 = vunpack.c.l.b16 %v3220
    %v4330 = vunpack.c.h.b16 %v3220
    %v4331 = vunpack.c.l.b16 %v3221
    %v4332 = vunpack.c.h.b16 %v3221
    %v4333 = vunpack.c.l.b16 %v3222
    %v4334 = vunpack.c.h.b16 %v3222
    %v4335 = vunpack.c.l.b16 %v3223
    %v4336 = vunpack.c.h.b16 %v3223
    %v4337 = vunpack.c.l.b16 %v3224
    %v4338 = vunpack.c.h.b16 %v3224
    %v4339 = vunpack.c.l.b16 %v3225
    %v4340 = vunpack.c.h.b16 %v3225
    %v4341 = vunpack.c.l.b16 %v3226
    %v4342 = vunpack.c.h.b16 %v3226
    %v4343 = vunpack.c.l.b16 %v3227
    %v4344 = vunpack.c.h.b16 %v3227
    %v4345 = vunpack.c.l.b16 %v3228
    %v4346 = vunpack.c.h.b16 %v3228
    %v4347 = vunpack.c.l.b16 %v3229
    %v4348 = vunpack.c.h.b16 %v3229
    %v4349 = vunpack.c.l.b16 %v3230
    %v4350 = vunpack.c.h.b16 %v3230
    %v4351 = vunpack.c.l.b16 %v3231
    %v4352 = vunpack.c.h.b16 %v3231
    %v4353 = vunpack.c.l.b16 %v3232
    %v4354 = vunpack.c.h.b16 %v3232
    %v4355 = vunpack.c.l.b16 %v3233
    %v4356 = vunpack.c.h.b16 %v3233
    %v4357 = vunpack.c.l.b16 %v3234
    %v4358 = vunpack.c.h.b16 %v3234
    %v4359 = vunpack.c.l.b16 %v3235
    %v4360 = vunpack.c.h.b16 %v3235
    %v4361 = vunpack.c.l.b16 %v3236
    %v4362 = vunpack.c.h.b16 %v3236
    %v4363 = vunpack.c.l.b16 %v3237
    %v4364 = vunpack.c.h.b16 %v3237
    %v4365 = vunpack.c.l.b16 %v3238
    %v4366 = vunpack.c.h.b16 %v3238
    %v4367 = vunpack.c.l.b16 %v3239
    %v4368 = vunpack.c.h.b16 %v3239
    %v4369 = vunpack.c.l.b16 %v3240
    %v4370 = vunpack.c.h.b16 %v3240
    %v4371 = vunpack.c.l.b16 %v3241
    %v4372 = vunpack.c.h.b16 %v3241
    %v4373 = vunpack.c.l.b16 %v3242
    %v4374 = vunpack.c.h.b16 %v3242
    %v4375 = vunpack.c.l.b16 %v3243
    %v4376 = vunpack.c.h.b16 %v3243
    %v4377 = vunpack.c.l.b16 %v3244
    %v4378 = vunpack.c.h.b16 %v3244
    %v4379 = vunpack.c.l.b16 %v3245
    %v4380 = vunpack.c.h.b16 %v3245
    %v4381 = vunpack.c.l.b16 %v3246
    %v4382 = vunpack.c.h.b16 %v3246
    %v4383 = vunpack.c.l.b16 %v3247
    %v4384 = vunpack.c.h.b16 %v3247
    %v4385 = vunpack.c.l.b16 %v3248
    %v4386 = vunpack.c.h.b16 %v3248
    %v4387 = vunpack.c.l.b16 %v3249
    %v4388 = vunpack.c.h.b16 %v3249
    %v4389 = vunpack.c.l.b16 %v3250
    %v4390 = vunpack.c.h.b16 %v3250
    %v4391 = vunpack.c.l.b16 %v3251
    %v4392 = vunpack.c.h.b16 %v3251
    %v4393 = vunpack.c.l.b16 %v3252
    %v4394 = vunpack.c.h.b16 %v3252
    %v4395 = vunpack.c.l.b16 %v3253
    %v4396 = vunpack.c.h.b16 %v3253
    %v4397 = vunpack.c.l.b16 %v3254
    %v4398 = vunpack.c.h.b16 %v3254
    %v4399 = vunpack.c.l.b16 %v3255
    %v4400 = vunpack.c.h.b16 %v3255
    %v4401 = vunpack.c.l.b16 %v3256
    %v4402 = vunpack.c.h.b16 %v3256
    %v4403 = vunpack.c.l.b16 %v3257
    %v4404 = vunpack.c.h.b16 %v3257
    %v4405 = vunpack.c.l.b16 %v3258
    %v4406 = vunpack.c.h.b16 %v3258
    %v4407 = vunpack.c.l.b16 %v3259
    %v4408 = vunpack.c.h.b16 %v3259
    %v4409 = vunpack.c.l.b16 %v3260
    %v4410 = vunpack.c.h.b16 %v3260
    %v4411 = vunpack.c.l.b16 %v3261
    %v4412 = vunpack.c.h.b16 %v3261
    %v4413 = vunpack.c.l.b16 %v3262
    %v4414 = vunpack.c.h.b16 %v3262
    %v4415 = vunpack.c.l.b16 %v3263
    %v4416 = vunpack.c.h.b16 %v3263
    %v4417 = vunpack.c.l.b16 %v3264
    %v4418 = vunpack.c.h.b16 %v3264
    %v4419 = vunpack.c.l.b16 %v3265
    %v4420 = vunpack.c.h.b16 %v3265
    %v4421 = vunpack.c.l.b16 %v3266
    %v4422 = vunpack.c.h.b16 %v3266
    %v4423 = vunpack.c.l.b16 %v3267
    %v4424 = vunpack.c.h.b16 %v3267
    %v4425 = vunpack.c.l.b16 %v3268
    %v4426 = vunpack.c.h.b16 %v3268
    %v4427 = vunpack.c.l.b16 %v3269
    %v4428 = vunpack.c.h.b16 %v3269
    %v4429 = vunpack.c.l.b16 %v3270
    %v4430 = vunpack.c.h.b16 %v3270
    %v4431 = vunpack.c.l.b16 %v3271
    %v4432 = vunpack.c.h.b16 %v3271
    %v4433 = vunpack.c.l.b16 %v3272
    %v4434 = vunpack.c.h.b16 %v3272
    %v4435 = vunpack.c.l.b16 %v3273
    %v4436 = vunpack.c.h.b16 %v3273
    %v4437 = vunpack.c.l.b16 %v3274
    %v4438 = vunpack.c.h.b16 %v3274
    %v4439 = vunpack.c.l.b16 %v3275
    %v4440 = vunpack.c.h.b16 %v3275
    %v4441 = vunpack.c.l.b16 %v3276
    %v4442 = vunpack.c.h.b16 %v3276
    %v4443 = vunpack.c.l.b16 %v3277
    %v4444 = vunpack.c.h.b16 %v3277
    %v4445 = vunpack.c.l.b16 %v3278
    %v4446 = vunpack.c.h.b16 %v3278
    %v4447 = vunpack.c.l.b16 %v3279
    %v4448 = vunpack.c.h.b16 %v3279
    %v4449 = vunpack.c.l.b16 %v3280
    %v4450 = vunpack.c.h.b16 %v3280
    %v4451 = vunpack.c.l.b16 %v3281
    %v4452 = vunpack.c.h.b16 %v3281
    %v4453 = vunpack.c.l.b16 %v3282
    %v4454 = vunpack.c.h.b16 %v3282
    %v4455 = vunpack.c.l.b16 %v3283
    %v4456 = vunpack.c.h.b16 %v3283
    %v4457 = vunpack.c.l.b16 %v3284
    %v4458 = vunpack.c.h.b16 %v3284
    %v4459 = vunpack.c.l.b16 %v3285
    %v4460 = vunpack.c.h.b16 %v3285
    %v4461 = vunpack.c.l.b16 %v3286
    %v4462 = vunpack.c.h.b16 %v3286
    %v4463 = vunpack.c.l.b16 %v3287
    %v4464 = vunpack.c.h.b16 %v3287
    %v4465 = vunpack.c.l.b16 %v3288
    %v4466 = vunpack.c.h.b16 %v3288
    %v4467 = vunpack.c.l.b16 %v3289
    %v4468 = vunpack.c.h.b16 %v3289
    %v4469 = vunpack.c.l.b16 %v3290
    %v4470 = vunpack.c.h.b16 %v3290
    %v4471 = vunpack.c.l.b16 %v3291
    %v4472 = vunpack.c.h.b16 %v3291
    %v4473 = vunpack.c.l.b16 %v3292
    %v4474 = vunpack.c.h.b16 %v3292
    %v4475 = vunpack.c.l.b16 %v3293
    %v4476 = vunpack.c.h.b16 %v3293
    %v4477 = vunpack.c.l.b16 %v3294
    %v4478 = vunpack.c.h.b16 %v3294
    %v4479 = vunpack.c.l.b16 %v3295
    %v4480 = vunpack.c.h.b16 %v3295
    %v4481 = vunpack.c.l.b16 %v3296
    %v4482 = vunpack.c.h.b16 %v3296
    %v4483 = vunpack.c.l.b16 %v3297
    %v4484 = vunpack.c.h.b16 %v3297
    %v4485 = vunpack.c.l.b16 %v3298
    %v4486 = vunpack.c.h.b16 %v3298
    %v4487 = vunpack.c.l.b16 %v3299
    %v4488 = vunpack.c.h.b16 %v3299
    %v4489 = vunpack.c.l.b16 %v3300
    %v4490 = vunpack.c.h.b16 %v3300
    %v4491 = vunpack.c.l.b16 %v3301
    %v4492 = vunpack.c.h.b16 %v3301
    %v4493 = vunpack.c.l.b16 %v3302
    %v4494 = vunpack.c.h.b16 %v3302
    %v4495 = vunpack.c.l.b16 %v3303
    %v4496 = vunpack.c.h.b16 %v3303
    %v4497 = vunpack.c.l.b16 %v3304
    %v4498 = vunpack.c.h.b16 %v3304
    %v4499 = vunpack.c.l.b16 %v3305
    %v4500 = vunpack.c.h.b16 %v3305
    %v4501 = vunpack.c.l.b16 %v3306
    %v4502 = vunpack.c.h.b16 %v3306
    %v4503 = vunpack.c.l.b16 %v3307
    %v4504 = vunpack.c.h.b16 %v3307
    %v4505 = vunpack.c.l.b16 %v3308
    %v4506 = vunpack.c.h.b16 %v3308
    %v4507 = vunpack.c.l.b16 %v3309
    %v4508 = vunpack.c.h.b16 %v3309
    %v4509 = vunpack.c.l.b16 %v3310
    %v4510 = vunpack.c.h.b16 %v3310
    %v4511 = vunpack.c.l.b16 %v3311
    %v4512 = vunpack.c.h.b16 %v3311
    %v4513 = vunpack.c.l.b16 %v3312
    %v4514 = vunpack.c.h.b16 %v3312
    %v4515 = vunpack.c.l.b16 %v3313
    %v4516 = vunpack.c.h.b16 %v3313
    %v4517 = vunpack.c.l.b16 %v3314
    %v4518 = vunpack.c.h.b16 %v3314
    %v4519 = vunpack.c.l.b16 %v3315
    %v4520 = vunpack.c.h.b16 %v3315
    %v4521 = vunpack.c.l.b16 %v3316
    %v4522 = vunpack.c.h.b16 %v3316
    %v4523 = vunpack.c.l.b16 %v3317
    %v4524 = vunpack.c.h.b16 %v3317
    %v4525 = vunpack.c.l.b16 %v3318
    %v4526 = vunpack.c.h.b16 %v3318
    %v4527 = vunpack.c.l.b16 %v3319
    %v4528 = vunpack.c.h.b16 %v3319
    %v4529 = vunpack.c.l.b16 %v3320
    %v4530 = vunpack.c.h.b16 %v3320
    %v4531 = vunpack.c.l.b16 %v3321
    %v4532 = vunpack.c.h.b16 %v3321
    %v4533 = vunpack.c.l.b16 %v3322
    %v4534 = vunpack.c.h.b16 %v3322
    %v4535 = vunpack.c.l.b16 %v3323
    %v4536 = vunpack.c.h.b16 %v3323
    %v4537 = vunpack.c.l.b16 %v3324
    %v4538 = vunpack.c.h.b16 %v3324
    %v4539 = vunpack.c.l.b16 %v3325
    %v4540 = vunpack.c.h.b16 %v3325
    %v4541 = vunpack.c.l.b16 %v3326
    %v4542 = vunpack.c.h.b16 %v3326
    %v4543 = vunpack.c.l.b16 %v3327
    %v4544 = vunpack.c.h.b16 %v3327
    %v4545 = vunpack.c.l.b16 %v3328
    %v4546 = vunpack.c.h.b16 %v3328
    %v4547 = vunpack.c.l.b16 %v3329
    %v4548 = vunpack.c.h.b16 %v3329
    %v4549 = vunpack.c.l.b16 %v3330
    %v4550 = vunpack.c.h.b16 %v3330
    %v4551 = vunpack.c.l.b16 %v3331
    %v4552 = vunpack.c.h.b16 %v3331
    %v4553 = vunpack.c.l.b16 %v3332
    %v4554 = vunpack.c.h.b16 %v3332
    %v4555 = vunpack.c.l.b16 %v3333
    %v4556 = vunpack.c.h.b16 %v3333
    %v4557 = vunpack.c.l.b16 %v3334
    %v4558 = vunpack.c.h.b16 %v3334
    %v4559 = vunpack.c.l.b16 %v3335
    %v4560 = vunpack.c.h.b16 %v3335
    %v4561 = vunpack.c.l.b16 %v3336
    %v4562 = vunpack.c.h.b16 %v3336
    %v4563 = vunpack.c.l.b16 %v3337
    %v4564 = vunpack.c.h.b16 %v3337
    %v4565 = vunpack.c.l.b16 %v3338
    %v4566 = vunpack.c.h.b16 %v3338
    %v4567 = vunpack.c.l.b16 %v3339
    %v4568 = vunpack.c.h.b16 %v3339
    %v4569 = vunpack.c.l.b16 %v3340
    %v4570 = vunpack.c.h.b16 %v3340
    %v4571 = vunpack.c.l.b16 %v3341
    %v4572 = vunpack.c.h.b16 %v3341
    %v4573 = vunpack.c.l.b16 %v3342
    %v4574 = vunpack.c.h.b16 %v3342
    %v4575 = vunpack.c.l.b16 %v3343
    %v4576 = vunpack.c.h.b16 %v3343
    %v4577 = vunpack.c.l.b16 %v3344
    %v4578 = vunpack.c.h.b16 %v3344
    %v4579 = vunpack.c.l.b16 %v3345
    %v4580 = vunpack.c.h.b16 %v3345
    %v4581 = vunpack.c.l.b16 %v3346
    %v4582 = vunpack.c.h.b16 %v3346
    %v4583 = vunpack.c.l.b16 %v3347
    %v4584 = vunpack.c.h.b16 %v3347
    %v4585 = vunpack.c.l.b16 %v3348
    %v4586 = vunpack.c.h.b16 %v3348
    %v4587 = vunpack.c.l.b16 %v3349
    %v4588 = vunpack.c.h.b16 %v3349
    %v4589 = vunpack.c.l.b16 %v3350
    %v4590 = vunpack.c.h.b16 %v3350
    %v4591 = vunpack.c.l.b16 %v3351
    %v4592 = vunpack.c.h.b16 %v3351
    %v4593 = vunpack.c.l.b16 %v3352
    %v4594 = vunpack.c.h.b16 %v3352
    %v4595 = vunpack.c.l.b16 %v3353
    %v4596 = vunpack.c.h.b16 %v3353
    %v4597 = vunpack.c.l.b16 %v3354
    %v4598 = vunpack.c.h.b16 %v3354
    %v4599 = vunpack.c.l.b16 %v3355
    %v4600 = vunpack.c.h.b16 %v3355
    %v4601 = vunpack.c.l.b16 %v3356
    %v4602 = vunpack.c.h.b16 %v3356
    %v4603 = vunpack.c.l.b16 %v3357
    %v4604 = vunpack.c.h.b16 %v3357
    %v4605 = vunpack.c.l.b16 %v3358
    %v4606 = vunpack.c.h.b16 %v3358
    %v4607 = vunpack.c.l.b16 %v3359
    %v4608 = vunpack.c.h.b16 %v3359
    %v4609 = vunpack.c.l.b16 %v3360
    %v4610 = vunpack.c.h.b16 %v3360
    %v4611 = vunpack.c.l.b16 %v3361
    %v4612 = vunpack.c.h.b16 %v3361
    %v4613 = vunpack.c.l.b16 %v3362
    %v4614 = vunpack.c.h.b16 %v3362
    %v4615 = vunpack.c.l.b16 %v3363
    %v4616 = vunpack.c.h.b16 %v3363
    %v4617 = vunpack.c.l.b16 %v3364
    %v4618 = vunpack.c.h.b16 %v3364
    %v4619 = vunpack.c.l.b16 %v3365
    %v4620 = vunpack.c.h.b16 %v3365
    %v4621 = vunpack.c.l.b16 %v3366
    %v4622 = vunpack.c.h.b16 %v3366
    %v4623 = vunpack.c.l.b16 %v3367
    %v4624 = vunpack.c.h.b16 %v3367
    %v4625 = vunpack.c.l.b16 %v3368
    %v4626 = vunpack.c.h.b16 %v3368
    %v4627 = vunpack.c.l.b16 %v3369
    %v4628 = vunpack.c.h.b16 %v3369
    %v4629 = vunpack.c.l.b16 %v3370
    %v4630 = vunpack.c.h.b16 %v3370
    %v4631 = vunpack.c.l.b16 %v3371
    %v4632 = vunpack.c.h.b16 %v3371
    %v4633 = vunpack.c.l.b16 %v3372
    %v4634 = vunpack.c.h.b16 %v3372
    %v4635 = vunpack.c.l.b16 %v3373
    %v4636 = vunpack.c.h.b16 %v3373
    %v4637 = vunpack.c.l.b16 %v3374
    %v4638 = vunpack.c.h.b16 %v3374
    %v4639 = vunpack.c.l.b16 %v3375
    %v4640 = vunpack.c.h.b16 %v3375
    %v4641 = vunpack.c.l.b16 %v3376
    %v4642 = vunpack.c.h.b16 %v3376
    %v4643 = vunpack.c.l.b16 %v3377
    %v4644 = vunpack.c.h.b16 %v3377
    %v4645 = vunpack.c.l.b16 %v3378
    %v4646 = vunpack.c.h.b16 %v3378
    %v4647 = vunpack.c.l.b16 %v3379
    %v4648 = vunpack.c.h.b16 %v3379
    %v4649 = vunpack.c.l.b16 %v3380
    %v4650 = vunpack.c.h.b16 %v3380
    %v4651 = vunpack.c.l.b16 %v3381
    %v4652 = vunpack.c.h.b16 %v3381
    %v4653 = vunpack.c.l.b16 %v3382
    %v4654 = vunpack.c.h.b16 %v3382
    %v4655 = vunpack.c.l.b16 %v3383
    %v4656 = vunpack.c.h.b16 %v3383
    %v4657 = vunpack.c.l.b16 %v3384
    %v4658 = vunpack.c.h.b16 %v3384
    %v4659 = vunpack.c.l.b16 %v3385
    %v4660 = vunpack.c.h.b16 %v3385
    %v4661 = vunpack.c.l.b16 %v3386
    %v4662 = vunpack.c.h.b16 %v3386
    %v4663 = vunpack.c.l.b16 %v3387
    %v4664 = vunpack.c.h.b16 %v3387
    %v4665 = vunpack.c.l.b16 %v3388
    %v4666 = vunpack.c.h.b16 %v3388
    %v4667 = vunpack.c.l.b16 %v3389
    %v4668 = vunpack.c.h.b16 %v3389
    %v4669 = vunpack.c.l.b16 %v3390
    %v4670 = vunpack.c.h.b16 %v3390
    %v4671 = vunpack.c.l.b16 %v3391
    %v4672 = vunpack.c.h.b16 %v3391
    %v4673 = vunpack.c.l.b16 %v3392
    %v4674 = vunpack.c.h.b16 %v3392
    %v4675 = vunpack.c.l.b16 %v3393
    %v4676 = vunpack.c.h.b16 %v3393
    %v4677 = vunpack.c.l.b16 %v3394
    %v4678 = vunpack.c.h.b16 %v3394
    %v4679 = vunpack.c.l.b16 %v3395
    %v4680 = vunpack.c.h.b16 %v3395
    %v4681 = vunpack.c.l.b16 %v3396
    %v4682 = vunpack.c.h.b16 %v3396
    %v4683 = vunpack.c.l.b16 %v3397
    %v4684 = vunpack.c.h.b16 %v3397
    %v4685 = vunpack.c.l.b16 %v3398
    %v4686 = vunpack.c.h.b16 %v3398
    %v4687 = vunpack.c.l.b16 %v3399
    %v4688 = vunpack.c.h.b16 %v3399
    %v4689 = vunpack.c.l.b16 %v3400
    %v4690 = vunpack.c.h.b16 %v3400
    %v4691 = vunpack.c.l.b16 %v3401
    %v4692 = vunpack.c.h.b16 %v3401
    %v4693 = vunpack.c.l.b16 %v3402
    %v4694 = vunpack.c.h.b16 %v3402
    %v4695 = vunpack.c.l.b16 %v3403
    %v4696 = vunpack.c.h.b16 %v3403
    %v4697 = vunpack.c.l.b16 %v3404
    %v4698 = vunpack.c.h.b16 %v3404
    %v4699 = vunpack.c.l.b16 %v3405
    %v4700 = vunpack.c.h.b16 %v3405
    %v4701 = vunpack.c.l.b16 %v3406
    %v4702 = vunpack.c.h.b16 %v3406
    %v4703 = vunpack.c.l.b16 %v3407
    %v4704 = vunpack.c.h.b16 %v3407
    %v4705 = vunpack.c.l.b16 %v3408
    %v4706 = vunpack.c.h.b16 %v3408
    %v4707 = vunpack.c.l.b16 %v3409
    %v4708 = vunpack.c.h.b16 %v3409
    %v4709 = vunpack.c.l.b16 %v3410
    %v4710 = vunpack.c.h.b16 %v3410
    %v4711 = vunpack.c.l.b16 %v3411
    %v4712 = vunpack.c.h.b16 %v3411
    %v4713 = vunpack.c.l.b16 %v3412
    %v4714 = vunpack.c.h.b16 %v3412
    %v4715 = vunpack.c.l.b16 %v3413
    %v4716 = vunpack.c.h.b16 %v3413
    %v4717 = vunpack.c.l.b16 %v3414
    %v4718 = vunpack.c.h.b16 %v3414
    %v4719 = vunpack.c.l.b16 %v3415
    %v4720 = vunpack.c.h.b16 %v3415
    %v4721 = vunpack.c.l.b16 %v3416
    %v4722 = vunpack.c.h.b16 %v3416
    %v4723 = vunpack.c.l.b16 %v3417
    %v4724 = vunpack.c.h.b16 %v3417
    %v4725 = vunpack.c.l.b16 %v3418
    %v4726 = vunpack.c.h.b16 %v3418
    %v4727 = vunpack.c.l.b16 %v3419
    %v4728 = vunpack.c.h.b16 %v3419
    %v4729 = vunpack.c.l.b16 %v3420
    %v4730 = vunpack.c.h.b16 %v3420
    %v4731 = vunpack.c.l.b16 %v3421
    %v4732 = vunpack.c.h.b16 %v3421
    %v4733 = vunpack.c.l.b16 %v3422
    %v4734 = vunpack.c.h.b16 %v3422
    %v4735 = vunpack.c.l.b16 %v3423
    %v4736 = vunpack.c.h.b16 %v3423
    %v4737 = vunpack.c.l.b16 %v3424
    %v4738 = vunpack.c.h.b16 %v3424
    %v4739 = vunpack.c.l.b16 %v3425
    %v4740 = vunpack.c.h.b16 %v3425
    %v4741 = vunpack.c.l.b16 %v3426
    %v4742 = vunpack.c.h.b16 %v3426
    %v4743 = vunpack.c.l.b16 %v3427
    %v4744 = vunpack.c.h.b16 %v3427
    %v4745 = vunpack.c.l.b16 %v3428
    %v4746 = vunpack.c.h.b16 %v3428
    %v4747 = vunpack.c.l.b16 %v3429
    %v4748 = vunpack.c.h.b16 %v3429
    %v4749 = vunpack.c.l.b16 %v3430
    %v4750 = vunpack.c.h.b16 %v3430
    %v4751 = vunpack.c.l.b16 %v3431
    %v4752 = vunpack.c.h.b16 %v3431
    %v4753 = vunpack.c.l.b16 %v3432
    %v4754 = vunpack.c.h.b16 %v3432
    %v4755 = vunpack.c.l.b16 %v3433
    %v4756 = vunpack.c.h.b16 %v3433
    %v4757 = vunpack.c.l.b16 %v3434
    %v4758 = vunpack.c.h.b16 %v3434
    %v4759 = vunpack.c.l.b16 %v3435
    %v4760 = vunpack.c.h.b16 %v3435
    %v4761 = vunpack.c.l.b16 %v3436
    %v4762 = vunpack.c.h.b16 %v3436
    %v4763 = vunpack.c.l.b16 %v3437
    %v4764 = vunpack.c.h.b16 %v3437
    %v4765 = vunpack.c.l.b16 %v3438
    %v4766 = vunpack.c.h.b16 %v3438
    %v4767 = vunpack.c.l.b16 %v3439
    %v4768 = vunpack.c.h.b16 %v3439
    %v4769 = vunpack.c.l.b16 %v3440
    %v4770 = vunpack.c.h.b16 %v3440
    %v4771 = vunpack.c.l.b16 %v3441
    %v4772 = vunpack.c.h.b16 %v3441
    %v4773 = vunpack.c.l.b16 %v3442
    %v4774 = vunpack.c.h.b16 %v3442
    %v4775 = vunpack.c.l.b16 %v3443
    %v4776 = vunpack.c.h.b16 %v3443
    %v4777 = vunpack.c.l.b16 %v3444
    %v4778 = vunpack.c.h.b16 %v3444
    %v4779 = vunpack.c.l.b16 %v3445
    %v4780 = vunpack.c.h.b16 %v3445
    %v4781 = vunpack.c.l.b16 %v3446
    %v4782 = vunpack.c.h.b16 %v3446
    %v4783 = vunpack.c.l.b16 %v3447
    %v4784 = vunpack.c.h.b16 %v3447
    %v4785 = vunpack.c.l.b16 %v3448
    %v4786 = vunpack.c.h.b16 %v3448
    %v4787 = vunpack.c.l.b16 %v3449
    %v4788 = vunpack.c.h.b16 %v3449
    %v4789 = vunpack.c.l.b16 %v3450
    %v4790 = vunpack.c.h.b16 %v3450
    %v4791 = vunpack.c.l.b16 %v3451
    %v4792 = vunpack.c.h.b16 %v3451
    %v4793 = vunpack.c.l.b16 %v3452
    %v4794 = vunpack.c.h.b16 %v3452
    %v4795 = vunpack.c.l.b16 %v3453
    %v4796 = vunpack.c.h.b16 %v3453
    %v4797 = vunpack.c.l.b16 %v3454
    %v4798 = vunpack.c.h.b16 %v3454
    %v4799 = vunpack.c.l.b16 %v3455
    %v4800 = vunpack.c.h.b16 %v3455
    %v4801 = vunpack.c.l.b16 %v3456
    %v4802 = vunpack.c.h.b16 %v3456
    %v4803 = vunpack.c.l.b16 %v3457
    %v4804 = vunpack.c.h.b16 %v3457
    %v4805 = vunpack.c.l.b16 %v3458
    %v4806 = vunpack.c.h.b16 %v3458
    %v4807 = vunpack.c.l.b16 %v3459
    %v4808 = vunpack.c.h.b16 %v3459
    %v4809 = vunpack.c.l.b16 %v3460
    %v4810 = vunpack.c.h.b16 %v3460
    %v4811 = vunpack.c.l.b16 %v3461
    %v4812 = vunpack.c.h.b16 %v3461
    %v4813 = vunpack.c.l.b16 %v3462
    %v4814 = vunpack.c.h.b16 %v3462
    %v4815 = vunpack.c.l.b16 %v3463
    %v4816 = vunpack.c.h.b16 %v3463
    %v4817 = vunpack.c.l.b16 %v3464
    %v4818 = vunpack.c.h.b16 %v3464
    %v4819 = vunpack.c.l.b16 %v3465
    %v4820 = vunpack.c.h.b16 %v3465
    %v4821 = vunpack.c.l.b16 %v3466
    %v4822 = vunpack.c.h.b16 %v3466
    %v4823 = vunpack.c.l.b16 %v3467
    %v4824 = vunpack.c.h.b16 %v3467
    %v4825 = vunpack.c.l.b16 %v3468
    %v4826 = vunpack.c.h.b16 %v3468
    %v4827 = vunpack.c.l.b16 %v3469
    %v4828 = vunpack.c.h.b16 %v3469
    %v4829 = vunpack.c.l.b16 %v3470
    %v4830 = vunpack.c.h.b16 %v3470
    %v4831 = vunpack.c.l.b16 %v3471
    %v4832 = vunpack.c.h.b16 %v3471
    %v4833 = vunpack.c.l.b16 %v3472
    %v4834 = vunpack.c.h.b16 %v3472
    %v4835 = vunpack.c.l.b16 %v3473
    %v4836 = vunpack.c.h.b16 %v3473
    %v4837 = vunpack.c.l.b16 %v3474
    %v4838 = vunpack.c.h.b16 %v3474
    %v4839 = vunpack.c.l.b16 %v3475
    %v4840 = vunpack.c.h.b16 %v3475
    %v4841 = vunpack.c.l.b16 %v3476
    %v4842 = vunpack.c.h.b16 %v3476
    %v4843 = vunpack.c.l.b16 %v3477
    %v4844 = vunpack.c.h.b16 %v3477
    %v4845 = vunpack.c.l.b16 %v3478
    %v4846 = vunpack.c.h.b16 %v3478
    %v4847 = vunpack.c.l.b16 %v3479
    %v4848 = vunpack.c.h.b16 %v3479
    %v4849 = vunpack.c.l.b16 %v3480
    %v4850 = vunpack.c.h.b16 %v3480
    %v4851 = vunpack.c.l.b16 %v3481
    %v4852 = vunpack.c.h.b16 %v3481
    %v4853 = vunpack.c.l.b16 %v3482
    %v4854 = vunpack.c.h.b16 %v3482
    %v4855 = vunpack.c.l.b16 %v3483
    %v4856 = vunpack.c.h.b16 %v3483
    %v4857 = vunpack.c.l.b16 %v3484
    %v4858 = vunpack.c.h.b16 %v3484
    %v4859 = vunpack.c.l.b16 %v3485
    %v4860 = vunpack.c.h.b16 %v3485
    %v4861 = vunpack.c.l.b16 %v3486
    %v4862 = vunpack.c.h.b16 %v3486
    %v4863 = vunpack.c.l.b16 %v3487
    %v4864 = vunpack.c.h.b16 %v3487
    %v4865 = vunpack.c.l.b16 %v3488
    %v4866 = vunpack.c.h.b16 %v3488
    %v4867 = vunpack.c.l.b16 %v3489
    %v4868 = vunpack.c.h.b16 %v3489
    %v4869 = vunpack.c.l.b16 %v3490
    %v4870 = vunpack.c.h.b16 %v3490
    %v4871 = vunpack.c.l.b16 %v3491
    %v4872 = vunpack.c.h.b16 %v3491
    %v4873 = vunpack.c.l.b16 %v3492
    %v4874 = vunpack.c.h.b16 %v3492
    %v4875 = vunpack.c.l.b16 %v3493
    %v4876 = vunpack.c.h.b16 %v3493
    %v4877 = vunpack.c.l.b16 %v3494
    %v4878 = vunpack.c.h.b16 %v3494
    %v4879 = vunpack.c.l.b16 %v3495
    %v4880 = vunpack.c.h.b16 %v3495
    %v4881 = vunpack.c.l.b16 %v3496
    %v4882 = vunpack.c.h.b16 %v3496
    %v4883 = vunpack.c.l.b16 %v3497
    %v4884 = vunpack.c.h.b16 %v3497
    %v4885 = vunpack.c.l.b16 %v3498
    %v4886 = vunpack.c.h.b16 %v3498
    %v4887 = vunpack.c.l.b16 %v3499
    %v4888 = vunpack.c.h.b16 %v3499
    %v4889 = vunpack.c.l.b16 %v3500
    %v4890 = vunpack.c.h.b16 %v3500
    %v4891 = vunpack.c.l.b16 %v3501
    %v4892 = vunpack.c.h.b16 %v3501
    %v4893 = vunpack.c.l.b16 %v3502
    %v4894 = vunpack.c.h.b16 %v3502
    %v4895 = vunpack.c.l.b16 %v3503
    %v4896 = vunpack.c.h.b16 %v3503
    %v4897 = vunpack.c.l.b16 %v3504
    %v4898 = vunpack.c.h.b16 %v3504
    %v4899 = vunpack.c.l.b16 %v3505
    %v4900 = vunpack.c.h.b16 %v3505
    %v4901 = vunpack.c.l.b16 %v3506
    %v4902 = vunpack.c.h.b16 %v3506
    %v4903 = vunpack.c.l.b16 %v3507
    %v4904 = vunpack.c.h.b16 %v3507
    %v4905 = vunpack.c.l.b16 %v3508
    %v4906 = vunpack.c.h.b16 %v3508
    %v4907 = vunpack.c.l.b16 %v3509
    %v4908 = vunpack.c.h.b16 %v3509
    %v4909 = vunpack.c.l.b16 %v3510
    %v4910 = vunpack.c.h.b16 %v3510
    %v4911 = vunpack.c.l.b16 %v3511
    %v4912 = vunpack.c.h.b16 %v3511
    %v4913 = vunpack.c.l.b16 %v3512
    %v4914 = vunpack.c.h.b16 %v3512
    %v4915 = vunpack.c.l.b16 %v3513
    %v4916 = vunpack.c.h.b16 %v3513
    %v4917 = vunpack.c.l.b16 %v3514
    %v4918 = vunpack.c.h.b16 %v3514
    %v4919 = vunpack.c.l.b16 %v3515
    %v4920 = vunpack.c.h.b16 %v3515
    %v4921 = vunpack.c.l.b16 %v3516
    %v4922 = vunpack.c.h.b16 %v3516
    %v4923 = vunpack.c.l.b16 %v3517
    %v4924 = vunpack.c.h.b16 %v3517
    %v4925 = vunpack.c.l.b16 %v3518
    %v4926 = vunpack.c.h.b16 %v3518
    %v4927 = vunpack.c.l.b16 %v3519
    %v4928 = vunpack.c.h.b16 %v3519
    %v4929 = vunpack.c.l.b16 %v3520
    %v4930 = vunpack.c.h.b16 %v3520
    %v4931 = vunpack.c.l.b16 %v3521
    %v4932 = vunpack.c.h.b16 %v3521
    %v4933 = vunpack.c.l.b16 %v3522
    %v4934 = vunpack.c.h.b16 %v3522
    %v4935 = vunpack.c.l.b16 %v3523
    %v4936 = vunpack.c.h.b16 %v3523
    %v4937 = vunpack.c.l.b16 %v3524
    %v4938 = vunpack.c.h.b16 %v3524
    %v4939 = vunpack.c.l.b16 %v3525
    %v4940 = vunpack.c.h.b16 %v3525
    %v4941 = vunpack.c.l.b16 %v3526
    %v4942 = vunpack.c.h.b16 %v3526
    %v4943 = vunpack.c.l.b16 %v3527
    %v4944 = vunpack.c.h.b16 %v3527
    %v4945 = vunpack.c.l.b16 %v3528
    %v4946 = vunpack.c.h.b16 %v3528
    %v4947 = vunpack.c.l.b16 %v3529
    %v4948 = vunpack.c.h.b16 %v3529
    %v4949 = vunpack.c.l.b16 %v3530
    %v4950 = vunpack.c.h.b16 %v3530
    %v4951 = vunpack.c.l.b16 %v3531
    %v4952 = vunpack.c.h.b16 %v3531
    %v4953 = vunpack.c.l.b16 %v3532
    %v4954 = vunpack.c.h.b16 %v3532
    %v4955 = vunpack.c.l.b16 %v3533
    %v4956 = vunpack.c.h.b16 %v3533
    %v4957 = vunpack.c.l.b16 %v3534
    %v4958 = vunpack.c.h.b16 %v3534
    %v4959 = vunpack.c.l.b16 %v3535
    %v4960 = vunpack.c.h.b16 %v3535
    %v4961 = vunpack.c.l.b16 %v3536
    %v4962 = vunpack.c.h.b16 %v3536
    %v4963 = vunpack.c.l.b16 %v3537
    %v4964 = vunpack.c.h.b16 %v3537
    %v4965 = vunpack.c.l.b16 %v3538
    %v4966 = vunpack.c.h.b16 %v3538
    %v4967 = vunpack.c.l.b16 %v3539
    %v4968 = vunpack.c.h.b16 %v3539
    %v4969 = vunpack.c.l.b16 %v3540
    %v4970 = vunpack.c.h.b16 %v3540
    %v4971 = vunpack.c.l.b16 %v3541
    %v4972 = vunpack.c.h.b16 %v3541
    %v4973 = vunpack.c.l.b16 %v3542
    %v4974 = vunpack.c.h.b16 %v3542
    %v4975 = vunpack.c.l.b16 %v3543
    %v4976 = vunpack.c.h.b16 %v3543
    %v4977 = vunpack.c.l.b16 %v3544
    %v4978 = vunpack.c.h.b16 %v3544
    %v4979 = vunpack.c.l.b16 %v3545
    %v4980 = vunpack.c.h.b16 %v3545
    %v4981 = vunpack.c.l.b16 %v3546
    %v4982 = vunpack.c.h.b16 %v3546
    %v4983 = vunpack.c.l.b16 %v3547
    %v4984 = vunpack.c.h.b16 %v3547
    %v4985 = vunpack.c.l.b16 %v3548
    %v4986 = vunpack.c.h.b16 %v3548
    %v4987 = vunpack.c.l.b16 %v3549
    %v4988 = vunpack.c.h.b16 %v3549
    %v4989 = vunpack.c.l.b16 %v3550
    %v4990 = vunpack.c.h.b16 %v3550
    %v4991 = vunpack.c.l.b16 %v3551
    %v4992 = vunpack.c.h.b16 %v3551
    %v4993 = vunpack.c.l.b16 %v3552
    %v4994 = vunpack.c.h.b16 %v3552
    %v4995 = vunpack.c.l.b16 %v3553
    %v4996 = vunpack.c.h.b16 %v3553
    %v4997 = vunpack.c.l.b16 %v3554
    %v4998 = vunpack.c.h.b16 %v3554
    %v4999 = vunpack.c.l.b16 %v3555
    %v5000 = vunpack.c.h.b16 %v3555
    %v5001 = vunpack.c.l.b16 %v3556
    %v5002 = vunpack.c.h.b16 %v3556
    %v5003 = vunpack.c.l.b16 %v3557
    %v5004 = vunpack.c.h.b16 %v3557
    %v5005 = vunpack.c.l.b16 %v3558
    %v5006 = vunpack.c.h.b16 %v3558
    %v5007 = vunpack.c.l.b16 %v3559
    %v5008 = vunpack.c.h.b16 %v3559
    %v5009 = vunpack.c.l.b16 %v3560
    %v5010 = vunpack.c.h.b16 %v3560
    %v5011 = vunpack.c.l.b16 %v3561
    %v5012 = vunpack.c.h.b16 %v3561
    %v5013 = vunpack.c.l.b16 %v3562
    %v5014 = vunpack.c.h.b16 %v3562
    %v5015 = vunpack.c.l.b16 %v3563
    %v5016 = vunpack.c.h.b16 %v3563
    %v5017 = vunpack.c.l.b16 %v3564
    %v5018 = vunpack.c.h.b16 %v3564
    %v5019 = vunpack.c.l.b16 %v3565
    %v5020 = vunpack.c.h.b16 %v3565
    %v5021 = vunpack.c.l.b16 %v3566
    %v5022 = vunpack.c.h.b16 %v3566
    %v5023 = vunpack.c.l.b16 %v3567
    %v5024 = vunpack.c.h.b16 %v3567
    %v5025 = vunpack.c.l.b16 %v3568
    %v5026 = vunpack.c.h.b16 %v3568
    %v5027 = vunpack.c.l.b16 %v3569
    %v5028 = vunpack.c.h.b16 %v3569
    %v5029 = vunpack.c.l.b16 %v3570
    %v5030 = vunpack.c.h.b16 %v3570
    %v5031 = vunpack.c.l.b16 %v3571
    %v5032 = vunpack.c.h.b16 %v3571
    %v5033 = vunpack.c.l.b16 %v3572
    %v5034 = vunpack.c.h.b16 %v3572
    %v5035 = vunpack.c.l.b16 %v3573
    %v5036 = vunpack.c.h.b16 %v3573
    %v5037 = vunpack.c.l.b16 %v3574
    %v5038 = vunpack.c.h.b16 %v3574
    %v5039 = vunpack.c.l.b16 %v3575
    %v5040 = vunpack.c.h.b16 %v3575
    %v5041 = vunpack.c.l.b16 %v3576
    %v5042 = vunpack.c.h.b16 %v3576
    %v5043 = vunpack.c.l.b16 %v3577
    %v5044 = vunpack.c.h.b16 %v3577
    %v5045 = vunpack.c.l.b16 %v3578
    %v5046 = vunpack.c.h.b16 %v3578
    %v5047 = vunpack.c.l.b16 %v3579
    %v5048 = vunpack.c.h.b16 %v3579
    %v5049 = vunpack.c.l.b16 %v3580
    %v5050 = vunpack.c.h.b16 %v3580
    %v5051 = vunpack.c.l.b16 %v3581
    %v5052 = vunpack.c.h.b16 %v3581
    %v5053 = vunpack.c.l.b16 %v3582
    %v5054 = vunpack.c.h.b16 %v3582
    %v5055 = vunpack.c.l.b16 %v3583
    %v5056 = vunpack.c.h.b16 %v3583
    %v5057 = vunpack.c.l.b16 %v3584
    %v5058 = vunpack.c.h.b16 %v3584
    %v5059 = vunpack.c.l.b16 %v3585
    %v5060 = vunpack.c.h.b16 %v3585
    %v5061 = vunpack.c.l.b16 %v3586
    %v5062 = vunpack.c.h.b16 %v3586
    %v5063 = vunpack.c.l.b16 %v3587
    %v5064 = vunpack.c.h.b16 %v3587
    %v5065 = vunpack.c.l.b16 %v3588
    %v5066 = vunpack.c.h.b16 %v3588
    %v5067 = vunpack.c.l.b16 %v3589
    %v5068 = vunpack.c.h.b16 %v3589
    %v5069 = vunpack.c.l.b16 %v3590
    %v5070 = vunpack.c.h.b16 %v3590
    %v5071 = vunpack.c.l.b16 %v3591
    %v5072 = vunpack.c.h.b16 %v3591
    %v5073 = vunpack.c.l.b16 %v3592
    %v5074 = vunpack.c.h.b16 %v3592
    %v5075 = vunpack.c.l.b16 %v3593
    %v5076 = vunpack.c.h.b16 %v3593
    %v5077 = vunpack.c.l.b16 %v3594
    %v5078 = vunpack.c.h.b16 %v3594
    %v5079 = vunpack.c.l.b16 %v3595
    %v5080 = vunpack.c.h.b16 %v3595
    %v5081 = vunpack.c.l.b16 %v3596
    %v5082 = vunpack.c.h.b16 %v3596
    %v5083 = vunpack.c.l.b16 %v3597
    %v5084 = vunpack.c.h.b16 %v3597
    %v5085 = vunpack.c.l.b16 %v3598
    %v5086 = vunpack.c.h.b16 %v3598
    %v5087 = vunpack.c.l.b16 %v3599
    %v5088 = vunpack.c.h.b16 %v3599
    %v5089 = vunpack.c.l.b16 %v3600
    %v5090 = vunpack.c.h.b16 %v3600
    %v5091 = vunpack.c.l.b16 %v3601
    %v5092 = vunpack.c.h.b16 %v3601
    %v5093 = vunpack.c.l.b16 %v3602
    %v5094 = vunpack.c.h.b16 %v3602
    %v5095 = vunpack.c.l.b16 %v3603
    %v5096 = vunpack.c.h.b16 %v3603
    %v5097 = vunpack.c.l.b16 %v3604
    %v5098 = vunpack.c.h.b16 %v3604
    %v5099 = vunpack.c.l.b16 %v3605
    %v5100 = vunpack.c.h.b16 %v3605
    %v5101 = vunpack.c.l.b16 %v3606
    %v5102 = vunpack.c.h.b16 %v3606
    %v5103 = vunpack.c.l.b16 %v3607
    %v5104 = vunpack.c.h.b16 %v3607
    %v5105 = vunpack.c.l.b16 %v3608
    %v5106 = vunpack.c.h.b16 %v3608
    %v5107 = vunpack.c.l.b16 %v3609
    %v5108 = vunpack.c.h.b16 %v3609
    %v5109 = vunpack.c.l.b16 %v3610
    %v5110 = vunpack.c.h.b16 %v3610
    %v5111 = vunpack.c.l.b16 %v3611
    %v5112 = vunpack.c.h.b16 %v3611
    %v5113 = vunpack.c.l.b16 %v3612
    %v5114 = vunpack.c.h.b16 %v3612
    %v5115 = vunpack.c.l.b16 %v3613
    %v5116 = vunpack.c.h.b16 %v3613
    %v5117 = vunpack.c.l.b16 %v3614
    %v5118 = vunpack.c.h.b16 %v3614
    %v5119 = vunpack.c.l.b16 %v3615
    %v5120 = vunpack.c.h.b16 %v3615
    %v5121 = vunpack.c.l.b16 %v3616
    %v5122 = vunpack.c.h.b16 %v3616
    %v5123 = vunpack.c.l.b16 %v3617
    %v5124 = vunpack.c.h.b16 %v3617
    %v5125 = vunpack.c.l.b16 %v3618
    %v5126 = vunpack.c.h.b16 %v3618
    %v5127 = vunpack.c.l.b16 %v3619
    %v5128 = vunpack.c.h.b16 %v3619
    %v5129 = vunpack.c.l.b16 %v3620
    %v5130 = vunpack.c.h.b16 %v3620
    %v5131 = vunpack.c.l.b16 %v3621
    %v5132 = vunpack.c.h.b16 %v3621
    %v5133 = vunpack.c.l.b16 %v3622
    %v5134 = vunpack.c.h.b16 %v3622
    %v5135 = vunpack.c.l.b16 %v3623
    %v5136 = vunpack.c.h.b16 %v3623
    %v5137 = vunpack.c.l.b16 %v3624
    %v5138 = vunpack.c.h.b16 %v3624
    %v5139 = vunpack.c.l.b16 %v3625
    %v5140 = vunpack.c.h.b16 %v3625
    %v5141 = vunpack.c.l.b16 %v3626
    %v5142 = vunpack.c.h.b16 %v3626
    %v5143 = vunpack.c.l.b16 %v3627
    %v5144 = vunpack.c.h.b16 %v3627
    %v5145 = vunpack.c.l.b16 %v3628
    %v5146 = vunpack.c.h.b16 %v3628
    %v5147 = vunpack.c.l.b16 %v3629
    %v5148 = vunpack.c.h.b16 %v3629
    %v5149 = vunpack.c.l.b16 %v3630
    %v5150 = vunpack.c.h.b16 %v3630
    %v5151 = vunpack.c.l.b16 %v3631
    %v5152 = vunpack.c.h.b16 %v3631
    %v5153 = vunpack.c.l.b16 %v3632
    %v5154 = vunpack.c.h.b16 %v3632
    %v5155 = vunpack.c.l.b16 %v3633
    %v5156 = vunpack.c.h.b16 %v3633
    %v5157 = vunpack.c.l.b16 %v3634
    %v5158 = vunpack.c.h.b16 %v3634
    %v5159 = vunpack.c.l.b16 %v3635
    %v5160 = vunpack.c.h.b16 %v3635
    %v5161 = vunpack.c.l.b16 %v3636
    %v5162 = vunpack.c.h.b16 %v3636
    %v5163 = vunpack.c.l.b16 %v3637
    %v5164 = vunpack.c.h.b16 %v3637
    %v5165 = vunpack.c.l.b16 %v3638
    %v5166 = vunpack.c.h.b16 %v3638
    %v5167 = vunpack.c.l.b16 %v3639
    %v5168 = vunpack.c.h.b16 %v3639
    %v5169 = vunpack.c.l.b16 %v3640
    %v5170 = vunpack.c.h.b16 %v3640
    %v5171 = vunpack.c.l.b16 %v3641
    %v5172 = vunpack.c.h.b16 %v3641
    %v5173 = vunpack.c.l.b16 %v3642
    %v5174 = vunpack.c.h.b16 %v3642
    %v5175 = vunpack.c.l.b16 %v3643
    %v5176 = vunpack.c.h.b16 %v3643
    %v5177 = vunpack.c.l.b16 %v3644
    %v5178 = vunpack.c.h.b16 %v3644
    %v5179 = vunpack.c.l.b16 %v3645
    %v5180 = vunpack.c.h.b16 %v3645
    %v5181 = vunpack.c.l.b16 %v3646
    %v5182 = vunpack.c.h.b16 %v3646
    %v5183 = vpack.c.b16 %v4175, %v4159
    %v5184 = vpack.c.b16 %v4176, %v4160
    %v5185 = vpack.c.b16 %v4177, %v4161
    %v5186 = vpack.c.b16 %v4178, %v4162
    %v5187 = vpack.c.b16 %v4179, %v4163
    %v5188 = vpack.c.b16 %v4180, %v4164
    %v5189 = vpack.c.b16 %v4181, %v4165
    %v5190 = vpack.c.b16 %v4182, %v4166
    %v5191 = vpack.c.b16 %v4183, %v4167
    %v5192 = vpack.c.b16 %v4184, %v4168
    %v5193 = vpack.c.b16 %v4185, %v4169
    %v5194 = vpack.c.b16 %v4186, %v4170
    %v5195 = vpack.c.b16 %v4187, %v4171
    %v5196 = vpack.c.b16 %v4188, %v4172
    %v5197 = vpack.c.b16 %v4189, %v4173
    %v5198 = vpack.c.b16 %v4190, %v4174
    %v5199 = vpack.c.b16 %v4207, %v4191
    %v5200 = vpack.c.b16 %v4208, %v4192
    %v5201 = vpack.c.b16 %v4209, %v4193
    %v5202 = vpack.c.b16 %v4210, %v4194
    %v5203 = vpack.c.b16 %v4211, %v4195
    %v5204 = vpack.c.b16 %v4212, %v4196
    %v5205 = vpack.c.b16 %v4213, %v4197
    %v5206 = vpack.c.b16 %v4214, %v4198
    %v5207 = vpack.c.b16 %v4215, %v4199
    %v5208 = vpack.c.b16 %v4216, %v4200
    %v5209 = vpack.c.b16 %v4217, %v4201
    %v5210 = vpack.c.b16 %v4218, %v4202
    %v5211 = vpack.c.b16 %v4219, %v4203
    %v5212 = vpack.c.b16 %v4220, %v4204
    %v5213 = vpack.c.b16 %v4221, %v4205
    %v5214 = vpack.c.b16 %v4222, %v4206
    %v5215 = vpack.c.b16 %v4239, %v4223
    %v5216 = vpack.c.b16 %v4240, %v4224
    %v5217 = vpack.c.b16 %v4241, %v4225
    %v5218 = vpack.c.b16 %v4242, %v4226
    %v5219 = vpack.c.b16 %v4243, %v4227
    %v5220 = vpack.c.b16 %v4244, %v4228
    %v5221 = vpack.c.b16 %v4245, %v4229
    %v5222 = vpack.c.b16 %v4246, %v4230
    %v5223 = vpack.c.b16 %v4247, %v4231
    %v5224 = vpack.c.b16 %v4248, %v4232
    %v5225 = vpack.c.b16 %v4249, %v4233
    %v5226 = vpack.c.b16 %v4250, %v4234
    %v5227 = vpack.c.b16 %v4251, %v4235
    %v5228 = vpack.c.b16 %v4252, %v4236
    %v5229 = vpack.c.b16 %v4253, %v4237
    %v5230 = vpack.c.b16 %v4254, %v4238
    %v5231 = vpack.c.b16 %v4271, %v4255
    %v5232 = vpack.c.b16 %v4272, %v4256
    %v5233 = vpack.c.b16 %v4273, %v4257
    %v5234 = vpack.c.b16 %v4274, %v4258
    %v5235 = vpack.c.b16 %v4275, %v4259
    %v5236 = vpack.c.b16 %v4276, %v4260
    %v5237 = vpack.c.b16 %v4277, %v4261
    %v5238 = vpack.c.b16 %v4278, %v4262
    %v5239 = vpack.c.b16 %v4279, %v4263
    %v5240 = vpack.c.b16 %v4280, %v4264
    %v5241 = vpack.c.b16 %v4281, %v4265
    %v5242 = vpack.c.b16 %v4282, %v4266
    %v5243 = vpack.c.b16 %v4283, %v4267
    %v5244 = vpack.c.b16 %v4284, %v4268
    %v5245 = vpack.c.b16 %v4285, %v4269
    %v5246 = vpack.c.b16 %v4286, %v4270
    %v5247 = vpack.c.b16 %v4303, %v4287
    %v5248 = vpack.c.b16 %v4304, %v4288
    %v5249 = vpack.c.b16 %v4305, %v4289
    %v5250 = vpack.c.b16 %v4306, %v4290
    %v5251 = vpack.c.b16 %v4307, %v4291
    %v5252 = vpack.c.b16 %v4308, %v4292
    %v5253 = vpack.c.b16 %v4309, %v4293
    %v5254 = vpack.c.b16 %v4310, %v4294
    %v5255 = vpack.c.b16 %v4311, %v4295
    %v5256 = vpack.c.b16 %v4312, %v4296
    %v5257 = vpack.c.b16 %v4313, %v4297
    %v5258 = vpack.c.b16 %v4314, %v4298
    %v5259 = vpack.c.b16 %v4315, %v4299
    %v5260 = vpack.c.b16 %v4316, %v4300
    %v5261 = vpack.c.b16 %v4317, %v4301
    %v5262 = vpack.c.b16 %v4318, %v4302
    %v5263 = vpack.c.b16 %v4335, %v4319
    %v5264 = vpack.c.b16 %v4336, %v4320
    %v5265 = vpack.c.b16 %v4337, %v4321
    %v5266 = vpack.c.b16 %v4338, %v4322
    %v5267 = vpack.c.b16 %v4339, %v4323
    %v5268 = vpack.c.b16 %v4340, %v4324
    %v5269 = vpack.c.b16 %v4341, %v4325
    %v5270 = vpack.c.b16 %v4342, %v4326
    %v5271 = vpack.c.b16 %v4343, %v4327
    %v5272 = vpack.c.b16 %v4344, %v4328
    %v5273 = vpack.c.b16 %v4345, %v4329
    %v5274 = vpack.c.b16 %v4346, %v4330
    %v5275 = vpack.c.b16 %v4347, %v4331
    %v5276 = vpack.c.b16 %v4348, %v4332
    %v5277 = vpack.c.b16 %v4349, %v4333
    %v5278 = vpack.c.b16 %v4350, %v4334
    %v5279 = vpack.c.b16 %v4367, %v4351
    %v5280 = vpack.c.b16 %v4368, %v4352
    %v5281 = vpack.c.b16 %v4369, %v4353
    %v5282 = vpack.c.b16 %v4370, %v4354
    %v5283 = vpack.c.b16 %v4371, %v4355
    %v5284 = vpack.c.b16 %v4372, %v4356
    %v5285 = vpack.c.b16 %v4373, %v4357
    %v5286 = vpack.c.b16 %v4374, %v4358
    %v5287 = vpack.c.b16 %v4375, %v4359
    %v5288 = vpack.c.b16 %v4376, %v4360
    %v5289 = vpack.c.b16 %v4377, %v4361
    %v5290 = vpack.c.b16 %v4378, %v4362
    %v5291 = vpack.c.b16 %v4379, %v4363
    %v5292 = vpack.c.b16 %v4380, %v4364
    %v5293 = vpack.c.b16 %v4381, %v4365
    %v5294 = vpack.c.b16 %v4382, %v4366
    %v5295 = vpack.c.b16 %v4399, %v4383
    %v5296 = vpack.c.b16 %v4400, %v4384
    %v5297 = vpack.c.b16 %v4401, %v4385
    %v5298 = vpack.c.b16 %v4402, %v4386
    %v5299 = vpack.c.b16 %v4403, %v4387
    %v5300 = vpack.c.b16 %v4404, %v4388
    %v5301 = vpack.c.b16 %v4405, %v4389
    %v5302 = vpack.c.b16 %v4406, %v4390
    %v5303 = vpack.c.b16 %v4407, %v4391
    %v5304 = vpack.c.b16 %v4408, %v4392
    %v5305 = vpack.c.b16 %v4409, %v4393
    %v5306 = vpack.c.b16 %v4410, %v4394
    %v5307 = vpack.c.b16 %v4411, %v4395
    %v5308 = vpack.c.b16 %v4412, %v4396
    %v5309 = vpack.c.b16 %v4413, %v4397
    %v5310 = vpack.c.b16 %v4414, %v4398
    %v5311 = vpack.c.b16 %v4431, %v4415
    %v5312 = vpack.c.b16 %v4432, %v4416
    %v5313 = vpack.c.b16 %v4433, %v4417
    %v5314 = vpack.c.b16 %v4434, %v4418
    %v5315 = vpack.c.b16 %v4435, %v4419
    %v5316 = vpack.c.b16 %v4436, %v4420
    %v5317 = vpack.c.b16 %v4437, %v4421
    %v5318 = vpack.c.b16 %v4438, %v4422
    %v5319 = vpack.c.b16 %v4439, %v4423
    %v5320 = vpack.c.b16 %v4440, %v4424
    %v5321 = vpack.c.b16 %v4441, %v4425
    %v5322 = vpack.c.b16 %v4442, %v4426
    %v5323 = vpack.c.b16 %v4443, %v4427
    %v5324 = vpack.c.b16 %v4444, %v4428
    %v5325 = vpack.c.b16 %v4445, %v4429
    %v5326 = vpack.c.b16 %v4446, %v4430
    %v5327 = vpack.c.b16 %v4463, %v4447
    %v5328 = vpack.c.b16 %v4464, %v4448
    %v5329 = vpack.c.b16 %v4465, %v4449
    %v5330 = vpack.c.b16 %v4466, %v4450
    %v5331 = vpack.c.b16 %v4467, %v4451
    %v5332 = vpack.c.b16 %v4468, %v4452
    %v5333 = vpack.c.b16 %v4469, %v4453
    %v5334 = vpack.c.b16 %v4470, %v4454
    %v5335 = vpack.c.b16 %v4471, %v4455
    %v5336 = vpack.c.b16 %v4472, %v4456
    %v5337 = vpack.c.b16 %v4473, %v4457
    %v5338 = vpack.c.b16 %v4474, %v4458
    %v5339 = vpack.c.b16 %v4475, %v4459
    %v5340 = vpack.c.b16 %v4476, %v4460
    %v5341 = vpack.c.b16 %v4477, %v4461
    %v5342 = vpack.c.b16 %v4478, %v4462
    %v5343 = vpack.c.b16 %v4495, %v4479
    %v5344 = vpack.c.b16 %v4496, %v4480
    %v5345 = vpack.c.b16 %v4497, %v4481
    %v5346 = vpack.c.b16 %v4498, %v4482
    %v5347 = vpack.c.b16 %v4499, %v4483
    %v5348 = vpack.c.b16 %v4500, %v4484
    %v5349 = vpack.c.b16 %v4501, %v4485
    %v5350 = vpack.c.b16 %v4502, %v4486
    %v5351 = vpack.c.b16 %v4503, %v4487
    %v5352 = vpack.c.b16 %v4504, %v4488
    %v5353 = vpack.c.b16 %v4505, %v4489
    %v5354 = vpack.c.b16 %v4506, %v4490
    %v5355 = vpack.c.b16 %v4507, %v4491
    %v5356 = vpack.c.b16 %v4508, %v4492
    %v5357 = vpack.c.b16 %v4509, %v4493
    %v5358 = vpack.c.b16 %v4510, %v4494
    %v5359 = vpack.c.b16 %v4527, %v4511
    %v5360 = vpack.c.b16 %v4528, %v4512
    %v5361 = vpack.c.b16 %v4529, %v4513
    %v5362 = vpack.c.b16 %v4530, %v4514
    %v5363 = vpack.c.b16 %v4531, %v4515
    %v5364 = vpack.c.b16 %v4532, %v4516
    %v5365 = vpack.c.b16 %v4533, %v4517
    %v5366 = vpack.c.b16 %v4534, %v4518
    %v5367 = vpack.c.b16 %v4535, %v4519
    %v5368 = vpack.c.b16 %v4536, %v4520
    %v5369 = vpack.c.b16 %v4537, %v4521
    %v5370 = vpack.c.b16 %v4538, %v4522
    %v5371 = vpack.c.b16 %v4539, %v4523
    %v5372 = vpack.c.b16 %v4540, %v4524
    %v5373 = vpack.c.b16 %v4541, %v4525
    %v5374 = vpack.c.b16 %v4542, %v4526
    %v5375 = vpack.c.b16 %v4559, %v4543
    %v5376 = vpack.c.b16 %v4560, %v4544
    %v5377 = vpack.c.b16 %v4561, %v4545
    %v5378 = vpack.c.b16 %v4562, %v4546
    %v5379 = vpack.c.b16 %v4563, %v4547
    %v5380 = vpack.c.b16 %v4564, %v4548
    %v5381 = vpack.c.b16 %v4565, %v4549
    %v5382 = vpack.c.b16 %v4566, %v4550
    %v5383 = vpack.c.b16 %v4567, %v4551
    %v5384 = vpack.c.b16 %v4568, %v4552
    %v5385 = vpack.c.b16 %v4569, %v4553
    %v5386 = vpack.c.b16 %v4570, %v4554
    %v5387 = vpack.c.b16 %v4571, %v4555
    %v5388 = vpack.c.b16 %v4572, %v4556
    %v5389 = vpack.c.b16 %v4573, %v4557
    %v5390 = vpack.c.b16 %v4574, %v4558
    %v5391 = vpack.c.b16 %v4591, %v4575
    %v5392 = vpack.c.b16 %v4592, %v4576
    %v5393 = vpack.c.b16 %v4593, %v4577
    %v5394 = vpack.c.b16 %v4594, %v4578
    %v5395 = vpack.c.b16 %v4595, %v4579
    %v5396 = vpack.c.b16 %v4596, %v4580
    %v5397 = vpack.c.b16 %v4597, %v4581
    %v5398 = vpack.c.b16 %v4598, %v4582
    %v5399 = vpack.c.b16 %v4599, %v4583
    %v5400 = vpack.c.b16 %v4600, %v4584
    %v5401 = vpack.c.b16 %v4601, %v4585
    %v5402 = vpack.c.b16 %v4602, %v4586
    %v5403 = vpack.c.b16 %v4603, %v4587
    %v5404 = vpack.c.b16 %v4604, %v4588
    %v5405 = vpack.c.b16 %v4605, %v4589
    %v5406 = vpack.c.b16 %v4606, %v4590
    %v5407 = vpack.c.b16 %v4623, %v4607
    %v5408 = vpack.c.b16 %v4624, %v4608
    %v5409 = vpack.c.b16 %v4625, %v4609
    %v5410 = vpack.c.b16 %v4626, %v4610
    %v5411 = vpack.c.b16 %v4627, %v4611
    %v5412 = vpack.c.b16 %v4628, %v4612
    %v5413 = vpack.c.b16 %v4629, %v4613
    %v5414 = vpack.c.b16 %v4630, %v4614
    %v5415 = vpack.c.b16 %v4631, %v4615
    %v5416 = vpack.c.b16 %v4632, %v4616
    %v5417 = vpack.c.b16 %v4633, %v4617
    %v5418 = vpack.c.b16 %v4634, %v4618
    %v5419 = vpack.c.b16 %v4635, %v4619
    %v5420 = vpack.c.b16 %v4636, %v4620
    %v5421 = vpack.c.b16 %v4637, %v4621
    %v5422 = vpack.c.b16 %v4638, %v4622
    %v5423 = vpack.c.b16 %v4655, %v4639
    %v5424 = vpack.c.b16 %v4656, %v4640
    %v5425 = vpack.c.b16 %v4657, %v4641
    %v5426 = vpack.c.b16 %v4658, %v4642
    %v5427 = vpack.c.b16 %v4659, %v4643
    %v5428 = vpack.c.b16 %v4660, %v4644
    %v5429 = vpack.c.b16 %v4661, %v4645
    %v5430 = vpack.c.b16 %v4662, %v4646
    %v5431 = vpack.c.b16 %v4663, %v4647
    %v5432 = vpack.c.b16 %v4664, %v4648
    %v5433 = vpack.c.b16 %v4665, %v4649
    %v5434 = vpack.c.b16 %v4666, %v4650
    %v5435 = vpack.c.b16 %v4667, %v4651
    %v5436 = vpack.c.b16 %v4668, %v4652
    %v5437 = vpack.c.b16 %v4669, %v4653
    %v5438 = vpack.c.b16 %v4670, %v4654
    %v5439 = vpack.c.b16 %v4687, %v4671
    %v5440 = vpack.c.b16 %v4688, %v4672
    %v5441 = vpack.c.b16 %v4689, %v4673
    %v5442 = vpack.c.b16 %v4690, %v4674
    %v5443 = vpack.c.b16 %v4691, %v4675
    %v5444 = vpack.c.b16 %v4692, %v4676
    %v5445 = vpack.c.b16 %v4693, %v4677
    %v5446 = vpack.c.b16 %v4694, %v4678
    %v5447 = vpack.c.b16 %v4695, %v4679
    %v5448 = vpack.c.b16 %v4696, %v4680
    %v5449 = vpack.c.b16 %v4697, %v4681
    %v5450 = vpack.c.b16 %v4698, %v4682
    %v5451 = vpack.c.b16 %v4699, %v4683
    %v5452 = vpack.c.b16 %v4700, %v4684
    %v5453 = vpack.c.b16 %v4701, %v4685
    %v5454 = vpack.c.b16 %v4702, %v4686
    %v5455 = vpack.c.b16 %v4719, %v4703
    %v5456 = vpack.c.b16 %v4720, %v4704
    %v5457 = vpack.c.b16 %v4721, %v4705
    %v5458 = vpack.c.b16 %v4722, %v4706
    %v5459 = vpack.c.b16 %v4723, %v4707
    %v5460 = vpack.c.b16 %v4724, %v4708
    %v5461 = vpack.c.b16 %v4725, %v4709
    %v5462 = vpack.c.b16 %v4726, %v4710
    %v5463 = vpack.c.b16 %v4727, %v4711
    %v5464 = vpack.c.b16 %v4728, %v4712
    %v5465 = vpack.c.b16 %v4729, %v4713
    %v5466 = vpack.c.b16 %v4730, %v4714
    %v5467 = vpack.c.b16 %v4731, %v4715
    %v5468 = vpack.c.b16 %v4732, %v4716
    %v5469 = vpack.c.b16 %v4733, %v4717
    %v5470 = vpack.c.b16 %v4734, %v4718
    %v5471 = vpack.c.b16 %v4751, %v4735
    %v5472 = vpack.c.b16 %v4752, %v4736
    %v5473 = vpack.c.b16 %v4753, %v4737
    %v5474 = vpack.c.b16 %v4754, %v4738
    %v5475 = vpack.c.b16 %v4755, %v4739
    %v5476 = vpack.c.b16 %v4756, %v4740
    %v5477 = vpack.c.b16 %v4757, %v4741
    %v5478 = vpack.c.b16 %v4758, %v4742
    %v5479 = vpack.c.b16 %v4759, %v4743
    %v5480 = vpack.c.b16 %v4760, %v4744
    %v5481 = vpack.c.b16 %v4761, %v4745
    %v5482 = vpack.c.b16 %v4762, %v4746
    %v5483 = vpack.c.b16 %v4763, %v4747
    %v5484 = vpack.c.b16 %v4764, %v4748
    %v5485 = vpack.c.b16 %v4765, %v4749
    %v5486 = vpack.c.b16 %v4766, %v4750
    %v5487 = vpack.c.b16 %v4783, %v4767
    %v5488 = vpack.c.b16 %v4784, %v4768
    %v5489 = vpack.c.b16 %v4785, %v4769
    %v5490 = vpack.c.b16 %v4786, %v4770
    %v5491 = vpack.c.b16 %v4787, %v4771
    %v5492 = vpack.c.b16 %v4788, %v4772
    %v5493 = vpack.c.b16 %v4789, %v4773
    %v5494 = vpack.c.b16 %v4790, %v4774
    %v5495 = vpack.c.b16 %v4791, %v4775
    %v5496 = vpack.c.b16 %v4792, %v4776
    %v5497 = vpack.c.b16 %v4793, %v4777
    %v5498 = vpack.c.b16 %v4794, %v4778
    %v5499 = vpack.c.b16 %v4795, %v4779
    %v5500 = vpack.c.b16 %v4796, %v4780
    %v5501 = vpack.c.b16 %v4797, %v4781
    %v5502 = vpack.c.b16 %v4798, %v4782
    %v5503 = vpack.c.b16 %v4815, %v4799
    %v5504 = vpack.c.b16 %v4816, %v4800
    %v5505 = vpack.c.b16 %v4817, %v4801
    %v5506 = vpack.c.b16 %v4818, %v4802
    %v5507 = vpack.c.b16 %v4819, %v4803
    %v5508 = vpack.c.b16 %v4820, %v4804
    %v5509 = vpack.c.b16 %v4821, %v4805
    %v5510 = vpack.c.b16 %v4822, %v4806
    %v5511 = vpack.c.b16 %v4823, %v4807
    %v5512 = vpack.c.b16 %v4824, %v4808
    %v5513 = vpack.c.b16 %v4825, %v4809
    %v5514 = vpack.c.b16 %v4826, %v4810
    %v5515 = vpack.c.b16 %v4827, %v4811
    %v5516 = vpack.c.b16 %v4828, %v4812
    %v5517 = vpack.c.b16 %v4829, %v4813
    %v5518 = vpack.c.b16 %v4830, %v4814
    %v5519 = vpack.c.b16 %v4847, %v4831
    %v5520 = vpack.c.b16 %v4848, %v4832
    %v5521 = vpack.c.b16 %v4849, %v4833
    %v5522 = vpack.c.b16 %v4850, %v4834
    %v5523 = vpack.c.b16 %v4851, %v4835
    %v5524 = vpack.c.b16 %v4852, %v4836
    %v5525 = vpack.c.b16 %v4853, %v4837
    %v5526 = vpack.c.b16 %v4854, %v4838
    %v5527 = vpack.c.b16 %v4855, %v4839
    %v5528 = vpack.c.b16 %v4856, %v4840
    %v5529 = vpack.c.b16 %v4857, %v4841
    %v5530 = vpack.c.b16 %v4858, %v4842
    %v5531 = vpack.c.b16 %v4859, %v4843
    %v5532 = vpack.c.b16 %v4860, %v4844
    %v5533 = vpack.c.b16 %v4861, %v4845
    %v5534 = vpack.c.b16 %v4862, %v4846
    %v5535 = vpack.c.b16 %v4879, %v4863
    %v5536 = vpack.c.b16 %v4880, %v4864
    %v5537 = vpack.c.b16 %v4881, %v4865
    %v5538 = vpack.c.b16 %v4882, %v4866
    %v5539 = vpack.c.b16 %v4883, %v4867
    %v5540 = vpack.c.b16 %v4884, %v4868
    %v5541 = vpack.c.b16 %v4885, %v4869
    %v5542 = vpack.c.b16 %v4886, %v4870
    %v5543 = vpack.c.b16 %v4887, %v4871
    %v5544 = vpack.c.b16 %v4888, %v4872
    %v5545 = vpack.c.b16 %v4889, %v4873
    %v5546 = vpack.c.b16 %v4890, %v4874
    %v5547 = vpack.c.b16 %v4891, %v4875
    %v5548 = vpack.c.b16 %v4892, %v4876
    %v5549 = vpack.c.b16 %v4893, %v4877
    %v5550 = vpack.c.b16 %v4894, %v4878
    %v5551 = vpack.c.b16 %v4911, %v4895
    %v5552 = vpack.c.b16 %v4912, %v4896
    %v5553 = vpack.c.b16 %v4913, %v4897
    %v5554 = vpack.c.b16 %v4914, %v4898
    %v5555 = vpack.c.b16 %v4915, %v4899
    %v5556 = vpack.c.b16 %v4916, %v4900
    %v5557 = vpack.c.b16 %v4917, %v4901
    %v5558 = vpack.c.b16 %v4918, %v4902
    %v5559 = vpack.c.b16 %v4919, %v4903
    %v5560 = vpack.c.b16 %v4920, %v4904
    %v5561 = vpack.c.b16 %v4921, %v4905
    %v5562 = vpack.c.b16 %v4922, %v4906
    %v5563 = vpack.c.b16 %v4923, %v4907
    %v5564 = vpack.c.b16 %v4924, %v4908
    %v5565 = vpack.c.b16 %v4925, %v4909
    %v5566 = vpack.c.b16 %v4926, %v4910
    %v5567 = vpack.c.b16 %v4943, %v4927
    %v5568 = vpack.c.b16 %v4944, %v4928
    %v5569 = vpack.c.b16 %v4945, %v4929
    %v5570 = vpack.c.b16 %v4946, %v4930
    %v5571 = vpack.c.b16 %v4947, %v4931
    %v5572 = vpack.c.b16 %v4948, %v4932
    %v5573 = vpack.c.b16 %v4949, %v4933
    %v5574 = vpack.c.b16 %v4950, %v4934
    %v5575 = vpack.c.b16 %v4951, %v4935
    %v5576 = vpack.c.b16 %v4952, %v4936
    %v5577 = vpack.c.b16 %v4953, %v4937
    %v5578 = vpack.c.b16 %v4954, %v4938
    %v5579 = vpack.c.b16 %v4955, %v4939
    %v5580 = vpack.c.b16 %v4956, %v4940
    %v5581 = vpack.c.b16 %v4957, %v4941
    %v5582 = vpack.c.b16 %v4958, %v4942
    %v5583 = vpack.c.b16 %v4975, %v4959
    %v5584 = vpack.c.b16 %v4976, %v4960
    %v5585 = vpack.c.b16 %v4977, %v4961
    %v5586 = vpack.c.b16 %v4978, %v4962
    %v5587 = vpack.c.b16 %v4979, %v4963
    %v5588 = vpack.c.b16 %v4980, %v4964
    %v5589 = vpack.c.b16 %v4981, %v4965
    %v5590 = vpack.c.b16 %v4982, %v4966
    %v5591 = vpack.c.b16 %v4983, %v4967
    %v5592 = vpack.c.b16 %v4984, %v4968
    %v5593 = vpack.c.b16 %v4985, %v4969
    %v5594 = vpack.c.b16 %v4986, %v4970
    %v5595 = vpack.c.b16 %v4987, %v4971
    %v5596 = vpack.c.b16 %v4988, %v4972
    %v5597 = vpack.c.b16 %v4989, %v4973
    %v5598 = vpack.c.b16 %v4990, %v4974
    %v5599 = vpack.c.b16 %v5007, %v4991
    %v5600 = vpack.c.b16 %v5008, %v4992
    %v5601 = vpack.c.b16 %v5009, %v4993
    %v5602 = vpack.c.b16 %v5010, %v4994
    %v5603 = vpack.c.b16 %v5011, %v4995
    %v5604 = vpack.c.b16 %v5012, %v4996
    %v5605 = vpack.c.b16 %v5013, %v4997
    %v5606 = vpack.c.b16 %v5014, %v4998
    %v5607 = vpack.c.b16 %v5015, %v4999
    %v5608 = vpack.c.b16 %v5016, %v5000
    %v5609 = vpack.c.b16 %v5017, %v5001
    %v5610 = vpack.c.b16 %v5018, %v5002
    %v5611 = vpack.c.b16 %v5019, %v5003
    %v5612 = vpack.c.b16 %v5020, %v5004
    %v5613 = vpack.c.b16 %v5021, %v5005
    %v5614 = vpack.c.b16 %v5022, %v5006
    %v5615 = vpack.c.b16 %v5039, %v5023
    %v5616 = vpack.c.b16 %v5040, %v5024
    %v5617 = vpack.c.b16 %v5041, %v5025
    %v5618 = vpack.c.b16 %v5042, %v5026
    %v5619 = vpack.c.b16 %v5043, %v5027
    %v5620 = vpack.c.b16 %v5044, %v5028
    %v5621 = vpack.c.b16 %v5045, %v5029
    %v5622 = vpack.c.b16 %v5046, %v5030
    %v5623 = vpack.c.b16 %v5047, %v5031
    %v5624 = vpack.c.b16 %v5048, %v5032
    %v5625 = vpack.c.b16 %v5049, %v5033
    %v5626 = vpack.c.b16 %v5050, %v5034
    %v5627 = vpack.c.b16 %v5051, %v5035
    %v5628 = vpack.c.b16 %v5052, %v5036
    %v5629 = vpack.c.b16 %v5053, %v5037
    %v5630 = vpack.c.b16 %v5054, %v5038
    %v5631 = vpack.c.b16 %v5071, %v5055
    %v5632 = vpack.c.b16 %v5072, %v5056
    %v5633 = vpack.c.b16 %v5073, %v5057
    %v5634 = vpack.c.b16 %v5074, %v5058
    %v5635 = vpack.c.b16 %v5075, %v5059
    %v5636 = vpack.c.b16 %v5076, %v5060
    %v5637 = vpack.c.b16 %v5077, %v5061
    %v5638 = vpack.c.b16 %v5078, %v5062
    %v5639 = vpack.c.b16 %v5079, %v5063
    %v5640 = vpack.c.b16 %v5080, %v5064
    %v5641 = vpack.c.b16 %v5081, %v5065
    %v5642 = vpack.c.b16 %v5082, %v5066
    %v5643 = vpack.c.b16 %v5083, %v5067
    %v5644 = vpack.c.b16 %v5084, %v5068
    %v5645 = vpack.c.b16 %v5085, %v5069
    %v5646 = vpack.c.b16 %v5086, %v5070
    %v5647 = vpack.c.b16 %v5103, %v5087
    %v5648 = vpack.c.b16 %v5104, %v5088
    %v5649 = vpack.c.b16 %v5105, %v5089
    %v5650 = vpack.c.b16 %v5106, %v5090
    %v5651 = vpack.c.b16 %v5107, %v5091
    %v5652 = vpack.c.b16 %v5108, %v5092
    %v5653 = vpack.c.b16 %v5109, %v5093
    %v5654 = vpack.c.b16 %v5110, %v5094
    %v5655 = vpack.c.b16 %v5111, %v5095
    %v5656 = vpack.c.b16 %v5112, %v5096
    %v5657 = vpack.c.b16 %v5113, %v5097
    %v5658 = vpack.c.b16 %v5114, %v5098
    %v5659 = vpack.c.b16 %v5115, %v5099
    %v5660 = vpack.c.b16 %v5116, %v5100
    %v5661 = vpack.c.b16 %v5117, %v5101
    %v5662 = vpack.c.b16 %v5118, %v5102
    %v5663 = vpack.c.b16 %v5135, %v5119
    %v5664 = vpack.c.b16 %v5136, %v5120
    %v5665 = vpack.c.b16 %v5137, %v5121
    %v5666 = vpack.c.b16 %v5138, %v5122
    %v5667 = vpack.c.b16 %v5139, %v5123
    %v5668 = vpack.c.b16 %v5140, %v5124
    %v5669 = vpack.c.b16 %v5141, %v5125
    %v5670 = vpack.c.b16 %v5142, %v5126
    %v5671 = vpack.c.b16 %v5143, %v5127
    %v5672 = vpack.c.b16 %v5144, %v5128
    %v5673 = vpack.c.b16 %v5145, %v5129
    %v5674 = vpack.c.b16 %v5146, %v5130
    %v5675 = vpack.c.b16 %v5147, %v5131
    %v5676 = vpack.c.b16 %v5148, %v5132
    %v5677 = vpack.c.b16 %v5149, %v5133
    %v5678 = vpack.c.b16 %v5150, %v5134
    %v5679 = vpack.c.b16 %v5167, %v5151
    %v5680 = vpack.c.b16 %v5168, %v5152
    %v5681 = vpack.c.b16 %v5169, %v5153
    %v5682 = vpack.c.b16 %v5170, %v5154
    %v5683 = vpack.c.b16 %v5171, %v5155
    %v5684 = vpack.c.b16 %v5172, %v5156
    %v5685 = vpack.c.b16 %v5173, %v5157
    %v5686 = vpack.c.b16 %v5174, %v5158
    %v5687 = vpack.c.b16 %v5175, %v5159
    %v5688 = vpack.c.b16 %v5176, %v5160
    %v5689 = vpack.c.b16 %v5177, %v5161
    %v5690 = vpack.c.b16 %v5178, %v5162
    %v5691 = vpack.c.b16 %v5179, %v5163
    %v5692 = vpack.c.b16 %v5180, %v5164
    %v5693 = vpack.c.b16 %v5181, %v5165
    %v5694 = vpack.c.b16 %v5182, %v5166
    %6207 = vmatprep.subr.bf16.mxu0 %v5184
    %6208 = vmatpush1.bf16.msra.mxu0 %v5183
    %6209 = vmatprep.subr.bf16.mxu0 %v5200
    %6210 = vmatpush1.bf16.msra.mxu0 %v5199
    %6211 = vmatprep.subr.bf16.mxu0 %v5216
    %6212 = vmatpush1.bf16.msra.mxu0 %v5215
    %6213 = vmatprep.subr.bf16.mxu0 %v5232
    %6214 = vmatpush1.bf16.msra.mxu0 %v5231
    %6215 = vmatprep.subr.bf16.mxu0 %v5248
    %6216 = vmatpush1.bf16.msra.mxu0 %v5247
    %6217 = vmatprep.subr.bf16.mxu0 %v5264
    %6218 = vmatpush1.bf16.msra.mxu0 %v5263
    %6219 = vmatprep.subr.bf16.mxu0 %v5280
    %6220 = vmatpush1.bf16.msra.mxu0 %v5279
    %6221 = vmatprep.subr.bf16.mxu0 %v5296
    %6222 = vmatpush1.bf16.msra.mxu0 %v5295
    %6223 = vmatprep.subr.bf16.mxu0 %v5312
    %6224 = vmatpush1.bf16.msra.mxu0 %v5311
    %6225 = vmatprep.subr.bf16.mxu0 %v5328
    %6226 = vmatpush1.bf16.msra.mxu0 %v5327
    %6227 = vmatprep.subr.bf16.mxu0 %v5344
    %6228 = vmatpush1.bf16.msra.mxu0 %v5343
    %6229 = vmatprep.subr.bf16.mxu0 %v5360
    %6230 = vmatpush1.bf16.msra.mxu0 %v5359
    %6231 = vmatprep.subr.bf16.mxu0 %v5376
    %6232 = vmatpush1.bf16.msra.mxu0 %v5375
    %6233 = vmatprep.subr.bf16.mxu0 %v5392
    %6234 = vmatpush1.bf16.msra.mxu0 %v5391
    %6235 = vmatprep.subr.bf16.mxu0 %v5408
    %6236 = vmatpush1.bf16.msra.mxu0 %v5407
    %6237 = vmatprep.subr.bf16.mxu0 %v5424
    %6238 = vmatpush1.bf16.msra.mxu0 %v5423
    %6239 = vmatprep.mubr.bf16.mxu0 0
    %6240 = vmatmul.mubr.bf16.gmra.mrb[0].mxu0 0
    %v6241 = vpop.f32.mrb[0].mxu0
    %v6242 = vadd.f32 0.0, %v6241
    %v6243 = vpop.f32.mrb[0].mxu0
    %v6244 = vadd.f32 0.0, %v6243
    %v6245 = vpop.f32.mrb[0].mxu0
    %v6246 = vpop.f32.mrb[0].mxu0
    %6247 = vdwg.mxu0
    %6248 = vmatprep.subr.bf16.mxu0 %v5440
    %6249 = vmatpush1.bf16.msra.mxu0 %v5439
    %6250 = vmatprep.subr.bf16.mxu0 %v5456
    %6251 = vmatpush1.bf16.msra.mxu0 %v5455
    %6252 = vmatprep.subr.bf16.mxu0 %v5472
    %6253 = vmatpush1.bf16.msra.mxu0 %v5471
    %6254 = vmatprep.subr.bf16.mxu0 %v5488
    %6255 = vmatpush1.bf16.msra.mxu0 %v5487
    %6256 = vmatprep.subr.bf16.mxu0 %v5504
    %6257 = vmatpush1.bf16.msra.mxu0 %v5503
    %6258 = vmatprep.subr.bf16.mxu0 %v5520
    %6259 = vmatpush1.bf16.msra.mxu0 %v5519
    %6260 = vmatprep.subr.bf16.mxu0 %v5536
    %6261 = vmatpush1.bf16.msra.mxu0 %v5535
    %6262 = vmatprep.subr.bf16.mxu0 %v5552
    %6263 = vmatpush1.bf16.msra.mxu0 %v5551
    %6264 = vmatprep.subr.bf16.mxu0 %v5568
    %6265 = vmatpush1.bf16.msra.mxu0 %v5567
    %6266 = vmatprep.subr.bf16.mxu0 %v5584
    %6267 = vmatpush1.bf16.msra.mxu0 %v5583
    %6268 = vmatprep.subr.bf16.mxu0 %v5600
    %6269 = vmatpush1.bf16.msra.mxu0 %v5599
    %6270 = vmatprep.subr.bf16.mxu0 %v5616
    %6271 = vmatpush1.bf16.msra.mxu0 %v5615
    %6272 = vmatprep.subr.bf16.mxu0 %v5632
    %6273 = vmatpush1.bf16.msra.mxu0 %v5631
    %6274 = vmatprep.subr.bf16.mxu0 %v5648
    %6275 = vmatpush1.bf16.msra.mxu0 %v5647
    %6276 = vmatprep.subr.bf16.mxu0 %v5664
    %6277 = vmatpush1.bf16.msra.mxu0 %v5663
    %6278 = vmatprep.subr.bf16.mxu0 %v5680
    %6279 = vmatpush1.bf16.msra.mxu0 %v5679
    %6280 = vmatprep.mubr.bf16.mxu0 0
    %6281 = vmatmul.mubr.bf16.gmra.mrb[0].mxu0 0
    %v6282 = vpop.f32.mrb[0].mxu0
    %v6283 = vadd.f32 %v6242, %v6282
    %v6284 = vpop.f32.mrb[0].mxu0
    %v6285 = vadd.f32 %v6244, %v6284
    %v6286 = vpop.f32.mrb[0].mxu0
    %v6287 = vpop.f32.mrb[0].mxu0
    %6288 = vdwg.mxu0
    %6289 = vmatprep.subr.bf16.mxu0 %v5186
    %6290 = vmatpush1.bf16.msra.mxu0 %v5185
    %6291 = vmatprep.subr.bf16.mxu0 %v5202
    %6292 = vmatpush1.bf16.msra.mxu0 %v5201
    %6293 = vmatprep.subr.bf16.mxu0 %v5218
    %6294 = vmatpush1.bf16.msra.mxu0 %v5217
    %6295 = vmatprep.subr.bf16.mxu0 %v5234
    %6296 = vmatpush1.bf16.msra.mxu0 %v5233
    %6297 = vmatprep.subr.bf16.mxu0 %v5250
    %6298 = vmatpush1.bf16.msra.mxu0 %v5249
    %6299 = vmatprep.subr.bf16.mxu0 %v5266
    %6300 = vmatpush1.bf16.msra.mxu0 %v5265
    %6301 = vmatprep.subr.bf16.mxu0 %v5282
    %6302 = vmatpush1.bf16.msra.mxu0 %v5281
    %6303 = vmatprep.subr.bf16.mxu0 %v5298
    %6304 = vmatpush1.bf16.msra.mxu0 %v5297
    %6305 = vmatprep.subr.bf16.mxu0 %v5314
    %6306 = vmatpush1.bf16.msra.mxu0 %v5313
    %6307 = vmatprep.subr.bf16.mxu0 %v5330
    %6308 = vmatpush1.bf16.msra.mxu0 %v5329
    %6309 = vmatprep.subr.bf16.mxu0 %v5346
    %6310 = vmatpush1.bf16.msra.mxu0 %v5345
    %6311 = vmatprep.subr.bf16.mxu0 %v5362
    %6312 = vmatpush1.bf16.msra.mxu0 %v5361
    %6313 = vmatprep.subr.bf16.mxu0 %v5378
    %6314 = vmatpush1.bf16.msra.mxu0 %v5377
    %6315 = vmatprep.subr.bf16.mxu0 %v5394
    %6316 = vmatpush1.bf16.msra.mxu0 %v5393
    %6317 = vmatprep.subr.bf16.mxu0 %v5410
    %6318 = vmatpush1.bf16.msra.mxu0 %v5409
    %6319 = vmatprep.subr.bf16.mxu0 %v5426
    %6320 = vmatpush1.bf16.msra.mxu0 %v5425
    %6321 = vmatprep.mubr.bf16.mxu0 0
    %6322 = vmatmul.mubr.bf16.gmra.mrb[0].mxu0 0
    %v6323 = vpop.f32.mrb[0].mxu0
    %v6324 = vadd.f32 0.0, %v6323
    %v6325 = vpop.f32.mrb[0].mxu0
    %v6326 = vadd.f32 0.0, %v6325
    %v6327 = vpop.f32.mrb[0].mxu0
    %v6328 = vpop.f32.mrb[0].mxu0
    %6329 = vdwg.mxu0
    %6330 = vmatprep.subr.bf16.mxu0 %v5442
    %6331 = vmatpush1.bf16.msra.mxu0 %v5441
    %6332 = vmatprep.subr.bf16.mxu0 %v5458
    %6333 = vmatpush1.bf16.msra.mxu0 %v5457
    %6334 = vmatprep.subr.bf16.mxu0 %v5474
    %6335 = vmatpush1.bf16.msra.mxu0 %v5473
    %6336 = vmatprep.subr.bf16.mxu0 %v5490
    %6337 = vmatpush1.bf16.msra.mxu0 %v5489
    %6338 = vmatprep.subr.bf16.mxu0 %v5506
    %6339 = vmatpush1.bf16.msra.mxu0 %v5505
    %6340 = vmatprep.subr.bf16.mxu0 %v5522
    %6341 = vmatpush1.bf16.msra.mxu0 %v5521
    %6342 = vmatprep.subr.bf16.mxu0 %v5538
    %6343 = vmatpush1.bf16.msra.mxu0 %v5537
    %6344 = vmatprep.subr.bf16.mxu0 %v5554
    %6345 = vmatpush1.bf16.msra.mxu0 %v5553
    %6346 = vmatprep.subr.bf16.mxu0 %v5570
    %6347 = vmatpush1.bf16.msra.mxu0 %v5569
    %6348 = vmatprep.subr.bf16.mxu0 %v5586
    %6349 = vmatpush1.bf16.msra.mxu0 %v5585
    %6350 = vmatprep.subr.bf16.mxu0 %v5602
    %6351 = vmatpush1.bf16.msra.mxu0 %v5601
    %6352 = vmatprep.subr.bf16.mxu0 %v5618
    %6353 = vmatpush1.bf16.msra.mxu0 %v5617
    %6354 = vmatprep.subr.bf16.mxu0 %v5634
    %6355 = vmatpush1.bf16.msra.mxu0 %v5633
    %6356 = vmatprep.subr.bf16.mxu0 %v5650
    %6357 = vmatpush1.bf16.msra.mxu0 %v5649
    %6358 = vmatprep.subr.bf16.mxu0 %v5666
    %6359 = vmatpush1.bf16.msra.mxu0 %v5665
    %6360 = vmatprep.subr.bf16.mxu0 %v5682
    %6361 = vmatpush1.bf16.msra.mxu0 %v5681
    %6362 = vmatprep.mubr.bf16.mxu0 0
    %6363 = vmatmul.mubr.bf16.gmra.mrb[0].mxu0 0
    %v6364 = vpop.f32.mrb[0].mxu0
    %v6365 = vadd.f32 %v6324, %v6364
    %v6366 = vpop.f32.mrb[0].mxu0
    %v6367 = vadd.f32 %v6326, %v6366
    %v6368 = vpop.f32.mrb[0].mxu0
    %v6369 = vpop.f32.mrb[0].mxu0
    %6370 = vdwg.mxu0
    %6371 = vmatprep.subr.bf16.mxu0 %v5188
    %6372 = vmatpush1.bf16.msra.mxu0 %v5187
    %6373 = vmatprep.subr.bf16.mxu0 %v5204
    %6374 = vmatpush1.bf16.msra.mxu0 %v5203
    %6375 = vmatprep.subr.bf16.mxu0 %v5220
    %6376 = vmatpush1.bf16.msra.mxu0 %v5219
    %6377 = vmatprep.subr.bf16.mxu0 %v5236
    %6378 = vmatpush1.bf16.msra.mxu0 %v5235
    %6379 = vmatprep.subr.bf16.mxu0 %v5252
    %6380 = vmatpush1.bf16.msra.mxu0 %v5251
    %6381 = vmatprep.subr.bf16.mxu0 %v5268
    %6382 = vmatpush1.bf16.msra.mxu0 %v5267
    %6383 = vmatprep.subr.bf16.mxu0 %v5284
    %6384 = vmatpush1.bf16.msra.mxu0 %v5283
    %6385 = vmatprep.subr.bf16.mxu0 %v5300
    %6386 = vmatpush1.bf16.msra.mxu0 %v5299
    %6387 = vmatprep.subr.bf16.mxu0 %v5316
    %6388 = vmatpush1.bf16.msra.mxu0 %v5315
    %6389 = vmatprep.subr.bf16.mxu0 %v5332
    %6390 = vmatpush1.bf16.msra.mxu0 %v5331
    %6391 = vmatprep.subr.bf16.mxu0 %v5348
    %6392 = vmatpush1.bf16.msra.mxu0 %v5347
    %6393 = vmatprep.subr.bf16.mxu0 %v5364
    %6394 = vmatpush1.bf16.msra.mxu0 %v5363
    %6395 = vmatprep.subr.bf16.mxu0 %v5380
    %6396 = vmatpush1.bf16.msra.mxu0 %v5379
    %6397 = vmatprep.subr.bf16.mxu0 %v5396
    %6398 = vmatpush1.bf16.msra.mxu0 %v5395
    %6399 = vmatprep.subr.bf16.mxu0 %v5412
    %6400 = vmatpush1.bf16.msra.mxu0 %v5411
    %6401 = vmatprep.subr.bf16.mxu0 %v5428
    %6402 = vmatpush1.bf16.msra.mxu0 %v5427
    %6403 = vmatprep.mubr.bf16.mxu0 0
    %6404 = vmatmul.mubr.bf16.gmra.mrb[0].mxu0 0
    %v6405 = vpop.f32.mrb[0].mxu0
    %v6406 = vadd.f32 0.0, %v6405
    %v6407 = vpop.f32.mrb[0].mxu0
    %v6408 = vadd.f32 0.0, %v6407
    %v6409 = vpop.f32.mrb[0].mxu0
    %v6410 = vpop.f32.mrb[0].mxu0
    %6411 = vdwg.mxu0
    %6412 = vmatprep.subr.bf16.mxu0 %v5444
    %6413 = vmatpush1.bf16.msra.mxu0 %v5443
    %6414 = vmatprep.subr.bf16.mxu0 %v5460
    %6415 = vmatpush1.bf16.msra.mxu0 %v5459
    %6416 = vmatprep.subr.bf16.mxu0 %v5476
    %6417 = vmatpush1.bf16.msra.mxu0 %v5475
    %6418 = vmatprep.subr.bf16.mxu0 %v5492
    %6419 = vmatpush1.bf16.msra.mxu0 %v5491
    %6420 = vmatprep.subr.bf16.mxu0 %v5508
    %6421 = vmatpush1.bf16.msra.mxu0 %v5507
    %6422 = vmatprep.subr.bf16.mxu0 %v5524
    %6423 = vmatpush1.bf16.msra.mxu0 %v5523
    %6424 = vmatprep.subr.bf16.mxu0 %v5540
    %6425 = vmatpush1.bf16.msra.mxu0 %v5539
    %6426 = vmatprep.subr.bf16.mxu0 %v5556
    %6427 = vmatpush1.bf16.msra.mxu0 %v5555
    %6428 = vmatprep.subr.bf16.mxu0 %v5572
    %6429 = vmatpush1.bf16.msra.mxu0 %v5571
    %6430 = vmatprep.subr.bf16.mxu0 %v5588
    %6431 = vmatpush1.bf16.msra.mxu0 %v5587
    %6432 = vmatprep.subr.bf16.mxu0 %v5604
    %6433 = vmatpush1.bf16.msra.mxu0 %v5603
    %6434 = vmatprep.subr.bf16.mxu0 %v5620
    %6435 = vmatpush1.bf16.msra.mxu0 %v5619
    %6436 = vmatprep.subr.bf16.mxu0 %v5636
    %6437 = vmatpush1.bf16.msra.mxu0 %v5635
    %6438 = vmatprep.subr.bf16.mxu0 %v5652
    %6439 = vmatpush1.bf16.msra.mxu0 %v5651
    %6440 = vmatprep.subr.bf16.mxu0 %v5668
    %6441 = vmatpush1.bf16.msra.mxu0 %v5667
    %6442 = vmatprep.subr.bf16.mxu0 %v5684
    %6443 = vmatpush1.bf16.msra.mxu0 %v5683
    %6444 = vmatprep.mubr.bf16.mxu0 0
    %6445 = vmatmul.mubr.bf16.gmra.mrb[0].mxu0 0
    %v6446 = vpop.f32.mrb[0].mxu0
    %v6447 = vadd.f32 %v6406, %v6446
    %v6448 = vpop.f32.mrb[0].mxu0
    %v6449 = vadd.f32 %v6408, %v6448
    %v6450 = vpop.f32.mrb[0].mxu0
    %v6451 = vpop.f32.mrb[0].mxu0
    %6452 = vdwg.mxu0
    %6453 = vmatprep.subr.bf16.mxu0 %v5190
    %6454 = vmatpush1.bf16.msra.mxu0 %v5189
    %6455 = vmatprep.subr.bf16.mxu0 %v5206
    %6456 = vmatpush1.bf16.msra.mxu0 %v5205
    %6457 = vmatprep.subr.bf16.mxu0 %v5222
    %6458 = vmatpush1.bf16.msra.mxu0 %v5221
    %6459 = vmatprep.subr.bf16.mxu0 %v5238
    %6460 = vmatpush1.bf16.msra.mxu0 %v5237
    %6461 = vmatprep.subr.bf16.mxu0 %v5254
    %6462 = vmatpush1.bf16.msra.mxu0 %v5253
    %6463 = vmatprep.subr.bf16.mxu0 %v5270
    %6464 = vmatpush1.bf16.msra.mxu0 %v5269
    %6465 = vmatprep.subr.bf16.mxu0 %v5286
    %6466 = vmatpush1.bf16.msra.mxu0 %v5285
    %6467 = vmatprep.subr.bf16.mxu0 %v5302
    %6468 = vmatpush1.bf16.msra.mxu0 %v5301
    %6469 = vmatprep.subr.bf16.mxu0 %v5318
    %6470 = vmatpush1.bf16.msra.mxu0 %v5317
    %6471 = vmatprep.subr.bf16.mxu0 %v5334
    %6472 = vmatpush1.bf16.msra.mxu0 %v5333
    %6473 = vmatprep.subr.bf16.mxu0 %v5350
    %6474 = vmatpush1.bf16.msra.mxu0 %v5349
    %6475 = vmatprep.subr.bf16.mxu0 %v5366
    %6476 = vmatpush1.bf16.msra.mxu0 %v5365
    %6477 = vmatprep.subr.bf16.mxu0 %v5382
    %6478 = vmatpush1.bf16.msra.mxu0 %v5381
    %6479 = vmatprep.subr.bf16.mxu0 %v5398
    %6480 = vmatpush1.bf16.msra.mxu0 %v5397
    %6481 = vmatprep.subr.bf16.mxu0 %v5414
    %6482 = vmatpush1.bf16.msra.mxu0 %v5413
    %6483 = vmatprep.subr.bf16.mxu0 %v5430
    %6484 = vmatpush1.bf16.msra.mxu0 %v5429
    %6485 = vmatprep.mubr.bf16.mxu0 0
    %6486 = vmatmul.mubr.bf16.gmra.mrb[0].mxu0 0
    %v6487 = vpop.f32.mrb[0].mxu0
    %v6488 = vadd.f32 0.0, %v6487
    %v6489 = vpop.f32.mrb[0].mxu0
    %v6490 = vadd.f32 0.0, %v6489
    %v6491 = vpop.f32.mrb[0].mxu0
    %v6492 = vpop.f32.mrb[0].mxu0
    %6493 = vdwg.mxu0
    %6494 = vmatprep.subr.bf16.mxu0 %v5446
    %6495 = vmatpush1.bf16.msra.mxu0 %v5445
    %6496 = vmatprep.subr.bf16.mxu0 %v5462
    %6497 = vmatpush1.bf16.msra.mxu0 %v5461
    %6498 = vmatprep.subr.bf16.mxu0 %v5478
    %6499 = vmatpush1.bf16.msra.mxu0 %v5477
    %6500 = vmatprep.subr.bf16.mxu0 %v5494
    %6501 = vmatpush1.bf16.msra.mxu0 %v5493
    %6502 = vmatprep.subr.bf16.mxu0 %v5510
    %6503 = vmatpush1.bf16.msra.mxu0 %v5509
    %6504 = vmatprep.subr.bf16.mxu0 %v5526
    %6505 = vmatpush1.bf16.msra.mxu0 %v5525
    %6506 = vmatprep.subr.bf16.mxu0 %v5542
    %6507 = vmatpush1.bf16.msra.mxu0 %v5541
    %6508 = vmatprep.subr.bf16.mxu0 %v5558
    %6509 = vmatpush1.bf16.msra.mxu0 %v5557
    %6510 = vmatprep.subr.bf16.mxu0 %v5574
    %6511 = vmatpush1.bf16.msra.mxu0 %v5573
    %6512 = vmatprep.subr.bf16.mxu0 %v5590
    %6513 = vmatpush1.bf16.msra.mxu0 %v5589
    %6514 = vmatprep.subr.bf16.mxu0 %v5606
    %6515 = vmatpush1.bf16.msra.mxu0 %v5605
    %6516 = vmatprep.subr.bf16.mxu0 %v5622
    %6517 = vmatpush1.bf16.msra.mxu0 %v5621
    %6518 = vmatprep.subr.bf16.mxu0 %v5638
    %6519 = vmatpush1.bf16.msra.mxu0 %v5637
    %6520 = vmatprep.subr.bf16.mxu0 %v5654
    %6521 = vmatpush1.bf16.msra.mxu0 %v5653
    %6522 = vmatprep.subr.bf16.mxu0 %v5670
    %6523 = vmatpush1.bf16.msra.mxu0 %v5669
    %6524 = vmatprep.subr.bf16.mxu0 %v5686
    %6525 = vmatpush1.bf16.msra.mxu0 %v5685
    %6526 = vmatprep.mubr.bf16.mxu0 0
    %6527 = vmatmul.mubr.bf16.gmra.mrb[0].mxu0 0
    %v6528 = vpop.f32.mrb[0].mxu0
    %v6529 = vadd.f32 %v6488, %v6528
    %v6530 = vpop.f32.mrb[0].mxu0
    %v6531 = vadd.f32 %v6490, %v6530
    %v6532 = vpop.f32.mrb[0].mxu0
    %v6533 = vpop.f32.mrb[0].mxu0
    %6534 = vdwg.mxu0
    %6535 = vmatprep.subr.bf16.mxu0 %v5192
    %6536 = vmatpush1.bf16.msra.mxu0 %v5191
    %6537 = vmatprep.subr.bf16.mxu0 %v5208
    %6538 = vmatpush1.bf16.msra.mxu0 %v5207
    %6539 = vmatprep.subr.bf16.mxu0 %v5224
    %6540 = vmatpush1.bf16.msra.mxu0 %v5223
    %6541 = vmatprep.subr.bf16.mxu0 %v5240
    %6542 = vmatpush1.bf16.msra.mxu0 %v5239
    %6543 = vmatprep.subr.bf16.mxu0 %v5256
    %6544 = vmatpush1.bf16.msra.mxu0 %v5255
    %6545 = vmatprep.subr.bf16.mxu0 %v5272
    %6546 = vmatpush1.bf16.msra.mxu0 %v5271
    %6547 = vmatprep.subr.bf16.mxu0 %v5288
    %6548 = vmatpush1.bf16.msra.mxu0 %v5287
    %6549 = vmatprep.subr.bf16.mxu0 %v5304
    %6550 = vmatpush1.bf16.msra.mxu0 %v5303
    %6551 = vmatprep.subr.bf16.mxu0 %v5320
    %6552 = vmatpush1.bf16.msra.mxu0 %v5319
    %6553 = vmatprep.subr.bf16.mxu0 %v5336
    %6554 = vmatpush1.bf16.msra.mxu0 %v5335
    %6555 = vmatprep.subr.bf16.mxu0 %v5352
    %6556 = vmatpush1.bf16.msra.mxu0 %v5351
    %6557 = vmatprep.subr.bf16.mxu0 %v5368
    %6558 = vmatpush1.bf16.msra.mxu0 %v5367
    %6559 = vmatprep.subr.bf16.mxu0 %v5384
    %6560 = vmatpush1.bf16.msra.mxu0 %v5383
    %6561 = vmatprep.subr.bf16.mxu0 %v5400
    %6562 = vmatpush1.bf16.msra.mxu0 %v5399
    %6563 = vmatprep.subr.bf16.mxu0 %v5416
    %6564 = vmatpush1.bf16.msra.mxu0 %v5415
    %6565 = vmatprep.subr.bf16.mxu0 %v5432
    %6566 = vmatpush1.bf16.msra.mxu0 %v5431
    %6567 = vmatprep.mubr.bf16.mxu0 0
    %6568 = vmatmul.mubr.bf16.gmra.mrb[0].mxu0 0
    %v6569 = vpop.f32.mrb[0].mxu0
    %v6570 = vadd.f32 0.0, %v6569
    %v6571 = vpop.f32.mrb[0].mxu0
    %v6572 = vadd.f32 0.0, %v6571
    %v6573 = vpop.f32.mrb[0].mxu0
    %v6574 = vpop.f32.mrb[0].mxu0
    %6575 = vdwg.mxu0
    %6576 = vmatprep.subr.bf16.mxu0 %v5448
    %6577 = vmatpush1.bf16.msra.mxu0 %v5447
    %6578 = vmatprep.subr.bf16.mxu0 %v5464
    %6579 = vmatpush1.bf16.msra.mxu0 %v5463
    %6580 = vmatprep.subr.bf16.mxu0 %v5480
    %6581 = vmatpush1.bf16.msra.mxu0 %v5479
    %6582 = vmatprep.subr.bf16.mxu0 %v5496
    %6583 = vmatpush1.bf16.msra.mxu0 %v5495
    %6584 = vmatprep.subr.bf16.mxu0 %v5512
    %6585 = vmatpush1.bf16.msra.mxu0 %v5511
    %6586 = vmatprep.subr.bf16.mxu0 %v5528
    %6587 = vmatpush1.bf16.msra.mxu0 %v5527
    %6588 = vmatprep.subr.bf16.mxu0 %v5544
    %6589 = vmatpush1.bf16.msra.mxu0 %v5543
    %6590 = vmatprep.subr.bf16.mxu0 %v5560
    %6591 = vmatpush1.bf16.msra.mxu0 %v5559
    %6592 = vmatprep.subr.bf16.mxu0 %v5576
    %6593 = vmatpush1.bf16.msra.mxu0 %v5575
    %6594 = vmatprep.subr.bf16.mxu0 %v5592
    %6595 = vmatpush1.bf16.msra.mxu0 %v5591
    %6596 = vmatprep.subr.bf16.mxu0 %v5608
    %6597 = vmatpush1.bf16.msra.mxu0 %v5607
    %6598 = vmatprep.subr.bf16.mxu0 %v5624
    %6599 = vmatpush1.bf16.msra.mxu0 %v5623
    %6600 = vmatprep.subr.bf16.mxu0 %v5640
    %6601 = vmatpush1.bf16.msra.mxu0 %v5639
    %6602 = vmatprep.subr.bf16.mxu0 %v5656
    %6603 = vmatpush1.bf16.msra.mxu0 %v5655
    %6604 = vmatprep.subr.bf16.mxu0 %v5672
    %6605 = vmatpush1.bf16.msra.mxu0 %v5671
    %6606 = vmatprep.subr.bf16.mxu0 %v5688
    %6607 = vmatpush1.bf16.msra.mxu0 %v5687
    %6608 = vmatprep.mubr.bf16.mxu0 0
    %6609 = vmatmul.mubr.bf16.gmra.mrb[0].mxu0 0
    %v6610 = vpop.f32.mrb[0].mxu0
    %v6611 = vadd.f32 %v6570, %v6610
    %v6612 = vpop.f32.mrb[0].mxu0
    %v6613 = vadd.f32 %v6572, %v6612
    %v6614 = vpop.f32.mrb[0].mxu0
    %v6615 = vpop.f32.mrb[0].mxu0
    %6616 = vdwg.mxu0
    %6617 = vmatprep.subr.bf16.mxu0 %v5194
    %6618 = vmatpush1.bf16.msra.mxu0 %v5193
    %6619 = vmatprep.subr.bf16.mxu0 %v5210
    %6620 = vmatpush1.bf16.msra.mxu0 %v5209
    %6621 = vmatprep.subr.bf16.mxu0 %v5226
    %6622 = vmatpush1.bf16.msra.mxu0 %v5225
    %6623 = vmatprep.subr.bf16.mxu0 %v5242
    %6624 = vmatpush1.bf16.msra.mxu0 %v5241
    %6625 = vmatprep.subr.bf16.mxu0 %v5258
    %6626 = vmatpush1.bf16.msra.mxu0 %v5257
    %6627 = vmatprep.subr.bf16.mxu0 %v5274
    %6628 = vmatpush1.bf16.msra.mxu0 %v5273
    %6629 = vmatprep.subr.bf16.mxu0 %v5290
    %6630 = vmatpush1.bf16.msra.mxu0 %v5289
    %6631 = vmatprep.subr.bf16.mxu0 %v5306
    %6632 = vmatpush1.bf16.msra.mxu0 %v5305
    %6633 = vmatprep.subr.bf16.mxu0 %v5322
    %6634 = vmatpush1.bf16.msra.mxu0 %v5321
    %6635 = vmatprep.subr.bf16.mxu0 %v5338
    %6636 = vmatpush1.bf16.msra.mxu0 %v5337
    %6637 = vmatprep.subr.bf16.mxu0 %v5354
    %6638 = vmatpush1.bf16.msra.mxu0 %v5353
    %6639 = vmatprep.subr.bf16.mxu0 %v5370
    %6640 = vmatpush1.bf16.msra.mxu0 %v5369
    %6641 = vmatprep.subr.bf16.mxu0 %v5386
    %6642 = vmatpush1.bf16.msra.mxu0 %v5385
    %6643 = vmatprep.subr.bf16.mxu0 %v5402
    %6644 = vmatpush1.bf16.msra.mxu0 %v5401
    %6645 = vmatprep.subr.bf16.mxu0 %v5418
    %6646 = vmatpush1.bf16.msra.mxu0 %v5417
    %6647 = vmatprep.subr.bf16.mxu0 %v5434
    %6648 = vmatpush1.bf16.msra.mxu0 %v5433
    %6649 = vmatprep.mubr.bf16.mxu0 0
    %6650 = vmatmul.mubr.bf16.gmra.mrb[0].mxu0 0
    %v6651 = vpop.f32.mrb[0].mxu0
    %v6652 = vadd.f32 0.0, %v6651
    %v6653 = vpop.f32.mrb[0].mxu0
    %v6654 = vadd.f32 0.0, %v6653
    %v6655 = vpop.f32.mrb[0].mxu0
    %v6656 = vpop.f32.mrb[0].mxu0
    %6657 = vdwg.mxu0
    %6658 = vmatprep.subr.bf16.mxu0 %v5450
    %6659 = vmatpush1.bf16.msra.mxu0 %v5449
    %6660 = vmatprep.subr.bf16.mxu0 %v5466
    %6661 = vmatpush1.bf16.msra.mxu0 %v5465
    %6662 = vmatprep.subr.bf16.mxu0 %v5482
    %6663 = vmatpush1.bf16.msra.mxu0 %v5481
    %6664 = vmatprep.subr.bf16.mxu0 %v5498
    %6665 = vmatpush1.bf16.msra.mxu0 %v5497
    %6666 = vmatprep.subr.bf16.mxu0 %v5514
    %6667 = vmatpush1.bf16.msra.mxu0 %v5513
    %6668 = vmatprep.subr.bf16.mxu0 %v5530
    %6669 = vmatpush1.bf16.msra.mxu0 %v5529
    %6670 = vmatprep.subr.bf16.mxu0 %v5546
    %6671 = vmatpush1.bf16.msra.mxu0 %v5545
    %6672 = vmatprep.subr.bf16.mxu0 %v5562
    %6673 = vmatpush1.bf16.msra.mxu0 %v5561
    %6674 = vmatprep.subr.bf16.mxu0 %v5578
    %6675 = vmatpush1.bf16.msra.mxu0 %v5577
    %6676 = vmatprep.subr.bf16.mxu0 %v5594
    %6677 = vmatpush1.bf16.msra.mxu0 %v5593
    %6678 = vmatprep.subr.bf16.mxu0 %v5610
    %6679 = vmatpush1.bf16.msra.mxu0 %v5609
    %6680 = vmatprep.subr.bf16.mxu0 %v5626
    %6681 = vmatpush1.bf16.msra.mxu0 %v5625
    %6682 = vmatprep.subr.bf16.mxu0 %v5642
    %6683 = vmatpush1.bf16.msra.mxu0 %v5641
    %6684 = vmatprep.subr.bf16.mxu0 %v5658
    %6685 = vmatpush1.bf16.msra.mxu0 %v5657
    %6686 = vmatprep.subr.bf16.mxu0 %v5674
    %6687 = vmatpush1.bf16.msra.mxu0 %v5673
    %6688 = vmatprep.subr.bf16.mxu0 %v5690
    %6689 = vmatpush1.bf16.msra.mxu0 %v5689
    %6690 = vmatprep.mubr.bf16.mxu0 0
    %6691 = vmatmul.mubr.bf16.gmra.mrb[0].mxu0 0
    %v6692 = vpop.f32.mrb[0].mxu0
    %v6693 = vadd.f32 %v6652, %v6692
    %v6694 = vpop.f32.mrb[0].mxu0
    %v6695 = vadd.f32 %v6654, %v6694
    %v6696 = vpop.f32.mrb[0].mxu0
    %v6697 = vpop.f32.mrb[0].mxu0
    %6698 = vdwg.mxu0
    %6699 = vmatprep.subr.bf16.mxu0 %v5196
    %6700 = vmatpush1.bf16.msra.mxu0 %v5195
    %6701 = vmatprep.subr.bf16.mxu0 %v5212
    %6702 = vmatpush1.bf16.msra.mxu0 %v5211
    %6703 = vmatprep.subr.bf16.mxu0 %v5228
    %6704 = vmatpush1.bf16.msra.mxu0 %v5227
    %6705 = vmatprep.subr.bf16.mxu0 %v5244
    %6706 = vmatpush1.bf16.msra.mxu0 %v5243
    %6707 = vmatprep.subr.bf16.mxu0 %v5260
    %6708 = vmatpush1.bf16.msra.mxu0 %v5259
    %6709 = vmatprep.subr.bf16.mxu0 %v5276
    %6710 = vmatpush1.bf16.msra.mxu0 %v5275
    %6711 = vmatprep.subr.bf16.mxu0 %v5292
    %6712 = vmatpush1.bf16.msra.mxu0 %v5291
    %6713 = vmatprep.subr.bf16.mxu0 %v5308
    %6714 = vmatpush1.bf16.msra.mxu0 %v5307
    %6715 = vmatprep.subr.bf16.mxu0 %v5324
    %6716 = vmatpush1.bf16.msra.mxu0 %v5323
    %6717 = vmatprep.subr.bf16.mxu0 %v5340
    %6718 = vmatpush1.bf16.msra.mxu0 %v5339
    %6719 = vmatprep.subr.bf16.mxu0 %v5356
    %6720 = vmatpush1.bf16.msra.mxu0 %v5355
    %6721 = vmatprep.subr.bf16.mxu0 %v5372
    %6722 = vmatpush1.bf16.msra.mxu0 %v5371
    %6723 = vmatprep.subr.bf16.mxu0 %v5388
    %6724 = vmatpush1.bf16.msra.mxu0 %v5387
    %6725 = vmatprep.subr.bf16.mxu0 %v5404
    %6726 = vmatpush1.bf16.msra.mxu0 %v5403
    %6727 = vmatprep.subr.bf16.mxu0 %v5420
    %6728 = vmatpush1.bf16.msra.mxu0 %v5419
    %6729 = vmatprep.subr.bf16.mxu0 %v5436
    %6730 = vmatpush1.bf16.msra.mxu0 %v5435
    %6731 = vmatprep.mubr.bf16.mxu0 0
    %6732 = vmatmul.mubr.bf16.gmra.mrb[0].mxu0 0
    %v6733 = vpop.f32.mrb[0].mxu0
    %v6734 = vadd.f32 0.0, %v6733
    %v6735 = vpop.f32.mrb[0].mxu0
    %v6736 = vadd.f32 0.0, %v6735
    %v6737 = vpop.f32.mrb[0].mxu0
    %v6738 = vpop.f32.mrb[0].mxu0
    %6739 = vdwg.mxu0
    %6740 = vmatprep.subr.bf16.mxu0 %v5452
    %6741 = vmatpush1.bf16.msra.mxu0 %v5451
    %6742 = vmatprep.subr.bf16.mxu0 %v5468
    %6743 = vmatpush1.bf16.msra.mxu0 %v5467
    %6744 = vmatprep.subr.bf16.mxu0 %v5484
    %6745 = vmatpush1.bf16.msra.mxu0 %v5483
    %6746 = vmatprep.subr.bf16.mxu0 %v5500
    %6747 = vmatpush1.bf16.msra.mxu0 %v5499
    %6748 = vmatprep.subr.bf16.mxu0 %v5516
    %6749 = vmatpush1.bf16.msra.mxu0 %v5515
    %6750 = vmatprep.subr.bf16.mxu0 %v5532
    %6751 = vmatpush1.bf16.msra.mxu0 %v5531
    %6752 = vmatprep.subr.bf16.mxu0 %v5548
    %6753 = vmatpush1.bf16.msra.mxu0 %v5547
    %6754 = vmatprep.subr.bf16.mxu0 %v5564
    %6755 = vmatpush1.bf16.msra.mxu0 %v5563
    %6756 = vmatprep.subr.bf16.mxu0 %v5580
    %6757 = vmatpush1.bf16.msra.mxu0 %v5579
    %6758 = vmatprep.subr.bf16.mxu0 %v5596
    %6759 = vmatpush1.bf16.msra.mxu0 %v5595
    %6760 = vmatprep.subr.bf16.mxu0 %v5612
    %6761 = vmatpush1.bf16.msra.mxu0 %v5611
    %6762 = vmatprep.subr.bf16.mxu0 %v5628
    %6763 = vmatpush1.bf16.msra.mxu0 %v5627
    %6764 = vmatprep.subr.bf16.mxu0 %v5644
    %6765 = vmatpush1.bf16.msra.mxu0 %v5643
    %6766 = vmatprep.subr.bf16.mxu0 %v5660
    %6767 = vmatpush1.bf16.msra.mxu0 %v5659
    %6768 = vmatprep.subr.bf16.mxu0 %v5676
    %6769 = vmatpush1.bf16.msra.mxu0 %v5675
    %6770 = vmatprep.subr.bf16.mxu0 %v5692
    %6771 = vmatpush1.bf16.msra.mxu0 %v5691
    %6772 = vmatprep.mubr.bf16.mxu0 0
    %6773 = vmatmul.mubr.bf16.gmra.mrb[0].mxu0 0
    %v6774 = vpop.f32.mrb[0].mxu0
    %v6775 = vadd.f32 %v6734, %v6774
    %v6776 = vpop.f32.mrb[0].mxu0
    %v6777 = vadd.f32 %v6736, %v6776
    %v6778 = vpop.f32.mrb[0].mxu0
    %v6779 = vpop.f32.mrb[0].mxu0
    %6780 = vdwg.mxu0
    %6781 = vmatprep.subr.bf16.mxu0 %v5198
    %6782 = vmatpush1.bf16.msra.mxu0 %v5197
    %6783 = vmatprep.subr.bf16.mxu0 %v5214
    %6784 = vmatpush1.bf16.msra.mxu0 %v5213
    %6785 = vmatprep.subr.bf16.mxu0 %v5230
    %6786 = vmatpush1.bf16.msra.mxu0 %v5229
    %6787 = vmatprep.subr.bf16.mxu0 %v5246
    %6788 = vmatpush1.bf16.msra.mxu0 %v5245
    %6789 = vmatprep.subr.bf16.mxu0 %v5262
    %6790 = vmatpush1.bf16.msra.mxu0 %v5261
    %6791 = vmatprep.subr.bf16.mxu0 %v5278
    %6792 = vmatpush1.bf16.msra.mxu0 %v5277
    %6793 = vmatprep.subr.bf16.mxu0 %v5294
    %6794 = vmatpush1.bf16.msra.mxu0 %v5293
    %6795 = vmatprep.subr.bf16.mxu0 %v5310
    %6796 = vmatpush1.bf16.msra.mxu0 %v5309
    %6797 = vmatprep.subr.bf16.mxu0 %v5326
    %6798 = vmatpush1.bf16.msra.mxu0 %v5325
    %6799 = vmatprep.subr.bf16.mxu0 %v5342
    %6800 = vmatpush1.bf16.msra.mxu0 %v5341
    %6801 = vmatprep.subr.bf16.mxu0 %v5358
    %6802 = vmatpush1.bf16.msra.mxu0 %v5357
    %6803 = vmatprep.subr.bf16.mxu0 %v5374
    %6804 = vmatpush1.bf16.msra.mxu0 %v5373
    %6805 = vmatprep.subr.bf16.mxu0 %v5390
    %6806 = vmatpush1.bf16.msra.mxu0 %v5389
    %6807 = vmatprep.subr.bf16.mxu0 %v5406
    %6808 = vmatpush1.bf16.msra.mxu0 %v5405
    %6809 = vmatprep.subr.bf16.mxu0 %v5422
    %6810 = vmatpush1.bf16.msra.mxu0 %v5421
    %6811 = vmatprep.subr.bf16.mxu0 %v5438
    %6812 = vmatpush1.bf16.msra.mxu0 %v5437
    %6813 = vmatprep.mubr.bf16.mxu0 0
    %6814 = vmatmul.mubr.bf16.gmra.mrb[0].mxu0 0
    %v6815 = vpop.f32.mrb[0].mxu0
    %v6816 = vadd.f32 0.0, %v6815
    %v6817 = vpop.f32.mrb[0].mxu0
    %v6818 = vadd.f32 0.0, %v6817
    %v6819 = vpop.f32.mrb[0].mxu0
    %v6820 = vpop.f32.mrb[0].mxu0
    %6821 = vdwg.mxu0
    %6822 = vmatprep.subr.bf16.mxu0 %v5454
    %6823 = vmatpush1.bf16.msra.mxu0 %v5453
    %6824 = vmatprep.subr.bf16.mxu0 %v5470
    %6825 = vmatpush1.bf16.msra.mxu0 %v5469
    %6826 = vmatprep.subr.bf16.mxu0 %v5486
    %6827 = vmatpush1.bf16.msra.mxu0 %v5485
    %6828 = vmatprep.subr.bf16.mxu0 %v5502
    %6829 = vmatpush1.bf16.msra.mxu0 %v5501
    %6830 = vmatprep.subr.bf16.mxu0 %v5518
    %6831 = vmatpush1.bf16.msra.mxu0 %v5517
    %6832 = vmatprep.subr.bf16.mxu0 %v5534
    %6833 = vmatpush1.bf16.msra.mxu0 %v5533
    %6834 = vmatprep.subr.bf16.mxu0 %v5550
    %6835 = vmatpush1.bf16.msra.mxu0 %v5549
    %6836 = vmatprep.subr.bf16.mxu0 %v5566
    %6837 = vmatpush1.bf16.msra.mxu0 %v5565
    %6838 = vmatprep.subr.bf16.mxu0 %v5582
    %6839 = vmatpush1.bf16.msra.mxu0 %v5581
    %6840 = vmatprep.subr.bf16.mxu0 %v5598
    %6841 = vmatpush1.bf16.msra.mxu0 %v5597
    %6842 = vmatprep.subr.bf16.mxu0 %v5614
    %6843 = vmatpush1.bf16.msra.mxu0 %v5613
    %6844 = vmatprep.subr.bf16.mxu0 %v5630
    %6845 = vmatpush1.bf16.msra.mxu0 %v5629
    %6846 = vmatprep.subr.bf16.mxu0 %v5646
    %6847 = vmatpush1.bf16.msra.mxu0 %v5645
    %6848 = vmatprep.subr.bf16.mxu0 %v5662
    %6849 = vmatpush1.bf16.msra.mxu0 %v5661
    %6850 = vmatprep.subr.bf16.mxu0 %v5678
    %6851 = vmatpush1.bf16.msra.mxu0 %v5677
    %6852 = vmatprep.subr.bf16.mxu0 %v5694
    %6853 = vmatpush1.bf16.msra.mxu0 %v5693
    %6854 = vmatprep.mubr.bf16.mxu0 0
    %6855 = vmatmul.mubr.bf16.gmra.mrb[0].mxu0 0
    %v6856 = vpop.f32.mrb[0].mxu0
    %v6857 = vadd.f32 %v6816, %v6856
    %v6858 = vpop.f32.mrb[0].mxu0
    %v6859 = vadd.f32 %v6818, %v6858
    %v6860 = vpop.f32.mrb[0].mxu0
    %v6861 = vpop.f32.mrb[0].mxu0
    %6862 = vdwg.mxu0
    %v6879 = vcombine.low %v6283, %v6285
    %v6880 = vcombine.low %v6365, %v6367
    %v6882 = vunpack.c.l.s4 1983009808
    %v6883 = vunpack.c.0.s8 %v6882
    %v6884 = vlaneseq
    %v6885 = vshrl.u32 %v6884, 7
    %v6886 = vsub.s32 %v6883, %v6885
    %v6887 = vrot.slane %v6879, %v6886
    %v6889 = vunpack.c.l.s4 1983009808
    %v6890 = vunpack.c.0.s8 %v6889
    %v6891 = vlaneseq
    %v6892 = vshrl.u32 %v6891, 7
    %v6893 = vsub.s32 %v6890, %v6892
    %v6894 = vrot.slane %v6880, %v6893
    %v6895 = vcombine.low %v6887, %v6894
    %v6896 = vcombine.low %v6447, %v6449
    %v6897 = vcombine.low %v6529, %v6531
    %v6899 = vunpack.c.l.s4 1983009808
    %v6900 = vunpack.c.0.s8 %v6899
    %v6901 = vlaneseq
    %v6902 = vshrl.u32 %v6901, 7
    %v6903 = vsub.s32 %v6900, %v6902
    %v6904 = vrot.slane %v6896, %v6903
    %v6906 = vunpack.c.l.s4 1983009808
    %v6907 = vunpack.c.0.s8 %v6906
    %v6908 = vlaneseq
    %v6909 = vshrl.u32 %v6908, 7
    %v6910 = vsub.s32 %v6907, %v6909
    %v6911 = vrot.slane %v6897, %v6910
    %v6912 = vcombine.low %v6904, %v6911
    %v6913 = vcombine.low %v6611, %v6613
    %v6914 = vcombine.low %v6693, %v6695
    %v6916 = vunpack.c.l.s4 1983009808
    %v6917 = vunpack.c.0.s8 %v6916
    %v6918 = vlaneseq
    %v6919 = vshrl.u32 %v6918, 7
    %v6920 = vsub.s32 %v6917, %v6919
    %v6921 = vrot.slane %v6913, %v6920
    %v6923 = vunpack.c.l.s4 1983009808
    %v6924 = vunpack.c.0.s8 %v6923
    %v6925 = vlaneseq
    %v6926 = vshrl.u32 %v6925, 7
    %v6927 = vsub.s32 %v6924, %v6926
    %v6928 = vrot.slane %v6914, %v6927
    %v6929 = vcombine.low %v6921, %v6928
    %v6930 = vcombine.low %v6775, %v6777
    %v6931 = vcombine.low %v6857, %v6859
    %v6933 = vunpack.c.l.s4 1983009808
    %v6934 = vunpack.c.0.s8 %v6933
    %v6935 = vlaneseq
    %v6936 = vshrl.u32 %v6935, 7
    %v6937 = vsub.s32 %v6934, %v6936
    %v6938 = vrot.slane %v6930, %v6937
    %v6940 = vunpack.c.l.s4 1983009808
    %v6941 = vunpack.c.0.s8 %v6940
    %v6942 = vlaneseq
    %v6943 = vshrl.u32 %v6942, 7
    %v6944 = vsub.s32 %v6941, %v6943
    %v6945 = vrot.slane %v6931, %v6944
    %v6946 = vcombine.low %v6938, %v6945
    %v6951 = vadd.f32 %v3007, %v6895
    %v6952 = vadd.f32 %v3043, %v6912
    %v6953 = vadd.f32 %v3079, %v6929
    %v6954 = vadd.f32 %v3115, %v6946
    %v6955 = vxor.u32 %v6951, 2147483648
    %v6956 = vmul.f32 %v6955, 1.442695
    %v6957 = vpow.pop %v6956
    %v6958 = vadd.f32 %v6957, 1.0
    %v6959 = vrcp.pop %v6958
    %v6960 = vmul.f32 1.0, %v6959
    %v6961 = vxor.u32 %v6952, 2147483648
    %v6962 = vmul.f32 %v6961, 1.442695
    %v6963 = vpow.pop %v6962
    %v6964 = vadd.f32 %v6963, 1.0
    %v6965 = vrcp.pop %v6964
    %v6966 = vmul.f32 1.0, %v6965
    %v6967 = vtanh.pop %v6953
    %v6968 = vxor.u32 %v6954, 2147483648
    %v6969 = vmul.f32 %v6968, 1.442695
    %v6970 = vpow.pop %v6969
    %v6971 = vadd.f32 %v6970, 1.0
    %v6972 = vrcp.pop %v6971
    %v6973 = vmul.f32 1.0, %v6972
    %v6974 = vmul.f32 %v6966, 0.0
    %v6975 = vmul.f32 %v6960, %v6967
    %v6976 = vadd.f32 %v6974, %v6975
    %v6977 = vtanh.pop %v6976
    %v6978 = vmul.f32 %v6973, %v6977
    %v6980 = vcombine.high %v6978, %v6978
    %v6982 = vunpack.c.l.s4 1983009808
    %v6983 = vunpack.c.0.s8 %v6982
    %v6984 = vlaneseq
    %v6985 = vshrl.u32 %v6984, 7
    %v6986 = vsub.s32 %v6983, %v6985
    %v6987 = vrot.slane %v6978, %v6986
    %v6989 = vunpack.c.l.s4 1983009808
    %v6990 = vunpack.c.0.s8 %v6989
    %v6991 = vlaneseq
    %v6992 = vshrl.u32 %v6991, 7
    %v6993 = vsub.s32 %v6990, %v6992
    %v6994 = vrot.slane %v6980, %v6993
    %v6995 = vcombine.high %v6987, %v6987
    %v6996 = vcombine.high %v6994, %v6994
    %v7001 = vpack.c.bf16 %v6987, %v6987
    %v7002 = vpack.c.bf16 %v6995, %v6995
    %v7003 = vpack.c.bf16 %v6994, %v6994
    %v7004 = vpack.c.bf16 %v6996, %v6996
    %7005 = vmatprep.subr.bf16.mxu0 %v5184
    %7006 = vmatpush1.bf16.msra.mxu0 %v5183
    %7007 = vmatprep.subr.bf16.mxu0 %v5200
    %7008 = vmatpush1.bf16.msra.mxu0 %v5199
    %7009 = vmatprep.subr.bf16.mxu0 %v5216
    %7010 = vmatpush1.bf16.msra.mxu0 %v5215
    %7011 = vmatprep.subr.bf16.mxu0 %v5232
    %7012 = vmatpush1.bf16.msra.mxu0 %v5231
    %7013 = vmatprep.subr.bf16.mxu0 %v5248
    %7014 = vmatpush1.bf16.msra.mxu0 %v5247
    %7015 = vmatprep.subr.bf16.mxu0 %v5264
    %7016 = vmatpush1.bf16.msra.mxu0 %v5263
    %7017 = vmatprep.subr.bf16.mxu0 %v5280
    %7018 = vmatpush1.bf16.msra.mxu0 %v5279
    %7019 = vmatprep.subr.bf16.mxu0 %v5296
    %7020 = vmatpush1.bf16.msra.mxu0 %v5295
    %7021 = vmatprep.subr.bf16.mxu0 %v5312
    %7022 = vmatpush1.bf16.msra.mxu0 %v5311
    %7023 = vmatprep.subr.bf16.mxu0 %v5328
    %7024 = vmatpush1.bf16.msra.mxu0 %v5327
    %7025 = vmatprep.subr.bf16.mxu0 %v5344
    %7026 = vmatpush1.bf16.msra.mxu0 %v5343
    %7027 = vmatprep.subr.bf16.mxu0 %v5360
    %7028 = vmatpush1.bf16.msra.mxu0 %v5359
    %7029 = vmatprep.subr.bf16.mxu0 %v5376
    %7030 = vmatpush1.bf16.msra.mxu0 %v5375
    %7031 = vmatprep.subr.bf16.mxu0 %v5392
    %7032 = vmatpush1.bf16.msra.mxu0 %v5391
    %7033 = vmatprep.subr.bf16.mxu0 %v5408
    %7034 = vmatpush1.bf16.msra.mxu0 %v5407
    %7035 = vmatprep.subr.bf16.mxu0 %v5424
    %7036 = vmatpush1.bf16.msra.mxu0 %v5423
    %7037 = vmatprep.mubr.bf16.mxu0 %v7002
    %7038 = vmatmul.mubr.bf16.gmra.mrb[0].mxu0 %v7001
    %v7039 = vpop.f32.mrb[0].mxu0
    %v7040 = vadd.f32 0.0, %v7039
    %v7041 = vpop.f32.mrb[0].mxu0
    %v7042 = vadd.f32 0.0, %v7041
    %v7043 = vpop.f32.mrb[0].mxu0
    %v7044 = vpop.f32.mrb[0].mxu0
    %7045 = vdwg.mxu0
    %7046 = vmatprep.subr.bf16.mxu0 %v5440
    %7047 = vmatpush1.bf16.msra.mxu0 %v5439
    %7048 = vmatprep.subr.bf16.mxu0 %v5456
    %7049 = vmatpush1.bf16.msra.mxu0 %v5455
    %7050 = vmatprep.subr.bf16.mxu0 %v5472
    %7051 = vmatpush1.bf16.msra.mxu0 %v5471
    %7052 = vmatprep.subr.bf16.mxu0 %v5488
    %7053 = vmatpush1.bf16.msra.mxu0 %v5487
    %7054 = vmatprep.subr.bf16.mxu0 %v5504
    %7055 = vmatpush1.bf16.msra.mxu0 %v5503
    %7056 = vmatprep.subr.bf16.mxu0 %v5520
    %7057 = vmatpush1.bf16.msra.mxu0 %v5519
    %7058 = vmatprep.subr.bf16.mxu0 %v5536
    %7059 = vmatpush1.bf16.msra.mxu0 %v5535
    %7060 = vmatprep.subr.bf16.mxu0 %v5552
    %7061 = vmatpush1.bf16.msra.mxu0 %v5551
    %7062 = vmatprep.subr.bf16.mxu0 %v5568
    %7063 = vmatpush1.bf16.msra.mxu0 %v5567
    %7064 = vmatprep.subr.bf16.mxu0 %v5584
    %7065 = vmatpush1.bf16.msra.mxu0 %v5583
    %7066 = vmatprep.subr.bf16.mxu0 %v5600
    %7067 = vmatpush1.bf16.msra.mxu0 %v5599
    %7068 = vmatprep.subr.bf16.mxu0 %v5616
    %7069 = vmatpush1.bf16.msra.mxu0 %v5615
    %7070 = vmatprep.subr.bf16.mxu0 %v5632
    %7071 = vmatpush1.bf16.msra.mxu0 %v5631
    %7072 = vmatprep.subr.bf16.mxu0 %v5648
    %7073 = vmatpush1.bf16.msra.mxu0 %v5647
    %7074 = vmatprep.subr.bf16.mxu0 %v5664
    %7075 = vmatpush1.bf16.msra.mxu0 %v5663
    %7076 = vmatprep.subr.bf16.mxu0 %v5680
    %7077 = vmatpush1.bf16.msra.mxu0 %v5679
    %7078 = vmatprep.mubr.bf16.mxu0 %v7004
    %7079 = vmatmul.mubr.bf16.gmra.mrb[0].mxu0 %v7003
    %v7080 = vpop.f32.mrb[0].mxu0
    %v7081 = vadd.f32 %v7040, %v7080
    %v7082 = vpop.f32.mrb[0].mxu0
    %v7083 = vadd.f32 %v7042, %v7082
    %v7084 = vpop.f32.mrb[0].mxu0
    %v7085 = vpop.f32.mrb[0].mxu0
    %7086 = vdwg.mxu0
    %7087 = vmatprep.subr.bf16.mxu0 %v5186
    %7088 = vmatpush1.bf16.msra.mxu0 %v5185
    %7089 = vmatprep.subr.bf16.mxu0 %v5202
    %7090 = vmatpush1.bf16.msra.mxu0 %v5201
    %7091 = vmatprep.subr.bf16.mxu0 %v5218
    %7092 = vmatpush1.bf16.msra.mxu0 %v5217
    %7093 = vmatprep.subr.bf16.mxu0 %v5234
    %7094 = vmatpush1.bf16.msra.mxu0 %v5233
    %7095 = vmatprep.subr.bf16.mxu0 %v5250
    %7096 = vmatpush1.bf16.msra.mxu0 %v5249
    %7097 = vmatprep.subr.bf16.mxu0 %v5266
    %7098 = vmatpush1.bf16.msra.mxu0 %v5265
    %7099 = vmatprep.subr.bf16.mxu0 %v5282
    %7100 = vmatpush1.bf16.msra.mxu0 %v5281
    %7101 = vmatprep.subr.bf16.mxu0 %v5298
    %7102 = vmatpush1.bf16.msra.mxu0 %v5297
    %7103 = vmatprep.subr.bf16.mxu0 %v5314
    %7104 = vmatpush1.bf16.msra.mxu0 %v5313
    %7105 = vmatprep.subr.bf16.mxu0 %v5330
    %7106 = vmatpush1.bf16.msra.mxu0 %v5329
    %7107 = vmatprep.subr.bf16.mxu0 %v5346
    %7108 = vmatpush1.bf16.msra.mxu0 %v5345
    %7109 = vmatprep.subr.bf16.mxu0 %v5362
    %7110 = vmatpush1.bf16.msra.mxu0 %v5361
    %7111 = vmatprep.subr.bf16.mxu0 %v5378
    %7112 = vmatpush1.bf16.msra.mxu0 %v5377
    %7113 = vmatprep.subr.bf16.mxu0 %v5394
    %7114 = vmatpush1.bf16.msra.mxu0 %v5393
    %7115 = vmatprep.subr.bf16.mxu0 %v5410
    %7116 = vmatpush1.bf16.msra.mxu0 %v5409
    %7117 = vmatprep.subr.bf16.mxu0 %v5426
    %7118 = vmatpush1.bf16.msra.mxu0 %v5425
    %7119 = vmatprep.mubr.bf16.mxu0 %v7002
    %7120 = vmatmul.mubr.bf16.gmra.mrb[0].mxu0 %v7001
    %v7121 = vpop.f32.mrb[0].mxu0
    %v7122 = vadd.f32 0.0, %v7121
    %v7123 = vpop.f32.mrb[0].mxu0
    %v7124 = vadd.f32 0.0, %v7123
    %v7125 = vpop.f32.mrb[0].mxu0
    %v7126 = vpop.f32.mrb[0].mxu0
    %7127 = vdwg.mxu0
    %7128 = vmatprep.subr.bf16.mxu0 %v5442
    %7129 = vmatpush1.bf16.msra.mxu0 %v5441
    %7130 = vmatprep.subr.bf16.mxu0 %v5458
    %7131 = vmatpush1.bf16.msra.mxu0 %v5457
    %7132 = vmatprep.subr.bf16.mxu0 %v5474
    %7133 = vmatpush1.bf16.msra.mxu0 %v5473
    %7134 = vmatprep.subr.bf16.mxu0 %v5490
    %7135 = vmatpush1.bf16.msra.mxu0 %v5489
    %7136 = vmatprep.subr.bf16.mxu0 %v5506
    %7137 = vmatpush1.bf16.msra.mxu0 %v5505
    %7138 = vmatprep.subr.bf16.mxu0 %v5522
    %7139 = vmatpush1.bf16.msra.mxu0 %v5521
    %7140 = vmatprep.subr.bf16.mxu0 %v5538
    %7141 = vmatpush1.bf16.msra.mxu0 %v5537
    %7142 = vmatprep.subr.bf16.mxu0 %v5554
    %7143 = vmatpush1.bf16.msra.mxu0 %v5553
    %7144 = vmatprep.subr.bf16.mxu0 %v5570
    %7145 = vmatpush1.bf16.msra.mxu0 %v5569
    %7146 = vmatprep.subr.bf16.mxu0 %v5586
    %7147 = vmatpush1.bf16.msra.mxu0 %v5585
    %7148 = vmatprep.subr.bf16.mxu0 %v5602
    %7149 = vmatpush1.bf16.msra.mxu0 %v5601
    %7150 = vmatprep.subr.bf16.mxu0 %v5618
    %7151 = vmatpush1.bf16.msra.mxu0 %v5617
    %7152 = vmatprep.subr.bf16.mxu0 %v5634
    %7153 = vmatpush1.bf16.msra.mxu0 %v5633
    %7154 = vmatprep.subr.bf16.mxu0 %v5650
    %7155 = vmatpush1.bf16.msra.mxu0 %v5649
    %7156 = vmatprep.subr.bf16.mxu0 %v5666
    %7157 = vmatpush1.bf16.msra.mxu0 %v5665
    %7158 = vmatprep.subr.bf16.mxu0 %v5682
    %7159 = vmatpush1.bf16.msra.mxu0 %v5681
    %7160 = vmatprep.mubr.bf16.mxu0 %v7004
    %7161 = vmatmul.mubr.bf16.gmra.mrb[0].mxu0 %v7003
    %v7162 = vpop.f32.mrb[0].mxu0
    %v7163 = vadd.f32 %v7122, %v7162
    %v7164 = vpop.f32.mrb[0].mxu0
    %v7165 = vadd.f32 %v7124, %v7164
    %v7166 = vpop.f32.mrb[0].mxu0
    %v7167 = vpop.f32.mrb[0].mxu0
    %7168 = vdwg.mxu0
    %7169 = vmatprep.subr.bf16.mxu0 %v5188
    %7170 = vmatpush1.bf16.msra.mxu0 %v5187
    %7171 = vmatprep.subr.bf16.mxu0 %v5204
    %7172 = vmatpush1.bf16.msra.mxu0 %v5203
    %7173 = vmatprep.subr.bf16.mxu0 %v5220
    %7174 = vmatpush1.bf16.msra.mxu0 %v5219
    %7175 = vmatprep.subr.bf16.mxu0 %v5236
    %7176 = vmatpush1.bf16.msra.mxu0 %v5235
    %7177 = vmatprep.subr.bf16.mxu0 %v5252
    %7178 = vmatpush1.bf16.msra.mxu0 %v5251
    %7179 = vmatprep.subr.bf16.mxu0 %v5268
    %7180 = vmatpush1.bf16.msra.mxu0 %v5267
    %7181 = vmatprep.subr.bf16.mxu0 %v5284
    %7182 = vmatpush1.bf16.msra.mxu0 %v5283
    %7183 = vmatprep.subr.bf16.mxu0 %v5300
    %7184 = vmatpush1.bf16.msra.mxu0 %v5299
    %7185 = vmatprep.subr.bf16.mxu0 %v5316
    %7186 = vmatpush1.bf16.msra.mxu0 %v5315
    %7187 = vmatprep.subr.bf16.mxu0 %v5332
    %7188 = vmatpush1.bf16.msra.mxu0 %v5331
    %7189 = vmatprep.subr.bf16.mxu0 %v5348
    %7190 = vmatpush1.bf16.msra.mxu0 %v5347
    %7191 = vmatprep.subr.bf16.mxu0 %v5364
    %7192 = vmatpush1.bf16.msra.mxu0 %v5363
    %7193 = vmatprep.subr.bf16.mxu0 %v5380
    %7194 = vmatpush1.bf16.msra.mxu0 %v5379
    %7195 = vmatprep.subr.bf16.mxu0 %v5396
    %7196 = vmatpush1.bf16.msra.mxu0 %v5395
    %7197 = vmatprep.subr.bf16.mxu0 %v5412
    %7198 = vmatpush1.bf16.msra.mxu0 %v5411
    %7199 = vmatprep.subr.bf16.mxu0 %v5428
    %7200 = vmatpush1.bf16.msra.mxu0 %v5427
    %7201 = vmatprep.mubr.bf16.mxu0 %v7002
    %7202 = vmatmul.mubr.bf16.gmra.mrb[0].mxu0 %v7001
    %v7203 = vpop.f32.mrb[0].mxu0
    %v7204 = vadd.f32 0.0, %v7203
    %v7205 = vpop.f32.mrb[0].mxu0
    %v7206 = vadd.f32 0.0, %v7205
    %v7207 = vpop.f32.mrb[0].mxu0
    %v7208 = vpop.f32.mrb[0].mxu0
    %7209 = vdwg.mxu0
    %7210 = vmatprep.subr.bf16.mxu0 %v5444
    %7211 = vmatpush1.bf16.msra.mxu0 %v5443
    %7212 = vmatprep.subr.bf16.mxu0 %v5460
    %7213 = vmatpush1.bf16.msra.mxu0 %v5459
    %7214 = vmatprep.subr.bf16.mxu0 %v5476
    %7215 = vmatpush1.bf16.msra.mxu0 %v5475
    %7216 = vmatprep.subr.bf16.mxu0 %v5492
    %7217 = vmatpush1.bf16.msra.mxu0 %v5491
    %7218 = vmatprep.subr.bf16.mxu0 %v5508
    %7219 = vmatpush1.bf16.msra.mxu0 %v5507
    %7220 = vmatprep.subr.bf16.mxu0 %v5524
    %7221 = vmatpush1.bf16.msra.mxu0 %v5523
    %7222 = vmatprep.subr.bf16.mxu0 %v5540
    %7223 = vmatpush1.bf16.msra.mxu0 %v5539
    %7224 = vmatprep.subr.bf16.mxu0 %v5556
    %7225 = vmatpush1.bf16.msra.mxu0 %v5555
    %7226 = vmatprep.subr.bf16.mxu0 %v5572
    %7227 = vmatpush1.bf16.msra.mxu0 %v5571
    %7228 = vmatprep.subr.bf16.mxu0 %v5588
    %7229 = vmatpush1.bf16.msra.mxu0 %v5587
    %7230 = vmatprep.subr.bf16.mxu0 %v5604
    %7231 = vmatpush1.bf16.msra.mxu0 %v5603
    %7232 = vmatprep.subr.bf16.mxu0 %v5620
    %7233 = vmatpush1.bf16.msra.mxu0 %v5619
    %7234 = vmatprep.subr.bf16.mxu0 %v5636
    %7235 = vmatpush1.bf16.msra.mxu0 %v5635
    %7236 = vmatprep.subr.bf16.mxu0 %v5652
    %7237 = vmatpush1.bf16.msra.mxu0 %v5651
    %7238 = vmatprep.subr.bf16.mxu0 %v5668
    %7239 = vmatpush1.bf16.msra.mxu0 %v5667
    %7240 = vmatprep.subr.bf16.mxu0 %v5684
    %7241 = vmatpush1.bf16.msra.mxu0 %v5683
    %7242 = vmatprep.mubr.bf16.mxu0 %v7004
    %7243 = vmatmul.mubr.bf16.gmra.mrb[0].mxu0 %v7003
    %v7244 = vpop.f32.mrb[0].mxu0
    %v7245 = vadd.f32 %v7204, %v7244
    %v7246 = vpop.f32.mrb[0].mxu0
    %v7247 = vadd.f32 %v7206, %v7246
    %v7248 = vpop.f32.mrb[0].mxu0
    %v7249 = vpop.f32.mrb[0].mxu0
    %7250 = vdwg.mxu0
    %7251 = vmatprep.subr.bf16.mxu0 %v5190
    %7252 = vmatpush1.bf16.msra.mxu0 %v5189
    %7253 = vmatprep.subr.bf16.mxu0 %v5206
    %7254 = vmatpush1.bf16.msra.mxu0 %v5205
    %7255 = vmatprep.subr.bf16.mxu0 %v5222
    %7256 = vmatpush1.bf16.msra.mxu0 %v5221
    %7257 = vmatprep.subr.bf16.mxu0 %v5238
    %7258 = vmatpush1.bf16.msra.mxu0 %v5237
    %7259 = vmatprep.subr.bf16.mxu0 %v5254
    %7260 = vmatpush1.bf16.msra.mxu0 %v5253
    %7261 = vmatprep.subr.bf16.mxu0 %v5270
    %7262 = vmatpush1.bf16.msra.mxu0 %v5269
    %7263 = vmatprep.subr.bf16.mxu0 %v5286
    %7264 = vmatpush1.bf16.msra.mxu0 %v5285
    %7265 = vmatprep.subr.bf16.mxu0 %v5302
    %7266 = vmatpush1.bf16.msra.mxu0 %v5301
    %7267 = vmatprep.subr.bf16.mxu0 %v5318
    %7268 = vmatpush1.bf16.msra.mxu0 %v5317
    %7269 = vmatprep.subr.bf16.mxu0 %v5334
    %7270 = vmatpush1.bf16.msra.mxu0 %v5333
    %7271 = vmatprep.subr.bf16.mxu0 %v5350
    %7272 = vmatpush1.bf16.msra.mxu0 %v5349
    %7273 = vmatprep.subr.bf16.mxu0 %v5366
    %7274 = vmatpush1.bf16.msra.mxu0 %v5365
    %7275 = vmatprep.subr.bf16.mxu0 %v5382
    %7276 = vmatpush1.bf16.msra.mxu0 %v5381
    %7277 = vmatprep.subr.bf16.mxu0 %v5398
    %7278 = vmatpush1.bf16.msra.mxu0 %v5397
    %7279 = vmatprep.subr.bf16.mxu0 %v5414
    %7280 = vmatpush1.bf16.msra.mxu0 %v5413
    %7281 = vmatprep.subr.bf16.mxu0 %v5430
    %7282 = vmatpush1.bf16.msra.mxu0 %v5429
    %7283 = vmatprep.mubr.bf16.mxu0 %v7002
    %7284 = vmatmul.mubr.bf16.gmra.mrb[0].mxu0 %v7001
    %v7285 = vpop.f32.mrb[0].mxu0
    %v7286 = vadd.f32 0.0, %v7285
    %v7287 = vpop.f32.mrb[0].mxu0
    %v7288 = vadd.f32 0.0, %v7287
    %v7289 = vpop.f32.mrb[0].mxu0
    %v7290 = vpop.f32.mrb[0].mxu0
    %7291 = vdwg.mxu0
    %7292 = vmatprep.subr.bf16.mxu0 %v5446
    %7293 = vmatpush1.bf16.msra.mxu0 %v5445
    %7294 = vmatprep.subr.bf16.mxu0 %v5462
    %7295 = vmatpush1.bf16.msra.mxu0 %v5461
    %7296 = vmatprep.subr.bf16.mxu0 %v5478
    %7297 = vmatpush1.bf16.msra.mxu0 %v5477
    %7298 = vmatprep.subr.bf16.mxu0 %v5494
    %7299 = vmatpush1.bf16.msra.mxu0 %v5493
    %7300 = vmatprep.subr.bf16.mxu0 %v5510
    %7301 = vmatpush1.bf16.msra.mxu0 %v5509
    %7302 = vmatprep.subr.bf16.mxu0 %v5526
    %7303 = vmatpush1.bf16.msra.mxu0 %v5525
    %7304 = vmatprep.subr.bf16.mxu0 %v5542
    %7305 = vmatpush1.bf16.msra.mxu0 %v5541
    %7306 = vmatprep.subr.bf16.mxu0 %v5558
    %7307 = vmatpush1.bf16.msra.mxu0 %v5557
    %7308 = vmatprep.subr.bf16.mxu0 %v5574
    %7309 = vmatpush1.bf16.msra.mxu0 %v5573
    %7310 = vmatprep.subr.bf16.mxu0 %v5590
    %7311 = vmatpush1.bf16.msra.mxu0 %v5589
    %7312 = vmatprep.subr.bf16.mxu0 %v5606
    %7313 = vmatpush1.bf16.msra.mxu0 %v5605
    %7314 = vmatprep.subr.bf16.mxu0 %v5622
    %7315 = vmatpush1.bf16.msra.mxu0 %v5621
    %7316 = vmatprep.subr.bf16.mxu0 %v5638
    %7317 = vmatpush1.bf16.msra.mxu0 %v5637
    %7318 = vmatprep.subr.bf16.mxu0 %v5654
    %7319 = vmatpush1.bf16.msra.mxu0 %v5653
    %7320 = vmatprep.subr.bf16.mxu0 %v5670
    %7321 = vmatpush1.bf16.msra.mxu0 %v5669
    %7322 = vmatprep.subr.bf16.mxu0 %v5686
    %7323 = vmatpush1.bf16.msra.mxu0 %v5685
    %7324 = vmatprep.mubr.bf16.mxu0 %v7004
    %7325 = vmatmul.mubr.bf16.gmra.mrb[0].mxu0 %v7003
    %v7326 = vpop.f32.mrb[0].mxu0
    %v7327 = vadd.f32 %v7286, %v7326
    %v7328 = vpop.f32.mrb[0].mxu0
    %v7329 = vadd.f32 %v7288, %v7328
    %v7330 = vpop.f32.mrb[0].mxu0
    %v7331 = vpop.f32.mrb[0].mxu0
    %7332 = vdwg.mxu0
    %7333 = vmatprep.subr.bf16.mxu0 %v5192
    %7334 = vmatpush1.bf16.msra.mxu0 %v5191
    %7335 = vmatprep.subr.bf16.mxu0 %v5208
    %7336 = vmatpush1.bf16.msra.mxu0 %v5207
    %7337 = vmatprep.subr.bf16.mxu0 %v5224
    %7338 = vmatpush1.bf16.msra.mxu0 %v5223
    %7339 = vmatprep.subr.bf16.mxu0 %v5240
    %7340 = vmatpush1.bf16.msra.mxu0 %v5239
    %7341 = vmatprep.subr.bf16.mxu0 %v5256
    %7342 = vmatpush1.bf16.msra.mxu0 %v5255
    %7343 = vmatprep.subr.bf16.mxu0 %v5272
    %7344 = vmatpush1.bf16.msra.mxu0 %v5271
    %7345 = vmatprep.subr.bf16.mxu0 %v5288
    %7346 = vmatpush1.bf16.msra.mxu0 %v5287
    %7347 = vmatprep.subr.bf16.mxu0 %v5304
    %7348 = vmatpush1.bf16.msra.mxu0 %v5303
    %7349 = vmatprep.subr.bf16.mxu0 %v5320
    %7350 = vmatpush1.bf16.msra.mxu0 %v5319
    %7351 = vmatprep.subr.bf16.mxu0 %v5336
    %7352 = vmatpush1.bf16.msra.mxu0 %v5335
    %7353 = vmatprep.subr.bf16.mxu0 %v5352
    %7354 = vmatpush1.bf16.msra.mxu0 %v5351
    %7355 = vmatprep.subr.bf16.mxu0 %v5368
    %7356 = vmatpush1.bf16.msra.mxu0 %v5367
    %7357 = vmatprep.subr.bf16.mxu0 %v5384
    %7358 = vmatpush1.bf16.msra.mxu0 %v5383
    %7359 = vmatprep.subr.bf16.mxu0 %v5400
    %7360 = vmatpush1.bf16.msra.mxu0 %v5399
    %7361 = vmatprep.subr.bf16.mxu0 %v5416
    %7362 = vmatpush1.bf16.msra.mxu0 %v5415
    %7363 = vmatprep.subr.bf16.mxu0 %v5432
    %7364 = vmatpush1.bf16.msra.mxu0 %v5431
    %7365 = vmatprep.mubr.bf16.mxu0 %v7002
    %7366 = vmatmul.mubr.bf16.gmra.mrb[0].mxu0 %v7001
    %v7367 = vpop.f32.mrb[0].mxu0
    %v7368 = vadd.f32 0.0, %v7367
    %v7369 = vpop.f32.mrb[0].mxu0
    %v7370 = vadd.f32 0.0, %v7369
    %v7371 = vpop.f32.mrb[0].mxu0
    %v7372 = vpop.f32.mrb[0].mxu0
    %7373 = vdwg.mxu0
    %7374 = vmatprep.subr.bf16.mxu0 %v5448
    %7375 = vmatpush1.bf16.msra.mxu0 %v5447
    %7376 = vmatprep.subr.bf16.mxu0 %v5464
    %7377 = vmatpush1.bf16.msra.mxu0 %v5463
    %7378 = vmatprep.subr.bf16.mxu0 %v5480
    %7379 = vmatpush1.bf16.msra.mxu0 %v5479
    %7380 = vmatprep.subr.bf16.mxu0 %v5496
    %7381 = vmatpush1.bf16.msra.mxu0 %v5495
    %7382 = vmatprep.subr.bf16.mxu0 %v5512
    %7383 = vmatpush1.bf16.msra.mxu0 %v5511
    %7384 = vmatprep.subr.bf16.mxu0 %v5528
    %7385 = vmatpush1.bf16.msra.mxu0 %v5527
    %7386 = vmatprep.subr.bf16.mxu0 %v5544
    %7387 = vmatpush1.bf16.msra.mxu0 %v5543
    %7388 = vmatprep.subr.bf16.mxu0 %v5560
    %7389 = vmatpush1.bf16.msra.mxu0 %v5559
    %7390 = vmatprep.subr.bf16.mxu0 %v5576
    %7391 = vmatpush1.bf16.msra.mxu0 %v5575
    %7392 = vmatprep.subr.bf16.mxu0 %v5592
    %7393 = vmatpush1.bf16.msra.mxu0 %v5591
    %7394 = vmatprep.subr.bf16.mxu0 %v5608
    %7395 = vmatpush1.bf16.msra.mxu0 %v5607
    %7396 = vmatprep.subr.bf16.mxu0 %v5624
    %7397 = vmatpush1.bf16.msra.mxu0 %v5623
    %7398 = vmatprep.subr.bf16.mxu0 %v5640
    %7399 = vmatpush1.bf16.msra.mxu0 %v5639
    %7400 = vmatprep.subr.bf16.mxu0 %v5656
    %7401 = vmatpush1.bf16.msra.mxu0 %v5655
    %7402 = vmatprep.subr.bf16.mxu0 %v5672
    %7403 = vmatpush1.bf16.msra.mxu0 %v5671
    %7404 = vmatprep.subr.bf16.mxu0 %v5688
    %7405 = vmatpush1.bf16.msra.mxu0 %v5687
    %7406 = vmatprep.mubr.bf16.mxu0 %v7004
    %7407 = vmatmul.mubr.bf16.gmra.mrb[0].mxu0 %v7003
    %v7408 = vpop.f32.mrb[0].mxu0
    %v7409 = vadd.f32 %v7368, %v7408
    %v7410 = vpop.f32.mrb[0].mxu0
    %v7411 = vadd.f32 %v7370, %v7410
    %v7412 = vpop.f32.mrb[0].mxu0
    %v7413 = vpop.f32.mrb[0].mxu0
    %7414 = vdwg.mxu0
    %7415 = vmatprep.subr.bf16.mxu0 %v5194
    %7416 = vmatpush1.bf16.msra.mxu0 %v5193
    %7417 = vmatprep.subr.bf16.mxu0 %v5210
    %7418 = vmatpush1.bf16.msra.mxu0 %v5209
    %7419 = vmatprep.subr.bf16.mxu0 %v5226
    %7420 = vmatpush1.bf16.msra.mxu0 %v5225
    %7421 = vmatprep.subr.bf16.mxu0 %v5242
    %7422 = vmatpush1.bf16.msra.mxu0 %v5241
    %7423 = vmatprep.subr.bf16.mxu0 %v5258
    %7424 = vmatpush1.bf16.msra.mxu0 %v5257
    %7425 = vmatprep.subr.bf16.mxu0 %v5274
    %7426 = vmatpush1.bf16.msra.mxu0 %v5273
    %7427 = vmatprep.subr.bf16.mxu0 %v5290
    %7428 = vmatpush1.bf16.msra.mxu0 %v5289
    %7429 = vmatprep.subr.bf16.mxu0 %v5306
    %7430 = vmatpush1.bf16.msra.mxu0 %v5305
    %7431 = vmatprep.subr.bf16.mxu0 %v5322
    %7432 = vmatpush1.bf16.msra.mxu0 %v5321
    %7433 = vmatprep.subr.bf16.mxu0 %v5338
    %7434 = vmatpush1.bf16.msra.mxu0 %v5337
    %7435 = vmatprep.subr.bf16.mxu0 %v5354
    %7436 = vmatpush1.bf16.msra.mxu0 %v5353
    %7437 = vmatprep.subr.bf16.mxu0 %v5370
    %7438 = vmatpush1.bf16.msra.mxu0 %v5369
    %7439 = vmatprep.subr.bf16.mxu0 %v5386
    %7440 = vmatpush1.bf16.msra.mxu0 %v5385
    %7441 = vmatprep.subr.bf16.mxu0 %v5402
    %7442 = vmatpush1.bf16.msra.mxu0 %v5401
    %7443 = vmatprep.subr.bf16.mxu0 %v5418
    %7444 = vmatpush1.bf16.msra.mxu0 %v5417
    %7445 = vmatprep.subr.bf16.mxu0 %v5434
    %7446 = vmatpush1.bf16.msra.mxu0 %v5433
    %7447 = vmatprep.mubr.bf16.mxu0 %v7002
    %7448 = vmatmul.mubr.bf16.gmra.mrb[0].mxu0 %v7001
    %v7449 = vpop.f32.mrb[0].mxu0
    %v7450 = vadd.f32 0.0, %v7449
    %v7451 = vpop.f32.mrb[0].mxu0
    %v7452 = vadd.f32 0.0, %v7451
    %v7453 = vpop.f32.mrb[0].mxu0
    %v7454 = vpop.f32.mrb[0].mxu0
    %7455 = vdwg.mxu0
    %7456 = vmatprep.subr.bf16.mxu0 %v5450
    %7457 = vmatpush1.bf16.msra.mxu0 %v5449
    %7458 = vmatprep.subr.bf16.mxu0 %v5466
    %7459 = vmatpush1.bf16.msra.mxu0 %v5465
    %7460 = vmatprep.subr.bf16.mxu0 %v5482
    %7461 = vmatpush1.bf16.msra.mxu0 %v5481
    %7462 = vmatprep.subr.bf16.mxu0 %v5498
    %7463 = vmatpush1.bf16.msra.mxu0 %v5497
    %7464 = vmatprep.subr.bf16.mxu0 %v5514
    %7465 = vmatpush1.bf16.msra.mxu0 %v5513
    %7466 = vmatprep.subr.bf16.mxu0 %v5530
    %7467 = vmatpush1.bf16.msra.mxu0 %v5529
    %7468 = vmatprep.subr.bf16.mxu0 %v5546
    %7469 = vmatpush1.bf16.msra.mxu0 %v5545
    %7470 = vmatprep.subr.bf16.mxu0 %v5562
    %7471 = vmatpush1.bf16.msra.mxu0 %v5561
    %7472 = vmatprep.subr.bf16.mxu0 %v5578
    %7473 = vmatpush1.bf16.msra.mxu0 %v5577
    %7474 = vmatprep.subr.bf16.mxu0 %v5594
    %7475 = vmatpush1.bf16.msra.mxu0 %v5593
    %7476 = vmatprep.subr.bf16.mxu0 %v5610
    %7477 = vmatpush1.bf16.msra.mxu0 %v5609
    %7478 = vmatprep.subr.bf16.mxu0 %v5626
    %7479 = vmatpush1.bf16.msra.mxu0 %v5625
    %7480 = vmatprep.subr.bf16.mxu0 %v5642
    %7481 = vmatpush1.bf16.msra.mxu0 %v5641
    %7482 = vmatprep.subr.bf16.mxu0 %v5658
    %7483 = vmatpush1.bf16.msra.mxu0 %v5657
    %7484 = vmatprep.subr.bf16.mxu0 %v5674
    %7485 = vmatpush1.bf16.msra.mxu0 %v5673
    %7486 = vmatprep.subr.bf16.mxu0 %v5690
    %7487 = vmatpush1.bf16.msra.mxu0 %v5689
    %7488 = vmatprep.mubr.bf16.mxu0 %v7004
    %7489 = vmatmul.mubr.bf16.gmra.mrb[0].mxu0 %v7003
    %v7490 = vpop.f32.mrb[0].mxu0
    %v7491 = vadd.f32 %v7450, %v7490
    %v7492 = vpop.f32.mrb[0].mxu0
    %v7493 = vadd.f32 %v7452, %v7492
    %v7494 = vpop.f32.mrb[0].mxu0
    %v7495 = vpop.f32.mrb[0].mxu0
    %7496 = vdwg.mxu0
    %7497 = vmatprep.subr.bf16.mxu0 %v5196
    %7498 = vmatpush1.bf16.msra.mxu0 %v5195
    %7499 = vmatprep.subr.bf16.mxu0 %v5212
    %7500 = vmatpush1.bf16.msra.mxu0 %v5211
    %7501 = vmatprep.subr.bf16.mxu0 %v5228
    %7502 = vmatpush1.bf16.msra.mxu0 %v5227
    %7503 = vmatprep.subr.bf16.mxu0 %v5244
    %7504 = vmatpush1.bf16.msra.mxu0 %v5243
    %7505 = vmatprep.subr.bf16.mxu0 %v5260
    %7506 = vmatpush1.bf16.msra.mxu0 %v5259
    %7507 = vmatprep.subr.bf16.mxu0 %v5276
    %7508 = vmatpush1.bf16.msra.mxu0 %v5275
    %7509 = vmatprep.subr.bf16.mxu0 %v5292
    %7510 = vmatpush1.bf16.msra.mxu0 %v5291
    %7511 = vmatprep.subr.bf16.mxu0 %v5308
    %7512 = vmatpush1.bf16.msra.mxu0 %v5307
    %7513 = vmatprep.subr.bf16.mxu0 %v5324
    %7514 = vmatpush1.bf16.msra.mxu0 %v5323
    %7515 = vmatprep.subr.bf16.mxu0 %v5340
    %7516 = vmatpush1.bf16.msra.mxu0 %v5339
    %7517 = vmatprep.subr.bf16.mxu0 %v5356
    %7518 = vmatpush1.bf16.msra.mxu0 %v5355
    %7519 = vmatprep.subr.bf16.mxu0 %v5372
    %7520 = vmatpush1.bf16.msra.mxu0 %v5371
    %7521 = vmatprep.subr.bf16.mxu0 %v5388
    %7522 = vmatpush1.bf16.msra.mxu0 %v5387
    %7523 = vmatprep.subr.bf16.mxu0 %v5404
    %7524 = vmatpush1.bf16.msra.mxu0 %v5403
    %7525 = vmatprep.subr.bf16.mxu0 %v5420
    %7526 = vmatpush1.bf16.msra.mxu0 %v5419
    %7527 = vmatprep.subr.bf16.mxu0 %v5436
    %7528 = vmatpush1.bf16.msra.mxu0 %v5435
    %7529 = vmatprep.mubr.bf16.mxu0 %v7002
    %7530 = vmatmul.mubr.bf16.gmra.mrb[0].mxu0 %v7001
    %v7531 = vpop.f32.mrb[0].mxu0
    %v7532 = vadd.f32 0.0, %v7531
    %v7533 = vpop.f32.mrb[0].mxu0
    %v7534 = vadd.f32 0.0, %v7533
    %v7535 = vpop.f32.mrb[0].mxu0
    %v7536 = vpop.f32.mrb[0].mxu0
    %7537 = vdwg.mxu0
    %7538 = vmatprep.subr.bf16.mxu0 %v5452
    %7539 = vmatpush1.bf16.msra.mxu0 %v5451
    %7540 = vmatprep.subr.bf16.mxu0 %v5468
    %7541 = vmatpush1.bf16.msra.mxu0 %v5467
    %7542 = vmatprep.subr.bf16.mxu0 %v5484
    %7543 = vmatpush1.bf16.msra.mxu0 %v5483
    %7544 = vmatprep.subr.bf16.mxu0 %v5500
    %7545 = vmatpush1.bf16.msra.mxu0 %v5499
    %7546 = vmatprep.subr.bf16.mxu0 %v5516
    %7547 = vmatpush1.bf16.msra.mxu0 %v5515
    %7548 = vmatprep.subr.bf16.mxu0 %v5532
    %7549 = vmatpush1.bf16.msra.mxu0 %v5531
    %7550 = vmatprep.subr.bf16.mxu0 %v5548
    %7551 = vmatpush1.bf16.msra.mxu0 %v5547
    %7552 = vmatprep.subr.bf16.mxu0 %v5564
    %7553 = vmatpush1.bf16.msra.mxu0 %v5563
    %7554 = vmatprep.subr.bf16.mxu0 %v5580
    %7555 = vmatpush1.bf16.msra.mxu0 %v5579
    %7556 = vmatprep.subr.bf16.mxu0 %v5596
    %7557 = vmatpush1.bf16.msra.mxu0 %v5595
    %7558 = vmatprep.subr.bf16.mxu0 %v5612
    %7559 = vmatpush1.bf16.msra.mxu0 %v5611
    %7560 = vmatprep.subr.bf16.mxu0 %v5628
    %7561 = vmatpush1.bf16.msra.mxu0 %v5627
    %7562 = vmatprep.subr.bf16.mxu0 %v5644
    %7563 = vmatpush1.bf16.msra.mxu0 %v5643
    %7564 = vmatprep.subr.bf16.mxu0 %v5660
    %7565 = vmatpush1.bf16.msra.mxu0 %v5659
    %7566 = vmatprep.subr.bf16.mxu0 %v5676
    %7567 = vmatpush1.bf16.msra.mxu0 %v5675
    %7568 = vmatprep.subr.bf16.mxu0 %v5692
    %7569 = vmatpush1.bf16.msra.mxu0 %v5691
    %7570 = vmatprep.mubr.bf16.mxu0 %v7004
    %7571 = vmatmul.mubr.bf16.gmra.mrb[0].mxu0 %v7003
    %v7572 = vpop.f32.mrb[0].mxu0
    %v7573 = vadd.f32 %v7532, %v7572
    %v7574 = vpop.f32.mrb[0].mxu0
    %v7575 = vadd.f32 %v7534, %v7574
    %v7576 = vpop.f32.mrb[0].mxu0
    %v7577 = vpop.f32.mrb[0].mxu0
    %7578 = vdwg.mxu0
    %7579 = vmatprep.subr.bf16.mxu0 %v5198
    %7580 = vmatpush1.bf16.msra.mxu0 %v5197
    %7581 = vmatprep.subr.bf16.mxu0 %v5214
    %7582 = vmatpush1.bf16.msra.mxu0 %v5213
    %7583 = vmatprep.subr.bf16.mxu0 %v5230
    %7584 = vmatpush1.bf16.msra.mxu0 %v5229
    %7585 = vmatprep.subr.bf16.mxu0 %v5246
    %7586 = vmatpush1.bf16.msra.mxu0 %v5245
    %7587 = vmatprep.subr.bf16.mxu0 %v5262
    %7588 = vmatpush1.bf16.msra.mxu0 %v5261
    %7589 = vmatprep.subr.bf16.mxu0 %v5278
    %7590 = vmatpush1.bf16.msra.mxu0 %v5277
    %7591 = vmatprep.subr.bf16.mxu0 %v5294
    %7592 = vmatpush1.bf16.msra.mxu0 %v5293
    %7593 = vmatprep.subr.bf16.mxu0 %v5310
    %7594 = vmatpush1.bf16.msra.mxu0 %v5309
    %7595 = vmatprep.subr.bf16.mxu0 %v5326
    %7596 = vmatpush1.bf16.msra.mxu0 %v5325
    %7597 = vmatprep.subr.bf16.mxu0 %v5342
    %7598 = vmatpush1.bf16.msra.mxu0 %v5341
    %7599 = vmatprep.subr.bf16.mxu0 %v5358
    %7600 = vmatpush1.bf16.msra.mxu0 %v5357
    %7601 = vmatprep.subr.bf16.mxu0 %v5374
    %7602 = vmatpush1.bf16.msra.mxu0 %v5373
    %7603 = vmatprep.subr.bf16.mxu0 %v5390
    %7604 = vmatpush1.bf16.msra.mxu0 %v5389
    %7605 = vmatprep.subr.bf16.mxu0 %v5406
    %7606 = vmatpush1.bf16.msra.mxu0 %v5405
    %7607 = vmatprep.subr.bf16.mxu0 %v5422
    %7608 = vmatpush1.bf16.msra.mxu0 %v5421
    %7609 = vmatprep.subr.bf16.mxu0 %v5438
    %7610 = vmatpush1.bf16.msra.mxu0 %v5437
    %7611 = vmatprep.mubr.bf16.mxu0 %v7002
    %7612 = vmatmul.mubr.bf16.gmra.mrb[0].mxu0 %v7001
    %v7613 = vpop.f32.mrb[0].mxu0
    %v7614 = vadd.f32 0.0, %v7613
    %v7615 = vpop.f32.mrb[0].mxu0
    %v7616 = vadd.f32 0.0, %v7615
    %v7617 = vpop.f32.mrb[0].mxu0
    %v7618 = vpop.f32.mrb[0].mxu0
    %7619 = vdwg.mxu0
    %7620 = vmatprep.subr.bf16.mxu0 %v5454
    %7621 = vmatpush1.bf16.msra.mxu0 %v5453
    %7622 = vmatprep.subr.bf16.mxu0 %v5470
    %7623 = vmatpush1.bf16.msra.mxu0 %v5469
    %7624 = vmatprep.subr.bf16.mxu0 %v5486
    %7625 = vmatpush1.bf16.msra.mxu0 %v5485
    %7626 = vmatprep.subr.bf16.mxu0 %v5502
    %7627 = vmatpush1.bf16.msra.mxu0 %v5501
    %7628 = vmatprep.subr.bf16.mxu0 %v5518
    %7629 = vmatpush1.bf16.msra.mxu0 %v5517
    %7630 = vmatprep.subr.bf16.mxu0 %v5534
    %7631 = vmatpush1.bf16.msra.mxu0 %v5533
    %7632 = vmatprep.subr.bf16.mxu0 %v5550
    %7633 = vmatpush1.bf16.msra.mxu0 %v5549
    %7634 = vmatprep.subr.bf16.mxu0 %v5566
    %7635 = vmatpush1.bf16.msra.mxu0 %v5565
    %7636 = vmatprep.subr.bf16.mxu0 %v5582
    %7637 = vmatpush1.bf16.msra.mxu0 %v5581
    %7638 = vmatprep.subr.bf16.mxu0 %v5598
    %7639 = vmatpush1.bf16.msra.mxu0 %v5597
    %7640 = vmatprep.subr.bf16.mxu0 %v5614
    %7641 = vmatpush1.bf16.msra.mxu0 %v5613
    %7642 = vmatprep.subr.bf16.mxu0 %v5630
    %7643 = vmatpush1.bf16.msra.mxu0 %v5629
    %7644 = vmatprep.subr.bf16.mxu0 %v5646
    %7645 = vmatpush1.bf16.msra.mxu0 %v5645
    %7646 = vmatprep.subr.bf16.mxu0 %v5662
    %7647 = vmatpush1.bf16.msra.mxu0 %v5661
    %7648 = vmatprep.subr.bf16.mxu0 %v5678
    %7649 = vmatpush1.bf16.msra.mxu0 %v5677
    %7650 = vmatprep.subr.bf16.mxu0 %v5694
    %7651 = vmatpush1.bf16.msra.mxu0 %v5693
    %7652 = vmatprep.mubr.bf16.mxu0 %v7004
    %7653 = vmatmul.mubr.bf16.gmra.mrb[0].mxu0 %v7003
    %v7654 = vpop.f32.mrb[0].mxu0
    %v7655 = vadd.f32 %v7614, %v7654
    %v7656 = vpop.f32.mrb[0].mxu0
    %v7657 = vadd.f32 %v7616, %v7656
    %v7658 = vpop.f32.mrb[0].mxu0
    %v7659 = vpop.f32.mrb[0].mxu0
    %7660 = vdwg.mxu0
    %v7677 = vcombine.low %v7081, %v7083
    %v7678 = vcombine.low %v7163, %v7165
    %v7680 = vunpack.c.l.s4 1983009808
    %v7681 = vunpack.c.0.s8 %v7680
    %v7682 = vlaneseq
    %v7683 = vshrl.u32 %v7682, 7
    %v7684 = vsub.s32 %v7681, %v7683
    %v7685 = vrot.slane %v7677, %v7684
    %v7687 = vunpack.c.l.s4 1983009808
    %v7688 = vunpack.c.0.s8 %v7687
    %v7689 = vlaneseq
    %v7690 = vshrl.u32 %v7689, 7
    %v7691 = vsub.s32 %v7688, %v7690
    %v7692 = vrot.slane %v7678, %v7691
    %v7693 = vcombine.low %v7685, %v7692
    %v7694 = vcombine.low %v7245, %v7247
    %v7695 = vcombine.low %v7327, %v7329
    %v7697 = vunpack.c.l.s4 1983009808
    %v7698 = vunpack.c.0.s8 %v7697
    %v7699 = vlaneseq
    %v7700 = vshrl.u32 %v7699, 7
    %v7701 = vsub.s32 %v7698, %v7700
    %v7702 = vrot.slane %v7694, %v7701
    %v7704 = vunpack.c.l.s4 1983009808
    %v7705 = vunpack.c.0.s8 %v7704
    %v7706 = vlaneseq
    %v7707 = vshrl.u32 %v7706, 7
    %v7708 = vsub.s32 %v7705, %v7707
    %v7709 = vrot.slane %v7695, %v7708
    %v7710 = vcombine.low %v7702, %v7709
    %v7711 = vcombine.low %v7409, %v7411
    %v7712 = vcombine.low %v7491, %v7493
    %v7714 = vunpack.c.l.s4 1983009808
    %v7715 = vunpack.c.0.s8 %v7714
    %v7716 = vlaneseq
    %v7717 = vshrl.u32 %v7716, 7
    %v7718 = vsub.s32 %v7715, %v7717
    %v7719 = vrot.slane %v7711, %v7718
    %v7721 = vunpack.c.l.s4 1983009808
    %v7722 = vunpack.c.0.s8 %v7721
    %v7723 = vlaneseq
    %v7724 = vshrl.u32 %v7723, 7
    %v7725 = vsub.s32 %v7722, %v7724
    %v7726 = vrot.slane %v7712, %v7725
    %v7727 = vcombine.low %v7719, %v7726
    %v7728 = vcombine.low %v7573, %v7575
    %v7729 = vcombine.low %v7655, %v7657
    %v7731 = vunpack.c.l.s4 1983009808
    %v7732 = vunpack.c.0.s8 %v7731
    %v7733 = vlaneseq
    %v7734 = vshrl.u32 %v7733, 7
    %v7735 = vsub.s32 %v7732, %v7734
    %v7736 = vrot.slane %v7728, %v7735
    %v7738 = vunpack.c.l.s4 1983009808
    %v7739 = vunpack.c.0.s8 %v7738
    %v7740 = vlaneseq
    %v7741 = vshrl.u32 %v7740, 7
    %v7742 = vsub.s32 %v7739, %v7741
    %v7743 = vrot.slane %v7729, %v7742
    %v7744 = vcombine.low %v7736, %v7743
    %v7749 = vadd.f32 %v3008, %v7693
    %v7750 = vadd.f32 %v3044, %v7710
    %v7751 = vadd.f32 %v3080, %v7727
    %v7752 = vadd.f32 %v3116, %v7744
    %v7753 = vxor.u32 %v7749, 2147483648
    %v7754 = vmul.f32 %v7753, 1.442695
    %v7755 = vpow.pop %v7754
    %v7756 = vadd.f32 %v7755, 1.0
    %v7757 = vrcp.pop %v7756
    %v7758 = vmul.f32 1.0, %v7757
    %v7759 = vxor.u32 %v7750, 2147483648
    %v7760 = vmul.f32 %v7759, 1.442695
    %v7761 = vpow.pop %v7760
    %v7762 = vadd.f32 %v7761, 1.0
    %v7763 = vrcp.pop %v7762
    %v7764 = vmul.f32 1.0, %v7763
    %v7765 = vtanh.pop %v7751
    %v7766 = vxor.u32 %v7752, 2147483648
    %v7767 = vmul.f32 %v7766, 1.442695
    %v7768 = vpow.pop %v7767
    %v7769 = vadd.f32 %v7768, 1.0
    %v7770 = vrcp.pop %v7769
    %v7771 = vmul.f32 1.0, %v7770
    %v7772 = vmul.f32 %v7764, %v6976
    %v7773 = vmul.f32 %v7758, %v7765
    %v7774 = vadd.f32 %v7772, %v7773
    %v7775 = vtanh.pop %v7774
    %v7776 = vmul.f32 %v7771, %v7775
    %v7778 = vcombine.high %v7776, %v7776
    %v7780 = vunpack.c.l.s4 1983009808
    %v7781 = vunpack.c.0.s8 %v7780
    %v7782 = vlaneseq
    %v7783 = vshrl.u32 %v7782, 7
    %v7784 = vsub.s32 %v7781, %v7783
    %v7785 = vrot.slane %v7776, %v7784
    %v7787 = vunpack.c.l.s4 1983009808
    %v7788 = vunpack.c.0.s8 %v7787
    %v7789 = vlaneseq
    %v7790 = vshrl.u32 %v7789, 7
    %v7791 = vsub.s32 %v7788, %v7790
    %v7792 = vrot.slane %v7778, %v7791
    %v7793 = vcombine.high %v7785, %v7785
    %v7794 = vcombine.high %v7792, %v7792
    %v7799 = vpack.c.bf16 %v7785, %v7785
    %v7800 = vpack.c.bf16 %v7793, %v7793
    %v7801 = vpack.c.bf16 %v7792, %v7792
    %v7802 = vpack.c.bf16 %v7794, %v7794
    %7803 = vmatprep.subr.bf16.mxu0 %v5184
    %7804 = vmatpush1.bf16.msra.mxu0 %v5183
    %7805 = vmatprep.subr.bf16.mxu0 %v5200
    %7806 = vmatpush1.bf16.msra.mxu0 %v5199
    %7807 = vmatprep.subr.bf16.mxu0 %v5216
    %7808 = vmatpush1.bf16.msra.mxu0 %v5215
    %7809 = vmatprep.subr.bf16.mxu0 %v5232
    %7810 = vmatpush1.bf16.msra.mxu0 %v5231
    %7811 = vmatprep.subr.bf16.mxu0 %v5248
    %7812 = vmatpush1.bf16.msra.mxu0 %v5247
    %7813 = vmatprep.subr.bf16.mxu0 %v5264
    %7814 = vmatpush1.bf16.msra.mxu0 %v5263
    %7815 = vmatprep.subr.bf16.mxu0 %v5280
    %7816 = vmatpush1.bf16.msra.mxu0 %v5279
    %7817 = vmatprep.subr.bf16.mxu0 %v5296
    %7818 = vmatpush1.bf16.msra.mxu0 %v5295
    %7819 = vmatprep.subr.bf16.mxu0 %v5312
    %7820 = vmatpush1.bf16.msra.mxu0 %v5311
    %7821 = vmatprep.subr.bf16.mxu0 %v5328
    %7822 = vmatpush1.bf16.msra.mxu0 %v5327
    %7823 = vmatprep.subr.bf16.mxu0 %v5344
    %7824 = vmatpush1.bf16.msra.mxu0 %v5343
    %7825 = vmatprep.subr.bf16.mxu0 %v5360
    %7826 = vmatpush1.bf16.msra.mxu0 %v5359
    %7827 = vmatprep.subr.bf16.mxu0 %v5376
    %7828 = vmatpush1.bf16.msra.mxu0 %v5375
    %7829 = vmatprep.subr.bf16.mxu0 %v5392
    %7830 = vmatpush1.bf16.msra.mxu0 %v5391
    %7831 = vmatprep.subr.bf16.mxu0 %v5408
    %7832 = vmatpush1.bf16.msra.mxu0 %v5407
    %7833 = vmatprep.subr.bf16.mxu0 %v5424
    %7834 = vmatpush1.bf16.msra.mxu0 %v5423
    %7835 = vmatprep.mubr.bf16.mxu0 %v7800
    %7836 = vmatmul.mubr.bf16.gmra.mrb[0].mxu0 %v7799
    %v7837 = vpop.f32.mrb[0].mxu0
    %v7838 = vadd.f32 0.0, %v7837
    %v7839 = vpop.f32.mrb[0].mxu0
    %v7840 = vadd.f32 0.0, %v7839
    %v7841 = vpop.f32.mrb[0].mxu0
    %v7842 = vpop.f32.mrb[0].mxu0
    %7843 = vdwg.mxu0
    %7844 = vmatprep.subr.bf16.mxu0 %v5440
    %7845 = vmatpush1.bf16.msra.mxu0 %v5439
    %7846 = vmatprep.subr.bf16.mxu0 %v5456
    %7847 = vmatpush1.bf16.msra.mxu0 %v5455
    %7848 = vmatprep.subr.bf16.mxu0 %v5472
    %7849 = vmatpush1.bf16.msra.mxu0 %v5471
    %7850 = vmatprep.subr.bf16.mxu0 %v5488
    %7851 = vmatpush1.bf16.msra.mxu0 %v5487
    %7852 = vmatprep.subr.bf16.mxu0 %v5504
    %7853 = vmatpush1.bf16.msra.mxu0 %v5503
    %7854 = vmatprep.subr.bf16.mxu0 %v5520
    %7855 = vmatpush1.bf16.msra.mxu0 %v5519
    %7856 = vmatprep.subr.bf16.mxu0 %v5536
    %7857 = vmatpush1.bf16.msra.mxu0 %v5535
    %7858 = vmatprep.subr.bf16.mxu0 %v5552
    %7859 = vmatpush1.bf16.msra.mxu0 %v5551
    %7860 = vmatprep.subr.bf16.mxu0 %v5568
    %7861 = vmatpush1.bf16.msra.mxu0 %v5567
    %7862 = vmatprep.subr.bf16.mxu0 %v5584
    %7863 = vmatpush1.bf16.msra.mxu0 %v5583
    %7864 = vmatprep.subr.bf16.mxu0 %v5600
    %7865 = vmatpush1.bf16.msra.mxu0 %v5599
    %7866 = vmatprep.subr.bf16.mxu0 %v5616
    %7867 = vmatpush1.bf16.msra.mxu0 %v5615
    %7868 = vmatprep.subr.bf16.mxu0 %v5632
    %7869 = vmatpush1.bf16.msra.mxu0 %v5631
    %7870 = vmatprep.subr.bf16.mxu0 %v5648
    %7871 = vmatpush1.bf16.msra.mxu0 %v5647
    %7872 = vmatprep.subr.bf16.mxu0 %v5664
    %7873 = vmatpush1.bf16.msra.mxu0 %v5663
    %7874 = vmatprep.subr.bf16.mxu0 %v5680
    %7875 = vmatpush1.bf16.msra.mxu0 %v5679
    %7876 = vmatprep.mubr.bf16.mxu0 %v7802
    %7877 = vmatmul.mubr.bf16.gmra.mrb[0].mxu0 %v7801
    %v7878 = vpop.f32.mrb[0].mxu0
    %v7879 = vadd.f32 %v7838, %v7878
    %v7880 = vpop.f32.mrb[0].mxu0
    %v7881 = vadd.f32 %v7840, %v7880
    %v7882 = vpop.f32.mrb[0].mxu0
    %v7883 = vpop.f32.mrb[0].mxu0
    %7884 = vdwg.mxu0
    %7885 = vmatprep.subr.bf16.mxu0 %v5186
    %7886 = vmatpush1.bf16.msra.mxu0 %v5185
    %7887 = vmatprep.subr.bf16.mxu0 %v5202
    %7888 = vmatpush1.bf16.msra.mxu0 %v5201
    %7889 = vmatprep.subr.bf16.mxu0 %v5218
    %7890 = vmatpush1.bf16.msra.mxu0 %v5217
    %7891 = vmatprep.subr.bf16.mxu0 %v5234
    %7892 = vmatpush1.bf16.msra.mxu0 %v5233
    %7893 = vmatprep.subr.bf16.mxu0 %v5250
    %7894 = vmatpush1.bf16.msra.mxu0 %v5249
    %7895 = vmatprep.subr.bf16.mxu0 %v5266
    %7896 = vmatpush1.bf16.msra.mxu0 %v5265
    %7897 = vmatprep.subr.bf16.mxu0 %v5282
    %7898 = vmatpush1.bf16.msra.mxu0 %v5281
    %7899 = vmatprep.subr.bf16.mxu0 %v5298
    %7900 = vmatpush1.bf16.msra.mxu0 %v5297
    %7901 = vmatprep.subr.bf16.mxu0 %v5314
    %7902 = vmatpush1.bf16.msra.mxu0 %v5313
    %7903 = vmatprep.subr.bf16.mxu0 %v5330
    %7904 = vmatpush1.bf16.msra.mxu0 %v5329
    %7905 = vmatprep.subr.bf16.mxu0 %v5346
    %7906 = vmatpush1.bf16.msra.mxu0 %v5345
    %7907 = vmatprep.subr.bf16.mxu0 %v5362
    %7908 = vmatpush1.bf16.msra.mxu0 %v5361
    %7909 = vmatprep.subr.bf16.mxu0 %v5378
    %7910 = vmatpush1.bf16.msra.mxu0 %v5377
    %7911 = vmatprep.subr.bf16.mxu0 %v5394
    %7912 = vmatpush1.bf16.msra.mxu0 %v5393
    %7913 = vmatprep.subr.bf16.mxu0 %v5410
    %7914 = vmatpush1.bf16.msra.mxu0 %v5409
    %7915 = vmatprep.subr.bf16.mxu0 %v5426
    %7916 = vmatpush1.bf16.msra.mxu0 %v5425
    %7917 = vmatprep.mubr.bf16.mxu0 %v7800
    %7918 = vmatmul.mubr.bf16.gmra.mrb[0].mxu0 %v7799
    %v7919 = vpop.f32.mrb[0].mxu0
    %v7920 = vadd.f32 0.0, %v7919
    %v7921 = vpop.f32.mrb[0].mxu0
    %v7922 = vadd.f32 0.0, %v7921
    %v7923 = vpop.f32.mrb[0].mxu0
    %v7924 = vpop.f32.mrb[0].mxu0
    %7925 = vdwg.mxu0
    %7926 = vmatprep.subr.bf16.mxu0 %v5442
    %7927 = vmatpush1.bf16.msra.mxu0 %v5441
    %7928 = vmatprep.subr.bf16.mxu0 %v5458
    %7929 = vmatpush1.bf16.msra.mxu0 %v5457
    %7930 = vmatprep.subr.bf16.mxu0 %v5474
    %7931 = vmatpush1.bf16.msra.mxu0 %v5473
    %7932 = vmatprep.subr.bf16.mxu0 %v5490
    %7933 = vmatpush1.bf16.msra.mxu0 %v5489
    %7934 = vmatprep.subr.bf16.mxu0 %v5506
    %7935 = vmatpush1.bf16.msra.mxu0 %v5505
    %7936 = vmatprep.subr.bf16.mxu0 %v5522
    %7937 = vmatpush1.bf16.msra.mxu0 %v5521
    %7938 = vmatprep.subr.bf16.mxu0 %v5538
    %7939 = vmatpush1.bf16.msra.mxu0 %v5537
    %7940 = vmatprep.subr.bf16.mxu0 %v5554
    %7941 = vmatpush1.bf16.msra.mxu0 %v5553
    %7942 = vmatprep.subr.bf16.mxu0 %v5570
    %7943 = vmatpush1.bf16.msra.mxu0 %v5569
    %7944 = vmatprep.subr.bf16.mxu0 %v5586
    %7945 = vmatpush1.bf16.msra.mxu0 %v5585
    %7946 = vmatprep.subr.bf16.mxu0 %v5602
    %7947 = vmatpush1.bf16.msra.mxu0 %v5601
    %7948 = vmatprep.subr.bf16.mxu0 %v5618
    %7949 = vmatpush1.bf16.msra.mxu0 %v5617
    %7950 = vmatprep.subr.bf16.mxu0 %v5634
    %7951 = vmatpush1.bf16.msra.mxu0 %v5633
    %7952 = vmatprep.subr.bf16.mxu0 %v5650
    %7953 = vmatpush1.bf16.msra.mxu0 %v5649
    %7954 = vmatprep.subr.bf16.mxu0 %v5666
    %7955 = vmatpush1.bf16.msra.mxu0 %v5665
    %7956 = vmatprep.subr.bf16.mxu0 %v5682
    %7957 = vmatpush1.bf16.msra.mxu0 %v5681
    %7958 = vmatprep.mubr.bf16.mxu0 %v7802
    %7959 = vmatmul.mubr.bf16.gmra.mrb[0].mxu0 %v7801
    %v7960 = vpop.f32.mrb[0].mxu0
    %v7961 = vadd.f32 %v7920, %v7960
    %v7962 = vpop.f32.mrb[0].mxu0
    %v7963 = vadd.f32 %v7922, %v7962
    %v7964 = vpop.f32.mrb[0].mxu0
    %v7965 = vpop.f32.mrb[0].mxu0
    %7966 = vdwg.mxu0
    %7967 = vmatprep.subr.bf16.mxu0 %v5188
    %7968 = vmatpush1.bf16.msra.mxu0 %v5187
    %7969 = vmatprep.subr.bf16.mxu0 %v5204
    %7970 = vmatpush1.bf16.msra.mxu0 %v5203
    %7971 = vmatprep.subr.bf16.mxu0 %v5220
    %7972 = vmatpush1.bf16.msra.mxu0 %v5219
    %7973 = vmatprep.subr.bf16.mxu0 %v5236
    %7974 = vmatpush1.bf16.msra.mxu0 %v5235
    %7975 = vmatprep.subr.bf16.mxu0 %v5252
    %7976 = vmatpush1.bf16.msra.mxu0 %v5251
    %7977 = vmatprep.subr.bf16.mxu0 %v5268
    %7978 = vmatpush1.bf16.msra.mxu0 %v5267
    %7979 = vmatprep.subr.bf16.mxu0 %v5284
    %7980 = vmatpush1.bf16.msra.mxu0 %v5283
    %7981 = vmatprep.subr.bf16.mxu0 %v5300
    %7982 = vmatpush1.bf16.msra.mxu0 %v5299
    %7983 = vmatprep.subr.bf16.mxu0 %v5316
    %7984 = vmatpush1.bf16.msra.mxu0 %v5315
    %7985 = vmatprep.subr.bf16.mxu0 %v5332
    %7986 = vmatpush1.bf16.msra.mxu0 %v5331
    %7987 = vmatprep.subr.bf16.mxu0 %v5348
    %7988 = vmatpush1.bf16.msra.mxu0 %v5347
    %7989 = vmatprep.subr.bf16.mxu0 %v5364
    %7990 = vmatpush1.bf16.msra.mxu0 %v5363
    %7991 = vmatprep.subr.bf16.mxu0 %v5380
    %7992 = vmatpush1.bf16.msra.mxu0 %v5379
    %7993 = vmatprep.subr.bf16.mxu0 %v5396
    %7994 = vmatpush1.bf16.msra.mxu0 %v5395
    %7995 = vmatprep.subr.bf16.mxu0 %v5412
    %7996 = vmatpush1.bf16.msra.mxu0 %v5411
    %7997 = vmatprep.subr.bf16.mxu0 %v5428
    %7998 = vmatpush1.bf16.msra.mxu0 %v5427
    %7999 = vmatprep.mubr.bf16.mxu0 %v7800
    %8000 = vmatmul.mubr.bf16.gmra.mrb[0].mxu0 %v7799
    %v8001 = vpop.f32.mrb[0].mxu0
    %v8002 = vadd.f32 0.0, %v8001
    %v8003 = vpop.f32.mrb[0].mxu0
    %v8004 = vadd.f32 0.0, %v8003
    %v8005 = vpop.f32.mrb[0].mxu0
    %v8006 = vpop.f32.mrb[0].mxu0
    %8007 = vdwg.mxu0
    %8008 = vmatprep.subr.bf16.mxu0 %v5444
    %8009 = vmatpush1.bf16.msra.mxu0 %v5443
    %8010 = vmatprep.subr.bf16.mxu0 %v5460
    %8011 = vmatpush1.bf16.msra.mxu0 %v5459
    %8012 = vmatprep.subr.bf16.mxu0 %v5476
    %8013 = vmatpush1.bf16.msra.mxu0 %v5475
    %8014 = vmatprep.subr.bf16.mxu0 %v5492
    %8015 = vmatpush1.bf16.msra.mxu0 %v5491
    %8016 = vmatprep.subr.bf16.mxu0 %v5508
    %8017 = vmatpush1.bf16.msra.mxu0 %v5507
    %8018 = vmatprep.subr.bf16.mxu0 %v5524
    %8019 = vmatpush1.bf16.msra.mxu0 %v5523
    %8020 = vmatprep.subr.bf16.mxu0 %v5540
    %8021 = vmatpush1.bf16.msra.mxu0 %v5539
    %8022 = vmatprep.subr.bf16.mxu0 %v5556
    %8023 = vmatpush1.bf16.msra.mxu0 %v5555
    %8024 = vmatprep.subr.bf16.mxu0 %v5572
    %8025 = vmatpush1.bf16.msra.mxu0 %v5571
    %8026 = vmatprep.subr.bf16.mxu0 %v5588
    %8027 = vmatpush1.bf16.msra.mxu0 %v5587
    %8028 = vmatprep.subr.bf16.mxu0 %v5604
    %8029 = vmatpush1.bf16.msra.mxu0 %v5603
    %8030 = vmatprep.subr.bf16.mxu0 %v5620
    %8031 = vmatpush1.bf16.msra.mxu0 %v5619
    %8032 = vmatprep.subr.bf16.mxu0 %v5636
    %8033 = vmatpush1.bf16.msra.mxu0 %v5635
    %8034 = vmatprep.subr.bf16.mxu0 %v5652
    %8035 = vmatpush1.bf16.msra.mxu0 %v5651
    %8036 = vmatprep.subr.bf16.mxu0 %v5668
    %8037 = vmatpush1.bf16.msra.mxu0 %v5667
    %8038 = vmatprep.subr.bf16.mxu0 %v5684
    %8039 = vmatpush1.bf16.msra.mxu0 %v5683
    %8040 = vmatprep.mubr.bf16.mxu0 %v7802
    %8041 = vmatmul.mubr.bf16.gmra.mrb[0].mxu0 %v7801
    %v8042 = vpop.f32.mrb[0].mxu0
    %v8043 = vadd.f32 %v8002, %v8042
    %v8044 = vpop.f32.mrb[0].mxu0
    %v8045 = vadd.f32 %v8004, %v8044
    %v8046 = vpop.f32.mrb[0].mxu0
    %v8047 = vpop.f32.mrb[0].mxu0
    %8048 = vdwg.mxu0
    %8049 = vmatprep.subr.bf16.mxu0 %v5190
    %8050 = vmatpush1.bf16.msra.mxu0 %v5189
    %8051 = vmatprep.subr.bf16.mxu0 %v5206
    %8052 = vmatpush1.bf16.msra.mxu0 %v5205
    %8053 = vmatprep.subr.bf16.mxu0 %v5222
    %8054 = vmatpush1.bf16.msra.mxu0 %v5221
    %8055 = vmatprep.subr.bf16.mxu0 %v5238
    %8056 = vmatpush1.bf16.msra.mxu0 %v5237
    %8057 = vmatprep.subr.bf16.mxu0 %v5254
    %8058 = vmatpush1.bf16.msra.mxu0 %v5253
    %8059 = vmatprep.subr.bf16.mxu0 %v5270
    %8060 = vmatpush1.bf16.msra.mxu0 %v5269
    %8061 = vmatprep.subr.bf16.mxu0 %v5286
    %8062 = vmatpush1.bf16.msra.mxu0 %v5285
    %8063 = vmatprep.subr.bf16.mxu0 %v5302
    %8064 = vmatpush1.bf16.msra.mxu0 %v5301
    %8065 = vmatprep.subr.bf16.mxu0 %v5318
    %8066 = vmatpush1.bf16.msra.mxu0 %v5317
    %8067 = vmatprep.subr.bf16.mxu0 %v5334
    %8068 = vmatpush1.bf16.msra.mxu0 %v5333
    %8069 = vmatprep.subr.bf16.mxu0 %v5350
    %8070 = vmatpush1.bf16.msra.mxu0 %v5349
    %8071 = vmatprep.subr.bf16.mxu0 %v5366
    %8072 = vmatpush1.bf16.msra.mxu0 %v5365
    %8073 = vmatprep.subr.bf16.mxu0 %v5382
    %8074 = vmatpush1.bf16.msra.mxu0 %v5381
    %8075 = vmatprep.subr.bf16.mxu0 %v5398
    %8076 = vmatpush1.bf16.msra.mxu0 %v5397
    %8077 = vmatprep.subr.bf16.mxu0 %v5414
    %8078 = vmatpush1.bf16.msra.mxu0 %v5413
    %8079 = vmatprep.subr.bf16.mxu0 %v5430
    %8080 = vmatpush1.bf16.msra.mxu0 %v5429
    %8081 = vmatprep.mubr.bf16.mxu0 %v7800
    %8082 = vmatmul.mubr.bf16.gmra.mrb[0].mxu0 %v7799
    %v8083 = vpop.f32.mrb[0].mxu0
    %v8084 = vadd.f32 0.0, %v8083
    %v8085 = vpop.f32.mrb[0].mxu0
    %v8086 = vadd.f32 0.0, %v8085
    %v8087 = vpop.f32.mrb[0].mxu0
    %v8088 = vpop.f32.mrb[0].mxu0
    %8089 = vdwg.mxu0
    %8090 = vmatprep.subr.bf16.mxu0 %v5446
    %8091 = vmatpush1.bf16.msra.mxu0 %v5445
    %8092 = vmatprep.subr.bf16.mxu0 %v5462
    %8093 = vmatpush1.bf16.msra.mxu0 %v5461
    %8094 = vmatprep.subr.bf16.mxu0 %v5478
    %8095 = vmatpush1.bf16.msra.mxu0 %v5477
    %8096 = vmatprep.subr.bf16.mxu0 %v5494
    %8097 = vmatpush1.bf16.msra.mxu0 %v5493
    %8098 = vmatprep.subr.bf16.mxu0 %v5510
    %8099 = vmatpush1.bf16.msra.mxu0 %v5509
    %8100 = vmatprep.subr.bf16.mxu0 %v5526
    %8101 = vmatpush1.bf16.msra.mxu0 %v5525
    %8102 = vmatprep.subr.bf16.mxu0 %v5542
    %8103 = vmatpush1.bf16.msra.mxu0 %v5541
    %8104 = vmatprep.subr.bf16.mxu0 %v5558
    %8105 = vmatpush1.bf16.msra.mxu0 %v5557
    %8106 = vmatprep.subr.bf16.mxu0 %v5574
    %8107 = vmatpush1.bf16.msra.mxu0 %v5573
    %8108 = vmatprep.subr.bf16.mxu0 %v5590
    %8109 = vmatpush1.bf16.msra.mxu0 %v5589
    %8110 = vmatprep.subr.bf16.mxu0 %v5606
    %8111 = vmatpush1.bf16.msra.mxu0 %v5605
    %8112 = vmatprep.subr.bf16.mxu0 %v5622
    %8113 = vmatpush1.bf16.msra.mxu0 %v5621
    %8114 = vmatprep.subr.bf16.mxu0 %v5638
    %8115 = vmatpush1.bf16.msra.mxu0 %v5637
    %8116 = vmatprep.subr.bf16.mxu0 %v5654
    %8117 = vmatpush1.bf16.msra.mxu0 %v5653
    %8118 = vmatprep.subr.bf16.mxu0 %v5670
    %8119 = vmatpush1.bf16.msra.mxu0 %v5669
    %8120 = vmatprep.subr.bf16.mxu0 %v5686
    %8121 = vmatpush1.bf16.msra.mxu0 %v5685
    %8122 = vmatprep.mubr.bf16.mxu0 %v7802
    %8123 = vmatmul.mubr.bf16.gmra.mrb[0].mxu0 %v7801
    %v8124 = vpop.f32.mrb[0].mxu0
    %v8125 = vadd.f32 %v8084, %v8124
    %v8126 = vpop.f32.mrb[0].mxu0
    %v8127 = vadd.f32 %v8086, %v8126
    %v8128 = vpop.f32.mrb[0].mxu0
    %v8129 = vpop.f32.mrb[0].mxu0
    %8130 = vdwg.mxu0
    %8131 = vmatprep.subr.bf16.mxu0 %v5192
    %8132 = vmatpush1.bf16.msra.mxu0 %v5191
    %8133 = vmatprep.subr.bf16.mxu0 %v5208
    %8134 = vmatpush1.bf16.msra.mxu0 %v5207
    %8135 = vmatprep.subr.bf16.mxu0 %v5224
    %8136 = vmatpush1.bf16.msra.mxu0 %v5223
    %8137 = vmatprep.subr.bf16.mxu0 %v5240
    %8138 = vmatpush1.bf16.msra.mxu0 %v5239
    %8139 = vmatprep.subr.bf16.mxu0 %v5256
    %8140 = vmatpush1.bf16.msra.mxu0 %v5255
    %8141 = vmatprep.subr.bf16.mxu0 %v5272
    %8142 = vmatpush1.bf16.msra.mxu0 %v5271
    %8143 = vmatprep.subr.bf16.mxu0 %v5288
    %8144 = vmatpush1.bf16.msra.mxu0 %v5287
    %8145 = vmatprep.subr.bf16.mxu0 %v5304
    %8146 = vmatpush1.bf16.msra.mxu0 %v5303
    %8147 = vmatprep.subr.bf16.mxu0 %v5320
    %8148 = vmatpush1.bf16.msra.mxu0 %v5319
    %8149 = vmatprep.subr.bf16.mxu0 %v5336
    %8150 = vmatpush1.bf16.msra.mxu0 %v5335
    %8151 = vmatprep.subr.bf16.mxu0 %v5352
    %8152 = vmatpush1.bf16.msra.mxu0 %v5351
    %8153 = vmatprep.subr.bf16.mxu0 %v5368
    %8154 = vmatpush1.bf16.msra.mxu0 %v5367
    %8155 = vmatprep.subr.bf16.mxu0 %v5384
    %8156 = vmatpush1.bf16.msra.mxu0 %v5383
    %8157 = vmatprep.subr.bf16.mxu0 %v5400
    %8158 = vmatpush1.bf16.msra.mxu0 %v5399
    %8159 = vmatprep.subr.bf16.mxu0 %v5416
    %8160 = vmatpush1.bf16.msra.mxu0 %v5415
    %8161 = vmatprep.subr.bf16.mxu0 %v5432
    %8162 = vmatpush1.bf16.msra.mxu0 %v5431
    %8163 = vmatprep.mubr.bf16.mxu0 %v7800
    %8164 = vmatmul.mubr.bf16.gmra.mrb[0].mxu0 %v7799
    %v8165 = vpop.f32.mrb[0].mxu0
    %v8166 = vadd.f32 0.0, %v8165
    %v8167 = vpop.f32.mrb[0].mxu0
    %v8168 = vadd.f32 0.0, %v8167
    %v8169 = vpop.f32.mrb[0].mxu0
    %v8170 = vpop.f32.mrb[0].mxu0
    %8171 = vdwg.mxu0
    %8172 = vmatprep.subr.bf16.mxu0 %v5448
    %8173 = vmatpush1.bf16.msra.mxu0 %v5447
    %8174 = vmatprep.subr.bf16.mxu0 %v5464
    %8175 = vmatpush1.bf16.msra.mxu0 %v5463
    %8176 = vmatprep.subr.bf16.mxu0 %v5480
    %8177 = vmatpush1.bf16.msra.mxu0 %v5479
    %8178 = vmatprep.subr.bf16.mxu0 %v5496
    %8179 = vmatpush1.bf16.msra.mxu0 %v5495
    %8180 = vmatprep.subr.bf16.mxu0 %v5512
    %8181 = vmatpush1.bf16.msra.mxu0 %v5511
    %8182 = vmatprep.subr.bf16.mxu0 %v5528
    %8183 = vmatpush1.bf16.msra.mxu0 %v5527
    %8184 = vmatprep.subr.bf16.mxu0 %v5544
    %8185 = vmatpush1.bf16.msra.mxu0 %v5543
    %8186 = vmatprep.subr.bf16.mxu0 %v5560
    %8187 = vmatpush1.bf16.msra.mxu0 %v5559
    %8188 = vmatprep.subr.bf16.mxu0 %v5576
    %8189 = vmatpush1.bf16.msra.mxu0 %v5575
    %8190 = vmatprep.subr.bf16.mxu0 %v5592
    %8191 = vmatpush1.bf16.msra.mxu0 %v5591
    %8192 = vmatprep.subr.bf16.mxu0 %v5608
    %8193 = vmatpush1.bf16.msra.mxu0 %v5607
    %8194 = vmatprep.subr.bf16.mxu0 %v5624
    %8195 = vmatpush1.bf16.msra.mxu0 %v5623
    %8196 = vmatprep.subr.bf16.mxu0 %v5640
    %8197 = vmatpush1.bf16.msra.mxu0 %v5639
    %8198 = vmatprep.subr.bf16.mxu0 %v5656
    %8199 = vmatpush1.bf16.msra.mxu0 %v5655
    %8200 = vmatprep.subr.bf16.mxu0 %v5672
    %8201 = vmatpush1.bf16.msra.mxu0 %v5671
    %8202 = vmatprep.subr.bf16.mxu0 %v5688
    %8203 = vmatpush1.bf16.msra.mxu0 %v5687
    %8204 = vmatprep.mubr.bf16.mxu0 %v7802
    %8205 = vmatmul.mubr.bf16.gmra.mrb[0].mxu0 %v7801
    %v8206 = vpop.f32.mrb[0].mxu0
    %v8207 = vadd.f32 %v8166, %v8206
    %v8208 = vpop.f32.mrb[0].mxu0
    %v8209 = vadd.f32 %v8168, %v8208
    %v8210 = vpop.f32.mrb[0].mxu0
    %v8211 = vpop.f32.mrb[0].mxu0
    %8212 = vdwg.mxu0
    %8213 = vmatprep.subr.bf16.mxu0 %v5194
    %8214 = vmatpush1.bf16.msra.mxu0 %v5193
    %8215 = vmatprep.subr.bf16.mxu0 %v5210
    %8216 = vmatpush1.bf16.msra.mxu0 %v5209
    %8217 = vmatprep.subr.bf16.mxu0 %v5226
    %8218 = vmatpush1.bf16.msra.mxu0 %v5225
    %8219 = vmatprep.subr.bf16.mxu0 %v5242
    %8220 = vmatpush1.bf16.msra.mxu0 %v5241
    %8221 = vmatprep.subr.bf16.mxu0 %v5258
    %8222 = vmatpush1.bf16.msra.mxu0 %v5257
    %8223 = vmatprep.subr.bf16.mxu0 %v5274
    %8224 = vmatpush1.bf16.msra.mxu0 %v5273
    %8225 = vmatprep.subr.bf16.mxu0 %v5290
    %8226 = vmatpush1.bf16.msra.mxu0 %v5289
    %8227 = vmatprep.subr.bf16.mxu0 %v5306
    %8228 = vmatpush1.bf16.msra.mxu0 %v5305
    %8229 = vmatprep.subr.bf16.mxu0 %v5322
    %8230 = vmatpush1.bf16.msra.mxu0 %v5321
    %8231 = vmatprep.subr.bf16.mxu0 %v5338
    %8232 = vmatpush1.bf16.msra.mxu0 %v5337
    %8233 = vmatprep.subr.bf16.mxu0 %v5354
    %8234 = vmatpush1.bf16.msra.mxu0 %v5353
    %8235 = vmatprep.subr.bf16.mxu0 %v5370
    %8236 = vmatpush1.bf16.msra.mxu0 %v5369
    %8237 = vmatprep.subr.bf16.mxu0 %v5386
    %8238 = vmatpush1.bf16.msra.mxu0 %v5385
    %8239 = vmatprep.subr.bf16.mxu0 %v5402
    %8240 = vmatpush1.bf16.msra.mxu0 %v5401
    %8241 = vmatprep.subr.bf16.mxu0 %v5418
    %8242 = vmatpush1.bf16.msra.mxu0 %v5417
    %8243 = vmatprep.subr.bf16.mxu0 %v5434
    %8244 = vmatpush1.bf16.msra.mxu0 %v5433
    %8245 = vmatprep.mubr.bf16.mxu0 %v7800
    %8246 = vmatmul.mubr.bf16.gmra.mrb[0].mxu0 %v7799
    %v8247 = vpop.f32.mrb[0].mxu0
    %v8248 = vadd.f32 0.0, %v8247
    %v8249 = vpop.f32.mrb[0].mxu0
    %v8250 = vadd.f32 0.0, %v8249
    %v8251 = vpop.f32.mrb[0].mxu0
    %v8252 = vpop.f32.mrb[0].mxu0
    %8253 = vdwg.mxu0
    %8254 = vmatprep.subr.bf16.mxu0 %v5450
    %8255 = vmatpush1.bf16.msra.mxu0 %v5449
    %8256 = vmatprep.subr.bf16.mxu0 %v5466
    %8257 = vmatpush1.bf16.msra.mxu0 %v5465
    %8258 = vmatprep.subr.bf16.mxu0 %v5482
    %8259 = vmatpush1.bf16.msra.mxu0 %v5481
    %8260 = vmatprep.subr.bf16.mxu0 %v5498
    %8261 = vmatpush1.bf16.msra.mxu0 %v5497
    %8262 = vmatprep.subr.bf16.mxu0 %v5514
    %8263 = vmatpush1.bf16.msra.mxu0 %v5513
    %8264 = vmatprep.subr.bf16.mxu0 %v5530
    %8265 = vmatpush1.bf16.msra.mxu0 %v5529
    %8266 = vmatprep.subr.bf16.mxu0 %v5546
    %8267 = vmatpush1.bf16.msra.mxu0 %v5545
    %8268 = vmatprep.subr.bf16.mxu0 %v5562
    %8269 = vmatpush1.bf16.msra.mxu0 %v5561
    %8270 = vmatprep.subr.bf16.mxu0 %v5578
    %8271 = vmatpush1.bf16.msra.mxu0 %v5577
    %8272 = vmatprep.subr.bf16.mxu0 %v5594
    %8273 = vmatpush1.bf16.msra.mxu0 %v5593
    %8274 = vmatprep.subr.bf16.mxu0 %v5610
    %8275 = vmatpush1.bf16.msra.mxu0 %v5609
    %8276 = vmatprep.subr.bf16.mxu0 %v5626
    %8277 = vmatpush1.bf16.msra.mxu0 %v5625
    %8278 = vmatprep.subr.bf16.mxu0 %v5642
    %8279 = vmatpush1.bf16.msra.mxu0 %v5641
    %8280 = vmatprep.subr.bf16.mxu0 %v5658
    %8281 = vmatpush1.bf16.msra.mxu0 %v5657
    %8282 = vmatprep.subr.bf16.mxu0 %v5674
    %8283 = vmatpush1.bf16.msra.mxu0 %v5673
    %8284 = vmatprep.subr.bf16.mxu0 %v5690
    %8285 = vmatpush1.bf16.msra.mxu0 %v5689
    %8286 = vmatprep.mubr.bf16.mxu0 %v7802
    %8287 = vmatmul.mubr.bf16.gmra.mrb[0].mxu0 %v7801
    %v8288 = vpop.f32.mrb[0].mxu0
    %v8289 = vadd.f32 %v8248, %v8288
    %v8290 = vpop.f32.mrb[0].mxu0
    %v8291 = vadd.f32 %v8250, %v8290
    %v8292 = vpop.f32.mrb[0].mxu0
    %v8293 = vpop.f32.mrb[0].mxu0
    %8294 = vdwg.mxu0
    %8295 = vmatprep.subr.bf16.mxu0 %v5196
    %8296 = vmatpush1.bf16.msra.mxu0 %v5195
    %8297 = vmatprep.subr.bf16.mxu0 %v5212
    %8298 = vmatpush1.bf16.msra.mxu0 %v5211
    %8299 = vmatprep.subr.bf16.mxu0 %v5228
    %8300 = vmatpush1.bf16.msra.mxu0 %v5227
    %8301 = vmatprep.subr.bf16.mxu0 %v5244
    %8302 = vmatpush1.bf16.msra.mxu0 %v5243
    %8303 = vmatprep.subr.bf16.mxu0 %v5260
    %8304 = vmatpush1.bf16.msra.mxu0 %v5259
    %8305 = vmatprep.subr.bf16.mxu0 %v5276
    %8306 = vmatpush1.bf16.msra.mxu0 %v5275
    %8307 = vmatprep.subr.bf16.mxu0 %v5292
    %8308 = vmatpush1.bf16.msra.mxu0 %v5291
    %8309 = vmatprep.subr.bf16.mxu0 %v5308
    %8310 = vmatpush1.bf16.msra.mxu0 %v5307
    %8311 = vmatprep.subr.bf16.mxu0 %v5324
    %8312 = vmatpush1.bf16.msra.mxu0 %v5323
    %8313 = vmatprep.subr.bf16.mxu0 %v5340
    %8314 = vmatpush1.bf16.msra.mxu0 %v5339
    %8315 = vmatprep.subr.bf16.mxu0 %v5356
    %8316 = vmatpush1.bf16.msra.mxu0 %v5355
    %8317 = vmatprep.subr.bf16.mxu0 %v5372
    %8318 = vmatpush1.bf16.msra.mxu0 %v5371
    %8319 = vmatprep.subr.bf16.mxu0 %v5388
    %8320 = vmatpush1.bf16.msra.mxu0 %v5387
    %8321 = vmatprep.subr.bf16.mxu0 %v5404
    %8322 = vmatpush1.bf16.msra.mxu0 %v5403
    %8323 = vmatprep.subr.bf16.mxu0 %v5420
    %8324 = vmatpush1.bf16.msra.mxu0 %v5419
    %8325 = vmatprep.subr.bf16.mxu0 %v5436
    %8326 = vmatpush1.bf16.msra.mxu0 %v5435
    %8327 = vmatprep.mubr.bf16.mxu0 %v7800
    %8328 = vmatmul.mubr.bf16.gmra.mrb[0].mxu0 %v7799
    %v8329 = vpop.f32.mrb[0].mxu0
    %v8330 = vadd.f32 0.0, %v8329
    %v8331 = vpop.f32.mrb[0].mxu0
    %v8332 = vadd.f32 0.0, %v8331
    %v8333 = vpop.f32.mrb[0].mxu0
    %v8334 = vpop.f32.mrb[0].mxu0
    %8335 = vdwg.mxu0
    %8336 = vmatprep.subr.bf16.mxu0 %v5452
    %8337 = vmatpush1.bf16.msra.mxu0 %v5451
    %8338 = vmatprep.subr.bf16.mxu0 %v5468
    %8339 = vmatpush1.bf16.msra.mxu0 %v5467
    %8340 = vmatprep.subr.bf16.mxu0 %v5484
    %8341 = vmatpush1.bf16.msra.mxu0 %v5483
    %8342 = vmatprep.subr.bf16.mxu0 %v5500
    %8343 = vmatpush1.bf16.msra.mxu0 %v5499
    %8344 = vmatprep.subr.bf16.mxu0 %v5516
    %8345 = vmatpush1.bf16.msra.mxu0 %v5515
    %8346 = vmatprep.subr.bf16.mxu0 %v5532
    %8347 = vmatpush1.bf16.msra.mxu0 %v5531
    %8348 = vmatprep.subr.bf16.mxu0 %v5548
    %8349 = vmatpush1.bf16.msra.mxu0 %v5547
    %8350 = vmatprep.subr.bf16.mxu0 %v5564
    %8351 = vmatpush1.bf16.msra.mxu0 %v5563
    %8352 = vmatprep.subr.bf16.mxu0 %v5580
    %8353 = vmatpush1.bf16.msra.mxu0 %v5579
    %8354 = vmatprep.subr.bf16.mxu0 %v5596
    %8355 = vmatpush1.bf16.msra.mxu0 %v5595
    %8356 = vmatprep.subr.bf16.mxu0 %v5612
    %8357 = vmatpush1.bf16.msra.mxu0 %v5611
    %8358 = vmatprep.subr.bf16.mxu0 %v5628
    %8359 = vmatpush1.bf16.msra.mxu0 %v5627
    %8360 = vmatprep.subr.bf16.mxu0 %v5644
    %8361 = vmatpush1.bf16.msra.mxu0 %v5643
    %8362 = vmatprep.subr.bf16.mxu0 %v5660
    %8363 = vmatpush1.bf16.msra.mxu0 %v5659
    %8364 = vmatprep.subr.bf16.mxu0 %v5676
    %8365 = vmatpush1.bf16.msra.mxu0 %v5675
    %8366 = vmatprep.subr.bf16.mxu0 %v5692
    %8367 = vmatpush1.bf16.msra.mxu0 %v5691
    %8368 = vmatprep.mubr.bf16.mxu0 %v7802
    %8369 = vmatmul.mubr.bf16.gmra.mrb[0].mxu0 %v7801
    %v8370 = vpop.f32.mrb[0].mxu0
    %v8371 = vadd.f32 %v8330, %v8370
    %v8372 = vpop.f32.mrb[0].mxu0
    %v8373 = vadd.f32 %v8332, %v8372
    %v8374 = vpop.f32.mrb[0].mxu0
    %v8375 = vpop.f32.mrb[0].mxu0
    %8376 = vdwg.mxu0
    %8377 = vmatprep.subr.bf16.mxu0 %v5198
    %8378 = vmatpush1.bf16.msra.mxu0 %v5197
    %8379 = vmatprep.subr.bf16.mxu0 %v5214
    %8380 = vmatpush1.bf16.msra.mxu0 %v5213
    %8381 = vmatprep.subr.bf16.mxu0 %v5230
    %8382 = vmatpush1.bf16.msra.mxu0 %v5229
    %8383 = vmatprep.subr.bf16.mxu0 %v5246
    %8384 = vmatpush1.bf16.msra.mxu0 %v5245
    %8385 = vmatprep.subr.bf16.mxu0 %v5262
    %8386 = vmatpush1.bf16.msra.mxu0 %v5261
    %8387 = vmatprep.subr.bf16.mxu0 %v5278
    %8388 = vmatpush1.bf16.msra.mxu0 %v5277
    %8389 = vmatprep.subr.bf16.mxu0 %v5294
    %8390 = vmatpush1.bf16.msra.mxu0 %v5293
    %8391 = vmatprep.subr.bf16.mxu0 %v5310
    %8392 = vmatpush1.bf16.msra.mxu0 %v5309
    %8393 = vmatprep.subr.bf16.mxu0 %v5326
    %8394 = vmatpush1.bf16.msra.mxu0 %v5325
    %8395 = vmatprep.subr.bf16.mxu0 %v5342
    %8396 = vmatpush1.bf16.msra.mxu0 %v5341
    %8397 = vmatprep.subr.bf16.mxu0 %v5358
    %8398 = vmatpush1.bf16.msra.mxu0 %v5357
    %8399 = vmatprep.subr.bf16.mxu0 %v5374
    %8400 = vmatpush1.bf16.msra.mxu0 %v5373
    %8401 = vmatprep.subr.bf16.mxu0 %v5390
    %8402 = vmatpush1.bf16.msra.mxu0 %v5389
    %8403 = vmatprep.subr.bf16.mxu0 %v5406
    %8404 = vmatpush1.bf16.msra.mxu0 %v5405
    %8405 = vmatprep.subr.bf16.mxu0 %v5422
    %8406 = vmatpush1.bf16.msra.mxu0 %v5421
    %8407 = vmatprep.subr.bf16.mxu0 %v5438
    %8408 = vmatpush1.bf16.msra.mxu0 %v5437
    %8409 = vmatprep.mubr.bf16.mxu0 %v7800
    %8410 = vmatmul.mubr.bf16.gmra.mrb[0].mxu0 %v7799
    %v8411 = vpop.f32.mrb[0].mxu0
    %v8412 = vadd.f32 0.0, %v8411
    %v8413 = vpop.f32.mrb[0].mxu0
    %v8414 = vadd.f32 0.0, %v8413
    %v8415 = vpop.f32.mrb[0].mxu0
    %v8416 = vpop.f32.mrb[0].mxu0
    %8417 = vdwg.mxu0
    %8418 = vmatprep.subr.bf16.mxu0 %v5454
    %8419 = vmatpush1.bf16.msra.mxu0 %v5453
    %8420 = vmatprep.subr.bf16.mxu0 %v5470
    %8421 = vmatpush1.bf16.msra.mxu0 %v5469
    %8422 = vmatprep.subr.bf16.mxu0 %v5486
    %8423 = vmatpush1.bf16.msra.mxu0 %v5485
    %8424 = vmatprep.subr.bf16.mxu0 %v5502
    %8425 = vmatpush1.bf16.msra.mxu0 %v5501
    %8426 = vmatprep.subr.bf16.mxu0 %v5518
    %8427 = vmatpush1.bf16.msra.mxu0 %v5517
    %8428 = vmatprep.subr.bf16.mxu0 %v5534
    %8429 = vmatpush1.bf16.msra.mxu0 %v5533
    %8430 = vmatprep.subr.bf16.mxu0 %v5550
    %8431 = vmatpush1.bf16.msra.mxu0 %v5549
    %8432 = vmatprep.subr.bf16.mxu0 %v5566
    %8433 = vmatpush1.bf16.msra.mxu0 %v5565
    %8434 = vmatprep.subr.bf16.mxu0 %v5582
    %8435 = vmatpush1.bf16.msra.mxu0 %v5581
    %8436 = vmatprep.subr.bf16.mxu0 %v5598
    %8437 = vmatpush1.bf16.msra.mxu0 %v5597
    %8438 = vmatprep.subr.bf16.mxu0 %v5614
    %8439 = vmatpush1.bf16.msra.mxu0 %v5613
    %8440 = vmatprep.subr.bf16.mxu0 %v5630
    %8441 = vmatpush1.bf16.msra.mxu0 %v5629
    %8442 = vmatprep.subr.bf16.mxu0 %v5646
    %8443 = vmatpush1.bf16.msra.mxu0 %v5645
    %8444 = vmatprep.subr.bf16.mxu0 %v5662
    %8445 = vmatpush1.bf16.msra.mxu0 %v5661
    %8446 = vmatprep.subr.bf16.mxu0 %v5678
    %8447 = vmatpush1.bf16.msra.mxu0 %v5677
    %8448 = vmatprep.subr.bf16.mxu0 %v5694
    %8449 = vmatpush1.bf16.msra.mxu0 %v5693
    %8450 = vmatprep.mubr.bf16.mxu0 %v7802
    %8451 = vmatmul.mubr.bf16.gmra.mrb[0].mxu0 %v7801
    %v8452 = vpop.f32.mrb[0].mxu0
    %v8453 = vadd.f32 %v8412, %v8452
    %v8454 = vpop.f32.mrb[0].mxu0
    %v8455 = vadd.f32 %v8414, %v8454
    %v8456 = vpop.f32.mrb[0].mxu0
    %v8457 = vpop.f32.mrb[0].mxu0
    %8458 = vdwg.mxu0
    %v8475 = vcombine.low %v7879, %v7881
    %v8476 = vcombine.low %v7961, %v7963
    %v8478 = vunpack.c.l.s4 1983009808
    %v8479 = vunpack.c.0.s8 %v8478
    %v8480 = vlaneseq
    %v8481 = vshrl.u32 %v8480, 7
    %v8482 = vsub.s32 %v8479, %v8481
    %v8483 = vrot.slane %v8475, %v8482
    %v8485 = vunpack.c.l.s4 1983009808
    %v8486 = vunpack.c.0.s8 %v8485
    %v8487 = vlaneseq
    %v8488 = vshrl.u32 %v8487, 7
    %v8489 = vsub.s32 %v8486, %v8488
    %v8490 = vrot.slane %v8476, %v8489
    %v8491 = vcombine.low %v8483, %v8490
    %v8492 = vcombine.low %v8043, %v8045
    %v8493 = vcombine.low %v8125, %v8127
    %v8495 = vunpack.c.l.s4 1983009808
    %v8496 = vunpack.c.0.s8 %v8495
    %v8497 = vlaneseq
    %v8498 = vshrl.u32 %v8497, 7
    %v8499 = vsub.s32 %v8496, %v8498
    %v8500 = vrot.slane %v8492, %v8499
    %v8502 = vunpack.c.l.s4 1983009808
    %v8503 = vunpack.c.0.s8 %v8502
    %v8504 = vlaneseq
    %v8505 = vshrl.u32 %v8504, 7
    %v8506 = vsub.s32 %v8503, %v8505
    %v8507 = vrot.slane %v8493, %v8506
    %v8508 = vcombine.low %v8500, %v8507
    %v8509 = vcombine.low %v8207, %v8209
    %v8510 = vcombine.low %v8289, %v8291
    %v8512 = vunpack.c.l.s4 1983009808
    %v8513 = vunpack.c.0.s8 %v8512
    %v8514 = vlaneseq
    %v8515 = vshrl.u32 %v8514, 7
    %v8516 = vsub.s32 %v8513, %v8515
    %v8517 = vrot.slane %v8509, %v8516
    %v8519 = vunpack.c.l.s4 1983009808
    %v8520 = vunpack.c.0.s8 %v8519
    %v8521 = vlaneseq
    %v8522 = vshrl.u32 %v8521, 7
    %v8523 = vsub.s32 %v8520, %v8522
    %v8524 = vrot.slane %v8510, %v8523
    %v8525 = vcombine.low %v8517, %v8524
    %v8526 = vcombine.low %v8371, %v8373
    %v8527 = vcombine.low %v8453, %v8455
    %v8529 = vunpack.c.l.s4 1983009808
    %v8530 = vunpack.c.0.s8 %v8529
    %v8531 = vlaneseq
    %v8532 = vshrl.u32 %v8531, 7
    %v8533 = vsub.s32 %v8530, %v8532
    %v8534 = vrot.slane %v8526, %v8533
    %v8536 = vunpack.c.l.s4 1983009808
    %v8537 = vunpack.c.0.s8 %v8536
    %v8538 = vlaneseq
    %v8539 = vshrl.u32 %v8538, 7
    %v8540 = vsub.s32 %v8537, %v8539
    %v8541 = vrot.slane %v8527, %v8540
    %v8542 = vcombine.low %v8534, %v8541
    %v8547 = vadd.f32 %v3009, %v8491
    %v8548 = vadd.f32 %v3045, %v8508
    %v8549 = vadd.f32 %v3081, %v8525
    %v8550 = vadd.f32 %v3117, %v8542
    %v8551 = vxor.u32 %v8547, 2147483648
    %v8552 = vmul.f32 %v8551, 1.442695
    %v8553 = vpow.pop %v8552
    %v8554 = vadd.f32 %v8553, 1.0
    %v8555 = vrcp.pop %v8554
    %v8556 = vmul.f32 1.0, %v8555
    %v8557 = vxor.u32 %v8548, 2147483648
    %v8558 = vmul.f32 %v8557, 1.442695
    %v8559 = vpow.pop %v8558
    %v8560 = vadd.f32 %v8559, 1.0
    %v8561 = vrcp.pop %v8560
    %v8562 = vmul.f32 1.0, %v8561
    %v8563 = vtanh.pop %v8549
    %v8564 = vxor.u32 %v8550, 2147483648
    %v8565 = vmul.f32 %v8564, 1.442695
    %v8566 = vpow.pop %v8565
    %v8567 = vadd.f32 %v8566, 1.0
    %v8568 = vrcp.pop %v8567
    %v8569 = vmul.f32 1.0, %v8568
    %v8570 = vmul.f32 %v8562, %v7774
    %v8571 = vmul.f32 %v8556, %v8563
    %v8572 = vadd.f32 %v8570, %v8571
    %v8573 = vtanh.pop %v8572
    %v8574 = vmul.f32 %v8569, %v8573
    %v8576 = vcombine.high %v8574, %v8574
    %v8578 = vunpack.c.l.s4 1983009808
    %v8579 = vunpack.c.0.s8 %v8578
    %v8580 = vlaneseq
    %v8581 = vshrl.u32 %v8580, 7
    %v8582 = vsub.s32 %v8579, %v8581
    %v8583 = vrot.slane %v8574, %v8582
    %v8585 = vunpack.c.l.s4 1983009808
    %v8586 = vunpack.c.0.s8 %v8585
    %v8587 = vlaneseq
    %v8588 = vshrl.u32 %v8587, 7
    %v8589 = vsub.s32 %v8586, %v8588
    %v8590 = vrot.slane %v8576, %v8589
    %v8591 = vcombine.high %v8583, %v8583
    %v8592 = vcombine.high %v8590, %v8590
    %v8597 = vpack.c.bf16 %v8583, %v8583
    %v8598 = vpack.c.bf16 %v8591, %v8591
    %v8599 = vpack.c.bf16 %v8590, %v8590
    %v8600 = vpack.c.bf16 %v8592, %v8592
    %8601 = vmatprep.subr.bf16.mxu0 %v5184
    %8602 = vmatpush1.bf16.msra.mxu0 %v5183
    %8603 = vmatprep.subr.bf16.mxu0 %v5200
    %8604 = vmatpush1.bf16.msra.mxu0 %v5199
    %8605 = vmatprep.subr.bf16.mxu0 %v5216
    %8606 = vmatpush1.bf16.msra.mxu0 %v5215
    %8607 = vmatprep.subr.bf16.mxu0 %v5232
    %8608 = vmatpush1.bf16.msra.mxu0 %v5231
    %8609 = vmatprep.subr.bf16.mxu0 %v5248
    %8610 = vmatpush1.bf16.msra.mxu0 %v5247
    %8611 = vmatprep.subr.bf16.mxu0 %v5264
    %8612 = vmatpush1.bf16.msra.mxu0 %v5263
    %8613 = vmatprep.subr.bf16.mxu0 %v5280
    %8614 = vmatpush1.bf16.msra.mxu0 %v5279
    %8615 = vmatprep.subr.bf16.mxu0 %v5296
    %8616 = vmatpush1.bf16.msra.mxu0 %v5295
    %8617 = vmatprep.subr.bf16.mxu0 %v5312
    %8618 = vmatpush1.bf16.msra.mxu0 %v5311
    %8619 = vmatprep.subr.bf16.mxu0 %v5328
    %8620 = vmatpush1.bf16.msra.mxu0 %v5327
    %8621 = vmatprep.subr.bf16.mxu0 %v5344
    %8622 = vmatpush1.bf16.msra.mxu0 %v5343
    %8623 = vmatprep.subr.bf16.mxu0 %v5360
    %8624 = vmatpush1.bf16.msra.mxu0 %v5359
    %8625 = vmatprep.subr.bf16.mxu0 %v5376
    %8626 = vmatpush1.bf16.msra.mxu0 %v5375
    %8627 = vmatprep.subr.bf16.mxu0 %v5392
    %8628 = vmatpush1.bf16.msra.mxu0 %v5391
    %8629 = vmatprep.subr.bf16.mxu0 %v5408
    %8630 = vmatpush1.bf16.msra.mxu0 %v5407
    %8631 = vmatprep.subr.bf16.mxu0 %v5424
    %8632 = vmatpush1.bf16.msra.mxu0 %v5423
    %8633 = vmatprep.mubr.bf16.mxu0 %v8598
    %8634 = vmatmul.mubr.bf16.gmra.mrb[0].mxu0 %v8597
    %v8635 = vpop.f32.mrb[0].mxu0
    %v8636 = vadd.f32 0.0, %v8635
    %v8637 = vpop.f32.mrb[0].mxu0
    %v8638 = vadd.f32 0.0, %v8637
    %v8639 = vpop.f32.mrb[0].mxu0
    %v8640 = vpop.f32.mrb[0].mxu0
    %8641 = vdwg.mxu0
    %8642 = vmatprep.subr.bf16.mxu0 %v5440
    %8643 = vmatpush1.bf16.msra.mxu0 %v5439
    %8644 = vmatprep.subr.bf16.mxu0 %v5456
    %8645 = vmatpush1.bf16.msra.mxu0 %v5455
    %8646 = vmatprep.subr.bf16.mxu0 %v5472
    %8647 = vmatpush1.bf16.msra.mxu0 %v5471
    %8648 = vmatprep.subr.bf16.mxu0 %v5488
    %8649 = vmatpush1.bf16.msra.mxu0 %v5487
    %8650 = vmatprep.subr.bf16.mxu0 %v5504
    %8651 = vmatpush1.bf16.msra.mxu0 %v5503
    %8652 = vmatprep.subr.bf16.mxu0 %v5520
    %8653 = vmatpush1.bf16.msra.mxu0 %v5519
    %8654 = vmatprep.subr.bf16.mxu0 %v5536
    %8655 = vmatpush1.bf16.msra.mxu0 %v5535
    %8656 = vmatprep.subr.bf16.mxu0 %v5552
    %8657 = vmatpush1.bf16.msra.mxu0 %v5551
    %8658 = vmatprep.subr.bf16.mxu0 %v5568
    %8659 = vmatpush1.bf16.msra.mxu0 %v5567
    %8660 = vmatprep.subr.bf16.mxu0 %v5584
    %8661 = vmatpush1.bf16.msra.mxu0 %v5583
    %8662 = vmatprep.subr.bf16.mxu0 %v5600
    %8663 = vmatpush1.bf16.msra.mxu0 %v5599
    %8664 = vmatprep.subr.bf16.mxu0 %v5616
    %8665 = vmatpush1.bf16.msra.mxu0 %v5615
    %8666 = vmatprep.subr.bf16.mxu0 %v5632
    %8667 = vmatpush1.bf16.msra.mxu0 %v5631
    %8668 = vmatprep.subr.bf16.mxu0 %v5648
    %8669 = vmatpush1.bf16.msra.mxu0 %v5647
    %8670 = vmatprep.subr.bf16.mxu0 %v5664
    %8671 = vmatpush1.bf16.msra.mxu0 %v5663
    %8672 = vmatprep.subr.bf16.mxu0 %v5680
    %8673 = vmatpush1.bf16.msra.mxu0 %v5679
    %8674 = vmatprep.mubr.bf16.mxu0 %v8600
    %8675 = vmatmul.mubr.bf16.gmra.mrb[0].mxu0 %v8599
    %v8676 = vpop.f32.mrb[0].mxu0
    %v8677 = vadd.f32 %v8636, %v8676
    %v8678 = vpop.f32.mrb[0].mxu0
    %v8679 = vadd.f32 %v8638, %v8678
    %v8680 = vpop.f32.mrb[0].mxu0
    %v8681 = vpop.f32.mrb[0].mxu0
    %8682 = vdwg.mxu0
    %8683 = vmatprep.subr.bf16.mxu0 %v5186
    %8684 = vmatpush1.bf16.msra.mxu0 %v5185
    %8685 = vmatprep.subr.bf16.mxu0 %v5202
    %8686 = vmatpush1.bf16.msra.mxu0 %v5201
    %8687 = vmatprep.subr.bf16.mxu0 %v5218
    %8688 = vmatpush1.bf16.msra.mxu0 %v5217
    %8689 = vmatprep.subr.bf16.mxu0 %v5234
    %8690 = vmatpush1.bf16.msra.mxu0 %v5233
    %8691 = vmatprep.subr.bf16.mxu0 %v5250
    %8692 = vmatpush1.bf16.msra.mxu0 %v5249
    %8693 = vmatprep.subr.bf16.mxu0 %v5266
    %8694 = vmatpush1.bf16.msra.mxu0 %v5265
    %8695 = vmatprep.subr.bf16.mxu0 %v5282
    %8696 = vmatpush1.bf16.msra.mxu0 %v5281
    %8697 = vmatprep.subr.bf16.mxu0 %v5298
    %8698 = vmatpush1.bf16.msra.mxu0 %v5297
    %8699 = vmatprep.subr.bf16.mxu0 %v5314
    %8700 = vmatpush1.bf16.msra.mxu0 %v5313
    %8701 = vmatprep.subr.bf16.mxu0 %v5330
    %8702 = vmatpush1.bf16.msra.mxu0 %v5329
    %8703 = vmatprep.subr.bf16.mxu0 %v5346
    %8704 = vmatpush1.bf16.msra.mxu0 %v5345
    %8705 = vmatprep.subr.bf16.mxu0 %v5362
    %8706 = vmatpush1.bf16.msra.mxu0 %v5361
    %8707 = vmatprep.subr.bf16.mxu0 %v5378
    %8708 = vmatpush1.bf16.msra.mxu0 %v5377
    %8709 = vmatprep.subr.bf16.mxu0 %v5394
    %8710 = vmatpush1.bf16.msra.mxu0 %v5393
    %8711 = vmatprep.subr.bf16.mxu0 %v5410
    %8712 = vmatpush1.bf16.msra.mxu0 %v5409
    %8713 = vmatprep.subr.bf16.mxu0 %v5426
    %8714 = vmatpush1.bf16.msra.mxu0 %v5425
    %8715 = vmatprep.mubr.bf16.mxu0 %v8598
    %8716 = vmatmul.mubr.bf16.gmra.mrb[0].mxu0 %v8597
    %v8717 = vpop.f32.mrb[0].mxu0
    %v8718 = vadd.f32 0.0, %v8717
    %v8719 = vpop.f32.mrb[0].mxu0
    %v8720 = vadd.f32 0.0, %v8719
    %v8721 = vpop.f32.mrb[0].mxu0
    %v8722 = vpop.f32.mrb[0].mxu0
    %8723 = vdwg.mxu0
    %8724 = vmatprep.subr.bf16.mxu0 %v5442
    %8725 = vmatpush1.bf16.msra.mxu0 %v5441
    %8726 = vmatprep.subr.bf16.mxu0 %v5458
    %8727 = vmatpush1.bf16.msra.mxu0 %v5457
    %8728 = vmatprep.subr.bf16.mxu0 %v5474
    %8729 = vmatpush1.bf16.msra.mxu0 %v5473
    %8730 = vmatprep.subr.bf16.mxu0 %v5490
    %8731 = vmatpush1.bf16.msra.mxu0 %v5489
    %8732 = vmatprep.subr.bf16.mxu0 %v5506
    %8733 = vmatpush1.bf16.msra.mxu0 %v5505
    %8734 = vmatprep.subr.bf16.mxu0 %v5522
    %8735 = vmatpush1.bf16.msra.mxu0 %v5521
    %8736 = vmatprep.subr.bf16.mxu0 %v5538
    %8737 = vmatpush1.bf16.msra.mxu0 %v5537
    %8738 = vmatprep.subr.bf16.mxu0 %v5554
    %8739 = vmatpush1.bf16.msra.mxu0 %v5553
    %8740 = vmatprep.subr.bf16.mxu0 %v5570
    %8741 = vmatpush1.bf16.msra.mxu0 %v5569
    %8742 = vmatprep.subr.bf16.mxu0 %v5586
    %8743 = vmatpush1.bf16.msra.mxu0 %v5585
    %8744 = vmatprep.subr.bf16.mxu0 %v5602
    %8745 = vmatpush1.bf16.msra.mxu0 %v5601
    %8746 = vmatprep.subr.bf16.mxu0 %v5618
    %8747 = vmatpush1.bf16.msra.mxu0 %v5617
    %8748 = vmatprep.subr.bf16.mxu0 %v5634
    %8749 = vmatpush1.bf16.msra.mxu0 %v5633
    %8750 = vmatprep.subr.bf16.mxu0 %v5650
    %8751 = vmatpush1.bf16.msra.mxu0 %v5649
    %8752 = vmatprep.subr.bf16.mxu0 %v5666
    %8753 = vmatpush1.bf16.msra.mxu0 %v5665
    %8754 = vmatprep.subr.bf16.mxu0 %v5682
    %8755 = vmatpush1.bf16.msra.mxu0 %v5681
    %8756 = vmatprep.mubr.bf16.mxu0 %v8600
    %8757 = vmatmul.mubr.bf16.gmra.mrb[0].mxu0 %v8599
    %v8758 = vpop.f32.mrb[0].mxu0
    %v8759 = vadd.f32 %v8718, %v8758
    %v8760 = vpop.f32.mrb[0].mxu0
    %v8761 = vadd.f32 %v8720, %v8760
    %v8762 = vpop.f32.mrb[0].mxu0
    %v8763 = vpop.f32.mrb[0].mxu0
    %8764 = vdwg.mxu0
    %8765 = vmatprep.subr.bf16.mxu0 %v5188
    %8766 = vmatpush1.bf16.msra.mxu0 %v5187
    %8767 = vmatprep.subr.bf16.mxu0 %v5204
    %8768 = vmatpush1.bf16.msra.mxu0 %v5203
    %8769 = vmatprep.subr.bf16.mxu0 %v5220
    %8770 = vmatpush1.bf16.msra.mxu0 %v5219
    %8771 = vmatprep.subr.bf16.mxu0 %v5236
    %8772 = vmatpush1.bf16.msra.mxu0 %v5235
    %8773 = vmatprep.subr.bf16.mxu0 %v5252
    %8774 = vmatpush1.bf16.msra.mxu0 %v5251
    %8775 = vmatprep.subr.bf16.mxu0 %v5268
    %8776 = vmatpush1.bf16.msra.mxu0 %v5267
    %8777 = vmatprep.subr.bf16.mxu0 %v5284
    %8778 = vmatpush1.bf16.msra.mxu0 %v5283
    %8779 = vmatprep.subr.bf16.mxu0 %v5300
    %8780 = vmatpush1.bf16.msra.mxu0 %v5299
    %8781 = vmatprep.subr.bf16.mxu0 %v5316
    %8782 = vmatpush1.bf16.msra.mxu0 %v5315
    %8783 = vmatprep.subr.bf16.mxu0 %v5332
    %8784 = vmatpush1.bf16.msra.mxu0 %v5331
    %8785 = vmatprep.subr.bf16.mxu0 %v5348
    %8786 = vmatpush1.bf16.msra.mxu0 %v5347
    %8787 = vmatprep.subr.bf16.mxu0 %v5364
    %8788 = vmatpush1.bf16.msra.mxu0 %v5363
    %8789 = vmatprep.subr.bf16.mxu0 %v5380
    %8790 = vmatpush1.bf16.msra.mxu0 %v5379
    %8791 = vmatprep.subr.bf16.mxu0 %v5396
    %8792 = vmatpush1.bf16.msra.mxu0 %v5395
    %8793 = vmatprep.subr.bf16.mxu0 %v5412
    %8794 = vmatpush1.bf16.msra.mxu0 %v5411
    %8795 = vmatprep.subr.bf16.mxu0 %v5428
    %8796 = vmatpush1.bf16.msra.mxu0 %v5427
    %8797 = vmatprep.mubr.bf16.mxu0 %v8598
    %8798 = vmatmul.mubr.bf16.gmra.mrb[0].mxu0 %v8597
    %v8799 = vpop.f32.mrb[0].mxu0
    %v8800 = vadd.f32 0.0, %v8799
    %v8801 = vpop.f32.mrb[0].mxu0
    %v8802 = vadd.f32 0.0, %v8801
    %v8803 = vpop.f32.mrb[0].mxu0
    %v8804 = vpop.f32.mrb[0].mxu0
    %8805 = vdwg.mxu0
    %8806 = vmatprep.subr.bf16.mxu0 %v5444
    %8807 = vmatpush1.bf16.msra.mxu0 %v5443
    %8808 = vmatprep.subr.bf16.mxu0 %v5460
    %8809 = vmatpush1.bf16.msra.mxu0 %v5459
    %8810 = vmatprep.subr.bf16.mxu0 %v5476
    %8811 = vmatpush1.bf16.msra.mxu0 %v5475
    %8812 = vmatprep.subr.bf16.mxu0 %v5492
    %8813 = vmatpush1.bf16.msra.mxu0 %v5491
    %8814 = vmatprep.subr.bf16.mxu0 %v5508
    %8815 = vmatpush1.bf16.msra.mxu0 %v5507
    %8816 = vmatprep.subr.bf16.mxu0 %v5524
    %8817 = vmatpush1.bf16.msra.mxu0 %v5523
    %8818 = vmatprep.subr.bf16.mxu0 %v5540
    %8819 = vmatpush1.bf16.msra.mxu0 %v5539
    %8820 = vmatprep.subr.bf16.mxu0 %v5556
    %8821 = vmatpush1.bf16.msra.mxu0 %v5555
    %8822 = vmatprep.subr.bf16.mxu0 %v5572
    %8823 = vmatpush1.bf16.msra.mxu0 %v5571
    %8824 = vmatprep.subr.bf16.mxu0 %v5588
    %8825 = vmatpush1.bf16.msra.mxu0 %v5587
    %8826 = vmatprep.subr.bf16.mxu0 %v5604
    %8827 = vmatpush1.bf16.msra.mxu0 %v5603
    %8828 = vmatprep.subr.bf16.mxu0 %v5620
    %8829 = vmatpush1.bf16.msra.mxu0 %v5619
    %8830 = vmatprep.subr.bf16.mxu0 %v5636
    %8831 = vmatpush1.bf16.msra.mxu0 %v5635
    %8832 = vmatprep.subr.bf16.mxu0 %v5652
    %8833 = vmatpush1.bf16.msra.mxu0 %v5651
    %8834 = vmatprep.subr.bf16.mxu0 %v5668
    %8835 = vmatpush1.bf16.msra.mxu0 %v5667
    %8836 = vmatprep.subr.bf16.mxu0 %v5684
    %8837 = vmatpush1.bf16.msra.mxu0 %v5683
    %8838 = vmatprep.mubr.bf16.mxu0 %v8600
    %8839 = vmatmul.mubr.bf16.gmra.mrb[0].mxu0 %v8599
    %v8840 = vpop.f32.mrb[0].mxu0
    %v8841 = vadd.f32 %v8800, %v8840
    %v8842 = vpop.f32.mrb[0].mxu0
    %v8843 = vadd.f32 %v8802, %v8842
    %v8844 = vpop.f32.mrb[0].mxu0
    %v8845 = vpop.f32.mrb[0].mxu0
    %8846 = vdwg.mxu0
    %8847 = vmatprep.subr.bf16.mxu0 %v5190
    %8848 = vmatpush1.bf16.msra.mxu0 %v5189
    %8849 = vmatprep.subr.bf16.mxu0 %v5206
    %8850 = vmatpush1.bf16.msra.mxu0 %v5205
    %8851 = vmatprep.subr.bf16.mxu0 %v5222
    %8852 = vmatpush1.bf16.msra.mxu0 %v5221
    %8853 = vmatprep.subr.bf16.mxu0 %v5238
    %8854 = vmatpush1.bf16.msra.mxu0 %v5237
    %8855 = vmatprep.subr.bf16.mxu0 %v5254
    %8856 = vmatpush1.bf16.msra.mxu0 %v5253
    %8857 = vmatprep.subr.bf16.mxu0 %v5270
    %8858 = vmatpush1.bf16.msra.mxu0 %v5269
    %8859 = vmatprep.subr.bf16.mxu0 %v5286
    %8860 = vmatpush1.bf16.msra.mxu0 %v5285
    %8861 = vmatprep.subr.bf16.mxu0 %v5302
    %8862 = vmatpush1.bf16.msra.mxu0 %v5301
    %8863 = vmatprep.subr.bf16.mxu0 %v5318
    %8864 = vmatpush1.bf16.msra.mxu0 %v5317
    %8865 = vmatprep.subr.bf16.mxu0 %v5334
    %8866 = vmatpush1.bf16.msra.mxu0 %v5333
    %8867 = vmatprep.subr.bf16.mxu0 %v5350
    %8868 = vmatpush1.bf16.msra.mxu0 %v5349
    %8869 = vmatprep.subr.bf16.mxu0 %v5366
    %8870 = vmatpush1.bf16.msra.mxu0 %v5365
    %8871 = vmatprep.subr.bf16.mxu0 %v5382
    %8872 = vmatpush1.bf16.msra.mxu0 %v5381
    %8873 = vmatprep.subr.bf16.mxu0 %v5398
    %8874 = vmatpush1.bf16.msra.mxu0 %v5397
    %8875 = vmatprep.subr.bf16.mxu0 %v5414
    %8876 = vmatpush1.bf16.msra.mxu0 %v5413
    %8877 = vmatprep.subr.bf16.mxu0 %v5430
    %8878 = vmatpush1.bf16.msra.mxu0 %v5429
    %8879 = vmatprep.mubr.bf16.mxu0 %v8598
    %8880 = vmatmul.mubr.bf16.gmra.mrb[0].mxu0 %v8597
    %v8881 = vpop.f32.mrb[0].mxu0
    %v8882 = vadd.f32 0.0, %v8881
    %v8883 = vpop.f32.mrb[0].mxu0
    %v8884 = vadd.f32 0.0, %v8883
    %v8885 = vpop.f32.mrb[0].mxu0
    %v8886 = vpop.f32.mrb[0].mxu0
    %8887 = vdwg.mxu0
    %8888 = vmatprep.subr.bf16.mxu0 %v5446
    %8889 = vmatpush1.bf16.msra.mxu0 %v5445
    %8890 = vmatprep.subr.bf16.mxu0 %v5462
    %8891 = vmatpush1.bf16.msra.mxu0 %v5461
    %8892 = vmatprep.subr.bf16.mxu0 %v5478
    %8893 = vmatpush1.bf16.msra.mxu0 %v5477
    %8894 = vmatprep.subr.bf16.mxu0 %v5494
    %8895 = vmatpush1.bf16.msra.mxu0 %v5493
    %8896 = vmatprep.subr.bf16.mxu0 %v5510
    %8897 = vmatpush1.bf16.msra.mxu0 %v5509
    %8898 = vmatprep.subr.bf16.mxu0 %v5526
    %8899 = vmatpush1.bf16.msra.mxu0 %v5525
    %8900 = vmatprep.subr.bf16.mxu0 %v5542
    %8901 = vmatpush1.bf16.msra.mxu0 %v5541
    %8902 = vmatprep.subr.bf16.mxu0 %v5558
    %8903 = vmatpush1.bf16.msra.mxu0 %v5557
    %8904 = vmatprep.subr.bf16.mxu0 %v5574
    %8905 = vmatpush1.bf16.msra.mxu0 %v5573
    %8906 = vmatprep.subr.bf16.mxu0 %v5590
    %8907 = vmatpush1.bf16.msra.mxu0 %v5589
    %8908 = vmatprep.subr.bf16.mxu0 %v5606
    %8909 = vmatpush1.bf16.msra.mxu0 %v5605
    %8910 = vmatprep.subr.bf16.mxu0 %v5622
    %8911 = vmatpush1.bf16.msra.mxu0 %v5621
    %8912 = vmatprep.subr.bf16.mxu0 %v5638
    %8913 = vmatpush1.bf16.msra.mxu0 %v5637
    %8914 = vmatprep.subr.bf16.mxu0 %v5654
    %8915 = vmatpush1.bf16.msra.mxu0 %v5653
    %8916 = vmatprep.subr.bf16.mxu0 %v5670
    %8917 = vmatpush1.bf16.msra.mxu0 %v5669
    %8918 = vmatprep.subr.bf16.mxu0 %v5686
    %8919 = vmatpush1.bf16.msra.mxu0 %v5685
    %8920 = vmatprep.mubr.bf16.mxu0 %v8600
    %8921 = vmatmul.mubr.bf16.gmra.mrb[0].mxu0 %v8599
    %v8922 = vpop.f32.mrb[0].mxu0
    %v8923 = vadd.f32 %v8882, %v8922
    %v8924 = vpop.f32.mrb[0].mxu0
    %v8925 = vadd.f32 %v8884, %v8924
    %v8926 = vpop.f32.mrb[0].mxu0
    %v8927 = vpop.f32.mrb[0].mxu0
    %8928 = vdwg.mxu0
    %8929 = vmatprep.subr.bf16.mxu0 %v5192
    %8930 = vmatpush1.bf16.msra.mxu0 %v5191
    %8931 = vmatprep.subr.bf16.mxu0 %v5208
    %8932 = vmatpush1.bf16.msra.mxu0 %v5207
    %8933 = vmatprep.subr.bf16.mxu0 %v5224
    %8934 = vmatpush1.bf16.msra.mxu0 %v5223
    %8935 = vmatprep.subr.bf16.mxu0 %v5240
    %8936 = vmatpush1.bf16.msra.mxu0 %v5239
    %8937 = vmatprep.subr.bf16.mxu0 %v5256
    %8938 = vmatpush1.bf16.msra.mxu0 %v5255
    %8939 = vmatprep.subr.bf16.mxu0 %v5272
    %8940 = vmatpush1.bf16.msra.mxu0 %v5271
    %8941 = vmatprep.subr.bf16.mxu0 %v5288
    %8942 = vmatpush1.bf16.msra.mxu0 %v5287
    %8943 = vmatprep.subr.bf16.mxu0 %v5304
    %8944 = vmatpush1.bf16.msra.mxu0 %v5303
    %8945 = vmatprep.subr.bf16.mxu0 %v5320
    %8946 = vmatpush1.bf16.msra.mxu0 %v5319
    %8947 = vmatprep.subr.bf16.mxu0 %v5336
    %8948 = vmatpush1.bf16.msra.mxu0 %v5335
    %8949 = vmatprep.subr.bf16.mxu0 %v5352
    %8950 = vmatpush1.bf16.msra.mxu0 %v5351
    %8951 = vmatprep.subr.bf16.mxu0 %v5368
    %8952 = vmatpush1.bf16.msra.mxu0 %v5367
    %8953 = vmatprep.subr.bf16.mxu0 %v5384
    %8954 = vmatpush1.bf16.msra.mxu0 %v5383
    %8955 = vmatprep.subr.bf16.mxu0 %v5400
    %8956 = vmatpush1.bf16.msra.mxu0 %v5399
    %8957 = vmatprep.subr.bf16.mxu0 %v5416
    %8958 = vmatpush1.bf16.msra.mxu0 %v5415
    %8959 = vmatprep.subr.bf16.mxu0 %v5432
    %8960 = vmatpush1.bf16.msra.mxu0 %v5431
    %8961 = vmatprep.mubr.bf16.mxu0 %v8598
    %8962 = vmatmul.mubr.bf16.gmra.mrb[0].mxu0 %v8597
    %v8963 = vpop.f32.mrb[0].mxu0
    %v8964 = vadd.f32 0.0, %v8963
    %v8965 = vpop.f32.mrb[0].mxu0
    %v8966 = vadd.f32 0.0, %v8965
    %v8967 = vpop.f32.mrb[0].mxu0
    %v8968 = vpop.f32.mrb[0].mxu0
    %8969 = vdwg.mxu0
    %8970 = vmatprep.subr.bf16.mxu0 %v5448
    %8971 = vmatpush1.bf16.msra.mxu0 %v5447
    %8972 = vmatprep.subr.bf16.mxu0 %v5464
    %8973 = vmatpush1.bf16.msra.mxu0 %v5463
    %8974 = vmatprep.subr.bf16.mxu0 %v5480
    %8975 = vmatpush1.bf16.msra.mxu0 %v5479
    %8976 = vmatprep.subr.bf16.mxu0 %v5496
    %8977 = vmatpush1.bf16.msra.mxu0 %v5495
    %8978 = vmatprep.subr.bf16.mxu0 %v5512
    %8979 = vmatpush1.bf16.msra.mxu0 %v5511
    %8980 = vmatprep.subr.bf16.mxu0 %v5528
    %8981 = vmatpush1.bf16.msra.mxu0 %v5527
    %8982 = vmatprep.subr.bf16.mxu0 %v5544
    %8983 = vmatpush1.bf16.msra.mxu0 %v5543
    %8984 = vmatprep.subr.bf16.mxu0 %v5560
    %8985 = vmatpush1.bf16.msra.mxu0 %v5559
    %8986 = vmatprep.subr.bf16.mxu0 %v5576
    %8987 = vmatpush1.bf16.msra.mxu0 %v5575
    %8988 = vmatprep.subr.bf16.mxu0 %v5592
    %8989 = vmatpush1.bf16.msra.mxu0 %v5591
    %8990 = vmatprep.subr.bf16.mxu0 %v5608
    %8991 = vmatpush1.bf16.msra.mxu0 %v5607
    %8992 = vmatprep.subr.bf16.mxu0 %v5624
    %8993 = vmatpush1.bf16.msra.mxu0 %v5623
    %8994 = vmatprep.subr.bf16.mxu0 %v5640
    %8995 = vmatpush1.bf16.msra.mxu0 %v5639
    %8996 = vmatprep.subr.bf16.mxu0 %v5656
    %8997 = vmatpush1.bf16.msra.mxu0 %v5655
    %8998 = vmatprep.subr.bf16.mxu0 %v5672
    %8999 = vmatpush1.bf16.msra.mxu0 %v5671
    %9000 = vmatprep.subr.bf16.mxu0 %v5688
    %9001 = vmatpush1.bf16.msra.mxu0 %v5687
    %9002 = vmatprep.mubr.bf16.mxu0 %v8600
    %9003 = vmatmul.mubr.bf16.gmra.mrb[0].mxu0 %v8599
    %v9004 = vpop.f32.mrb[0].mxu0
    %v9005 = vadd.f32 %v8964, %v9004
    %v9006 = vpop.f32.mrb[0].mxu0
    %v9007 = vadd.f32 %v8966, %v9006
    %v9008 = vpop.f32.mrb[0].mxu0
    %v9009 = vpop.f32.mrb[0].mxu0
    %9010 = vdwg.mxu0
    %9011 = vmatprep.subr.bf16.mxu0 %v5194
    %9012 = vmatpush1.bf16.msra.mxu0 %v5193
    %9013 = vmatprep.subr.bf16.mxu0 %v5210
    %9014 = vmatpush1.bf16.msra.mxu0 %v5209
    %9015 = vmatprep.subr.bf16.mxu0 %v5226
    %9016 = vmatpush1.bf16.msra.mxu0 %v5225
    %9017 = vmatprep.subr.bf16.mxu0 %v5242
    %9018 = vmatpush1.bf16.msra.mxu0 %v5241
    %9019 = vmatprep.subr.bf16.mxu0 %v5258
    %9020 = vmatpush1.bf16.msra.mxu0 %v5257
    %9021 = vmatprep.subr.bf16.mxu0 %v5274
    %9022 = vmatpush1.bf16.msra.mxu0 %v5273
    %9023 = vmatprep.subr.bf16.mxu0 %v5290
    %9024 = vmatpush1.bf16.msra.mxu0 %v5289
    %9025 = vmatprep.subr.bf16.mxu0 %v5306
    %9026 = vmatpush1.bf16.msra.mxu0 %v5305
    %9027 = vmatprep.subr.bf16.mxu0 %v5322
    %9028 = vmatpush1.bf16.msra.mxu0 %v5321
    %9029 = vmatprep.subr.bf16.mxu0 %v5338
    %9030 = vmatpush1.bf16.msra.mxu0 %v5337
    %9031 = vmatprep.subr.bf16.mxu0 %v5354
    %9032 = vmatpush1.bf16.msra.mxu0 %v5353
    %9033 = vmatprep.subr.bf16.mxu0 %v5370
    %9034 = vmatpush1.bf16.msra.mxu0 %v5369
    %9035 = vmatprep.subr.bf16.mxu0 %v5386
    %9036 = vmatpush1.bf16.msra.mxu0 %v5385
    %9037 = vmatprep.subr.bf16.mxu0 %v5402
    %9038 = vmatpush1.bf16.msra.mxu0 %v5401
    %9039 = vmatprep.subr.bf16.mxu0 %v5418
    %9040 = vmatpush1.bf16.msra.mxu0 %v5417
    %9041 = vmatprep.subr.bf16.mxu0 %v5434
    %9042 = vmatpush1.bf16.msra.mxu0 %v5433
    %9043 = vmatprep.mubr.bf16.mxu0 %v8598
    %9044 = vmatmul.mubr.bf16.gmra.mrb[0].mxu0 %v8597
    %v9045 = vpop.f32.mrb[0].mxu0
    %v9046 = vadd.f32 0.0, %v9045
    %v9047 = vpop.f32.mrb[0].mxu0
    %v9048 = vadd.f32 0.0, %v9047
    %v9049 = vpop.f32.mrb[0].mxu0
    %v9050 = vpop.f32.mrb[0].mxu0
    %9051 = vdwg.mxu0
    %9052 = vmatprep.subr.bf16.mxu0 %v5450
    %9053 = vmatpush1.bf16.msra.mxu0 %v5449
    %9054 = vmatprep.subr.bf16.mxu0 %v5466
    %9055 = vmatpush1.bf16.msra.mxu0 %v5465
    %9056 = vmatprep.subr.bf16.mxu0 %v5482
    %9057 = vmatpush1.bf16.msra.mxu0 %v5481
    %9058 = vmatprep.subr.bf16.mxu0 %v5498
    %9059 = vmatpush1.bf16.msra.mxu0 %v5497
    %9060 = vmatprep.subr.bf16.mxu0 %v5514
    %9061 = vmatpush1.bf16.msra.mxu0 %v5513
    %9062 = vmatprep.subr.bf16.mxu0 %v5530
    %9063 = vmatpush1.bf16.msra.mxu0 %v5529
    %9064 = vmatprep.subr.bf16.mxu0 %v5546
    %9065 = vmatpush1.bf16.msra.mxu0 %v5545
    %9066 = vmatprep.subr.bf16.mxu0 %v5562
    %9067 = vmatpush1.bf16.msra.mxu0 %v5561
    %9068 = vmatprep.subr.bf16.mxu0 %v5578
    %9069 = vmatpush1.bf16.msra.mxu0 %v5577
    %9070 = vmatprep.subr.bf16.mxu0 %v5594
    %9071 = vmatpush1.bf16.msra.mxu0 %v5593
    %9072 = vmatprep.subr.bf16.mxu0 %v5610
    %9073 = vmatpush1.bf16.msra.mxu0 %v5609
    %9074 = vmatprep.subr.bf16.mxu0 %v5626
    %9075 = vmatpush1.bf16.msra.mxu0 %v5625
    %9076 = vmatprep.subr.bf16.mxu0 %v5642
    %9077 = vmatpush1.bf16.msra.mxu0 %v5641
    %9078 = vmatprep.subr.bf16.mxu0 %v5658
    %9079 = vmatpush1.bf16.msra.mxu0 %v5657
    %9080 = vmatprep.subr.bf16.mxu0 %v5674
    %9081 = vmatpush1.bf16.msra.mxu0 %v5673
    %9082 = vmatprep.subr.bf16.mxu0 %v5690
    %9083 = vmatpush1.bf16.msra.mxu0 %v5689
    %9084 = vmatprep.mubr.bf16.mxu0 %v8600
    %9085 = vmatmul.mubr.bf16.gmra.mrb[0].mxu0 %v8599
    %v9086 = vpop.f32.mrb[0].mxu0
    %v9087 = vadd.f32 %v9046, %v9086
    %v9088 = vpop.f32.mrb[0].mxu0
    %v9089 = vadd.f32 %v9048, %v9088
    %v9090 = vpop.f32.mrb[0].mxu0
    %v9091 = vpop.f32.mrb[0].mxu0
    %9092 = vdwg.mxu0
    %9093 = vmatprep.subr.bf16.mxu0 %v5196
    %9094 = vmatpush1.bf16.msra.mxu0 %v5195
    %9095 = vmatprep.subr.bf16.mxu0 %v5212
    %9096 = vmatpush1.bf16.msra.mxu0 %v5211
    %9097 = vmatprep.subr.bf16.mxu0 %v5228
    %9098 = vmatpush1.bf16.msra.mxu0 %v5227
    %9099 = vmatprep.subr.bf16.mxu0 %v5244
    %9100 = vmatpush1.bf16.msra.mxu0 %v5243
    %9101 = vmatprep.subr.bf16.mxu0 %v5260
    %9102 = vmatpush1.bf16.msra.mxu0 %v5259
    %9103 = vmatprep.subr.bf16.mxu0 %v5276
    %9104 = vmatpush1.bf16.msra.mxu0 %v5275
    %9105 = vmatprep.subr.bf16.mxu0 %v5292
    %9106 = vmatpush1.bf16.msra.mxu0 %v5291
    %9107 = vmatprep.subr.bf16.mxu0 %v5308
    %9108 = vmatpush1.bf16.msra.mxu0 %v5307
    %9109 = vmatprep.subr.bf16.mxu0 %v5324
    %9110 = vmatpush1.bf16.msra.mxu0 %v5323
    %9111 = vmatprep.subr.bf16.mxu0 %v5340
    %9112 = vmatpush1.bf16.msra.mxu0 %v5339
    %9113 = vmatprep.subr.bf16.mxu0 %v5356
    %9114 = vmatpush1.bf16.msra.mxu0 %v5355
    %9115 = vmatprep.subr.bf16.mxu0 %v5372
    %9116 = vmatpush1.bf16.msra.mxu0 %v5371
    %9117 = vmatprep.subr.bf16.mxu0 %v5388
    %9118 = vmatpush1.bf16.msra.mxu0 %v5387
    %9119 = vmatprep.subr.bf16.mxu0 %v5404
    %9120 = vmatpush1.bf16.msra.mxu0 %v5403
    %9121 = vmatprep.subr.bf16.mxu0 %v5420
    %9122 = vmatpush1.bf16.msra.mxu0 %v5419
    %9123 = vmatprep.subr.bf16.mxu0 %v5436
    %9124 = vmatpush1.bf16.msra.mxu0 %v5435
    %9125 = vmatprep.mubr.bf16.mxu0 %v8598
    %9126 = vmatmul.mubr.bf16.gmra.mrb[0].mxu0 %v8597
    %v9127 = vpop.f32.mrb[0].mxu0
    %v9128 = vadd.f32 0.0, %v9127
    %v9129 = vpop.f32.mrb[0].mxu0
    %v9130 = vadd.f32 0.0, %v9129
    %v9131 = vpop.f32.mrb[0].mxu0
    %v9132 = vpop.f32.mrb[0].mxu0
    %9133 = vdwg.mxu0
    %9134 = vmatprep.subr.bf16.mxu0 %v5452
    %9135 = vmatpush1.bf16.msra.mxu0 %v5451
    %9136 = vmatprep.subr.bf16.mxu0 %v5468
    %9137 = vmatpush1.bf16.msra.mxu0 %v5467
    %9138 = vmatprep.subr.bf16.mxu0 %v5484
    %9139 = vmatpush1.bf16.msra.mxu0 %v5483
    %9140 = vmatprep.subr.bf16.mxu0 %v5500
    %9141 = vmatpush1.bf16.msra.mxu0 %v5499
    %9142 = vmatprep.subr.bf16.mxu0 %v5516
    %9143 = vmatpush1.bf16.msra.mxu0 %v5515
    %9144 = vmatprep.subr.bf16.mxu0 %v5532
    %9145 = vmatpush1.bf16.msra.mxu0 %v5531
    %9146 = vmatprep.subr.bf16.mxu0 %v5548
    %9147 = vmatpush1.bf16.msra.mxu0 %v5547
    %9148 = vmatprep.subr.bf16.mxu0 %v5564
    %9149 = vmatpush1.bf16.msra.mxu0 %v5563
    %9150 = vmatprep.subr.bf16.mxu0 %v5580
    %9151 = vmatpush1.bf16.msra.mxu0 %v5579
    %9152 = vmatprep.subr.bf16.mxu0 %v5596
    %9153 = vmatpush1.bf16.msra.mxu0 %v5595
    %9154 = vmatprep.subr.bf16.mxu0 %v5612
    %9155 = vmatpush1.bf16.msra.mxu0 %v5611
    %9156 = vmatprep.subr.bf16.mxu0 %v5628
    %9157 = vmatpush1.bf16.msra.mxu0 %v5627
    %9158 = vmatprep.subr.bf16.mxu0 %v5644
    %9159 = vmatpush1.bf16.msra.mxu0 %v5643
    %9160 = vmatprep.subr.bf16.mxu0 %v5660
    %9161 = vmatpush1.bf16.msra.mxu0 %v5659
    %9162 = vmatprep.subr.bf16.mxu0 %v5676
    %9163 = vmatpush1.bf16.msra.mxu0 %v5675
    %9164 = vmatprep.subr.bf16.mxu0 %v5692
    %9165 = vmatpush1.bf16.msra.mxu0 %v5691
    %9166 = vmatprep.mubr.bf16.mxu0 %v8600
    %9167 = vmatmul.mubr.bf16.gmra.mrb[0].mxu0 %v8599
    %v9168 = vpop.f32.mrb[0].mxu0
    %v9169 = vadd.f32 %v9128, %v9168
    %v9170 = vpop.f32.mrb[0].mxu0
    %v9171 = vadd.f32 %v9130, %v9170
    %v9172 = vpop.f32.mrb[0].mxu0
    %v9173 = vpop.f32.mrb[0].mxu0
    %9174 = vdwg.mxu0
    %9175 = vmatprep.subr.bf16.mxu0 %v5198
    %9176 = vmatpush1.bf16.msra.mxu0 %v5197
    %9177 = vmatprep.subr.bf16.mxu0 %v5214
    %9178 = vmatpush1.bf16.msra.mxu0 %v5213
    %9179 = vmatprep.subr.bf16.mxu0 %v5230
    %9180 = vmatpush1.bf16.msra.mxu0 %v5229
    %9181 = vmatprep.subr.bf16.mxu0 %v5246
    %9182 = vmatpush1.bf16.msra.mxu0 %v5245
    %9183 = vmatprep.subr.bf16.mxu0 %v5262
    %9184 = vmatpush1.bf16.msra.mxu0 %v5261
    %9185 = vmatprep.subr.bf16.mxu0 %v5278
    %9186 = vmatpush1.bf16.msra.mxu0 %v5277
    %9187 = vmatprep.subr.bf16.mxu0 %v5294
    %9188 = vmatpush1.bf16.msra.mxu0 %v5293
    %9189 = vmatprep.subr.bf16.mxu0 %v5310
    %9190 = vmatpush1.bf16.msra.mxu0 %v5309
    %9191 = vmatprep.subr.bf16.mxu0 %v5326
    %9192 = vmatpush1.bf16.msra.mxu0 %v5325
    %9193 = vmatprep.subr.bf16.mxu0 %v5342
    %9194 = vmatpush1.bf16.msra.mxu0 %v5341
    %9195 = vmatprep.subr.bf16.mxu0 %v5358
    %9196 = vmatpush1.bf16.msra.mxu0 %v5357
    %9197 = vmatprep.subr.bf16.mxu0 %v5374
    %9198 = vmatpush1.bf16.msra.mxu0 %v5373
    %9199 = vmatprep.subr.bf16.mxu0 %v5390
    %9200 = vmatpush1.bf16.msra.mxu0 %v5389
    %9201 = vmatprep.subr.bf16.mxu0 %v5406
    %9202 = vmatpush1.bf16.msra.mxu0 %v5405
    %9203 = vmatprep.subr.bf16.mxu0 %v5422
    %9204 = vmatpush1.bf16.msra.mxu0 %v5421
    %9205 = vmatprep.subr.bf16.mxu0 %v5438
    %9206 = vmatpush1.bf16.msra.mxu0 %v5437
    %9207 = vmatprep.mubr.bf16.mxu0 %v8598
    %9208 = vmatmul.mubr.bf16.gmra.mrb[0].mxu0 %v8597
    %v9209 = vpop.f32.mrb[0].mxu0
    %v9210 = vadd.f32 0.0, %v9209
    %v9211 = vpop.f32.mrb[0].mxu0
    %v9212 = vadd.f32 0.0, %v9211
    %v9213 = vpop.f32.mrb[0].mxu0
    %v9214 = vpop.f32.mrb[0].mxu0
    %9215 = vdwg.mxu0
    %9216 = vmatprep.subr.bf16.mxu0 %v5454
    %9217 = vmatpush1.bf16.msra.mxu0 %v5453
    %9218 = vmatprep.subr.bf16.mxu0 %v5470
    %9219 = vmatpush1.bf16.msra.mxu0 %v5469
    %9220 = vmatprep.subr.bf16.mxu0 %v5486
    %9221 = vmatpush1.bf16.msra.mxu0 %v5485
    %9222 = vmatprep.subr.bf16.mxu0 %v5502
    %9223 = vmatpush1.bf16.msra.mxu0 %v5501
    %9224 = vmatprep.subr.bf16.mxu0 %v5518
    %9225 = vmatpush1.bf16.msra.mxu0 %v5517
    %9226 = vmatprep.subr.bf16.mxu0 %v5534
    %9227 = vmatpush1.bf16.msra.mxu0 %v5533
    %9228 = vmatprep.subr.bf16.mxu0 %v5550
    %9229 = vmatpush1.bf16.msra.mxu0 %v5549
    %9230 = vmatprep.subr.bf16.mxu0 %v5566
    %9231 = vmatpush1.bf16.msra.mxu0 %v5565
    %9232 = vmatprep.subr.bf16.mxu0 %v5582
    %9233 = vmatpush1.bf16.msra.mxu0 %v5581
    %9234 = vmatprep.subr.bf16.mxu0 %v5598
    %9235 = vmatpush1.bf16.msra.mxu0 %v5597
    %9236 = vmatprep.subr.bf16.mxu0 %v5614
    %9237 = vmatpush1.bf16.msra.mxu0 %v5613
    %9238 = vmatprep.subr.bf16.mxu0 %v5630
    %9239 = vmatpush1.bf16.msra.mxu0 %v5629
    %9240 = vmatprep.subr.bf16.mxu0 %v5646
    %9241 = vmatpush1.bf16.msra.mxu0 %v5645
    %9242 = vmatprep.subr.bf16.mxu0 %v5662
    %9243 = vmatpush1.bf16.msra.mxu0 %v5661
    %9244 = vmatprep.subr.bf16.mxu0 %v5678
    %9245 = vmatpush1.bf16.msra.mxu0 %v5677
    %9246 = vmatprep.subr.bf16.mxu0 %v5694
    %9247 = vmatpush1.bf16.msra.mxu0 %v5693
    %9248 = vmatprep.mubr.bf16.mxu0 %v8600
    %9249 = vmatmul.mubr.bf16.gmra.mrb[0].mxu0 %v8599
    %v9250 = vpop.f32.mrb[0].mxu0
    %v9251 = vadd.f32 %v9210, %v9250
    %v9252 = vpop.f32.mrb[0].mxu0
    %v9253 = vadd.f32 %v9212, %v9252
    %v9254 = vpop.f32.mrb[0].mxu0
    %v9255 = vpop.f32.mrb[0].mxu0
    %9256 = vdwg.mxu0
    %v9273 = vcombine.low %v8677, %v8679
    %v9274 = vcombine.low %v8759, %v8761
    %v9276 = vunpack.c.l.s4 1983009808
    %v9277 = vunpack.c.0.s8 %v9276
    %v9278 = vlaneseq
    %v9279 = vshrl.u32 %v9278, 7
    %v9280 = vsub.s32 %v9277, %v9279
    %v9281 = vrot.slane %v9273, %v9280
    %v9283 = vunpack.c.l.s4 1983009808
    %v9284 = vunpack.c.0.s8 %v9283
    %v9285 = vlaneseq
    %v9286 = vshrl.u32 %v9285, 7
    %v9287 = vsub.s32 %v9284, %v9286
    %v9288 = vrot.slane %v9274, %v9287
    %v9289 = vcombine.low %v9281, %v9288
    %v9290 = vcombine.low %v8841, %v8843
    %v9291 = vcombine.low %v8923, %v8925
    %v9293 = vunpack.c.l.s4 1983009808
    %v9294 = vunpack.c.0.s8 %v9293
    %v9295 = vlaneseq
    %v9296 = vshrl.u32 %v9295, 7
    %v9297 = vsub.s32 %v9294, %v9296
    %v9298 = vrot.slane %v9290, %v9297
    %v9300 = vunpack.c.l.s4 1983009808
    %v9301 = vunpack.c.0.s8 %v9300
    %v9302 = vlaneseq
    %v9303 = vshrl.u32 %v9302, 7
    %v9304 = vsub.s32 %v9301, %v9303
    %v9305 = vrot.slane %v9291, %v9304
    %v9306 = vcombine.low %v9298, %v9305
    %v9307 = vcombine.low %v9005, %v9007
    %v9308 = vcombine.low %v9087, %v9089
    %v9310 = vunpack.c.l.s4 1983009808
    %v9311 = vunpack.c.0.s8 %v9310
    %v9312 = vlaneseq
    %v9313 = vshrl.u32 %v9312, 7
    %v9314 = vsub.s32 %v9311, %v9313
    %v9315 = vrot.slane %v9307, %v9314
    %v9317 = vunpack.c.l.s4 1983009808
    %v9318 = vunpack.c.0.s8 %v9317
    %v9319 = vlaneseq
    %v9320 = vshrl.u32 %v9319, 7
    %v9321 = vsub.s32 %v9318, %v9320
    %v9322 = vrot.slane %v9308, %v9321
    %v9323 = vcombine.low %v9315, %v9322
    %v9324 = vcombine.low %v9169, %v9171
    %v9325 = vcombine.low %v9251, %v9253
    %v9327 = vunpack.c.l.s4 1983009808
    %v9328 = vunpack.c.0.s8 %v9327
    %v9329 = vlaneseq
    %v9330 = vshrl.u32 %v9329, 7
    %v9331 = vsub.s32 %v9328, %v9330
    %v9332 = vrot.slane %v9324, %v9331
    %v9334 = vunpack.c.l.s4 1983009808
    %v9335 = vunpack.c.0.s8 %v9334
    %v9336 = vlaneseq
    %v9337 = vshrl.u32 %v9336, 7
    %v9338 = vsub.s32 %v9335, %v9337
    %v9339 = vrot.slane %v9325, %v9338
    %v9340 = vcombine.low %v9332, %v9339
    %v9345 = vadd.f32 %v3010, %v9289
    %v9346 = vadd.f32 %v3046, %v9306
    %v9347 = vadd.f32 %v3082, %v9323
    %v9348 = vadd.f32 %v3118, %v9340
    %v9349 = vxor.u32 %v9345, 2147483648
    %v9350 = vmul.f32 %v9349, 1.442695
    %v9351 = vpow.pop %v9350
    %v9352 = vadd.f32 %v9351, 1.0
    %v9353 = vrcp.pop %v9352
    %v9354 = vmul.f32 1.0, %v9353
    %v9355 = vxor.u32 %v9346, 2147483648
    %v9356 = vmul.f32 %v9355, 1.442695
    %v9357 = vpow.pop %v9356
    %v9358 = vadd.f32 %v9357, 1.0
    %v9359 = vrcp.pop %v9358
    %v9360 = vmul.f32 1.0, %v9359
    %v9361 = vtanh.pop %v9347
    %v9362 = vxor.u32 %v9348, 2147483648
    %v9363 = vmul.f32 %v9362, 1.442695
    %v9364 = vpow.pop %v9363
    %v9365 = vadd.f32 %v9364, 1.0
    %v9366 = vrcp.pop %v9365
    %v9367 = vmul.f32 1.0, %v9366
    %v9368 = vmul.f32 %v9360, %v8572
    %v9369 = vmul.f32 %v9354, %v9361
    %v9370 = vadd.f32 %v9368, %v9369
    %v9371 = vtanh.pop %v9370
    %v9372 = vmul.f32 %v9367, %v9371
    %v9373 = vld [vmem:[#allocation13] sm:$0xf]
    %v9375 = vlaneseq
    %v9376 = vshrl.u32 %v9375, 7
    %v9377 = vsub.s32 0, %v9376
    %v9378 = vrot.slane %v9373, %v9377
    %v9379 = vlaneseq
    %v9380 = vshrl.u32 %v9379, 7
    %v9381 = vsub.s32 1, %v9380
    %v9382 = vrot.slane %v9373, %v9381
    %v9383 = vlaneseq
    %v9384 = vshrl.u32 %v9383, 7
    %v9385 = vsub.s32 2, %v9384
    %v9386 = vrot.slane %v9373, %v9385
    %v9387 = vlaneseq
    %v9388 = vshrl.u32 %v9387, 7
    %v9389 = vsub.s32 3, %v9388
    %v9390 = vrot.slane %v9373, %v9389
    %v9391 = vcombine.low %v9378, %v9382
    %v9392 = vcombine.low %v9386, %v9390
    %v9394 = vunpack.c.l.s4 1983009808
    %v9395 = vunpack.c.0.s8 %v9394
    %v9396 = vlaneseq
    %v9397 = vshrl.u32 %v9396, 7
    %v9398 = vsub.s32 %v9395, %v9397
    %v9399 = vrot.slane %v9391, %v9398
    %v9401 = vunpack.c.l.s4 1983009808
    %v9402 = vunpack.c.0.s8 %v9401
    %v9403 = vlaneseq
    %v9404 = vshrl.u32 %v9403, 7
    %v9405 = vsub.s32 %v9402, %v9404
    %v9406 = vrot.slane %v9392, %v9405
    %v9407 = vcombine.low %v9399, %v9406
    %v9409 = vmul.f32 %v9372, %v9407
    %v9411 = vcombine.high %v9409, %v9409
    %v9413 = vunpack.c.l.s4 1983009808
    %v9414 = vunpack.c.0.s8 %v9413
    %v9415 = vlaneseq
    %v9416 = vshrl.u32 %v9415, 7
    %v9417 = vsub.s32 %v9414, %v9416
    %v9418 = vrot.slane %v9409, %v9417
    %v9420 = vunpack.c.l.s4 1983009808
    %v9421 = vunpack.c.0.s8 %v9420
    %v9422 = vlaneseq
    %v9423 = vshrl.u32 %v9422, 7
    %v9424 = vsub.s32 %v9421, %v9423
    %v9425 = vrot.slane %v9411, %v9424
    %v9426 = vcombine.high %v9418, %v9418
    %v9427 = vcombine.high %v9425, %v9425
    %v9432 = vsel %vm269, %v9418, 0.0
    %v9433 = vsel %vm269, %v9426, 0.0
    %v9434 = vadd.f32 %v9432, %v9433
    %v9435 = vsel %vm269, %v9425, 0.0
    %v9436 = vadd.f32 %v9434, %v9435
    %v9437 = vsel %vm269, %v9427, 0.0
    %v9438 = vadd.f32 %v9436, %v9437
    %9439 = vadd.xlane.f32.xlu0 %v9438
    %v9440 = vpop.xlane.xlu0 %9439
    %v9441 = vld [vmem:[#allocation2] sm:$0x1]
    %v9443 = vlaneseq
    %v9444 = vshrl.u32 %v9443, 7
    %v9445 = vsub.s32 0, %v9444
    %v9446 = vrot.slane %v9441, %v9445
    %v9448 = vadd.f32 %v9440, %v9446
    %v9449 = vxor.u32 %v9448, 2147483648
    %v9450 = vmul.f32 %v9449, 1.442695
    %v9451 = vpow.pop %v9450
    %v9452 = vadd.f32 %v9451, 1.0
    %v9453 = vrcp.pop %v9452
    %v9454 = vmul.f32 1.0, %v9453
    %vm9455 = vcmask 1024
    %9456 = vst.msk [vmem:[%s9] sm:$0x3] %vm9455, %v9454
    // Predicated region
    $region66: #{forward.1} parent=1 // pred_check
      _
    $region67: #{forward.1} parent=1 // pred_check_branch
      %9458 = sbr.rel (0) target = $region69
    $region68: #{forward.1} parent=1 // pred_region
      _
    $region69: #{forward.1} parent=1 // pred_fallthru
      _
    // Predicated region
    $region70: #{forward.1} parent=1 // pred_check
      _
    $region71: #{forward.1} parent=1 // pred_check_branch
      %9460 = sbr.rel (0) target = $region73
    $region72: #{forward.1} parent=1 // pred_region
      _
    $region73: #{forward.1} parent=1 // pred_fallthru
      _
    %9461 = vsyncpa [#allocation4], 1
    %9462 = vsyncpa [#allocation6], 1
    %9463 = vsyncpa [#allocation9], 1
    %9464 = vsyncpa [#allocation12], 1

</llo_original>
